<compile_context>
chip_gen: v7x
topology: tpu7x:2x2x1
jax: 0.10.0
libtpu: 0.0.40
codegen_flags: <defaults>
</compile_context>

<pallas_src>
import numpy as np
import jax
import jax.numpy as jnp
from jax import lax
from jax.experimental import pallas as pl
from jax.experimental.pallas import tpu as pltpu

LEAKY_SLOPE = 0.01   # nn.LeakyReLU default negative_slope
BN_EPS = 1e-5        # nn.BatchNorm2d default eps
LANE = 128


def _round_up(x, m):
    return (x + m - 1) // m * m


def _bilinear_matrix(n_in: int, n_out: int) -> np.ndarray:
    """1-D interpolation matrix reproducing nn.Upsample(mode='bilinear',
    align_corners=False) along one axis: out = U @ in (separable in H/W)."""
    scale = n_in / n_out
    src = (np.arange(n_out, dtype=np.float64) + 0.5) * scale - 0.5
    src = np.maximum(src, 0.0)                       # PyTorch clamps negative coords
    i0 = np.minimum(np.floor(src).astype(np.int64), n_in - 1)
    i1 = np.minimum(i0 + 1, n_in - 1)
    lam = src - i0
    U = np.zeros((n_out, n_in), dtype=np.float32)
    U[np.arange(n_out), i0] += (1.0 - lam).astype(np.float32)
    U[np.arange(n_out), i1] += lam.astype(np.float32)
    return U


def _upsample_pad_matrix(n_in: int, n_out: int) -> np.ndarray:
    """(2x bilinear upsample) followed by F.pad(zero) to n_out, as one matrix.
    Handles the Up.forward diffY/diffX >= 0 branch; negative diff unsupported."""
    n_up = 2 * n_in
    diff = n_out - n_up
    assert diff >= 0, "x2 spatial size must be >= 2 * x1 spatial size"
    M = np.zeros((n_out, n_in), dtype=np.float32)
    M[diff // 2: diff // 2 + n_up, :] = _bilinear_matrix(n_in, n_up)
    return M


def _upsample_pad_conv_matrix(n_in: int, n_out: int) -> np.ndarray:
    """(2x bilinear upsample -> F.pad to n_out -> 1-px conv zero pad) as one
    (n_out + 2, n_in) matrix with zero rows at the conv halo."""
    M = np.zeros((n_out + 2, n_in), dtype=np.float32)
    M[1:n_out + 1, :] = _upsample_pad_matrix(n_in, n_out)
    return M


def _make_up_kernel(H, Wp, Np):
    """Build the kernel for a fixed padded geometry (Wp = W+2, Np >= (H+2)*Wp + 2)."""
    M1 = H * Wp   # conv-output rows in the flattened padded-row frame

    def conv3x3_bn_lrelu(src_ref, wk_ref, s_ref, b_ref):
        # 9 accumulating matmuls; every tap is a CONTIGUOUS static-offset slice of
        # the flattened (Np, C) padded scratch -- no strided patch copies.
        acc = jnp.dot(src_ref[0:M1, :], wk_ref[0],
                      preferred_element_type=jnp.float32)
        for t in range(1, 9):
            off = (t // 3) * Wp + (t % 3)
            acc = acc + jnp.dot(src_ref[off:off + M1, :], wk_ref[t],
                                preferred_element_type=jnp.float32)
        y = acc * s_ref[...] + b_ref[...]               # folded inference BN
        return jnp.where(y > 0, y, LEAKY_SLOPE * y)     # LeakyReLU

    def kernel(x1p_ref, x2pad_ref, u2_ref, mask_ref,
               wk1_ref, s1_ref, b1_ref, wk2_ref, s2_ref, b2_ref,
               out_ref, xpad_ref, midpad_ref):
        cmid = midpad_ref.shape[-1]

        # Fused bilinear-2x upsample + F.pad + conv zero-pad + channel concat:
        # one MXU matmul + one add, stored with a single dense full-slab store.
        up = jnp.dot(u2_ref[...], x1p_ref[0], preferred_element_type=jnp.float32)
        xpad_ref[...] = x2pad_ref[0] + up

        # Conv1 + BN + LeakyReLU; zero the wrap-around columns (they become the
        # left/right zero halo of the next conv's padded input).
        y1 = conv3x3_bn_lrelu(xpad_ref, wk1_ref, s1_ref, b1_ref) * mask_ref[...]

        # Only two contiguous row strips of the mid scratch need zeroing
        # (top halo row + (1,0), and the bottom halo / overrun rows).
        midpad_ref[0:Wp + 1, :] = jnp.zeros((Wp + 1, cmid), jnp.float32)
        midpad_ref[(H + 1) * Wp:Np, :] = jnp.zeros((Np - (H + 1) * Wp, cmid),
                                                   jnp.float32)
        midpad_ref[Wp + 1:Wp + 1 + M1, :] = y1

        # Conv2 + BN + LeakyReLU; garbage columns are sliced away in the wrapper.
        y2 = conv3x3_bn_lrelu(midpad_ref, wk2_ref, s2_ref, b2_ref)
        out_ref[...] = y2.reshape(1, M1, y2.shape[-1])   # dense lane/sublane store

    return kernel


def up_forward(x1_nchw, x2_nchw, params):
    """Up.forward(x1, x2): upsample x1 2x (+ zero-pad to x2 size), concat [x2, x1]
    on channels, then DoubleConv. Inputs/outputs use PyTorch NCHW."""
    N, C1, h_lo, w_lo = x1_nchw.shape
    N2, C2, H, W = x2_nchw.shape
    assert N == N2
    assert H >= 2 * h_lo and W >= 2 * w_lo, "crop branch (diff < 0) unsupported"
    Cin = C1 + C2

    Hp, Wp = H + 2, W + 2
    M1 = H * Wp
    Np = _round_up(Hp * Wp + 2, 8)            # tap slices read up to row Hp*Wp + 1
    K_pad = _round_up(h_lo * w_lo, LANE)      # lane-dense upsample contraction dim

    wt1, wt2 = params["wt1"], params["wt2"]   # torch layout (out, in, 3, 3)
    Cmid, Cout = wt1.shape[0], wt2.shape[0]
    assert wt1.shape[1] == Cin and wt2.shape[1] == Cmid
    Cin_p, Cmid_p, Cout_p = (_round_up(c, LANE) for c in (Cin, Cmid, Cout))

    # Conv weights -> (9, Cin_p, Cmid_p) / (9, Cmid_p, Cout_p), zero padded.
    wk1 = jnp.transpose(wt1, (2, 3, 1, 0)).reshape(9, Cin, Cmid)
    wk1 = jnp.pad(wk1, ((0, 0), (0, Cin_p - Cin), (0, Cmid_p - Cmid)))
    wk2 = jnp.transpose(wt2, (2, 3, 1, 0)).reshape(9, Cmid, Cout)
    wk2 = jnp.pad(wk2, ((0, 0), (0, Cmid_p - Cmid), (0, Cout_p - Cout)))
    s1 = jnp.pad(params["scale1"], (0, Cmid_p - Cmid)).reshape(1, Cmid_p)
    b1 = jnp.pad(params["shift1"], (0, Cmid_p - Cmid)).reshape(1, Cmid_p)
    s2 = jnp.pad(params["scale2"], (0, Cout_p - Cout)).reshape(1, Cout_p)
    b2 = jnp.pad(params["shift2"], (0, Cout_p - Cout)).reshape(1, Cout_p)

    # Skip x2: NHWC, spatially pre-padded by the 1-px conv halo, channels at lanes
    # [0:C2], flattened to the padded-row frame and padded to Np rows.
    x2p = jnp.transpose(x2_nchw, (0, 2, 3, 1))
    x2p = jnp.pad(x2p, ((0, 0), (1, 1), (1, 1), (0, Cin_p - C2)))
    x2p = x2p.reshape(N, Hp * Wp, Cin_p)
    x2p = jnp.pad(x2p, ((0, 0), (0, Np - Hp * Wp), (0, 0)))

    # Low-res x1: channels placed at lanes [C2:C2+C1]; rows padded to K_pad.
    x1p = jnp.transpose(x1_nchw, (0, 2, 3, 1)).reshape(N, h_lo * w_lo, C1)
    x1p = jnp.pad(x1p, ((0, 0), (0, K_pad - h_lo * w_lo), (C2, Cin_p - C2 - C1)))

    # Fused (upsample -> pad to (H,W) -> 1-px conv pad) operator over the padded
    # grid; zero rows at the halo and the Np/K_pad padding. Dense kron (tiny here).
    u2_np = np.zeros((Np, K_pad), np.float32)
    u2_np[:Hp * Wp, :h_lo * w_lo] = np.kron(_upsample_pad_conv_matrix(h_lo, H),
                                            _upsample_pad_conv_matrix(w_lo, W))
    u2 = jnp.asarray(u2_np)

    # Column mask zeroing the (Wp - W) wrap-around columns of a flattened conv slab.
    mask = jnp.asarray((np.arange(M1) % Wp < W).astype(np.float32).reshape(M1, 1))

    kernel = _make_up_kernel(H, Wp, Np)

    flops = 2 * N * (Np * K_pad * Cin_p
                     + 9 * M1 * Cin_p * Cmid_p
                     + 9 * M1 * Cmid_p * Cout_p)
    bytes_accessed = 4 * (x1p.size + x2p.size + u2.size + mask.size
                          + wk1.size + wk2.size + s1.size + b1.size
                          + s2.size + b2.size + N * M1 * Cout_p)

    out_p = pl.pallas_call(
        kernel,
        out_shape=jax.ShapeDtypeStruct((N, M1, Cout_p), jnp.float32),
        grid_spec=pltpu.PrefetchScalarGridSpec(
            num_scalar_prefetch=0,
            grid=(N,),
            in_specs=[
                pl.BlockSpec((1, K_pad, Cin_p), lambda n: (n, 0, 0)),
                pl.BlockSpec((1, Np, Cin_p), lambda n: (n, 0, 0)),
                pl.BlockSpec((Np, K_pad), lambda n: (0, 0)),
                pl.BlockSpec((M1, 1), lambda n: (0, 0)),
                pl.BlockSpec((9, Cin_p, Cmid_p), lambda n: (0, 0, 0)),
                pl.BlockSpec((1, Cmid_p), lambda n: (0, 0)),
                pl.BlockSpec((1, Cmid_p), lambda n: (0, 0)),
                pl.BlockSpec((9, Cmid_p, Cout_p), lambda n: (0, 0, 0)),
                pl.BlockSpec((1, Cout_p), lambda n: (0, 0)),
                pl.BlockSpec((1, Cout_p), lambda n: (0, 0)),
            ],
            out_specs=pl.BlockSpec((1, M1, Cout_p), lambda n: (n, 0, 0)),
            scratch_shapes=[
                pltpu.VMEM((Np, Cin_p), jnp.float32),    # padded conv1 input slab
                pltpu.VMEM((Np, Cmid_p), jnp.float32),   # padded conv2 input slab
            ],
        ),
        compiler_params=pltpu.CompilerParams(dimension_semantics=("parallel",)),
        cost_estimate=pl.CostEstimate(flops=flops, transcendentals=0,
                                      bytes_accessed=bytes_accessed),
    )(x1p, x2p, u2, mask, wk1, s1, b1, wk2, s2, b2)

    # Drop the wrap-around columns and the lane padding, back to PyTorch NCHW.
    out = out_p.reshape(N, H, Wp, Cout_p)[:, :, :W, :Cout]
    return jnp.transpose(out, (0, 3, 1, 2))


def init_params(key, in_ch, out_ch):
    """Deterministic synthetic parameters matching Up(in_ch, out_ch) shapes.
    BatchNorm is used in inference mode: (gamma, beta, running stats) are folded
    into a per-channel scale/shift."""
    ks = jax.random.split(key, 6)
    wt1 = jax.random.normal(ks[0], (out_ch, in_ch, 3, 3), jnp.float32) * (2.0 / (in_ch * 9)) ** 0.5
    wt2 = jax.random.normal(ks[1], (out_ch, out_ch, 3, 3), jnp.float32) * (2.0 / (out_ch * 9)) ** 0.5
    gamma1 = 1.0 + 0.1 * jax.random.normal(ks[2], (out_ch,), jnp.float32)
    beta1 = 0.1 * jax.random.normal(ks[3], (out_ch,), jnp.float32)
    mean1 = 0.05 * jnp.arange(out_ch, dtype=jnp.float32)
    var1 = 1.0 + 0.05 * jnp.arange(out_ch, dtype=jnp.float32)
    gamma2 = 1.0 + 0.1 * jax.random.normal(ks[4], (out_ch,), jnp.float32)
    beta2 = 0.1 * jax.random.normal(ks[5], (out_ch,), jnp.float32)
    mean2 = -0.05 * jnp.arange(out_ch, dtype=jnp.float32)
    var2 = 1.0 + 0.1 * jnp.arange(out_ch, dtype=jnp.float32)
    return dict(
        wt1=wt1, wt2=wt2,
        scale1=gamma1 / jnp.sqrt(var1 + BN_EPS),
        shift1=beta1 - mean1 * (gamma1 / jnp.sqrt(var1 + BN_EPS)),
        scale2=gamma2 / jnp.sqrt(var2 + BN_EPS),
        shift2=beta2 - mean2 * (gamma2 / jnp.sqrt(var2 + BN_EPS)),
    )


def up_forward_ref(x1_nchw, x2_nchw, params):
    """Pure-JAX reference (XLA conv) for numerical validation."""
    _, _, h_lo, w_lo = x1_nchw.shape
    _, _, H, W = x2_nchw.shape
    mh = jnp.asarray(_upsample_pad_matrix(h_lo, H))
    mw = jnp.asarray(_upsample_pad_matrix(w_lo, W))
    x1 = jnp.einsum('ai,ncij->ncaj', mh, x1_nchw)
    x1 = jnp.einsum('bj,ncaj->ncab', mw, x1)
    x = jnp.concatenate([x2_nchw, x1], axis=1)
    x = jnp.transpose(x, (0, 2, 3, 1))

    def conv_bn_lrelu(x, wt, scale, shift):
        w_hwio = jnp.transpose(wt, (2, 3, 1, 0))
        y = lax.conv_general_dilated(x, w_hwio, (1, 1), 'SAME',
                                     dimension_numbers=('NHWC', 'HWIO', 'NHWC'))
        y = y * scale.reshape(1, -1) + shift.reshape(1, -1)
        return jnp.where(y > 0, y, LEAKY_SLOPE * y)

    y = conv_bn_lrelu(x, params["wt1"], params["scale1"], params["shift1"])
    y = conv_bn_lrelu(y, params["wt2"], params["scale2"], params["shift2"])
    return jnp.transpose(y, (0, 3, 1, 2))


if __name__ == "__main__":
    key = jax.random.PRNGKey(0)
    kx1, kx2, kp = jax.random.split(key, 3)

    # Up(in_ch=8, out_ch=4): x1 is the low-res decoder feature, x2 the skip.
    N, C1, h_lo, w_lo = 2, 4, 8, 8
    C2, H, W = 4, 16, 16
    in_ch, out_ch = C1 + C2, 4

    x1 = jax.random.normal(kx1, (N, C1, h_lo, w_lo), jnp.float32)   # NCHW
    x2 = jax.random.normal(kx2, (N, C2, H, W), jnp.float32)         # NCHW
    params = init_params(kp, in_ch, out_ch)

    out = jax.jit(up_forward)(x1, x2, params)
    out = jax.block_until_ready(out)
    assert out.shape == (N, out_ch, H, W)

    ref = up_forward_ref(x1, x2, params)
    np.testing.assert_allclose(np.asarray(out), np.asarray(ref), rtol=1e-4, atol=1e-4)

    print("KERNEL_OK")
</pallas_src>

<mosaic_0001>
module attributes {stable_mosaic.version = 11 : i64} {
  func.func @kernel(%arg0: i32, %arg1: memref<1x128x128xf32, #tpu.memory_space<vmem>>, %arg2: memref<1x328x128xf32, #tpu.memory_space<vmem>>, %arg3: memref<328x128xf32, #tpu.memory_space<vmem>>, %arg4: memref<288x1xf32, #tpu.memory_space<vmem>>, %arg5: memref<9x128x128xf32, #tpu.memory_space<vmem>>, %arg6: memref<1x128xf32, #tpu.memory_space<vmem>>, %arg7: memref<1x128xf32, #tpu.memory_space<vmem>>, %arg8: memref<9x128x128xf32, #tpu.memory_space<vmem>>, %arg9: memref<1x128xf32, #tpu.memory_space<vmem>>, %arg10: memref<1x128xf32, #tpu.memory_space<vmem>>, %arg11: memref<1x288x128xf32, #tpu.memory_space<vmem>>, %arg12: memref<328x128xf32, #tpu.memory_space<vmem>>, %arg13: memref<328x128xf32, #tpu.memory_space<vmem>>) attributes {dimension_semantics = [#tpu.dimension_semantics<parallel>], iteration_bounds = array<i64: 2>, scalar_prefetch = 0 : i64, scratch_operands = 2 : i64, tpu.core_type = #tpu.core_type<tc>, window_params = [{transform_indices = @transform_0, window_bounds = array<i64: 1, 128, 128>}, {transform_indices = @transform_1, window_bounds = array<i64: 1, 328, 128>}, {pipeline_mode = #tpu.pipeline_mode<synchronous>, transform_indices = @transform_2, window_bounds = array<i64: 328, 128>}, {pipeline_mode = #tpu.pipeline_mode<synchronous>, transform_indices = @transform_3, window_bounds = array<i64: 288, 1>}, {pipeline_mode = #tpu.pipeline_mode<synchronous>, transform_indices = @transform_4, window_bounds = array<i64: 9, 128, 128>}, {pipeline_mode = #tpu.pipeline_mode<synchronous>, transform_indices = @transform_5, window_bounds = array<i64: 1, 128>}, {pipeline_mode = #tpu.pipeline_mode<synchronous>, transform_indices = @transform_6, window_bounds = array<i64: 1, 128>}, {pipeline_mode = #tpu.pipeline_mode<synchronous>, transform_indices = @transform_7, window_bounds = array<i64: 9, 128, 128>}, {pipeline_mode = #tpu.pipeline_mode<synchronous>, transform_indices = @transform_8, window_bounds = array<i64: 1, 128>}, {pipeline_mode = #tpu.pipeline_mode<synchronous>, transform_indices = @transform_9, window_bounds = array<i64: 1, 128>}, {transform_indices = @transform_10, window_bounds = array<i64: 1, 288, 128>}]} {
    %c0 = arith.constant 0 : index
    %c0_0 = arith.constant 0 : index
    %0 = vector.load %arg3[%c0, %c0_0] : memref<328x128xf32, #tpu.memory_space<vmem>>, vector<328x128xf32>
    %c0_1 = arith.constant 0 : index
    %c0_2 = arith.constant 0 : index
    %c0_3 = arith.constant 0 : index
    %1 = vector.load %arg1[%c0_1, %c0_2, %c0_3] : memref<1x128x128xf32, #tpu.memory_space<vmem>>, vector<1x128x128xf32>
    %2 = vector.shape_cast %1 : vector<1x128x128xf32> to vector<128x128xf32>
    %cst = arith.constant dense<0.000000e+00> : vector<328x128xf32>
    %3 = tpu.matmul %0, %2, %cst {dimension_numbers = #tpu.dot_dimension_numbers<[1], [0], [0], [1], [0, 0, 1, 1], [], []>} : vector<328x128xf32>, vector<128x128xf32>, vector<328x128xf32> -> vector<328x128xf32>
    %c0_4 = arith.constant 0 : index
    %c0_5 = arith.constant 0 : index
    %c0_6 = arith.constant 0 : index
    %4 = vector.load %arg2[%c0_4, %c0_5, %c0_6] : memref<1x328x128xf32, #tpu.memory_space<vmem>>, vector<1x328x128xf32>
    %5 = vector.shape_cast %4 : vector<1x328x128xf32> to vector<328x128xf32>
    %6 = arith.addf %5, %3 : vector<328x128xf32>
    %c0_7 = arith.constant 0 : index
    %c0_8 = arith.constant 0 : index
    %7 = vector.load %arg12[%c0_7, %c0_8] : memref<328x128xf32, #tpu.memory_space<vmem>>, vector<328x128xf32>
    tpu.vector_store %arg12[%c0_7, %c0_8], %6 {strides = array<i32>} : memref<328x128xf32, #tpu.memory_space<vmem>>, vector<328x128xf32>,
    %c0_9 = arith.constant 0 : index
    %c0_10 = arith.constant 0 : index
    %8 = vector.load %arg12[%c0_9, %c0_10] : memref<328x128xf32, #tpu.memory_space<vmem>>, vector<288x128xf32>
    %c0_11 = arith.constant 0 : index
    %c0_12 = arith.constant 0 : index
    %c0_13 = arith.constant 0 : index
    %9 = vector.load %arg5[%c0_11, %c0_12, %c0_13] : memref<9x128x128xf32, #tpu.memory_space<vmem>>, vector<1x128x128xf32>
    %10 = vector.shape_cast %9 : vector<1x128x128xf32> to vector<128x128xf32>
    %cst_14 = arith.constant dense<0.000000e+00> : vector<288x128xf32>
    %11 = tpu.matmul %8, %10, %cst_14 {dimension_numbers = #tpu.dot_dimension_numbers<[1], [0], [0], [1], [0, 0, 1, 1], [], []>} : vector<288x128xf32>, vector<128x128xf32>, vector<288x128xf32> -> vector<288x128xf32>
    %c1 = arith.constant 1 : index
    %c0_15 = arith.constant 0 : index
    %12 = vector.load %arg12[%c1, %c0_15] : memref<328x128xf32, #tpu.memory_space<vmem>>, vector<288x128xf32>
    %c1_16 = arith.constant 1 : index
    %c0_17 = arith.constant 0 : index
    %c0_18 = arith.constant 0 : index
    %13 = vector.load %arg5[%c1_16, %c0_17, %c0_18] : memref<9x128x128xf32, #tpu.memory_space<vmem>>, vector<1x128x128xf32>
    %14 = vector.shape_cast %13 : vector<1x128x128xf32> to vector<128x128xf32>
    %cst_19 = arith.constant dense<0.000000e+00> : vector<288x128xf32>
    %15 = tpu.matmul %12, %14, %cst_19 {dimension_numbers = #tpu.dot_dimension_numbers<[1], [0], [0], [1], [0, 0, 1, 1], [], []>} : vector<288x128xf32>, vector<128x128xf32>, vector<288x128xf32> -> vector<288x128xf32>
    %16 = arith.addf %11, %15 : vector<288x128xf32>
    %c2 = arith.constant 2 : index
    %c0_20 = arith.constant 0 : index
    %17 = vector.load %arg12[%c2, %c0_20] : memref<328x128xf32, #tpu.memory_space<vmem>>, vector<288x128xf32>
    %c2_21 = arith.constant 2 : index
    %c0_22 = arith.constant 0 : index
    %c0_23 = arith.constant 0 : index
    %18 = vector.load %arg5[%c2_21, %c0_22, %c0_23] : memref<9x128x128xf32, #tpu.memory_space<vmem>>, vector<1x128x128xf32>
    %19 = vector.shape_cast %18 : vector<1x128x128xf32> to vector<128x128xf32>
    %cst_24 = arith.constant dense<0.000000e+00> : vector<288x128xf32>
    %20 = tpu.matmul %17, %19, %cst_24 {dimension_numbers = #tpu.dot_dimension_numbers<[1], [0], [0], [1], [0, 0, 1, 1], [], []>} : vector<288x128xf32>, vector<128x128xf32>, vector<288x128xf32> -> vector<288x128xf32>
    %21 = arith.addf %16, %20 : vector<288x128xf32>
    %c18 = arith.constant 18 : index
    %c0_25 = arith.constant 0 : index
    %22 = vector.load %arg12[%c18, %c0_25] : memref<328x128xf32, #tpu.memory_space<vmem>>, vector<288x128xf32>
    %c3 = arith.constant 3 : index
    %c0_26 = arith.constant 0 : index
    %c0_27 = arith.constant 0 : index
    %23 = vector.load %arg5[%c3, %c0_26, %c0_27] : memref<9x128x128xf32, #tpu.memory_space<vmem>>, vector<1x128x128xf32>
    %24 = vector.shape_cast %23 : vector<1x128x128xf32> to vector<128x128xf32>
    %cst_28 = arith.constant dense<0.000000e+00> : vector<288x128xf32>
    %25 = tpu.matmul %22, %24, %cst_28 {dimension_numbers = #tpu.dot_dimension_numbers<[1], [0], [0], [1], [0, 0, 1, 1], [], []>} : vector<288x128xf32>, vector<128x128xf32>, vector<288x128xf32> -> vector<288x128xf32>
    %26 = arith.addf %21, %25 : vector<288x128xf32>
    %c19 = arith.constant 19 : index
    %c0_29 = arith.constant 0 : index
    %27 = vector.load %arg12[%c19, %c0_29] : memref<328x128xf32, #tpu.memory_space<vmem>>, vector<288x128xf32>
    %c4 = arith.constant 4 : index
    %c0_30 = arith.constant 0 : index
    %c0_31 = arith.constant 0 : index
    %28 = vector.load %arg5[%c4, %c0_30, %c0_31] : memref<9x128x128xf32, #tpu.memory_space<vmem>>, vector<1x128x128xf32>
    %29 = vector.shape_cast %28 : vector<1x128x128xf32> to vector<128x128xf32>
    %cst_32 = arith.constant dense<0.000000e+00> : vector<288x128xf32>
    %30 = tpu.matmul %27, %29, %cst_32 {dimension_numbers = #tpu.dot_dimension_numbers<[1], [0], [0], [1], [0, 0, 1, 1], [], []>} : vector<288x128xf32>, vector<128x128xf32>, vector<288x128xf32> -> vector<288x128xf32>
    %31 = arith.addf %26, %30 : vector<288x128xf32>
    %c20 = arith.constant 20 : index
    %c0_33 = arith.constant 0 : index
    %32 = vector.load %arg12[%c20, %c0_33] : memref<328x128xf32, #tpu.memory_space<vmem>>, vector<288x128xf32>
    %c5 = arith.constant 5 : index
    %c0_34 = arith.constant 0 : index
    %c0_35 = arith.constant 0 : index
    %33 = vector.load %arg5[%c5, %c0_34, %c0_35] : memref<9x128x128xf32, #tpu.memory_space<vmem>>, vector<1x128x128xf32>
    %34 = vector.shape_cast %33 : vector<1x128x128xf32> to vector<128x128xf32>
    %cst_36 = arith.constant dense<0.000000e+00> : vector<288x128xf32>
    %35 = tpu.matmul %32, %34, %cst_36 {dimension_numbers = #tpu.dot_dimension_numbers<[1], [0], [0], [1], [0, 0, 1, 1], [], []>} : vector<288x128xf32>, vector<128x128xf32>, vector<288x128xf32> -> vector<288x128xf32>
    %36 = arith.addf %31, %35 : vector<288x128xf32>
    %c36 = arith.constant 36 : index
    %c0_37 = arith.constant 0 : index
    %37 = vector.load %arg12[%c36, %c0_37] : memref<328x128xf32, #tpu.memory_space<vmem>>, vector<288x128xf32>
    %c6 = arith.constant 6 : index
    %c0_38 = arith.constant 0 : index
    %c0_39 = arith.constant 0 : index
    %38 = vector.load %arg5[%c6, %c0_38, %c0_39] : memref<9x128x128xf32, #tpu.memory_space<vmem>>, vector<1x128x128xf32>
    %39 = vector.shape_cast %38 : vector<1x128x128xf32> to vector<128x128xf32>
    %cst_40 = arith.constant dense<0.000000e+00> : vector<288x128xf32>
    %40 = tpu.matmul %37, %39, %cst_40 {dimension_numbers = #tpu.dot_dimension_numbers<[1], [0], [0], [1], [0, 0, 1, 1], [], []>} : vector<288x128xf32>, vector<128x128xf32>, vector<288x128xf32> -> vector<288x128xf32>
    %41 = arith.addf %36, %40 : vector<288x128xf32>
    %c37 = arith.constant 37 : index
    %c0_41 = arith.constant 0 : index
    %42 = vector.load %arg12[%c37, %c0_41] : memref<328x128xf32, #tpu.memory_space<vmem>>, vector<288x128xf32>
    %c7 = arith.constant 7 : index
    %c0_42 = arith.constant 0 : index
    %c0_43 = arith.constant 0 : index
    %43 = vector.load %arg5[%c7, %c0_42, %c0_43] : memref<9x128x128xf32, #tpu.memory_space<vmem>>, vector<1x128x128xf32>
    %44 = vector.shape_cast %43 : vector<1x128x128xf32> to vector<128x128xf32>
    %cst_44 = arith.constant dense<0.000000e+00> : vector<288x128xf32>
    %45 = tpu.matmul %42, %44, %cst_44 {dimension_numbers = #tpu.dot_dimension_numbers<[1], [0], [0], [1], [0, 0, 1, 1], [], []>} : vector<288x128xf32>, vector<128x128xf32>, vector<288x128xf32> -> vector<288x128xf32>
    %46 = arith.addf %41, %45 : vector<288x128xf32>
    %c38 = arith.constant 38 : index
    %c0_45 = arith.constant 0 : index
    %47 = vector.load %arg12[%c38, %c0_45] : memref<328x128xf32, #tpu.memory_space<vmem>>, vector<288x128xf32>
    %c8 = arith.constant 8 : index
    %c0_46 = arith.constant 0 : index
    %c0_47 = arith.constant 0 : index
    %48 = vector.load %arg5[%c8, %c0_46, %c0_47] : memref<9x128x128xf32, #tpu.memory_space<vmem>>, vector<1x128x128xf32>
    %49 = vector.shape_cast %48 : vector<1x128x128xf32> to vector<128x128xf32>
    %cst_48 = arith.constant dense<0.000000e+00> : vector<288x128xf32>
    %50 = tpu.matmul %47, %49, %cst_48 {dimension_numbers = #tpu.dot_dimension_numbers<[1], [0], [0], [1], [0, 0, 1, 1], [], []>} : vector<288x128xf32>, vector<128x128xf32>, vector<288x128xf32> -> vector<288x128xf32>
    %51 = arith.addf %46, %50 : vector<288x128xf32>
    %c0_49 = arith.constant 0 : index
    %c0_50 = arith.constant 0 : index
    %52 = vector.load %arg6[%c0_49, %c0_50] : memref<1x128xf32, #tpu.memory_space<vmem>>, vector<1x128xf32>
    %53 = vector.broadcast %52 : vector<1x128xf32> to vector<288x128xf32>
    %54 = arith.mulf %51, %53 : vector<288x128xf32>
    %c0_51 = arith.constant 0 : index
    %c0_52 = arith.constant 0 : index
    %55 = vector.load %arg7[%c0_51, %c0_52] : memref<1x128xf32, #tpu.memory_space<vmem>>, vector<1x128xf32>
    %56 = vector.broadcast %55 : vector<1x128xf32> to vector<288x128xf32>
    %57 = arith.addf %54, %56 : vector<288x128xf32>
    %cst_53 = arith.constant 0.000000e+00 : f32
    %58 = vector.broadcast %cst_53 : f32 to vector<288x128xf32>
    %59 = arith.cmpf ogt, %57, %58 : vector<288x128xf32>
    %cst_54 = arith.constant 0.00999999977 : f32
    %60 = vector.broadcast %cst_54 : f32 to vector<288x128xf32>
    %61 = arith.mulf %60, %57 : vector<288x128xf32>
    %62 = arith.select %59, %57, %61 : vector<288x128xi1>, vector<288x128xf32>
    %c0_55 = arith.constant 0 : index
    %c0_56 = arith.constant 0 : index
    %63 = vector.load %arg4[%c0_55, %c0_56] : memref<288x1xf32, #tpu.memory_space<vmem>>, vector<288x1xf32>
    %64 = vector.broadcast %63 : vector<288x1xf32> to vector<288x128xf32>
    %65 = arith.mulf %62, %64 : vector<288x128xf32>
    %cst_57 = arith.constant 0.000000e+00 : f32
    %66 = vector.broadcast %cst_57 : f32 to vector<19x128xf32>
    %c0_58 = arith.constant 0 : index
    %c0_59 = arith.constant 0 : index
    %67 = vector.load %arg13[%c0_58, %c0_59] : memref<328x128xf32, #tpu.memory_space<vmem>>, vector<19x128xf32>
    tpu.vector_store %arg13[%c0_58, %c0_59], %66 {strides = array<i32>} : memref<328x128xf32, #tpu.memory_space<vmem>>, vector<19x128xf32>,
    %cst_60 = arith.constant 0.000000e+00 : f32
    %68 = vector.broadcast %cst_60 : f32 to vector<22x128xf32>
    %c306 = arith.constant 306 : index
    %c0_61 = arith.constant 0 : index
    %69 = vector.load %arg13[%c306, %c0_61] : memref<328x128xf32, #tpu.memory_space<vmem>>, vector<22x128xf32>
    tpu.vector_store %arg13[%c306, %c0_61], %68 {strides = array<i32>} : memref<328x128xf32, #tpu.memory_space<vmem>>, vector<22x128xf32>,
    %c19_62 = arith.constant 19 : index
    %c0_63 = arith.constant 0 : index
    %70 = vector.load %arg13[%c19_62, %c0_63] : memref<328x128xf32, #tpu.memory_space<vmem>>, vector<288x128xf32>
    tpu.vector_store %arg13[%c19_62, %c0_63], %65 {strides = array<i32>} : memref<328x128xf32, #tpu.memory_space<vmem>>, vector<288x128xf32>,
    %c0_64 = arith.constant 0 : index
    %c0_65 = arith.constant 0 : index
    %71 = vector.load %arg13[%c0_64, %c0_65] : memref<328x128xf32, #tpu.memory_space<vmem>>, vector<288x128xf32>
    %c0_66 = arith.constant 0 : index
    %c0_67 = arith.constant 0 : index
    %c0_68 = arith.constant 0 : index
    %72 = vector.load %arg8[%c0_66, %c0_67, %c0_68] : memref<9x128x128xf32, #tpu.memory_space<vmem>>, vector<1x128x128xf32>
    %73 = vector.shape_cast %72 : vector<1x128x128xf32> to vector<128x128xf32>
    %cst_69 = arith.constant dense<0.000000e+00> : vector<288x128xf32>
    %74 = tpu.matmul %71, %73, %cst_69 {dimension_numbers = #tpu.dot_dimension_numbers<[1], [0], [0], [1], [0, 0, 1, 1], [], []>} : vector<288x128xf32>, vector<128x128xf32>, vector<288x128xf32> -> vector<288x128xf32>
    %c1_70 = arith.constant 1 : index
    %c0_71 = arith.constant 0 : index
    %75 = vector.load %arg13[%c1_70, %c0_71] : memref<328x128xf32, #tpu.memory_space<vmem>>, vector<288x128xf32>
    %c1_72 = arith.constant 1 : index
    %c0_73 = arith.constant 0 : index
    %c0_74 = arith.constant 0 : index
    %76 = vector.load %arg8[%c1_72, %c0_73, %c0_74] : memref<9x128x128xf32, #tpu.memory_space<vmem>>, vector<1x128x128xf32>
    %77 = vector.shape_cast %76 : vector<1x128x128xf32> to vector<128x128xf32>
    %cst_75 = arith.constant dense<0.000000e+00> : vector<288x128xf32>
    %78 = tpu.matmul %75, %77, %cst_75 {dimension_numbers = #tpu.dot_dimension_numbers<[1], [0], [0], [1], [0, 0, 1, 1], [], []>} : vector<288x128xf32>, vector<128x128xf32>, vector<288x128xf32> -> vector<288x128xf32>
    %79 = arith.addf %74, %78 : vector<288x128xf32>
    %c2_76 = arith.constant 2 : index
    %c0_77 = arith.constant 0 : index
    %80 = vector.load %arg13[%c2_76, %c0_77] : memref<328x128xf32, #tpu.memory_space<vmem>>, vector<288x128xf32>
    %c2_78 = arith.constant 2 : index
    %c0_79 = arith.constant 0 : index
    %c0_80 = arith.constant 0 : index
    %81 = vector.load %arg8[%c2_78, %c0_79, %c0_80] : memref<9x128x128xf32, #tpu.memory_space<vmem>>, vector<1x128x128xf32>
    %82 = vector.shape_cast %81 : vector<1x128x128xf32> to vector<128x128xf32>
    %cst_81 = arith.constant dense<0.000000e+00> : vector<288x128xf32>
    %83 = tpu.matmul %80, %82, %cst_81 {dimension_numbers = #tpu.dot_dimension_numbers<[1], [0], [0], [1], [0, 0, 1, 1], [], []>} : vector<288x128xf32>, vector<128x128xf32>, vector<288x128xf32> -> vector<288x128xf32>
    %84 = arith.addf %79, %83 : vector<288x128xf32>
    %c18_82 = arith.constant 18 : index
    %c0_83 = arith.constant 0 : index
    %85 = vector.load %arg13[%c18_82, %c0_83] : memref<328x128xf32, #tpu.memory_space<vmem>>, vector<288x128xf32>
    %c3_84 = arith.constant 3 : index
    %c0_85 = arith.constant 0 : index
    %c0_86 = arith.constant 0 : index
    %86 = vector.load %arg8[%c3_84, %c0_85, %c0_86] : memref<9x128x128xf32, #tpu.memory_space<vmem>>, vector<1x128x128xf32>
    %87 = vector.shape_cast %86 : vector<1x128x128xf32> to vector<128x128xf32>
    %cst_87 = arith.constant dense<0.000000e+00> : vector<288x128xf32>
    %88 = tpu.matmul %85, %87, %cst_87 {dimension_numbers = #tpu.dot_dimension_numbers<[1], [0], [0], [1], [0, 0, 1, 1], [], []>} : vector<288x128xf32>, vector<128x128xf32>, vector<288x128xf32> -> vector<288x128xf32>
    %89 = arith.addf %84, %88 : vector<288x128xf32>
    %c19_88 = arith.constant 19 : index
    %c0_89 = arith.constant 0 : index
    %90 = vector.load %arg13[%c19_88, %c0_89] : memref<328x128xf32, #tpu.memory_space<vmem>>, vector<288x128xf32>
    %c4_90 = arith.constant 4 : index
    %c0_91 = arith.constant 0 : index
    %c0_92 = arith.constant 0 : index
    %91 = vector.load %arg8[%c4_90, %c0_91, %c0_92] : memref<9x128x128xf32, #tpu.memory_space<vmem>>, vector<1x128x128xf32>
    %92 = vector.shape_cast %91 : vector<1x128x128xf32> to vector<128x128xf32>
    %cst_93 = arith.constant dense<0.000000e+00> : vector<288x128xf32>
    %93 = tpu.matmul %90, %92, %cst_93 {dimension_numbers = #tpu.dot_dimension_numbers<[1], [0], [0], [1], [0, 0, 1, 1], [], []>} : vector<288x128xf32>, vector<128x128xf32>, vector<288x128xf32> -> vector<288x128xf32>
    %94 = arith.addf %89, %93 : vector<288x128xf32>
    %c20_94 = arith.constant 20 : index
    %c0_95 = arith.constant 0 : index
    %95 = vector.load %arg13[%c20_94, %c0_95] : memref<328x128xf32, #tpu.memory_space<vmem>>, vector<288x128xf32>
    %c5_96 = arith.constant 5 : index
    %c0_97 = arith.constant 0 : index
    %c0_98 = arith.constant 0 : index
    %96 = vector.load %arg8[%c5_96, %c0_97, %c0_98] : memref<9x128x128xf32, #tpu.memory_space<vmem>>, vector<1x128x128xf32>
    %97 = vector.shape_cast %96 : vector<1x128x128xf32> to vector<128x128xf32>
    %cst_99 = arith.constant dense<0.000000e+00> : vector<288x128xf32>
    %98 = tpu.matmul %95, %97, %cst_99 {dimension_numbers = #tpu.dot_dimension_numbers<[1], [0], [0], [1], [0, 0, 1, 1], [], []>} : vector<288x128xf32>, vector<128x128xf32>, vector<288x128xf32> -> vector<288x128xf32>
    %99 = arith.addf %94, %98 : vector<288x128xf32>
    %c36_100 = arith.constant 36 : index
    %c0_101 = arith.constant 0 : index
    %100 = vector.load %arg13[%c36_100, %c0_101] : memref<328x128xf32, #tpu.memory_space<vmem>>, vector<288x128xf32>
    %c6_102 = arith.constant 6 : index
    %c0_103 = arith.constant 0 : index
    %c0_104 = arith.constant 0 : index
    %101 = vector.load %arg8[%c6_102, %c0_103, %c0_104] : memref<9x128x128xf32, #tpu.memory_space<vmem>>, vector<1x128x128xf32>
    %102 = vector.shape_cast %101 : vector<1x128x128xf32> to vector<128x128xf32>
    %cst_105 = arith.constant dense<0.000000e+00> : vector<288x128xf32>
    %103 = tpu.matmul %100, %102, %cst_105 {dimension_numbers = #tpu.dot_dimension_numbers<[1], [0], [0], [1], [0, 0, 1, 1], [], []>} : vector<288x128xf32>, vector<128x128xf32>, vector<288x128xf32> -> vector<288x128xf32>
    %104 = arith.addf %99, %103 : vector<288x128xf32>
    %c37_106 = arith.constant 37 : index
    %c0_107 = arith.constant 0 : index
    %105 = vector.load %arg13[%c37_106, %c0_107] : memref<328x128xf32, #tpu.memory_space<vmem>>, vector<288x128xf32>
    %c7_108 = arith.constant 7 : index
    %c0_109 = arith.constant 0 : index
    %c0_110 = arith.constant 0 : index
    %106 = vector.load %arg8[%c7_108, %c0_109, %c0_110] : memref<9x128x128xf32, #tpu.memory_space<vmem>>, vector<1x128x128xf32>
    %107 = vector.shape_cast %106 : vector<1x128x128xf32> to vector<128x128xf32>
    %cst_111 = arith.constant dense<0.000000e+00> : vector<288x128xf32>
    %108 = tpu.matmul %105, %107, %cst_111 {dimension_numbers = #tpu.dot_dimension_numbers<[1], [0], [0], [1], [0, 0, 1, 1], [], []>} : vector<288x128xf32>, vector<128x128xf32>, vector<288x128xf32> -> vector<288x128xf32>
    %109 = arith.addf %104, %108 : vector<288x128xf32>
    %c38_112 = arith.constant 38 : index
    %c0_113 = arith.constant 0 : index
    %110 = vector.load %arg13[%c38_112, %c0_113] : memref<328x128xf32, #tpu.memory_space<vmem>>, vector<288x128xf32>
    %c8_114 = arith.constant 8 : index
    %c0_115 = arith.constant 0 : index
    %c0_116 = arith.constant 0 : index
    %111 = vector.load %arg8[%c8_114, %c0_115, %c0_116] : memref<9x128x128xf32, #tpu.memory_space<vmem>>, vector<1x128x128xf32>
    %112 = vector.shape_cast %111 : vector<1x128x128xf32> to vector<128x128xf32>
    %cst_117 = arith.constant dense<0.000000e+00> : vector<288x128xf32>
    %113 = tpu.matmul %110, %112, %cst_117 {dimension_numbers = #tpu.dot_dimension_numbers<[1], [0], [0], [1], [0, 0, 1, 1], [], []>} : vector<288x128xf32>, vector<128x128xf32>, vector<288x128xf32> -> vector<288x128xf32>
    %114 = arith.addf %109, %113 : vector<288x128xf32>
    %c0_118 = arith.constant 0 : index
    %c0_119 = arith.constant 0 : index
    %115 = vector.load %arg9[%c0_118, %c0_119] : memref<1x128xf32, #tpu.memory_space<vmem>>, vector<1x128xf32>
    %116 = vector.broadcast %115 : vector<1x128xf32> to vector<288x128xf32>
    %117 = arith.mulf %114, %116 : vector<288x128xf32>
    %c0_120 = arith.constant 0 : index
    %c0_121 = arith.constant 0 : index
    %118 = vector.load %arg10[%c0_120, %c0_121] : memref<1x128xf32, #tpu.memory_space<vmem>>, vector<1x128xf32>
    %119 = vector.broadcast %118 : vector<1x128xf32> to vector<288x128xf32>
    %120 = arith.addf %117, %119 : vector<288x128xf32>
    %cst_122 = arith.constant 0.000000e+00 : f32
    %121 = vector.broadcast %cst_122 : f32 to vector<288x128xf32>
    %122 = arith.cmpf ogt, %120, %121 : vector<288x128xf32>
    %cst_123 = arith.constant 0.00999999977 : f32
    %123 = vector.broadcast %cst_123 : f32 to vector<288x128xf32>
    %124 = arith.mulf %123, %120 : vector<288x128xf32>
    %125 = arith.select %122, %120, %124 : vector<288x128xi1>, vector<288x128xf32>
    %126 = vector.shape_cast %125 : vector<288x128xf32> to vector<1x288x128xf32>
    %c0_124 = arith.constant 0 : index
    %c0_125 = arith.constant 0 : index
    %c0_126 = arith.constant 0 : index
    %127 = vector.load %arg11[%c0_124, %c0_125, %c0_126] : memref<1x288x128xf32, #tpu.memory_space<vmem>>, vector<1x288x128xf32>
    tpu.vector_store %arg11[%c0_124, %c0_125, %c0_126], %126 {strides = array<i32>} : memref<1x288x128xf32, #tpu.memory_space<vmem>>, vector<1x288x128xf32>,
    return
  }
  func.func @transform_0(%arg0: i32) -> (i32, i32, i32) {
    %c0_i32 = arith.constant 0 : i32
    %c0_i32_0 = arith.constant 0 : i32
    %c0_i32_1 = arith.constant 0 : i32
    return %arg0, %c0_i32, %c0_i32_0 : i32, i32, i32
  }
  func.func @transform_1(%arg0: i32) -> (i32, i32, i32) {
    %c0_i32 = arith.constant 0 : i32
    %c0_i32_0 = arith.constant 0 : i32
    %c0_i32_1 = arith.constant 0 : i32
    return %arg0, %c0_i32, %c0_i32_0 : i32, i32, i32
  }
  func.func @transform_2(%arg0: i32) -> (i32, i32) {
    %c0_i32 = arith.constant 0 : i32
    %c0_i32_0 = arith.constant 0 : i32
    %c0_i32_1 = arith.constant 0 : i32
    return %c0_i32, %c0_i32_0 : i32, i32
  }
  func.func @transform_3(%arg0: i32) -> (i32, i32) {
    %c0_i32 = arith.constant 0 : i32
    %c0_i32_0 = arith.constant 0 : i32
    %c0_i32_1 = arith.constant 0 : i32
    return %c0_i32, %c0_i32_0 : i32, i32
  }
  func.func @transform_4(%arg0: i32) -> (i32, i32, i32) {
    %c0_i32 = arith.constant 0 : i32
    %c0_i32_0 = arith.constant 0 : i32
    %c0_i32_1 = arith.constant 0 : i32
    %c0_i32_2 = arith.constant 0 : i32
    return %c0_i32, %c0_i32_0, %c0_i32_1 : i32, i32, i32
  }
  func.func @transform_5(%arg0: i32) -> (i32, i32) {
    %c0_i32 = arith.constant 0 : i32
    %c0_i32_0 = arith.constant 0 : i32
    %c0_i32_1 = arith.constant 0 : i32
    return %c0_i32, %c0_i32_0 : i32, i32
  }
  func.func @transform_6(%arg0: i32) -> (i32, i32) {
    %c0_i32 = arith.constant 0 : i32
    %c0_i32_0 = arith.constant 0 : i32
    %c0_i32_1 = arith.constant 0 : i32
    return %c0_i32, %c0_i32_0 : i32, i32
  }
  func.func @transform_7(%arg0: i32) -> (i32, i32, i32) {
    %c0_i32 = arith.constant 0 : i32
    %c0_i32_0 = arith.constant 0 : i32
    %c0_i32_1 = arith.constant 0 : i32
    %c0_i32_2 = arith.constant 0 : i32
    return %c0_i32, %c0_i32_0, %c0_i32_1 : i32, i32, i32
  }
  func.func @transform_8(%arg0: i32) -> (i32, i32) {
    %c0_i32 = arith.constant 0 : i32
    %c0_i32_0 = arith.constant 0 : i32
    %c0_i32_1 = arith.constant 0 : i32
    return %c0_i32, %c0_i32_0 : i32, i32
  }
  func.func @transform_9(%arg0: i32) -> (i32, i32) {
    %c0_i32 = arith.constant 0 : i32
    %c0_i32_0 = arith.constant 0 : i32
    %c0_i32_1 = arith.constant 0 : i32
    return %c0_i32, %c0_i32_0 : i32, i32
  }
  func.func @transform_10(%arg0: i32) -> (i32, i32, i32) {
    %c0_i32 = arith.constant 0 : i32
    %c0_i32_0 = arith.constant 0 : i32
    %c0_i32_1 = arith.constant 0 : i32
    return %arg0, %c0_i32, %c0_i32_0 : i32, i32, i32
  }
}

</mosaic_0001>

<llo_original>
// kernel: up_forward.1
$region0: #{up_forward.1}
  #allocation0 [shape = 'u32[]', space=smem, size = 0x4, offset = 0x4, fixed_abs, tag = 'smem constant byte address 0x4 - core index']
  #allocation1 [shape = 'u32[144,128]{1,0:T(1,128)}', space=vmem, size = 0x12000, scoped, tag = 'internal scratch']
  #allocation2 [shape = 'f32[328,128]{1,0:T(8,128)}', space=vmem, size = 0x29000, scoped, tag = 'scratch operand']
  #allocation3 [shape = 'f32[328,128]{1,0:T(8,128)}', space=vmem, size = 0x29000, scoped, tag = 'scratch operand']
  %s0 = inlined_call_operand.vmem [shape: f32[2,128,128], index: 0, kind: input, shape index: {}]
  %s1 = inlined_call_operand.vmem [shape: f32[2,328,128], index: 1, kind: input, shape index: {}]
  %s2 = inlined_call_operand.vmem [shape: f32[328,128], index: 2, kind: input, shape index: {}]
  %s3 = inlined_call_operand.vmem [shape: f32[288,1], index: 3, kind: input, shape index: {}]
  %s4 = inlined_call_operand.vmem [shape: f32[9,128,128], index: 4, kind: input, shape index: {}]
  %s5 = inlined_call_operand.vmem [shape: f32[1,128], index: 5, kind: input, shape index: {}]
  %s6 = inlined_call_operand.vmem [shape: f32[1,128], index: 6, kind: input, shape index: {}]
  %s7 = inlined_call_operand.vmem [shape: f32[9,128,128], index: 7, kind: input, shape index: {}]
  %s8 = inlined_call_operand.vmem [shape: f32[1,128], index: 8, kind: input, shape index: {}]
  %s9 = inlined_call_operand.vmem [shape: f32[1,128], index: 9, kind: input, shape index: {}]
  %s10 = inlined_call_operand.vmem [shape: f32[2,288,128], index: 10, kind: output, shape index: {}]
  %s11 = sld [smem:[#allocation0]]
  $region73: #{up_forward.1} parent=0
    _
  %s13 = ssub.s32 1, %s11
  %s14 = scalar_select 0, %s13, %s11
  loop: start=0, step=1, limit=4
  $region2: #{up_forward.1} parent=0 // loop_pre_header
    _
  $region3: #{up_forward.1} parent=0 // loop_header
    %s16 = sphi 0, %s20
    %p17 = scmp.ge.s32.totalorder %s16, 4
    %s26 = sphi 0, %s28
    %s29 = sphi 0, %s26
    %s30 = sphi 0, %s29
    %s46 = sphi 0, %s30
    %s52 = sphi 0, %s54
    %s55 = sphi 0, %s52
    %s56 = sphi 0, %s55
    %s72 = sphi 0, %s56
    %s76 = sphi 0, %s76
    %s78 = sphi 0, %s76
    %s79 = sphi 0, %s78
    %s93 = sphi 0, %s79
    %s97 = sphi 0, %s97
    %s99 = sphi 0, %s97
    %s100 = sphi 0, %s99
    %s114 = sphi 0, %s100
    %s118 = sphi 0, %s118
    %s120 = sphi 0, %s118
    %s121 = sphi 0, %s120
    %s135 = sphi 0, %s121
    %s139 = sphi 0, %s139
    %s141 = sphi 0, %s139
    %s142 = sphi 0, %s141
    %s156 = sphi 0, %s142
    %s160 = sphi 0, %s160
    %s162 = sphi 0, %s160
    %s163 = sphi 0, %s162
    %s177 = sphi 0, %s163
    %s181 = sphi 0, %s181
    %s183 = sphi 0, %s181
    %s184 = sphi 0, %s183
    %s198 = sphi 0, %s184
    %s202 = sphi 0, %s202
    %s204 = sphi 0, %s202
    %s205 = sphi 0, %s204
    %s219 = sphi 0, %s205
    %s223 = sphi 0, %s223
    %s225 = sphi 0, %s223
    %s226 = sphi 0, %s225
    %s240 = sphi 0, %s226
    %s246 = sphi 0, %s248
    %s249 = sphi 0, %s246
    %s250 = sphi 0, %s249
    %s266 = sphi 0, %s250
  $region4: #{up_forward.1} parent=0 // loop_header_branch
    %19 = sbr.rel (%p17) target = $region8
  $region5: #{up_forward.1} parent=0 // loop_body
    %s21 = ssub.s32 %s16, 1
    %s22 = ssub.s32 %s16, 2
    %s23 = sadd.s32 %s16, 1
    %s24 = ssub.s32 %s16, %s23
    %p25 = scmp.eq.s32.totalorder %s24, 0
    %s27 = sadd.s32 %s26, 1
    %s28 = scalar_select %p25, %s26, %s27
    %p31 = pneg %p25
    %p32 = scmp.eq.s32.totalorder %s16, 1
    %p33 = por %p31, %p32
    %p34 = scmp.ne.s32.totalorder %s26, %s29
    %p35 = scmp.eq.s32.totalorder %s16, 0
    %p36 = por %p34, %p35
    %p37 = scmp.ne.s32.totalorder %s26, %s29
    %p38 = scmp.eq.s32.totalorder %s21, 1
    %p39 = por %p37, %p38
    %p40 = scmp.ne.s32.totalorder %s29, %s30
    %p41 = scmp.eq.s32.totalorder %s21, 0
    %p42 = por %p40, %p41
    %p43 = scmp.ne.s32.totalorder %s29, %s30
    %p44 = scmp.eq.s32.totalorder %s22, 1
    %p45 = por %p43, %p44
    %p47 = scmp.ne.s32.totalorder %s30, %s46
    %p48 = scmp.eq.s32.totalorder %s22, 0
    %p49 = por %p47, %p48
    %s50 = ssub.s32 %s16, %s23
    %p51 = scmp.eq.s32.totalorder %s50, 0
    %s53 = sadd.s32 %s52, 1
    %s54 = scalar_select %p51, %s52, %s53
    %p57 = pneg %p51
    %p58 = scmp.eq.s32.totalorder %s16, 1
    %p59 = por %p57, %p58
    %p60 = scmp.ne.s32.totalorder %s52, %s55
    %p61 = scmp.eq.s32.totalorder %s16, 0
    %p62 = por %p60, %p61
    %p63 = scmp.ne.s32.totalorder %s52, %s55
    %p64 = scmp.eq.s32.totalorder %s21, 1
    %p65 = por %p63, %p64
    %p66 = scmp.ne.s32.totalorder %s55, %s56
    %p67 = scmp.eq.s32.totalorder %s21, 0
    %p68 = por %p66, %p67
    %p69 = scmp.ne.s32.totalorder %s55, %s56
    %p70 = scmp.eq.s32.totalorder %s22, 1
    %p71 = por %p69, %p70
    %p73 = scmp.ne.s32.totalorder %s56, %s72
    %p74 = scmp.eq.s32.totalorder %s22, 0
    %p75 = por %p73, %p74
    %s77 = sadd.s32 %s76, 1
    %p80 = scmp.eq.s32.totalorder %s16, 1
    %p81 = scmp.ne.s32.totalorder %s76, %s78
    %p82 = scmp.eq.s32.totalorder %s16, 0
    %p83 = por %p81, %p82
    %p84 = scmp.ne.s32.totalorder %s76, %s78
    %p85 = scmp.eq.s32.totalorder %s21, 1
    %p86 = por %p84, %p85
    %p87 = scmp.ne.s32.totalorder %s78, %s79
    %p88 = scmp.eq.s32.totalorder %s21, 0
    %p89 = por %p87, %p88
    %p90 = scmp.ne.s32.totalorder %s78, %s79
    %p91 = scmp.eq.s32.totalorder %s22, 1
    %p92 = por %p90, %p91
    %p94 = scmp.ne.s32.totalorder %s79, %s93
    %p95 = scmp.eq.s32.totalorder %s22, 0
    %p96 = por %p94, %p95
    %s98 = sadd.s32 %s97, 1
    %p101 = scmp.eq.s32.totalorder %s16, 1
    %p102 = scmp.ne.s32.totalorder %s97, %s99
    %p103 = scmp.eq.s32.totalorder %s16, 0
    %p104 = por %p102, %p103
    %p105 = scmp.ne.s32.totalorder %s97, %s99
    %p106 = scmp.eq.s32.totalorder %s21, 1
    %p107 = por %p105, %p106
    %p108 = scmp.ne.s32.totalorder %s99, %s100
    %p109 = scmp.eq.s32.totalorder %s21, 0
    %p110 = por %p108, %p109
    %p111 = scmp.ne.s32.totalorder %s99, %s100
    %p112 = scmp.eq.s32.totalorder %s22, 1
    %p113 = por %p111, %p112
    %p115 = scmp.ne.s32.totalorder %s100, %s114
    %p116 = scmp.eq.s32.totalorder %s22, 0
    %p117 = por %p115, %p116
    %s119 = sadd.s32 %s118, 1
    %p122 = scmp.eq.s32.totalorder %s16, 1
    %p123 = scmp.ne.s32.totalorder %s118, %s120
    %p124 = scmp.eq.s32.totalorder %s16, 0
    %p125 = por %p123, %p124
    %p126 = scmp.ne.s32.totalorder %s118, %s120
    %p127 = scmp.eq.s32.totalorder %s21, 1
    %p128 = por %p126, %p127
    %p129 = scmp.ne.s32.totalorder %s120, %s121
    %p130 = scmp.eq.s32.totalorder %s21, 0
    %p131 = por %p129, %p130
    %p132 = scmp.ne.s32.totalorder %s120, %s121
    %p133 = scmp.eq.s32.totalorder %s22, 1
    %p134 = por %p132, %p133
    %p136 = scmp.ne.s32.totalorder %s121, %s135
    %p137 = scmp.eq.s32.totalorder %s22, 0
    %p138 = por %p136, %p137
    %s140 = sadd.s32 %s139, 1
    %p143 = scmp.eq.s32.totalorder %s16, 1
    %p144 = scmp.ne.s32.totalorder %s139, %s141
    %p145 = scmp.eq.s32.totalorder %s16, 0
    %p146 = por %p144, %p145
    %p147 = scmp.ne.s32.totalorder %s139, %s141
    %p148 = scmp.eq.s32.totalorder %s21, 1
    %p149 = por %p147, %p148
    %p150 = scmp.ne.s32.totalorder %s141, %s142
    %p151 = scmp.eq.s32.totalorder %s21, 0
    %p152 = por %p150, %p151
    %p153 = scmp.ne.s32.totalorder %s141, %s142
    %p154 = scmp.eq.s32.totalorder %s22, 1
    %p155 = por %p153, %p154
    %p157 = scmp.ne.s32.totalorder %s142, %s156
    %p158 = scmp.eq.s32.totalorder %s22, 0
    %p159 = por %p157, %p158
    %s161 = sadd.s32 %s160, 1
    %p164 = scmp.eq.s32.totalorder %s16, 1
    %p165 = scmp.ne.s32.totalorder %s160, %s162
    %p166 = scmp.eq.s32.totalorder %s16, 0
    %p167 = por %p165, %p166
    %p168 = scmp.ne.s32.totalorder %s160, %s162
    %p169 = scmp.eq.s32.totalorder %s21, 1
    %p170 = por %p168, %p169
    %p171 = scmp.ne.s32.totalorder %s162, %s163
    %p172 = scmp.eq.s32.totalorder %s21, 0
    %p173 = por %p171, %p172
    %p174 = scmp.ne.s32.totalorder %s162, %s163
    %p175 = scmp.eq.s32.totalorder %s22, 1
    %p176 = por %p174, %p175
    %p178 = scmp.ne.s32.totalorder %s163, %s177
    %p179 = scmp.eq.s32.totalorder %s22, 0
    %p180 = por %p178, %p179
    %s182 = sadd.s32 %s181, 1
    %p185 = scmp.eq.s32.totalorder %s16, 1
    %p186 = scmp.ne.s32.totalorder %s181, %s183
    %p187 = scmp.eq.s32.totalorder %s16, 0
    %p188 = por %p186, %p187
    %p189 = scmp.ne.s32.totalorder %s181, %s183
    %p190 = scmp.eq.s32.totalorder %s21, 1
    %p191 = por %p189, %p190
    %p192 = scmp.ne.s32.totalorder %s183, %s184
    %p193 = scmp.eq.s32.totalorder %s21, 0
    %p194 = por %p192, %p193
    %p195 = scmp.ne.s32.totalorder %s183, %s184
    %p196 = scmp.eq.s32.totalorder %s22, 1
    %p197 = por %p195, %p196
    %p199 = scmp.ne.s32.totalorder %s184, %s198
    %p200 = scmp.eq.s32.totalorder %s22, 0
    %p201 = por %p199, %p200
    %s203 = sadd.s32 %s202, 1
    %p206 = scmp.eq.s32.totalorder %s16, 1
    %p207 = scmp.ne.s32.totalorder %s202, %s204
    %p208 = scmp.eq.s32.totalorder %s16, 0
    %p209 = por %p207, %p208
    %p210 = scmp.ne.s32.totalorder %s202, %s204
    %p211 = scmp.eq.s32.totalorder %s21, 1
    %p212 = por %p210, %p211
    %p213 = scmp.ne.s32.totalorder %s204, %s205
    %p214 = scmp.eq.s32.totalorder %s21, 0
    %p215 = por %p213, %p214
    %p216 = scmp.ne.s32.totalorder %s204, %s205
    %p217 = scmp.eq.s32.totalorder %s22, 1
    %p218 = por %p216, %p217
    %p220 = scmp.ne.s32.totalorder %s205, %s219
    %p221 = scmp.eq.s32.totalorder %s22, 0
    %p222 = por %p220, %p221
    %s224 = sadd.s32 %s223, 1
    %p227 = scmp.eq.s32.totalorder %s16, 1
    %p228 = scmp.ne.s32.totalorder %s223, %s225
    %p229 = scmp.eq.s32.totalorder %s16, 0
    %p230 = por %p228, %p229
    %p231 = scmp.ne.s32.totalorder %s223, %s225
    %p232 = scmp.eq.s32.totalorder %s21, 1
    %p233 = por %p231, %p232
    %p234 = scmp.ne.s32.totalorder %s225, %s226
    %p235 = scmp.eq.s32.totalorder %s21, 0
    %p236 = por %p234, %p235
    %p237 = scmp.ne.s32.totalorder %s225, %s226
    %p238 = scmp.eq.s32.totalorder %s22, 1
    %p239 = por %p237, %p238
    %p241 = scmp.ne.s32.totalorder %s226, %s240
    %p242 = scmp.eq.s32.totalorder %s22, 0
    %p243 = por %p241, %p242
    %s244 = ssub.s32 %s16, %s23
    %p245 = scmp.eq.s32.totalorder %s244, 0
    %s247 = sadd.s32 %s246, 1
    %s248 = scalar_select %p245, %s246, %s247
    %p251 = pneg %p245
    %p252 = scmp.eq.s32.totalorder %s16, 1
    %p253 = por %p251, %p252
    %p254 = scmp.ne.s32.totalorder %s246, %s249
    %p255 = scmp.eq.s32.totalorder %s16, 0
    %p256 = por %p254, %p255
    %p257 = scmp.ne.s32.totalorder %s246, %s249
    %p258 = scmp.eq.s32.totalorder %s21, 1
    %p259 = por %p257, %p258
    %p260 = scmp.ne.s32.totalorder %s249, %s250
    %p261 = scmp.eq.s32.totalorder %s21, 0
    %p262 = por %p260, %p261
    %p263 = scmp.ne.s32.totalorder %s249, %s250
    %p264 = scmp.eq.s32.totalorder %s22, 1
    %p265 = por %p263, %p264
    %p267 = scmp.ne.s32.totalorder %s250, %s266
    %p268 = scmp.eq.s32.totalorder %s22, 0
    %p269 = por %p267, %p268
    %p270 = scmp.le.s32.totalorder 1, %s16
    %p271 = scmp.lt.s32.totalorder %s16, 3
    %p272 = pnand %p270, %p271
    %p273 = pneg %p272
    // Predicated region
    $region9: #{up_forward.1} parent=5 // pred_check
      _
    $region10: #{up_forward.1} parent=5 // pred_check_branch
      %275 = sbr.rel (%p272) target = $region12
    $region11: #{up_forward.1} parent=5 // pred_region
      %s276 = ssub.s32 %s16, 1
      // Predicated region
      $region13: #{up_forward.1} parent=11 // pred_check
        %p277 = pneg %p89
      $region14: #{up_forward.1} parent=11 // pred_check_branch
        %279 = sbr.rel (%p277) target = $region16
      $region15: #{up_forward.1} parent=11 // pred_region
        _
      $region16: #{up_forward.1} parent=11 // pred_fallthru
        _
      // Predicated region
      $region17: #{up_forward.1} parent=11 // pred_check
        %p280 = pneg %p110
      $region18: #{up_forward.1} parent=11 // pred_check_branch
        %282 = sbr.rel (%p280) target = $region20
      $region19: #{up_forward.1} parent=11 // pred_region
        _
      $region20: #{up_forward.1} parent=11 // pred_fallthru
        _
      // Predicated region
      $region21: #{up_forward.1} parent=11 // pred_check
        %p283 = pneg %p131
      $region22: #{up_forward.1} parent=11 // pred_check_branch
        %285 = sbr.rel (%p283) target = $region24
      $region23: #{up_forward.1} parent=11 // pred_region
        _
      $region24: #{up_forward.1} parent=11 // pred_fallthru
        _
      // Predicated region
      $region25: #{up_forward.1} parent=11 // pred_check
        %p286 = pneg %p152
      $region26: #{up_forward.1} parent=11 // pred_check_branch
        %288 = sbr.rel (%p286) target = $region28
      $region27: #{up_forward.1} parent=11 // pred_region
        _
      $region28: #{up_forward.1} parent=11 // pred_fallthru
        _
      // Predicated region
      $region29: #{up_forward.1} parent=11 // pred_check
        %p289 = pneg %p173
      $region30: #{up_forward.1} parent=11 // pred_check_branch
        %291 = sbr.rel (%p289) target = $region32
      $region31: #{up_forward.1} parent=11 // pred_region
        _
      $region32: #{up_forward.1} parent=11 // pred_fallthru
        _
      // Predicated region
      $region33: #{up_forward.1} parent=11 // pred_check
        %p292 = pneg %p194
      $region34: #{up_forward.1} parent=11 // pred_check_branch
        %294 = sbr.rel (%p292) target = $region36
      $region35: #{up_forward.1} parent=11 // pred_region
        _
      $region36: #{up_forward.1} parent=11 // pred_fallthru
        _
      // Predicated region
      $region37: #{up_forward.1} parent=11 // pred_check
        %p295 = pneg %p215
      $region38: #{up_forward.1} parent=11 // pred_check_branch
        %297 = sbr.rel (%p295) target = $region40
      $region39: #{up_forward.1} parent=11 // pred_region
        _
      $region40: #{up_forward.1} parent=11 // pred_fallthru
        _
      // Predicated region
      $region41: #{up_forward.1} parent=11 // pred_check
        %p298 = pneg %p236
      $region42: #{up_forward.1} parent=11 // pred_check_branch
        %300 = sbr.rel (%p298) target = $region44
      $region43: #{up_forward.1} parent=11 // pred_region
        _
      $region44: #{up_forward.1} parent=11 // pred_fallthru
        _
    $region12: #{up_forward.1} parent=5 // pred_fallthru
      _
    %p301 = scmp.lt.s32.totalorder %s16, 2
    // Predicated region
    $region45: #{up_forward.1} parent=5 // pred_check
      %p302 = pneg %p301
    $region46: #{up_forward.1} parent=5 // pred_check_branch
      %304 = sbr.rel (%p302) target = $region48
    $region47: #{up_forward.1} parent=5 // pred_region
      // Predicated region
      $region49: #{up_forward.1} parent=47 // pred_check
        %p305 = pneg %p36
      $region50: #{up_forward.1} parent=47 // pred_check_branch
        %307 = sbr.rel (%p305) target = $region52
      $region51: #{up_forward.1} parent=47 // pred_region
        %p308 = scmp.lt.s32.totalorder %s16, 1
        %s309 = scalar_select %p308, %s16, 1
        %s310 = smul.addr %s309, 16
        %s311 = smul.addr %s310, 8
        %s312 = scalar_lea.vmem %s0, %s311
      $region52: #{up_forward.1} parent=47 // pred_fallthru
        _
      // Predicated region
      $region53: #{up_forward.1} parent=47 // pred_check
        %p313 = pneg %p62
      $region54: #{up_forward.1} parent=47 // pred_check_branch
        %315 = sbr.rel (%p313) target = $region56
      $region55: #{up_forward.1} parent=47 // pred_region
        %p316 = scmp.lt.s32.totalorder %s16, 1
        %s317 = scalar_select %p316, %s16, 1
        %s318 = smul.addr %s317, 41
        %s319 = smul.addr %s318, 8
        %s320 = scalar_lea.vmem %s1, %s319
      $region56: #{up_forward.1} parent=47 // pred_fallthru
        _
    $region48: #{up_forward.1} parent=5 // pred_fallthru
      _
    %p321 = scmp.le.s32.totalorder 1, %s16
    %p322 = scmp.lt.s32.totalorder %s16, 3
    %p323 = pnand %p321, %p322
    %p324 = pneg %p323
    // Predicated region
    $region57: #{up_forward.1} parent=5 // pred_check
      _
    $region58: #{up_forward.1} parent=5 // pred_check_branch
      %326 = sbr.rel (%p323) target = $region60
    $region59: #{up_forward.1} parent=5 // pred_region
      %s327 = ssub.s32 %s16, 1
      %p328 = scmp.lt.s32.totalorder %s21, 1
      %s329 = scalar_select %p328, %s21, 1
      %s330 = smul.addr %s329, 16
      %s331 = smul.addr %s330, 8
      %s332 = scalar_lea.vmem %s0, %s331
      %p333 = pneg %p42
      %p334 = pneg %p39
      %p335 = scmp.lt.s32.totalorder %s21, 1
      %s336 = scalar_select %p335, %s21, 1
      %s337 = smul.addr %s336, 41
      %s338 = smul.addr %s337, 8
      %s339 = scalar_lea.vmem %s1, %s338
      %p340 = pneg %p68
      %p341 = pneg %p65
      %p342 = pneg %p89
      %p343 = pneg %p86
      %p344 = pneg %p110
      %p345 = pneg %p107
      %p346 = pneg %p131
      %p347 = pneg %p128
      %p348 = pneg %p152
      %p349 = pneg %p149
      %p350 = pneg %p173
      %p351 = pneg %p170
      %p352 = pneg %p194
      %p353 = pneg %p191
      %p354 = pneg %p215
      %p355 = pneg %p212
      %p356 = pneg %p236
      %p357 = pneg %p233
      %p358 = pneg %p262
      %p359 = pneg %p259
      %p360 = scmp.lt.s32.totalorder %s21, 1
      %s361 = scalar_select %p360, %s21, 1
      %s362 = smul.addr %s361, 36
      %s363 = smul.addr %s362, 8
      %s364 = scalar_lea.vmem %s10, %s363
      %p365 = scmp.lt.s32.totalorder %s21, 1
      %s366 = scalar_select %p365, %s21, 1
      %s367 = smul.addr %s366, 16
      %s368 = smul.addr %s367, 8
      %s369 = scalar_lea.vmem %s0, %s368
      %p370 = scmp.lt.s32.totalorder %s21, 1
      %s371 = scalar_select %p370, %s21, 1
      %s372 = smul.addr %s371, 41
      %s373 = smul.addr %s372, 8
      %s374 = scalar_lea.vmem %s1, %s373
      %p375 = scmp.lt.s32.totalorder %s21, 1
      %s376 = scalar_select %p375, %s21, 1
      %s377 = smul.addr %s376, 36
      %s378 = smul.addr %s377, 8
      %s379 = scalar_lea.vmem %s10, %s378
      %v380 = vld [vmem:[%s2] sm:$0xff]
      %v381 = vld [vmem:[%s2 + $0x8] sm:$0xff]
      %v382 = vld [vmem:[%s2 + $0x10] sm:$0xff]
      %v383 = vld [vmem:[%s2 + $0x18] sm:$0xff]
      %v384 = vld [vmem:[%s2 + $0x20] sm:$0xff]
      %v385 = vld [vmem:[%s2 + $0x28] sm:$0xff]
      %v386 = vld [vmem:[%s2 + $0x30] sm:$0xff]
      %v387 = vld [vmem:[%s2 + $0x38] sm:$0xff]
      %v388 = vld [vmem:[%s2 + $0x40] sm:$0xff]
      %v389 = vld [vmem:[%s2 + $0x48] sm:$0xff]
      %v390 = vld [vmem:[%s2 + $0x50] sm:$0xff]
      %v391 = vld [vmem:[%s2 + $0x58] sm:$0xff]
      %v392 = vld [vmem:[%s2 + $0x60] sm:$0xff]
      %v393 = vld [vmem:[%s2 + $0x68] sm:$0xff]
      %v394 = vld [vmem:[%s2 + $0x70] sm:$0xff]
      %v395 = vld [vmem:[%s2 + $0x78] sm:$0xff]
      %v396 = vld [vmem:[%s2 + $0x80] sm:$0xff]
      %v397 = vld [vmem:[%s2 + $0x88] sm:$0xff]
      %v398 = vld [vmem:[%s2 + $0x90] sm:$0xff]
      %v399 = vld [vmem:[%s2 + $0x98] sm:$0xff]
      %v400 = vld [vmem:[%s2 + $0xa0] sm:$0xff]
      %v401 = vld [vmem:[%s2 + $0xa8] sm:$0xff]
      %v402 = vld [vmem:[%s2 + $0xb0] sm:$0xff]
      %v403 = vld [vmem:[%s2 + $0xb8] sm:$0xff]
      %v404 = vld [vmem:[%s2 + $0xc0] sm:$0xff]
      %v405 = vld [vmem:[%s2 + $0xc8] sm:$0xff]
      %v406 = vld [vmem:[%s2 + $0xd0] sm:$0xff]
      %v407 = vld [vmem:[%s2 + $0xd8] sm:$0xff]
      %v408 = vld [vmem:[%s2 + $0xe0] sm:$0xff]
      %v409 = vld [vmem:[%s2 + $0xe8] sm:$0xff]
      %v410 = vld [vmem:[%s2 + $0xf0] sm:$0xff]
      %v411 = vld [vmem:[%s2 + $0xf8] sm:$0xff]
      %v412 = vld [vmem:[%s2 + $0x100] sm:$0xff]
      %v413 = vld [vmem:[%s2 + $0x108] sm:$0xff]
      %v414 = vld [vmem:[%s2 + $0x110] sm:$0xff]
      %v415 = vld [vmem:[%s2 + $0x118] sm:$0xff]
      %v416 = vld [vmem:[%s2 + $0x120] sm:$0xff]
      %v417 = vld [vmem:[%s2 + $0x128] sm:$0xff]
      %v418 = vld [vmem:[%s2 + $0x130] sm:$0xff]
      %v419 = vld [vmem:[%s2 + $0x138] sm:$0xff]
      %v420 = vld [vmem:[%s2 + $0x140] sm:$0xff]
      %v421 = vld [vmem:[%s369] sm:$0xff]
      %v422 = vld [vmem:[%s369 + $0x8] sm:$0xff]
      %v423 = vld [vmem:[%s369 + $0x10] sm:$0xff]
      %v424 = vld [vmem:[%s369 + $0x18] sm:$0xff]
      %v425 = vld [vmem:[%s369 + $0x20] sm:$0xff]
      %v426 = vld [vmem:[%s369 + $0x28] sm:$0xff]
      %v427 = vld [vmem:[%s369 + $0x30] sm:$0xff]
      %v428 = vld [vmem:[%s369 + $0x38] sm:$0xff]
      %v429 = vld [vmem:[%s369 + $0x40] sm:$0xff]
      %v430 = vld [vmem:[%s369 + $0x48] sm:$0xff]
      %v431 = vld [vmem:[%s369 + $0x50] sm:$0xff]
      %v432 = vld [vmem:[%s369 + $0x58] sm:$0xff]
      %v433 = vld [vmem:[%s369 + $0x60] sm:$0xff]
      %v434 = vld [vmem:[%s369 + $0x68] sm:$0xff]
      %v435 = vld [vmem:[%s369 + $0x70] sm:$0xff]
      %v436 = vld [vmem:[%s369 + $0x78] sm:$0xff]
      %437 = vmatprep.subr.mxu0 0.0
      %438 = vmatpush1.msra.mxu0 %v421
      %439 = vmatprep.subr.mxu0 0.0
      %440 = vmatpush1.msra.mxu0 %v422
      %441 = vmatprep.subr.mxu0 0.0
      %442 = vmatpush1.msra.mxu0 %v423
      %443 = vmatprep.subr.mxu0 0.0
      %444 = vmatpush1.msra.mxu0 %v424
      %445 = vmatprep.subr.mxu0 0.0
      %446 = vmatpush1.msra.mxu0 %v425
      %447 = vmatprep.subr.mxu0 0.0
      %448 = vmatpush1.msra.mxu0 %v426
      %449 = vmatprep.subr.mxu0 0.0
      %450 = vmatpush1.msra.mxu0 %v427
      %451 = vmatprep.subr.mxu0 0.0
      %452 = vmatpush1.msra.mxu0 %v428
      %453 = vmatprep.subr.mxu0 0.0
      %454 = vmatpush1.msra.mxu0 %v429
      %455 = vmatprep.subr.mxu0 0.0
      %456 = vmatpush1.msra.mxu0 %v430
      %457 = vmatprep.subr.mxu0 0.0
      %458 = vmatpush1.msra.mxu0 %v431
      %459 = vmatprep.subr.mxu0 0.0
      %460 = vmatpush1.msra.mxu0 %v432
      %461 = vmatprep.subr.mxu0 0.0
      %462 = vmatpush1.msra.mxu0 %v433
      %463 = vmatprep.subr.mxu0 0.0
      %464 = vmatpush1.msra.mxu0 %v434
      %465 = vmatprep.subr.mxu0 0.0
      %466 = vmatpush1.msra.mxu0 %v435
      %467 = vmatprep.subr.mxu0 0.0
      %468 = vmatpush1.msra.mxu0 %v436
      %469 = vmatprep.subr.mxu0 0.0
      %470 = vmatpush1.msra.mxu0 0.0
      %471 = vmatprep.subr.mxu0 0.0
      %472 = vmatpush1.msra.mxu0 0.0
      %473 = vmatprep.subr.mxu0 0.0
      %474 = vmatpush1.msra.mxu0 0.0
      %475 = vmatprep.subr.mxu0 0.0
      %476 = vmatpush1.msra.mxu0 0.0
      %477 = vmatprep.subr.mxu0 0.0
      %478 = vmatpush1.msra.mxu0 0.0
      %479 = vmatprep.subr.mxu0 0.0
      %480 = vmatpush1.msra.mxu0 0.0
      %481 = vmatprep.subr.mxu0 0.0
      %482 = vmatpush1.msra.mxu0 0.0
      %483 = vmatprep.subr.mxu0 0.0
      %484 = vmatpush1.msra.mxu0 0.0
      %485 = vmatprep.subr.mxu0 0.0
      %486 = vmatpush1.msra.mxu0 0.0
      %487 = vmatprep.subr.mxu0 0.0
      %488 = vmatpush1.msra.mxu0 0.0
      %489 = vmatprep.subr.mxu0 0.0
      %490 = vmatpush1.msra.mxu0 0.0
      %491 = vmatprep.subr.mxu0 0.0
      %492 = vmatpush1.msra.mxu0 0.0
      %493 = vmatprep.subr.mxu0 0.0
      %494 = vmatpush1.msra.mxu0 0.0
      %495 = vmatprep.subr.mxu0 0.0
      %496 = vmatpush1.msra.mxu0 0.0
      %497 = vmatprep.subr.mxu0 0.0
      %498 = vmatpush1.msra.mxu0 0.0
      %499 = vmatprep.subr.mxu0 0.0
      %500 = vmatpush1.msra.mxu0 0.0
      %501 = vmatprep.mubr.f32.mxu0 0.0
      %502 = vmatmul.mubr.f32.gmra.mrb[0].mxu0 %v380
      %v503 = vpop.f32.mrb[0].mxu0
      %v504 = vadd.f32 0.0, %v503
      %v505 = vpop.f32.mrb[0].mxu0
      %506 = vmatprep.mubr.f32.mxu0 0.0
      %507 = vmatmul.mubr.f32.gmra.mrb[0].mxu0 %v381
      %v508 = vpop.f32.mrb[0].mxu0
      %v509 = vadd.f32 0.0, %v508
      %v510 = vpop.f32.mrb[0].mxu0
      %511 = vmatprep.mubr.f32.mxu0 0.0
      %512 = vmatmul.mubr.f32.gmra.mrb[0].mxu0 %v382
      %v513 = vpop.f32.mrb[0].mxu0
      %v514 = vadd.f32 0.0, %v513
      %v515 = vpop.f32.mrb[0].mxu0
      %516 = vmatprep.mubr.f32.mxu0 0.0
      %517 = vmatmul.mubr.f32.gmra.mrb[0].mxu0 %v383
      %v518 = vpop.f32.mrb[0].mxu0
      %v519 = vadd.f32 0.0, %v518
      %v520 = vpop.f32.mrb[0].mxu0
      %521 = vmatprep.mubr.f32.mxu0 0.0
      %522 = vmatmul.mubr.f32.gmra.mrb[0].mxu0 %v384
      %v523 = vpop.f32.mrb[0].mxu0
      %v524 = vadd.f32 0.0, %v523
      %v525 = vpop.f32.mrb[0].mxu0
      %526 = vmatprep.mubr.f32.mxu0 0.0
      %527 = vmatmul.mubr.f32.gmra.mrb[0].mxu0 %v385
      %v528 = vpop.f32.mrb[0].mxu0
      %v529 = vadd.f32 0.0, %v528
      %v530 = vpop.f32.mrb[0].mxu0
      %531 = vmatprep.mubr.f32.mxu0 0.0
      %532 = vmatmul.mubr.f32.gmra.mrb[0].mxu0 %v386
      %v533 = vpop.f32.mrb[0].mxu0
      %v534 = vadd.f32 0.0, %v533
      %v535 = vpop.f32.mrb[0].mxu0
      %536 = vmatprep.mubr.f32.mxu0 0.0
      %537 = vmatmul.mubr.f32.gmra.mrb[0].mxu0 %v387
      %v538 = vpop.f32.mrb[0].mxu0
      %v539 = vadd.f32 0.0, %v538
      %v540 = vpop.f32.mrb[0].mxu0
      %541 = vmatprep.mubr.f32.mxu0 0.0
      %542 = vmatmul.mubr.f32.gmra.mrb[0].mxu0 %v388
      %v543 = vpop.f32.mrb[0].mxu0
      %v544 = vadd.f32 0.0, %v543
      %v545 = vpop.f32.mrb[0].mxu0
      %546 = vmatprep.mubr.f32.mxu0 0.0
      %547 = vmatmul.mubr.f32.gmra.mrb[0].mxu0 %v389
      %v548 = vpop.f32.mrb[0].mxu0
      %v549 = vadd.f32 0.0, %v548
      %v550 = vpop.f32.mrb[0].mxu0
      %551 = vmatprep.mubr.f32.mxu0 0.0
      %552 = vmatmul.mubr.f32.gmra.mrb[0].mxu0 %v390
      %v553 = vpop.f32.mrb[0].mxu0
      %v554 = vadd.f32 0.0, %v553
      %v555 = vpop.f32.mrb[0].mxu0
      %556 = vmatprep.mubr.f32.mxu0 0.0
      %557 = vmatmul.mubr.f32.gmra.mrb[0].mxu0 %v391
      %v558 = vpop.f32.mrb[0].mxu0
      %v559 = vadd.f32 0.0, %v558
      %v560 = vpop.f32.mrb[0].mxu0
      %561 = vmatprep.mubr.f32.mxu0 0.0
      %562 = vmatmul.mubr.f32.gmra.mrb[0].mxu0 %v392
      %v563 = vpop.f32.mrb[0].mxu0
      %v564 = vadd.f32 0.0, %v563
      %v565 = vpop.f32.mrb[0].mxu0
      %566 = vmatprep.mubr.f32.mxu0 0.0
      %567 = vmatmul.mubr.f32.gmra.mrb[0].mxu0 %v393
      %v568 = vpop.f32.mrb[0].mxu0
      %v569 = vadd.f32 0.0, %v568
      %v570 = vpop.f32.mrb[0].mxu0
      %571 = vmatprep.mubr.f32.mxu0 0.0
      %572 = vmatmul.mubr.f32.gmra.mrb[0].mxu0 %v394
      %v573 = vpop.f32.mrb[0].mxu0
      %v574 = vadd.f32 0.0, %v573
      %v575 = vpop.f32.mrb[0].mxu0
      %576 = vmatprep.mubr.f32.mxu0 0.0
      %577 = vmatmul.mubr.f32.gmra.mrb[0].mxu0 %v395
      %v578 = vpop.f32.mrb[0].mxu0
      %v579 = vadd.f32 0.0, %v578
      %v580 = vpop.f32.mrb[0].mxu0
      %581 = vmatprep.mubr.f32.mxu0 0.0
      %582 = vmatmul.mubr.f32.gmra.mrb[0].mxu0 %v396
      %v583 = vpop.f32.mrb[0].mxu0
      %v584 = vadd.f32 0.0, %v583
      %v585 = vpop.f32.mrb[0].mxu0
      %586 = vmatprep.mubr.f32.mxu0 0.0
      %587 = vmatmul.mubr.f32.gmra.mrb[0].mxu0 %v397
      %v588 = vpop.f32.mrb[0].mxu0
      %v589 = vadd.f32 0.0, %v588
      %v590 = vpop.f32.mrb[0].mxu0
      %591 = vmatprep.mubr.f32.mxu0 0.0
      %592 = vmatmul.mubr.f32.gmra.mrb[0].mxu0 %v398
      %v593 = vpop.f32.mrb[0].mxu0
      %v594 = vadd.f32 0.0, %v593
      %v595 = vpop.f32.mrb[0].mxu0
      %596 = vmatprep.mubr.f32.mxu0 0.0
      %597 = vmatmul.mubr.f32.gmra.mrb[0].mxu0 %v399
      %v598 = vpop.f32.mrb[0].mxu0
      %v599 = vadd.f32 0.0, %v598
      %v600 = vpop.f32.mrb[0].mxu0
      %601 = vmatprep.mubr.f32.mxu0 0.0
      %602 = vmatmul.mubr.f32.gmra.mrb[0].mxu0 %v400
      %v603 = vpop.f32.mrb[0].mxu0
      %v604 = vadd.f32 0.0, %v603
      %v605 = vpop.f32.mrb[0].mxu0
      %606 = vmatprep.mubr.f32.mxu0 0.0
      %607 = vmatmul.mubr.f32.gmra.mrb[0].mxu0 %v401
      %v608 = vpop.f32.mrb[0].mxu0
      %v609 = vadd.f32 0.0, %v608
      %v610 = vpop.f32.mrb[0].mxu0
      %611 = vmatprep.mubr.f32.mxu0 0.0
      %612 = vmatmul.mubr.f32.gmra.mrb[0].mxu0 %v402
      %v613 = vpop.f32.mrb[0].mxu0
      %v614 = vadd.f32 0.0, %v613
      %v615 = vpop.f32.mrb[0].mxu0
      %616 = vmatprep.mubr.f32.mxu0 0.0
      %617 = vmatmul.mubr.f32.gmra.mrb[0].mxu0 %v403
      %v618 = vpop.f32.mrb[0].mxu0
      %v619 = vadd.f32 0.0, %v618
      %v620 = vpop.f32.mrb[0].mxu0
      %621 = vmatprep.mubr.f32.mxu0 0.0
      %622 = vmatmul.mubr.f32.gmra.mrb[0].mxu0 %v404
      %v623 = vpop.f32.mrb[0].mxu0
      %v624 = vadd.f32 0.0, %v623
      %v625 = vpop.f32.mrb[0].mxu0
      %626 = vmatprep.mubr.f32.mxu0 0.0
      %627 = vmatmul.mubr.f32.gmra.mrb[0].mxu0 %v405
      %v628 = vpop.f32.mrb[0].mxu0
      %v629 = vadd.f32 0.0, %v628
      %v630 = vpop.f32.mrb[0].mxu0
      %631 = vmatprep.mubr.f32.mxu0 0.0
      %632 = vmatmul.mubr.f32.gmra.mrb[0].mxu0 %v406
      %v633 = vpop.f32.mrb[0].mxu0
      %v634 = vadd.f32 0.0, %v633
      %v635 = vpop.f32.mrb[0].mxu0
      %636 = vmatprep.mubr.f32.mxu0 0.0
      %637 = vmatmul.mubr.f32.gmra.mrb[0].mxu0 %v407
      %v638 = vpop.f32.mrb[0].mxu0
      %v639 = vadd.f32 0.0, %v638
      %v640 = vpop.f32.mrb[0].mxu0
      %641 = vmatprep.mubr.f32.mxu0 0.0
      %642 = vmatmul.mubr.f32.gmra.mrb[0].mxu0 %v408
      %v643 = vpop.f32.mrb[0].mxu0
      %v644 = vadd.f32 0.0, %v643
      %v645 = vpop.f32.mrb[0].mxu0
      %646 = vmatprep.mubr.f32.mxu0 0.0
      %647 = vmatmul.mubr.f32.gmra.mrb[0].mxu0 %v409
      %v648 = vpop.f32.mrb[0].mxu0
      %v649 = vadd.f32 0.0, %v648
      %v650 = vpop.f32.mrb[0].mxu0
      %651 = vmatprep.mubr.f32.mxu0 0.0
      %652 = vmatmul.mubr.f32.gmra.mrb[0].mxu0 %v410
      %v653 = vpop.f32.mrb[0].mxu0
      %v654 = vadd.f32 0.0, %v653
      %v655 = vpop.f32.mrb[0].mxu0
      %656 = vmatprep.mubr.f32.mxu0 0.0
      %657 = vmatmul.mubr.f32.gmra.mrb[0].mxu0 %v411
      %v658 = vpop.f32.mrb[0].mxu0
      %v659 = vadd.f32 0.0, %v658
      %v660 = vpop.f32.mrb[0].mxu0
      %661 = vmatprep.mubr.f32.mxu0 0.0
      %662 = vmatmul.mubr.f32.gmra.mrb[0].mxu0 %v412
      %v663 = vpop.f32.mrb[0].mxu0
      %v664 = vadd.f32 0.0, %v663
      %v665 = vpop.f32.mrb[0].mxu0
      %666 = vmatprep.mubr.f32.mxu0 0.0
      %667 = vmatmul.mubr.f32.gmra.mrb[0].mxu0 %v413
      %v668 = vpop.f32.mrb[0].mxu0
      %v669 = vadd.f32 0.0, %v668
      %v670 = vpop.f32.mrb[0].mxu0
      %671 = vmatprep.mubr.f32.mxu0 0.0
      %672 = vmatmul.mubr.f32.gmra.mrb[0].mxu0 %v414
      %v673 = vpop.f32.mrb[0].mxu0
      %v674 = vadd.f32 0.0, %v673
      %v675 = vpop.f32.mrb[0].mxu0
      %676 = vmatprep.mubr.f32.mxu0 0.0
      %677 = vmatmul.mubr.f32.gmra.mrb[0].mxu0 %v415
      %v678 = vpop.f32.mrb[0].mxu0
      %v679 = vadd.f32 0.0, %v678
      %v680 = vpop.f32.mrb[0].mxu0
      %681 = vmatprep.mubr.f32.mxu0 0.0
      %682 = vmatmul.mubr.f32.gmra.mrb[0].mxu0 %v416
      %v683 = vpop.f32.mrb[0].mxu0
      %v684 = vadd.f32 0.0, %v683
      %v685 = vpop.f32.mrb[0].mxu0
      %686 = vmatprep.mubr.f32.mxu0 0.0
      %687 = vmatmul.mubr.f32.gmra.mrb[0].mxu0 %v417
      %v688 = vpop.f32.mrb[0].mxu0
      %v689 = vadd.f32 0.0, %v688
      %v690 = vpop.f32.mrb[0].mxu0
      %691 = vmatprep.mubr.f32.mxu0 0.0
      %692 = vmatmul.mubr.f32.gmra.mrb[0].mxu0 %v418
      %v693 = vpop.f32.mrb[0].mxu0
      %v694 = vadd.f32 0.0, %v693
      %v695 = vpop.f32.mrb[0].mxu0
      %696 = vmatprep.mubr.f32.mxu0 0.0
      %697 = vmatmul.mubr.f32.gmra.mrb[0].mxu0 %v419
      %v698 = vpop.f32.mrb[0].mxu0
      %v699 = vadd.f32 0.0, %v698
      %v700 = vpop.f32.mrb[0].mxu0
      %701 = vmatprep.mubr.f32.mxu0 0.0
      %702 = vmatmul.mubr.f32.gmra.mrb[0].mxu0 %v420
      %v703 = vpop.f32.mrb[0].mxu0
      %v704 = vadd.f32 0.0, %v703
      %v705 = vpop.f32.mrb[0].mxu0
      %706 = vdwg.mxu0
      %v707 = vld [vmem:[%s374] sm:$0xff]
      %v708 = vld [vmem:[%s374 + $0x8] sm:$0xff]
      %v709 = vld [vmem:[%s374 + $0x10] sm:$0xff]
      %v710 = vld [vmem:[%s374 + $0x18] sm:$0xff]
      %v711 = vld [vmem:[%s374 + $0x20] sm:$0xff]
      %v712 = vld [vmem:[%s374 + $0x28] sm:$0xff]
      %v713 = vld [vmem:[%s374 + $0x30] sm:$0xff]
      %v714 = vld [vmem:[%s374 + $0x38] sm:$0xff]
      %v715 = vld [vmem:[%s374 + $0x40] sm:$0xff]
      %v716 = vld [vmem:[%s374 + $0x48] sm:$0xff]
      %v717 = vld [vmem:[%s374 + $0x50] sm:$0xff]
      %v718 = vld [vmem:[%s374 + $0x58] sm:$0xff]
      %v719 = vld [vmem:[%s374 + $0x60] sm:$0xff]
      %v720 = vld [vmem:[%s374 + $0x68] sm:$0xff]
      %v721 = vld [vmem:[%s374 + $0x70] sm:$0xff]
      %v722 = vld [vmem:[%s374 + $0x78] sm:$0xff]
      %v723 = vld [vmem:[%s374 + $0x80] sm:$0xff]
      %v724 = vld [vmem:[%s374 + $0x88] sm:$0xff]
      %v725 = vld [vmem:[%s374 + $0x90] sm:$0xff]
      %v726 = vld [vmem:[%s374 + $0x98] sm:$0xff]
      %v727 = vld [vmem:[%s374 + $0xa0] sm:$0xff]
      %v728 = vld [vmem:[%s374 + $0xa8] sm:$0xff]
      %v729 = vld [vmem:[%s374 + $0xb0] sm:$0xff]
      %v730 = vld [vmem:[%s374 + $0xb8] sm:$0xff]
      %v731 = vld [vmem:[%s374 + $0xc0] sm:$0xff]
      %v732 = vld [vmem:[%s374 + $0xc8] sm:$0xff]
      %v733 = vld [vmem:[%s374 + $0xd0] sm:$0xff]
      %v734 = vld [vmem:[%s374 + $0xd8] sm:$0xff]
      %v735 = vld [vmem:[%s374 + $0xe0] sm:$0xff]
      %v736 = vld [vmem:[%s374 + $0xe8] sm:$0xff]
      %v737 = vld [vmem:[%s374 + $0xf0] sm:$0xff]
      %v738 = vld [vmem:[%s374 + $0xf8] sm:$0xff]
      %v739 = vld [vmem:[%s374 + $0x100] sm:$0xff]
      %v740 = vld [vmem:[%s374 + $0x108] sm:$0xff]
      %v741 = vld [vmem:[%s374 + $0x110] sm:$0xff]
      %v742 = vld [vmem:[%s374 + $0x118] sm:$0xff]
      %v743 = vld [vmem:[%s374 + $0x120] sm:$0xff]
      %v744 = vld [vmem:[%s374 + $0x128] sm:$0xff]
      %v745 = vld [vmem:[%s374 + $0x130] sm:$0xff]
      %v746 = vld [vmem:[%s374 + $0x138] sm:$0xff]
      %v747 = vld [vmem:[%s374 + $0x140] sm:$0xff]
      %v748 = vadd.f32 %v707, %v504
      %v749 = vadd.f32 %v708, %v509
      %v750 = vadd.f32 %v709, %v514
      %v751 = vadd.f32 %v710, %v519
      %v752 = vadd.f32 %v711, %v524
      %v753 = vadd.f32 %v712, %v529
      %v754 = vadd.f32 %v713, %v534
      %v755 = vadd.f32 %v714, %v539
      %v756 = vadd.f32 %v715, %v544
      %v757 = vadd.f32 %v716, %v549
      %v758 = vadd.f32 %v717, %v554
      %v759 = vadd.f32 %v718, %v559
      %v760 = vadd.f32 %v719, %v564
      %v761 = vadd.f32 %v720, %v569
      %v762 = vadd.f32 %v721, %v574
      %v763 = vadd.f32 %v722, %v579
      %v764 = vadd.f32 %v723, %v584
      %v765 = vadd.f32 %v724, %v589
      %v766 = vadd.f32 %v725, %v594
      %v767 = vadd.f32 %v726, %v599
      %v768 = vadd.f32 %v727, %v604
      %v769 = vadd.f32 %v728, %v609
      %v770 = vadd.f32 %v729, %v614
      %v771 = vadd.f32 %v730, %v619
      %v772 = vadd.f32 %v731, %v624
      %v773 = vadd.f32 %v732, %v629
      %v774 = vadd.f32 %v733, %v634
      %v775 = vadd.f32 %v734, %v639
      %v776 = vadd.f32 %v735, %v644
      %v777 = vadd.f32 %v736, %v649
      %v778 = vadd.f32 %v737, %v654
      %v779 = vadd.f32 %v738, %v659
      %v780 = vadd.f32 %v739, %v664
      %v781 = vadd.f32 %v740, %v669
      %v782 = vadd.f32 %v741, %v674
      %v783 = vadd.f32 %v742, %v679
      %v784 = vadd.f32 %v743, %v684
      %v785 = vadd.f32 %v744, %v689
      %v786 = vadd.f32 %v745, %v694
      %v787 = vadd.f32 %v746, %v699
      %v788 = vadd.f32 %v747, %v704
      %789 = vst [vmem:[#allocation2] sm:$0xff] %v748
      %790 = vst [vmem:[#allocation2 + $0x8] sm:$0xff] %v749
      %791 = vst [vmem:[#allocation2 + $0x10] sm:$0xff] %v750
      %792 = vst [vmem:[#allocation2 + $0x18] sm:$0xff] %v751
      %793 = vst [vmem:[#allocation2 + $0x20] sm:$0xff] %v752
      %794 = vst [vmem:[#allocation2 + $0x28] sm:$0xff] %v753
      %795 = vst [vmem:[#allocation2 + $0x30] sm:$0xff] %v754
      %796 = vst [vmem:[#allocation2 + $0x38] sm:$0xff] %v755
      %797 = vst [vmem:[#allocation2 + $0x40] sm:$0xff] %v756
      %798 = vst [vmem:[#allocation2 + $0x48] sm:$0xff] %v757
      %799 = vst [vmem:[#allocation2 + $0x50] sm:$0xff] %v758
      %800 = vst [vmem:[#allocation2 + $0x58] sm:$0xff] %v759
      %801 = vst [vmem:[#allocation2 + $0x60] sm:$0xff] %v760
      %802 = vst [vmem:[#allocation2 + $0x68] sm:$0xff] %v761
      %803 = vst [vmem:[#allocation2 + $0x70] sm:$0xff] %v762
      %804 = vst [vmem:[#allocation2 + $0x78] sm:$0xff] %v763
      %805 = vst [vmem:[#allocation2 + $0x80] sm:$0xff] %v764
      %806 = vst [vmem:[#allocation2 + $0x88] sm:$0xff] %v765
      %807 = vst [vmem:[#allocation2 + $0x90] sm:$0xff] %v766
      %808 = vst [vmem:[#allocation2 + $0x98] sm:$0xff] %v767
      %809 = vst [vmem:[#allocation2 + $0xa0] sm:$0xff] %v768
      %810 = vst [vmem:[#allocation2 + $0xa8] sm:$0xff] %v769
      %811 = vst [vmem:[#allocation2 + $0xb0] sm:$0xff] %v770
      %812 = vst [vmem:[#allocation2 + $0xb8] sm:$0xff] %v771
      %813 = vst [vmem:[#allocation2 + $0xc0] sm:$0xff] %v772
      %814 = vst [vmem:[#allocation2 + $0xc8] sm:$0xff] %v773
      %815 = vst [vmem:[#allocation2 + $0xd0] sm:$0xff] %v774
      %816 = vst [vmem:[#allocation2 + $0xd8] sm:$0xff] %v775
      %817 = vst [vmem:[#allocation2 + $0xe0] sm:$0xff] %v776
      %818 = vst [vmem:[#allocation2 + $0xe8] sm:$0xff] %v777
      %819 = vst [vmem:[#allocation2 + $0xf0] sm:$0xff] %v778
      %820 = vst [vmem:[#allocation2 + $0xf8] sm:$0xff] %v779
      %821 = vst [vmem:[#allocation2 + $0x100] sm:$0xff] %v780
      %822 = vst [vmem:[#allocation2 + $0x108] sm:$0xff] %v781
      %823 = vst [vmem:[#allocation2 + $0x110] sm:$0xff] %v782
      %824 = vst [vmem:[#allocation2 + $0x118] sm:$0xff] %v783
      %825 = vst [vmem:[#allocation2 + $0x120] sm:$0xff] %v784
      %826 = vst [vmem:[#allocation2 + $0x128] sm:$0xff] %v785
      %827 = vst [vmem:[#allocation2 + $0x130] sm:$0xff] %v786
      %828 = vst [vmem:[#allocation2 + $0x138] sm:$0xff] %v787
      %829 = vst [vmem:[#allocation2 + $0x140] sm:$0xff] %v788
      %v830 = vld [vmem:[#allocation2] sm:$0xff]
      %v831 = vld [vmem:[#allocation2 + $0x8] sm:$0xff]
      %v832 = vld [vmem:[#allocation2 + $0x10] sm:$0xff]
      %v833 = vld [vmem:[#allocation2 + $0x18] sm:$0xff]
      %v834 = vld [vmem:[#allocation2 + $0x20] sm:$0xff]
      %v835 = vld [vmem:[#allocation2 + $0x28] sm:$0xff]
      %v836 = vld [vmem:[#allocation2 + $0x30] sm:$0xff]
      %v837 = vld [vmem:[#allocation2 + $0x38] sm:$0xff]
      %v838 = vld [vmem:[#allocation2 + $0x40] sm:$0xff]
      %v839 = vld [vmem:[#allocation2 + $0x48] sm:$0xff]
      %v840 = vld [vmem:[#allocation2 + $0x50] sm:$0xff]
      %v841 = vld [vmem:[#allocation2 + $0x58] sm:$0xff]
      %v842 = vld [vmem:[#allocation2 + $0x60] sm:$0xff]
      %v843 = vld [vmem:[#allocation2 + $0x68] sm:$0xff]
      %v844 = vld [vmem:[#allocation2 + $0x70] sm:$0xff]
      %v845 = vld [vmem:[#allocation2 + $0x78] sm:$0xff]
      %v846 = vld [vmem:[#allocation2 + $0x80] sm:$0xff]
      %v847 = vld [vmem:[#allocation2 + $0x88] sm:$0xff]
      %v848 = vld [vmem:[#allocation2 + $0x90] sm:$0xff]
      %v849 = vld [vmem:[#allocation2 + $0x98] sm:$0xff]
      %v850 = vld [vmem:[#allocation2 + $0xa0] sm:$0xff]
      %v851 = vld [vmem:[#allocation2 + $0xa8] sm:$0xff]
      %v852 = vld [vmem:[#allocation2 + $0xb0] sm:$0xff]
      %v853 = vld [vmem:[#allocation2 + $0xb8] sm:$0xff]
      %v854 = vld [vmem:[#allocation2 + $0xc0] sm:$0xff]
      %v855 = vld [vmem:[#allocation2 + $0xc8] sm:$0xff]
      %v856 = vld [vmem:[#allocation2 + $0xd0] sm:$0xff]
      %v857 = vld [vmem:[#allocation2 + $0xd8] sm:$0xff]
      %v858 = vld [vmem:[#allocation2 + $0xe0] sm:$0xff]
      %v859 = vld [vmem:[#allocation2 + $0xe8] sm:$0xff]
      %v860 = vld [vmem:[#allocation2 + $0xf0] sm:$0xff]
      %v861 = vld [vmem:[#allocation2 + $0xf8] sm:$0xff]
      %v862 = vld [vmem:[#allocation2 + $0x100] sm:$0xff]
      %v863 = vld [vmem:[#allocation2 + $0x108] sm:$0xff]
      %v864 = vld [vmem:[#allocation2 + $0x110] sm:$0xff]
      %v865 = vld [vmem:[#allocation2 + $0x118] sm:$0xff]
      %v866 = vld [vmem:[%s4] sm:$0xff]
      %v867 = vld [vmem:[%s4 + $0x8] sm:$0xff]
      %v868 = vld [vmem:[%s4 + $0x10] sm:$0xff]
      %v869 = vld [vmem:[%s4 + $0x18] sm:$0xff]
      %v870 = vld [vmem:[%s4 + $0x20] sm:$0xff]
      %v871 = vld [vmem:[%s4 + $0x28] sm:$0xff]
      %v872 = vld [vmem:[%s4 + $0x30] sm:$0xff]
      %v873 = vld [vmem:[%s4 + $0x38] sm:$0xff]
      %v874 = vld [vmem:[%s4 + $0x40] sm:$0xff]
      %v875 = vld [vmem:[%s4 + $0x48] sm:$0xff]
      %v876 = vld [vmem:[%s4 + $0x50] sm:$0xff]
      %v877 = vld [vmem:[%s4 + $0x58] sm:$0xff]
      %v878 = vld [vmem:[%s4 + $0x60] sm:$0xff]
      %v879 = vld [vmem:[%s4 + $0x68] sm:$0xff]
      %v880 = vld [vmem:[%s4 + $0x70] sm:$0xff]
      %v881 = vld [vmem:[%s4 + $0x78] sm:$0xff]
      %v882 = vld [vmem:[#allocation2 + $0x1] sm:$0xff]
      %v883 = vld [vmem:[#allocation2 + $0x9] sm:$0xff]
      %v884 = vld [vmem:[#allocation2 + $0x11] sm:$0xff]
      %v885 = vld [vmem:[#allocation2 + $0x19] sm:$0xff]
      %v886 = vld [vmem:[#allocation2 + $0x21] sm:$0xff]
      %v887 = vld [vmem:[#allocation2 + $0x29] sm:$0xff]
      %v888 = vld [vmem:[#allocation2 + $0x31] sm:$0xff]
      %v889 = vld [vmem:[#allocation2 + $0x39] sm:$0xff]
      %v890 = vld [vmem:[#allocation2 + $0x41] sm:$0xff]
      %v891 = vld [vmem:[#allocation2 + $0x49] sm:$0xff]
      %v892 = vld [vmem:[#allocation2 + $0x51] sm:$0xff]
      %v893 = vld [vmem:[#allocation2 + $0x59] sm:$0xff]
      %v894 = vld [vmem:[#allocation2 + $0x61] sm:$0xff]
      %v895 = vld [vmem:[#allocation2 + $0x69] sm:$0xff]
      %v896 = vld [vmem:[#allocation2 + $0x71] sm:$0xff]
      %v897 = vld [vmem:[#allocation2 + $0x79] sm:$0xff]
      %v898 = vld [vmem:[#allocation2 + $0x81] sm:$0xff]
      %v899 = vld [vmem:[#allocation2 + $0x89] sm:$0xff]
      %v900 = vld [vmem:[#allocation2 + $0x91] sm:$0xff]
      %v901 = vld [vmem:[#allocation2 + $0x99] sm:$0xff]
      %v902 = vld [vmem:[#allocation2 + $0xa1] sm:$0xff]
      %v903 = vld [vmem:[#allocation2 + $0xa9] sm:$0xff]
      %v904 = vld [vmem:[#allocation2 + $0xb1] sm:$0xff]
      %v905 = vld [vmem:[#allocation2 + $0xb9] sm:$0xff]
      %v906 = vld [vmem:[#allocation2 + $0xc1] sm:$0xff]
      %v907 = vld [vmem:[#allocation2 + $0xc9] sm:$0xff]
      %v908 = vld [vmem:[#allocation2 + $0xd1] sm:$0xff]
      %v909 = vld [vmem:[#allocation2 + $0xd9] sm:$0xff]
      %v910 = vld [vmem:[#allocation2 + $0xe1] sm:$0xff]
      %v911 = vld [vmem:[#allocation2 + $0xe9] sm:$0xff]
      %v912 = vld [vmem:[#allocation2 + $0xf1] sm:$0xff]
      %v913 = vld [vmem:[#allocation2 + $0xf9] sm:$0xff]
      %v914 = vld [vmem:[#allocation2 + $0x101] sm:$0xff]
      %v915 = vld [vmem:[#allocation2 + $0x109] sm:$0xff]
      %v916 = vld [vmem:[#allocation2 + $0x111] sm:$0xff]
      %v917 = vld [vmem:[#allocation2 + $0x119] sm:$0xff]
      %s918 = scalar_lea.vmem %s4, 128
      %v919 = vld [vmem:[%s918] sm:$0xff]
      %v920 = vld [vmem:[%s918 + $0x8] sm:$0xff]
      %v921 = vld [vmem:[%s918 + $0x10] sm:$0xff]
      %v922 = vld [vmem:[%s918 + $0x18] sm:$0xff]
      %v923 = vld [vmem:[%s918 + $0x20] sm:$0xff]
      %v924 = vld [vmem:[%s918 + $0x28] sm:$0xff]
      %v925 = vld [vmem:[%s918 + $0x30] sm:$0xff]
      %v926 = vld [vmem:[%s918 + $0x38] sm:$0xff]
      %v927 = vld [vmem:[%s918 + $0x40] sm:$0xff]
      %v928 = vld [vmem:[%s918 + $0x48] sm:$0xff]
      %v929 = vld [vmem:[%s918 + $0x50] sm:$0xff]
      %v930 = vld [vmem:[%s918 + $0x58] sm:$0xff]
      %v931 = vld [vmem:[%s918 + $0x60] sm:$0xff]
      %v932 = vld [vmem:[%s918 + $0x68] sm:$0xff]
      %v933 = vld [vmem:[%s918 + $0x70] sm:$0xff]
      %v934 = vld [vmem:[%s918 + $0x78] sm:$0xff]
      %935 = vmatprep.subr.mxu0 0.0
      %936 = vmatpush1.msra.mxu0 %v919
      %937 = vmatprep.subr.mxu0 0.0
      %938 = vmatpush1.msra.mxu0 %v920
      %939 = vmatprep.subr.mxu0 0.0
      %940 = vmatpush1.msra.mxu0 %v921
      %941 = vmatprep.subr.mxu0 0.0
      %942 = vmatpush1.msra.mxu0 %v922
      %943 = vmatprep.subr.mxu0 0.0
      %944 = vmatpush1.msra.mxu0 %v923
      %945 = vmatprep.subr.mxu0 0.0
      %946 = vmatpush1.msra.mxu0 %v924
      %947 = vmatprep.subr.mxu0 0.0
      %948 = vmatpush1.msra.mxu0 %v925
      %949 = vmatprep.subr.mxu0 0.0
      %950 = vmatpush1.msra.mxu0 %v926
      %951 = vmatprep.subr.mxu0 0.0
      %952 = vmatpush1.msra.mxu0 %v927
      %953 = vmatprep.subr.mxu0 0.0
      %954 = vmatpush1.msra.mxu0 %v928
      %955 = vmatprep.subr.mxu0 0.0
      %956 = vmatpush1.msra.mxu0 %v929
      %957 = vmatprep.subr.mxu0 0.0
      %958 = vmatpush1.msra.mxu0 %v930
      %959 = vmatprep.subr.mxu0 0.0
      %960 = vmatpush1.msra.mxu0 %v931
      %961 = vmatprep.subr.mxu0 0.0
      %962 = vmatpush1.msra.mxu0 %v932
      %963 = vmatprep.subr.mxu0 0.0
      %964 = vmatpush1.msra.mxu0 %v933
      %965 = vmatprep.subr.mxu0 0.0
      %966 = vmatpush1.msra.mxu0 %v934
      %967 = vmatprep.subr.mxu0 0.0
      %968 = vmatpush1.msra.mxu0 0.0
      %969 = vmatprep.subr.mxu0 0.0
      %970 = vmatpush1.msra.mxu0 0.0
      %971 = vmatprep.subr.mxu0 0.0
      %972 = vmatpush1.msra.mxu0 0.0
      %973 = vmatprep.subr.mxu0 0.0
      %974 = vmatpush1.msra.mxu0 0.0
      %975 = vmatprep.subr.mxu0 0.0
      %976 = vmatpush1.msra.mxu0 0.0
      %977 = vmatprep.subr.mxu0 0.0
      %978 = vmatpush1.msra.mxu0 0.0
      %979 = vmatprep.subr.mxu0 0.0
      %980 = vmatpush1.msra.mxu0 0.0
      %981 = vmatprep.subr.mxu0 0.0
      %982 = vmatpush1.msra.mxu0 0.0
      %983 = vmatprep.subr.mxu0 0.0
      %984 = vmatpush1.msra.mxu0 0.0
      %985 = vmatprep.subr.mxu0 0.0
      %986 = vmatpush1.msra.mxu0 0.0
      %987 = vmatprep.subr.mxu0 0.0
      %988 = vmatpush1.msra.mxu0 0.0
      %989 = vmatprep.subr.mxu0 0.0
      %990 = vmatpush1.msra.mxu0 0.0
      %991 = vmatprep.subr.mxu0 0.0
      %992 = vmatpush1.msra.mxu0 0.0
      %993 = vmatprep.subr.mxu0 0.0
      %994 = vmatpush1.msra.mxu0 0.0
      %995 = vmatprep.subr.mxu0 0.0
      %996 = vmatpush1.msra.mxu0 0.0
      %997 = vmatprep.subr.mxu0 0.0
      %998 = vmatpush1.msra.mxu0 0.0
      %999 = vmatprep.mubr.f32.mxu0 0.0
      %1000 = vmatmul.mubr.f32.gmra.mrb[0].mxu0 %v882
      %v1001 = vpop.f32.mrb[0].mxu0
      %v1002 = vadd.f32 0.0, %v1001
      %v1003 = vpop.f32.mrb[0].mxu0
      %1004 = vmatprep.mubr.f32.mxu0 0.0
      %1005 = vmatmul.mubr.f32.gmra.mrb[0].mxu0 %v883
      %v1006 = vpop.f32.mrb[0].mxu0
      %v1007 = vadd.f32 0.0, %v1006
      %v1008 = vpop.f32.mrb[0].mxu0
      %1009 = vmatprep.mubr.f32.mxu0 0.0
      %1010 = vmatmul.mubr.f32.gmra.mrb[0].mxu0 %v884
      %v1011 = vpop.f32.mrb[0].mxu0
      %v1012 = vadd.f32 0.0, %v1011
      %v1013 = vpop.f32.mrb[0].mxu0
      %1014 = vmatprep.mubr.f32.mxu0 0.0
      %1015 = vmatmul.mubr.f32.gmra.mrb[0].mxu0 %v885
      %v1016 = vpop.f32.mrb[0].mxu0
      %v1017 = vadd.f32 0.0, %v1016
      %v1018 = vpop.f32.mrb[0].mxu0
      %1019 = vmatprep.mubr.f32.mxu0 0.0
      %1020 = vmatmul.mubr.f32.gmra.mrb[0].mxu0 %v886
      %v1021 = vpop.f32.mrb[0].mxu0
      %v1022 = vadd.f32 0.0, %v1021
      %v1023 = vpop.f32.mrb[0].mxu0
      %1024 = vmatprep.mubr.f32.mxu0 0.0
      %1025 = vmatmul.mubr.f32.gmra.mrb[0].mxu0 %v887
      %v1026 = vpop.f32.mrb[0].mxu0
      %v1027 = vadd.f32 0.0, %v1026
      %v1028 = vpop.f32.mrb[0].mxu0
      %1029 = vmatprep.mubr.f32.mxu0 0.0
      %1030 = vmatmul.mubr.f32.gmra.mrb[0].mxu0 %v888
      %v1031 = vpop.f32.mrb[0].mxu0
      %v1032 = vadd.f32 0.0, %v1031
      %v1033 = vpop.f32.mrb[0].mxu0
      %1034 = vmatprep.mubr.f32.mxu0 0.0
      %1035 = vmatmul.mubr.f32.gmra.mrb[0].mxu0 %v889
      %v1036 = vpop.f32.mrb[0].mxu0
      %v1037 = vadd.f32 0.0, %v1036
      %v1038 = vpop.f32.mrb[0].mxu0
      %1039 = vmatprep.mubr.f32.mxu0 0.0
      %1040 = vmatmul.mubr.f32.gmra.mrb[0].mxu0 %v890
      %v1041 = vpop.f32.mrb[0].mxu0
      %v1042 = vadd.f32 0.0, %v1041
      %v1043 = vpop.f32.mrb[0].mxu0
      %1044 = vmatprep.mubr.f32.mxu0 0.0
      %1045 = vmatmul.mubr.f32.gmra.mrb[0].mxu0 %v891
      %v1046 = vpop.f32.mrb[0].mxu0
      %v1047 = vadd.f32 0.0, %v1046
      %v1048 = vpop.f32.mrb[0].mxu0
      %1049 = vmatprep.mubr.f32.mxu0 0.0
      %1050 = vmatmul.mubr.f32.gmra.mrb[0].mxu0 %v892
      %v1051 = vpop.f32.mrb[0].mxu0
      %v1052 = vadd.f32 0.0, %v1051
      %v1053 = vpop.f32.mrb[0].mxu0
      %1054 = vmatprep.mubr.f32.mxu0 0.0
      %1055 = vmatmul.mubr.f32.gmra.mrb[0].mxu0 %v893
      %v1056 = vpop.f32.mrb[0].mxu0
      %v1057 = vadd.f32 0.0, %v1056
      %v1058 = vpop.f32.mrb[0].mxu0
      %1059 = vmatprep.mubr.f32.mxu0 0.0
      %1060 = vmatmul.mubr.f32.gmra.mrb[0].mxu0 %v894
      %v1061 = vpop.f32.mrb[0].mxu0
      %v1062 = vadd.f32 0.0, %v1061
      %v1063 = vpop.f32.mrb[0].mxu0
      %1064 = vmatprep.mubr.f32.mxu0 0.0
      %1065 = vmatmul.mubr.f32.gmra.mrb[0].mxu0 %v895
      %v1066 = vpop.f32.mrb[0].mxu0
      %v1067 = vadd.f32 0.0, %v1066
      %v1068 = vpop.f32.mrb[0].mxu0
      %1069 = vmatprep.mubr.f32.mxu0 0.0
      %1070 = vmatmul.mubr.f32.gmra.mrb[0].mxu0 %v896
      %v1071 = vpop.f32.mrb[0].mxu0
      %v1072 = vadd.f32 0.0, %v1071
      %v1073 = vpop.f32.mrb[0].mxu0
      %1074 = vmatprep.mubr.f32.mxu0 0.0
      %1075 = vmatmul.mubr.f32.gmra.mrb[0].mxu0 %v897
      %v1076 = vpop.f32.mrb[0].mxu0
      %v1077 = vadd.f32 0.0, %v1076
      %v1078 = vpop.f32.mrb[0].mxu0
      %1079 = vmatprep.mubr.f32.mxu0 0.0
      %1080 = vmatmul.mubr.f32.gmra.mrb[0].mxu0 %v898
      %v1081 = vpop.f32.mrb[0].mxu0
      %v1082 = vadd.f32 0.0, %v1081
      %v1083 = vpop.f32.mrb[0].mxu0
      %1084 = vmatprep.mubr.f32.mxu0 0.0
      %1085 = vmatmul.mubr.f32.gmra.mrb[0].mxu0 %v899
      %v1086 = vpop.f32.mrb[0].mxu0
      %v1087 = vadd.f32 0.0, %v1086
      %v1088 = vpop.f32.mrb[0].mxu0
      %1089 = vmatprep.mubr.f32.mxu0 0.0
      %1090 = vmatmul.mubr.f32.gmra.mrb[0].mxu0 %v900
      %v1091 = vpop.f32.mrb[0].mxu0
      %v1092 = vadd.f32 0.0, %v1091
      %v1093 = vpop.f32.mrb[0].mxu0
      %1094 = vmatprep.mubr.f32.mxu0 0.0
      %1095 = vmatmul.mubr.f32.gmra.mrb[0].mxu0 %v901
      %v1096 = vpop.f32.mrb[0].mxu0
      %v1097 = vadd.f32 0.0, %v1096
      %v1098 = vpop.f32.mrb[0].mxu0
      %1099 = vmatprep.mubr.f32.mxu0 0.0
      %1100 = vmatmul.mubr.f32.gmra.mrb[0].mxu0 %v902
      %v1101 = vpop.f32.mrb[0].mxu0
      %v1102 = vadd.f32 0.0, %v1101
      %v1103 = vpop.f32.mrb[0].mxu0
      %1104 = vmatprep.mubr.f32.mxu0 0.0
      %1105 = vmatmul.mubr.f32.gmra.mrb[0].mxu0 %v903
      %v1106 = vpop.f32.mrb[0].mxu0
      %v1107 = vadd.f32 0.0, %v1106
      %v1108 = vpop.f32.mrb[0].mxu0
      %1109 = vmatprep.mubr.f32.mxu0 0.0
      %1110 = vmatmul.mubr.f32.gmra.mrb[0].mxu0 %v904
      %v1111 = vpop.f32.mrb[0].mxu0
      %v1112 = vadd.f32 0.0, %v1111
      %v1113 = vpop.f32.mrb[0].mxu0
      %1114 = vmatprep.mubr.f32.mxu0 0.0
      %1115 = vmatmul.mubr.f32.gmra.mrb[0].mxu0 %v905
      %v1116 = vpop.f32.mrb[0].mxu0
      %v1117 = vadd.f32 0.0, %v1116
      %v1118 = vpop.f32.mrb[0].mxu0
      %1119 = vmatprep.mubr.f32.mxu0 0.0
      %1120 = vmatmul.mubr.f32.gmra.mrb[0].mxu0 %v906
      %v1121 = vpop.f32.mrb[0].mxu0
      %v1122 = vadd.f32 0.0, %v1121
      %v1123 = vpop.f32.mrb[0].mxu0
      %1124 = vmatprep.mubr.f32.mxu0 0.0
      %1125 = vmatmul.mubr.f32.gmra.mrb[0].mxu0 %v907
      %v1126 = vpop.f32.mrb[0].mxu0
      %v1127 = vadd.f32 0.0, %v1126
      %v1128 = vpop.f32.mrb[0].mxu0
      %1129 = vmatprep.mubr.f32.mxu0 0.0
      %1130 = vmatmul.mubr.f32.gmra.mrb[0].mxu0 %v908
      %v1131 = vpop.f32.mrb[0].mxu0
      %v1132 = vadd.f32 0.0, %v1131
      %v1133 = vpop.f32.mrb[0].mxu0
      %1134 = vmatprep.mubr.f32.mxu0 0.0
      %1135 = vmatmul.mubr.f32.gmra.mrb[0].mxu0 %v909
      %v1136 = vpop.f32.mrb[0].mxu0
      %v1137 = vadd.f32 0.0, %v1136
      %v1138 = vpop.f32.mrb[0].mxu0
      %1139 = vmatprep.mubr.f32.mxu0 0.0
      %1140 = vmatmul.mubr.f32.gmra.mrb[0].mxu0 %v910
      %v1141 = vpop.f32.mrb[0].mxu0
      %v1142 = vadd.f32 0.0, %v1141
      %v1143 = vpop.f32.mrb[0].mxu0
      %1144 = vmatprep.mubr.f32.mxu0 0.0
      %1145 = vmatmul.mubr.f32.gmra.mrb[0].mxu0 %v911
      %v1146 = vpop.f32.mrb[0].mxu0
      %v1147 = vadd.f32 0.0, %v1146
      %v1148 = vpop.f32.mrb[0].mxu0
      %1149 = vmatprep.mubr.f32.mxu0 0.0
      %1150 = vmatmul.mubr.f32.gmra.mrb[0].mxu0 %v912
      %v1151 = vpop.f32.mrb[0].mxu0
      %v1152 = vadd.f32 0.0, %v1151
      %v1153 = vpop.f32.mrb[0].mxu0
      %1154 = vmatprep.mubr.f32.mxu0 0.0
      %1155 = vmatmul.mubr.f32.gmra.mrb[0].mxu0 %v913
      %v1156 = vpop.f32.mrb[0].mxu0
      %v1157 = vadd.f32 0.0, %v1156
      %v1158 = vpop.f32.mrb[0].mxu0
      %1159 = vmatprep.mubr.f32.mxu0 0.0
      %1160 = vmatmul.mubr.f32.gmra.mrb[0].mxu0 %v914
      %v1161 = vpop.f32.mrb[0].mxu0
      %v1162 = vadd.f32 0.0, %v1161
      %v1163 = vpop.f32.mrb[0].mxu0
      %1164 = vmatprep.mubr.f32.mxu0 0.0
      %1165 = vmatmul.mubr.f32.gmra.mrb[0].mxu0 %v915
      %v1166 = vpop.f32.mrb[0].mxu0
      %v1167 = vadd.f32 0.0, %v1166
      %v1168 = vpop.f32.mrb[0].mxu0
      %1169 = vmatprep.mubr.f32.mxu0 0.0
      %1170 = vmatmul.mubr.f32.gmra.mrb[0].mxu0 %v916
      %v1171 = vpop.f32.mrb[0].mxu0
      %v1172 = vadd.f32 0.0, %v1171
      %v1173 = vpop.f32.mrb[0].mxu0
      %1174 = vmatprep.mubr.f32.mxu0 0.0
      %1175 = vmatmul.mubr.f32.gmra.mrb[0].mxu0 %v917
      %v1176 = vpop.f32.mrb[0].mxu0
      %v1177 = vadd.f32 0.0, %v1176
      %v1178 = vpop.f32.mrb[0].mxu0
      %1179 = vdwg.mxu0
      %1180 = vmatprep.subr.mxu0 0.0
      %1181 = vmatpush1.msra.mxu0 %v866
      %1182 = vmatprep.subr.mxu0 0.0
      %1183 = vmatpush1.msra.mxu0 %v867
      %1184 = vmatprep.subr.mxu0 0.0
      %1185 = vmatpush1.msra.mxu0 %v868
      %1186 = vmatprep.subr.mxu0 0.0
      %1187 = vmatpush1.msra.mxu0 %v869
      %1188 = vmatprep.subr.mxu0 0.0
      %1189 = vmatpush1.msra.mxu0 %v870
      %1190 = vmatprep.subr.mxu0 0.0
      %1191 = vmatpush1.msra.mxu0 %v871
      %1192 = vmatprep.subr.mxu0 0.0
      %1193 = vmatpush1.msra.mxu0 %v872
      %1194 = vmatprep.subr.mxu0 0.0
      %1195 = vmatpush1.msra.mxu0 %v873
      %1196 = vmatprep.subr.mxu0 0.0
      %1197 = vmatpush1.msra.mxu0 %v874
      %1198 = vmatprep.subr.mxu0 0.0
      %1199 = vmatpush1.msra.mxu0 %v875
      %1200 = vmatprep.subr.mxu0 0.0
      %1201 = vmatpush1.msra.mxu0 %v876
      %1202 = vmatprep.subr.mxu0 0.0
      %1203 = vmatpush1.msra.mxu0 %v877
      %1204 = vmatprep.subr.mxu0 0.0
      %1205 = vmatpush1.msra.mxu0 %v878
      %1206 = vmatprep.subr.mxu0 0.0
      %1207 = vmatpush1.msra.mxu0 %v879
      %1208 = vmatprep.subr.mxu0 0.0
      %1209 = vmatpush1.msra.mxu0 %v880
      %1210 = vmatprep.subr.mxu0 0.0
      %1211 = vmatpush1.msra.mxu0 %v881
      %1212 = vmatprep.subr.mxu0 0.0
      %1213 = vmatpush1.msra.mxu0 0.0
      %1214 = vmatprep.subr.mxu0 0.0
      %1215 = vmatpush1.msra.mxu0 0.0
      %1216 = vmatprep.subr.mxu0 0.0
      %1217 = vmatpush1.msra.mxu0 0.0
      %1218 = vmatprep.subr.mxu0 0.0
      %1219 = vmatpush1.msra.mxu0 0.0
      %1220 = vmatprep.subr.mxu0 0.0
      %1221 = vmatpush1.msra.mxu0 0.0
      %1222 = vmatprep.subr.mxu0 0.0
      %1223 = vmatpush1.msra.mxu0 0.0
      %1224 = vmatprep.subr.mxu0 0.0
      %1225 = vmatpush1.msra.mxu0 0.0
      %1226 = vmatprep.subr.mxu0 0.0
      %1227 = vmatpush1.msra.mxu0 0.0
      %1228 = vmatprep.subr.mxu0 0.0
      %1229 = vmatpush1.msra.mxu0 0.0
      %1230 = vmatprep.subr.mxu0 0.0
      %1231 = vmatpush1.msra.mxu0 0.0
      %1232 = vmatprep.subr.mxu0 0.0
      %1233 = vmatpush1.msra.mxu0 0.0
      %1234 = vmatprep.subr.mxu0 0.0
      %1235 = vmatpush1.msra.mxu0 0.0
      %1236 = vmatprep.subr.mxu0 0.0
      %1237 = vmatpush1.msra.mxu0 0.0
      %1238 = vmatprep.subr.mxu0 0.0
      %1239 = vmatpush1.msra.mxu0 0.0
      %1240 = vmatprep.subr.mxu0 0.0
      %1241 = vmatpush1.msra.mxu0 0.0
      %1242 = vmatprep.subr.mxu0 0.0
      %1243 = vmatpush1.msra.mxu0 0.0
      %1244 = vmatprep.mubr.f32.mxu0 0.0
      %1245 = vmatmul.mubr.f32.gmra.mrb[0].mxu0 %v830
      %v1246 = vpop.f32.mrb[0].mxu0
      %v1247 = vadd.f32 %v1002, %v1246
      %v1248 = vpop.f32.mrb[0].mxu0
      %1249 = vmatprep.mubr.f32.mxu0 0.0
      %1250 = vmatmul.mubr.f32.gmra.mrb[0].mxu0 %v831
      %v1251 = vpop.f32.mrb[0].mxu0
      %v1252 = vadd.f32 %v1007, %v1251
      %v1253 = vpop.f32.mrb[0].mxu0
      %1254 = vmatprep.mubr.f32.mxu0 0.0
      %1255 = vmatmul.mubr.f32.gmra.mrb[0].mxu0 %v832
      %v1256 = vpop.f32.mrb[0].mxu0
      %v1257 = vadd.f32 %v1012, %v1256
      %v1258 = vpop.f32.mrb[0].mxu0
      %1259 = vmatprep.mubr.f32.mxu0 0.0
      %1260 = vmatmul.mubr.f32.gmra.mrb[0].mxu0 %v833
      %v1261 = vpop.f32.mrb[0].mxu0
      %v1262 = vadd.f32 %v1017, %v1261
      %v1263 = vpop.f32.mrb[0].mxu0
      %1264 = vmatprep.mubr.f32.mxu0 0.0
      %1265 = vmatmul.mubr.f32.gmra.mrb[0].mxu0 %v834
      %v1266 = vpop.f32.mrb[0].mxu0
      %v1267 = vadd.f32 %v1022, %v1266
      %v1268 = vpop.f32.mrb[0].mxu0
      %1269 = vmatprep.mubr.f32.mxu0 0.0
      %1270 = vmatmul.mubr.f32.gmra.mrb[0].mxu0 %v835
      %v1271 = vpop.f32.mrb[0].mxu0
      %v1272 = vadd.f32 %v1027, %v1271
      %v1273 = vpop.f32.mrb[0].mxu0
      %1274 = vmatprep.mubr.f32.mxu0 0.0
      %1275 = vmatmul.mubr.f32.gmra.mrb[0].mxu0 %v836
      %v1276 = vpop.f32.mrb[0].mxu0
      %v1277 = vadd.f32 %v1032, %v1276
      %v1278 = vpop.f32.mrb[0].mxu0
      %1279 = vmatprep.mubr.f32.mxu0 0.0
      %1280 = vmatmul.mubr.f32.gmra.mrb[0].mxu0 %v837
      %v1281 = vpop.f32.mrb[0].mxu0
      %v1282 = vadd.f32 %v1037, %v1281
      %v1283 = vpop.f32.mrb[0].mxu0
      %1284 = vmatprep.mubr.f32.mxu0 0.0
      %1285 = vmatmul.mubr.f32.gmra.mrb[0].mxu0 %v838
      %v1286 = vpop.f32.mrb[0].mxu0
      %v1287 = vadd.f32 %v1042, %v1286
      %v1288 = vpop.f32.mrb[0].mxu0
      %1289 = vmatprep.mubr.f32.mxu0 0.0
      %1290 = vmatmul.mubr.f32.gmra.mrb[0].mxu0 %v839
      %v1291 = vpop.f32.mrb[0].mxu0
      %v1292 = vadd.f32 %v1047, %v1291
      %v1293 = vpop.f32.mrb[0].mxu0
      %1294 = vmatprep.mubr.f32.mxu0 0.0
      %1295 = vmatmul.mubr.f32.gmra.mrb[0].mxu0 %v840
      %v1296 = vpop.f32.mrb[0].mxu0
      %v1297 = vadd.f32 %v1052, %v1296
      %v1298 = vpop.f32.mrb[0].mxu0
      %1299 = vmatprep.mubr.f32.mxu0 0.0
      %1300 = vmatmul.mubr.f32.gmra.mrb[0].mxu0 %v841
      %v1301 = vpop.f32.mrb[0].mxu0
      %v1302 = vadd.f32 %v1057, %v1301
      %v1303 = vpop.f32.mrb[0].mxu0
      %1304 = vmatprep.mubr.f32.mxu0 0.0
      %1305 = vmatmul.mubr.f32.gmra.mrb[0].mxu0 %v842
      %v1306 = vpop.f32.mrb[0].mxu0
      %v1307 = vadd.f32 %v1062, %v1306
      %v1308 = vpop.f32.mrb[0].mxu0
      %1309 = vmatprep.mubr.f32.mxu0 0.0
      %1310 = vmatmul.mubr.f32.gmra.mrb[0].mxu0 %v843
      %v1311 = vpop.f32.mrb[0].mxu0
      %v1312 = vadd.f32 %v1067, %v1311
      %v1313 = vpop.f32.mrb[0].mxu0
      %1314 = vmatprep.mubr.f32.mxu0 0.0
      %1315 = vmatmul.mubr.f32.gmra.mrb[0].mxu0 %v844
      %v1316 = vpop.f32.mrb[0].mxu0
      %v1317 = vadd.f32 %v1072, %v1316
      %v1318 = vpop.f32.mrb[0].mxu0
      %1319 = vmatprep.mubr.f32.mxu0 0.0
      %1320 = vmatmul.mubr.f32.gmra.mrb[0].mxu0 %v845
      %v1321 = vpop.f32.mrb[0].mxu0
      %v1322 = vadd.f32 %v1077, %v1321
      %v1323 = vpop.f32.mrb[0].mxu0
      %1324 = vmatprep.mubr.f32.mxu0 0.0
      %1325 = vmatmul.mubr.f32.gmra.mrb[0].mxu0 %v846
      %v1326 = vpop.f32.mrb[0].mxu0
      %v1327 = vadd.f32 %v1082, %v1326
      %v1328 = vpop.f32.mrb[0].mxu0
      %1329 = vmatprep.mubr.f32.mxu0 0.0
      %1330 = vmatmul.mubr.f32.gmra.mrb[0].mxu0 %v847
      %v1331 = vpop.f32.mrb[0].mxu0
      %v1332 = vadd.f32 %v1087, %v1331
      %v1333 = vpop.f32.mrb[0].mxu0
      %1334 = vmatprep.mubr.f32.mxu0 0.0
      %1335 = vmatmul.mubr.f32.gmra.mrb[0].mxu0 %v848
      %v1336 = vpop.f32.mrb[0].mxu0
      %v1337 = vadd.f32 %v1092, %v1336
      %v1338 = vpop.f32.mrb[0].mxu0
      %1339 = vmatprep.mubr.f32.mxu0 0.0
      %1340 = vmatmul.mubr.f32.gmra.mrb[0].mxu0 %v849
      %v1341 = vpop.f32.mrb[0].mxu0
      %v1342 = vadd.f32 %v1097, %v1341
      %v1343 = vpop.f32.mrb[0].mxu0
      %1344 = vmatprep.mubr.f32.mxu0 0.0
      %1345 = vmatmul.mubr.f32.gmra.mrb[0].mxu0 %v850
      %v1346 = vpop.f32.mrb[0].mxu0
      %v1347 = vadd.f32 %v1102, %v1346
      %v1348 = vpop.f32.mrb[0].mxu0
      %1349 = vmatprep.mubr.f32.mxu0 0.0
      %1350 = vmatmul.mubr.f32.gmra.mrb[0].mxu0 %v851
      %v1351 = vpop.f32.mrb[0].mxu0
      %v1352 = vadd.f32 %v1107, %v1351
      %v1353 = vpop.f32.mrb[0].mxu0
      %1354 = vmatprep.mubr.f32.mxu0 0.0
      %1355 = vmatmul.mubr.f32.gmra.mrb[0].mxu0 %v852
      %v1356 = vpop.f32.mrb[0].mxu0
      %v1357 = vadd.f32 %v1112, %v1356
      %v1358 = vpop.f32.mrb[0].mxu0
      %1359 = vmatprep.mubr.f32.mxu0 0.0
      %1360 = vmatmul.mubr.f32.gmra.mrb[0].mxu0 %v853
      %v1361 = vpop.f32.mrb[0].mxu0
      %v1362 = vadd.f32 %v1117, %v1361
      %v1363 = vpop.f32.mrb[0].mxu0
      %1364 = vmatprep.mubr.f32.mxu0 0.0
      %1365 = vmatmul.mubr.f32.gmra.mrb[0].mxu0 %v854
      %v1366 = vpop.f32.mrb[0].mxu0
      %v1367 = vadd.f32 %v1122, %v1366
      %v1368 = vpop.f32.mrb[0].mxu0
      %1369 = vmatprep.mubr.f32.mxu0 0.0
      %1370 = vmatmul.mubr.f32.gmra.mrb[0].mxu0 %v855
      %v1371 = vpop.f32.mrb[0].mxu0
      %v1372 = vadd.f32 %v1127, %v1371
      %v1373 = vpop.f32.mrb[0].mxu0
      %1374 = vmatprep.mubr.f32.mxu0 0.0
      %1375 = vmatmul.mubr.f32.gmra.mrb[0].mxu0 %v856
      %v1376 = vpop.f32.mrb[0].mxu0
      %v1377 = vadd.f32 %v1132, %v1376
      %v1378 = vpop.f32.mrb[0].mxu0
      %1379 = vmatprep.mubr.f32.mxu0 0.0
      %1380 = vmatmul.mubr.f32.gmra.mrb[0].mxu0 %v857
      %v1381 = vpop.f32.mrb[0].mxu0
      %v1382 = vadd.f32 %v1137, %v1381
      %v1383 = vpop.f32.mrb[0].mxu0
      %1384 = vmatprep.mubr.f32.mxu0 0.0
      %1385 = vmatmul.mubr.f32.gmra.mrb[0].mxu0 %v858
      %v1386 = vpop.f32.mrb[0].mxu0
      %v1387 = vadd.f32 %v1142, %v1386
      %v1388 = vpop.f32.mrb[0].mxu0
      %1389 = vmatprep.mubr.f32.mxu0 0.0
      %1390 = vmatmul.mubr.f32.gmra.mrb[0].mxu0 %v859
      %v1391 = vpop.f32.mrb[0].mxu0
      %v1392 = vadd.f32 %v1147, %v1391
      %v1393 = vpop.f32.mrb[0].mxu0
      %1394 = vmatprep.mubr.f32.mxu0 0.0
      %1395 = vmatmul.mubr.f32.gmra.mrb[0].mxu0 %v860
      %v1396 = vpop.f32.mrb[0].mxu0
      %v1397 = vadd.f32 %v1152, %v1396
      %v1398 = vpop.f32.mrb[0].mxu0
      %1399 = vmatprep.mubr.f32.mxu0 0.0
      %1400 = vmatmul.mubr.f32.gmra.mrb[0].mxu0 %v861
      %v1401 = vpop.f32.mrb[0].mxu0
      %v1402 = vadd.f32 %v1157, %v1401
      %v1403 = vpop.f32.mrb[0].mxu0
      %1404 = vmatprep.mubr.f32.mxu0 0.0
      %1405 = vmatmul.mubr.f32.gmra.mrb[0].mxu0 %v862
      %v1406 = vpop.f32.mrb[0].mxu0
      %v1407 = vadd.f32 %v1162, %v1406
      %v1408 = vpop.f32.mrb[0].mxu0
      %1409 = vmatprep.mubr.f32.mxu0 0.0
      %1410 = vmatmul.mubr.f32.gmra.mrb[0].mxu0 %v863
      %v1411 = vpop.f32.mrb[0].mxu0
      %v1412 = vadd.f32 %v1167, %v1411
      %v1413 = vpop.f32.mrb[0].mxu0
      %1414 = vmatprep.mubr.f32.mxu0 0.0
      %1415 = vmatmul.mubr.f32.gmra.mrb[0].mxu0 %v864
      %v1416 = vpop.f32.mrb[0].mxu0
      %v1417 = vadd.f32 %v1172, %v1416
      %v1418 = vpop.f32.mrb[0].mxu0
      %1419 = vmatprep.mubr.f32.mxu0 0.0
      %1420 = vmatmul.mubr.f32.gmra.mrb[0].mxu0 %v865
      %v1421 = vpop.f32.mrb[0].mxu0
      %v1422 = vadd.f32 %v1177, %v1421
      %v1423 = vpop.f32.mrb[0].mxu0
      %1424 = vdwg.mxu0
      %v1425 = vld [vmem:[#allocation2 + $0x2] sm:$0xff]
      %v1426 = vld [vmem:[#allocation2 + $0xa] sm:$0xff]
      %v1427 = vld [vmem:[#allocation2 + $0x12] sm:$0xff]
      %v1428 = vld [vmem:[#allocation2 + $0x1a] sm:$0xff]
      %v1429 = vld [vmem:[#allocation2 + $0x22] sm:$0xff]
      %v1430 = vld [vmem:[#allocation2 + $0x2a] sm:$0xff]
      %v1431 = vld [vmem:[#allocation2 + $0x32] sm:$0xff]
      %v1432 = vld [vmem:[#allocation2 + $0x3a] sm:$0xff]
      %v1433 = vld [vmem:[#allocation2 + $0x42] sm:$0xff]
      %v1434 = vld [vmem:[#allocation2 + $0x4a] sm:$0xff]
      %v1435 = vld [vmem:[#allocation2 + $0x52] sm:$0xff]
      %v1436 = vld [vmem:[#allocation2 + $0x5a] sm:$0xff]
      %v1437 = vld [vmem:[#allocation2 + $0x62] sm:$0xff]
      %v1438 = vld [vmem:[#allocation2 + $0x6a] sm:$0xff]
      %v1439 = vld [vmem:[#allocation2 + $0x72] sm:$0xff]
      %v1440 = vld [vmem:[#allocation2 + $0x7a] sm:$0xff]
      %v1441 = vld [vmem:[#allocation2 + $0x82] sm:$0xff]
      %v1442 = vld [vmem:[#allocation2 + $0x8a] sm:$0xff]
      %v1443 = vld [vmem:[#allocation2 + $0x92] sm:$0xff]
      %v1444 = vld [vmem:[#allocation2 + $0x9a] sm:$0xff]
      %v1445 = vld [vmem:[#allocation2 + $0xa2] sm:$0xff]
      %v1446 = vld [vmem:[#allocation2 + $0xaa] sm:$0xff]
      %v1447 = vld [vmem:[#allocation2 + $0xb2] sm:$0xff]
      %v1448 = vld [vmem:[#allocation2 + $0xba] sm:$0xff]
      %v1449 = vld [vmem:[#allocation2 + $0xc2] sm:$0xff]
      %v1450 = vld [vmem:[#allocation2 + $0xca] sm:$0xff]
      %v1451 = vld [vmem:[#allocation2 + $0xd2] sm:$0xff]
      %v1452 = vld [vmem:[#allocation2 + $0xda] sm:$0xff]
      %v1453 = vld [vmem:[#allocation2 + $0xe2] sm:$0xff]
      %v1454 = vld [vmem:[#allocation2 + $0xea] sm:$0xff]
      %v1455 = vld [vmem:[#allocation2 + $0xf2] sm:$0xff]
      %v1456 = vld [vmem:[#allocation2 + $0xfa] sm:$0xff]
      %v1457 = vld [vmem:[#allocation2 + $0x102] sm:$0xff]
      %v1458 = vld [vmem:[#allocation2 + $0x10a] sm:$0xff]
      %v1459 = vld [vmem:[#allocation2 + $0x112] sm:$0xff]
      %v1460 = vld [vmem:[#allocation2 + $0x11a] sm:$0xff]
      %s1461 = scalar_lea.vmem %s4, 256
      %v1462 = vld [vmem:[%s1461] sm:$0xff]
      %v1463 = vld [vmem:[%s1461 + $0x8] sm:$0xff]
      %v1464 = vld [vmem:[%s1461 + $0x10] sm:$0xff]
      %v1465 = vld [vmem:[%s1461 + $0x18] sm:$0xff]
      %v1466 = vld [vmem:[%s1461 + $0x20] sm:$0xff]
      %v1467 = vld [vmem:[%s1461 + $0x28] sm:$0xff]
      %v1468 = vld [vmem:[%s1461 + $0x30] sm:$0xff]
      %v1469 = vld [vmem:[%s1461 + $0x38] sm:$0xff]
      %v1470 = vld [vmem:[%s1461 + $0x40] sm:$0xff]
      %v1471 = vld [vmem:[%s1461 + $0x48] sm:$0xff]
      %v1472 = vld [vmem:[%s1461 + $0x50] sm:$0xff]
      %v1473 = vld [vmem:[%s1461 + $0x58] sm:$0xff]
      %v1474 = vld [vmem:[%s1461 + $0x60] sm:$0xff]
      %v1475 = vld [vmem:[%s1461 + $0x68] sm:$0xff]
      %v1476 = vld [vmem:[%s1461 + $0x70] sm:$0xff]
      %v1477 = vld [vmem:[%s1461 + $0x78] sm:$0xff]
      %1478 = vmatprep.subr.mxu0 0.0
      %1479 = vmatpush1.msra.mxu0 %v1462
      %1480 = vmatprep.subr.mxu0 0.0
      %1481 = vmatpush1.msra.mxu0 %v1463
      %1482 = vmatprep.subr.mxu0 0.0
      %1483 = vmatpush1.msra.mxu0 %v1464
      %1484 = vmatprep.subr.mxu0 0.0
      %1485 = vmatpush1.msra.mxu0 %v1465
      %1486 = vmatprep.subr.mxu0 0.0
      %1487 = vmatpush1.msra.mxu0 %v1466
      %1488 = vmatprep.subr.mxu0 0.0
      %1489 = vmatpush1.msra.mxu0 %v1467
      %1490 = vmatprep.subr.mxu0 0.0
      %1491 = vmatpush1.msra.mxu0 %v1468
      %1492 = vmatprep.subr.mxu0 0.0
      %1493 = vmatpush1.msra.mxu0 %v1469
      %1494 = vmatprep.subr.mxu0 0.0
      %1495 = vmatpush1.msra.mxu0 %v1470
      %1496 = vmatprep.subr.mxu0 0.0
      %1497 = vmatpush1.msra.mxu0 %v1471
      %1498 = vmatprep.subr.mxu0 0.0
      %1499 = vmatpush1.msra.mxu0 %v1472
      %1500 = vmatprep.subr.mxu0 0.0
      %1501 = vmatpush1.msra.mxu0 %v1473
      %1502 = vmatprep.subr.mxu0 0.0
      %1503 = vmatpush1.msra.mxu0 %v1474
      %1504 = vmatprep.subr.mxu0 0.0
      %1505 = vmatpush1.msra.mxu0 %v1475
      %1506 = vmatprep.subr.mxu0 0.0
      %1507 = vmatpush1.msra.mxu0 %v1476
      %1508 = vmatprep.subr.mxu0 0.0
      %1509 = vmatpush1.msra.mxu0 %v1477
      %1510 = vmatprep.subr.mxu0 0.0
      %1511 = vmatpush1.msra.mxu0 0.0
      %1512 = vmatprep.subr.mxu0 0.0
      %1513 = vmatpush1.msra.mxu0 0.0
      %1514 = vmatprep.subr.mxu0 0.0
      %1515 = vmatpush1.msra.mxu0 0.0
      %1516 = vmatprep.subr.mxu0 0.0
      %1517 = vmatpush1.msra.mxu0 0.0
      %1518 = vmatprep.subr.mxu0 0.0
      %1519 = vmatpush1.msra.mxu0 0.0
      %1520 = vmatprep.subr.mxu0 0.0
      %1521 = vmatpush1.msra.mxu0 0.0
      %1522 = vmatprep.subr.mxu0 0.0
      %1523 = vmatpush1.msra.mxu0 0.0
      %1524 = vmatprep.subr.mxu0 0.0
      %1525 = vmatpush1.msra.mxu0 0.0
      %1526 = vmatprep.subr.mxu0 0.0
      %1527 = vmatpush1.msra.mxu0 0.0
      %1528 = vmatprep.subr.mxu0 0.0
      %1529 = vmatpush1.msra.mxu0 0.0
      %1530 = vmatprep.subr.mxu0 0.0
      %1531 = vmatpush1.msra.mxu0 0.0
      %1532 = vmatprep.subr.mxu0 0.0
      %1533 = vmatpush1.msra.mxu0 0.0
      %1534 = vmatprep.subr.mxu0 0.0
      %1535 = vmatpush1.msra.mxu0 0.0
      %1536 = vmatprep.subr.mxu0 0.0
      %1537 = vmatpush1.msra.mxu0 0.0
      %1538 = vmatprep.subr.mxu0 0.0
      %1539 = vmatpush1.msra.mxu0 0.0
      %1540 = vmatprep.subr.mxu0 0.0
      %1541 = vmatpush1.msra.mxu0 0.0
      %1542 = vmatprep.mubr.f32.mxu0 0.0
      %1543 = vmatmul.mubr.f32.gmra.mrb[0].mxu0 %v1425
      %v1544 = vpop.f32.mrb[0].mxu0
      %v1545 = vadd.f32 0.0, %v1544
      %v1546 = vpop.f32.mrb[0].mxu0
      %1547 = vmatprep.mubr.f32.mxu0 0.0
      %1548 = vmatmul.mubr.f32.gmra.mrb[0].mxu0 %v1426
      %v1549 = vpop.f32.mrb[0].mxu0
      %v1550 = vadd.f32 0.0, %v1549
      %v1551 = vpop.f32.mrb[0].mxu0
      %1552 = vmatprep.mubr.f32.mxu0 0.0
      %1553 = vmatmul.mubr.f32.gmra.mrb[0].mxu0 %v1427
      %v1554 = vpop.f32.mrb[0].mxu0
      %v1555 = vadd.f32 0.0, %v1554
      %v1556 = vpop.f32.mrb[0].mxu0
      %1557 = vmatprep.mubr.f32.mxu0 0.0
      %1558 = vmatmul.mubr.f32.gmra.mrb[0].mxu0 %v1428
      %v1559 = vpop.f32.mrb[0].mxu0
      %v1560 = vadd.f32 0.0, %v1559
      %v1561 = vpop.f32.mrb[0].mxu0
      %1562 = vmatprep.mubr.f32.mxu0 0.0
      %1563 = vmatmul.mubr.f32.gmra.mrb[0].mxu0 %v1429
      %v1564 = vpop.f32.mrb[0].mxu0
      %v1565 = vadd.f32 0.0, %v1564
      %v1566 = vpop.f32.mrb[0].mxu0
      %1567 = vmatprep.mubr.f32.mxu0 0.0
      %1568 = vmatmul.mubr.f32.gmra.mrb[0].mxu0 %v1430
      %v1569 = vpop.f32.mrb[0].mxu0
      %v1570 = vadd.f32 0.0, %v1569
      %v1571 = vpop.f32.mrb[0].mxu0
      %1572 = vmatprep.mubr.f32.mxu0 0.0
      %1573 = vmatmul.mubr.f32.gmra.mrb[0].mxu0 %v1431
      %v1574 = vpop.f32.mrb[0].mxu0
      %v1575 = vadd.f32 0.0, %v1574
      %v1576 = vpop.f32.mrb[0].mxu0
      %1577 = vmatprep.mubr.f32.mxu0 0.0
      %1578 = vmatmul.mubr.f32.gmra.mrb[0].mxu0 %v1432
      %v1579 = vpop.f32.mrb[0].mxu0
      %v1580 = vadd.f32 0.0, %v1579
      %v1581 = vpop.f32.mrb[0].mxu0
      %1582 = vmatprep.mubr.f32.mxu0 0.0
      %1583 = vmatmul.mubr.f32.gmra.mrb[0].mxu0 %v1433
      %v1584 = vpop.f32.mrb[0].mxu0
      %v1585 = vadd.f32 0.0, %v1584
      %v1586 = vpop.f32.mrb[0].mxu0
      %1587 = vmatprep.mubr.f32.mxu0 0.0
      %1588 = vmatmul.mubr.f32.gmra.mrb[0].mxu0 %v1434
      %v1589 = vpop.f32.mrb[0].mxu0
      %v1590 = vadd.f32 0.0, %v1589
      %v1591 = vpop.f32.mrb[0].mxu0
      %1592 = vmatprep.mubr.f32.mxu0 0.0
      %1593 = vmatmul.mubr.f32.gmra.mrb[0].mxu0 %v1435
      %v1594 = vpop.f32.mrb[0].mxu0
      %v1595 = vadd.f32 0.0, %v1594
      %v1596 = vpop.f32.mrb[0].mxu0
      %1597 = vmatprep.mubr.f32.mxu0 0.0
      %1598 = vmatmul.mubr.f32.gmra.mrb[0].mxu0 %v1436
      %v1599 = vpop.f32.mrb[0].mxu0
      %v1600 = vadd.f32 0.0, %v1599
      %v1601 = vpop.f32.mrb[0].mxu0
      %1602 = vmatprep.mubr.f32.mxu0 0.0
      %1603 = vmatmul.mubr.f32.gmra.mrb[0].mxu0 %v1437
      %v1604 = vpop.f32.mrb[0].mxu0
      %v1605 = vadd.f32 0.0, %v1604
      %v1606 = vpop.f32.mrb[0].mxu0
      %1607 = vmatprep.mubr.f32.mxu0 0.0
      %1608 = vmatmul.mubr.f32.gmra.mrb[0].mxu0 %v1438
      %v1609 = vpop.f32.mrb[0].mxu0
      %v1610 = vadd.f32 0.0, %v1609
      %v1611 = vpop.f32.mrb[0].mxu0
      %1612 = vmatprep.mubr.f32.mxu0 0.0
      %1613 = vmatmul.mubr.f32.gmra.mrb[0].mxu0 %v1439
      %v1614 = vpop.f32.mrb[0].mxu0
      %v1615 = vadd.f32 0.0, %v1614
      %v1616 = vpop.f32.mrb[0].mxu0
      %1617 = vmatprep.mubr.f32.mxu0 0.0
      %1618 = vmatmul.mubr.f32.gmra.mrb[0].mxu0 %v1440
      %v1619 = vpop.f32.mrb[0].mxu0
      %v1620 = vadd.f32 0.0, %v1619
      %v1621 = vpop.f32.mrb[0].mxu0
      %1622 = vmatprep.mubr.f32.mxu0 0.0
      %1623 = vmatmul.mubr.f32.gmra.mrb[0].mxu0 %v1441
      %v1624 = vpop.f32.mrb[0].mxu0
      %v1625 = vadd.f32 0.0, %v1624
      %v1626 = vpop.f32.mrb[0].mxu0
      %1627 = vmatprep.mubr.f32.mxu0 0.0
      %1628 = vmatmul.mubr.f32.gmra.mrb[0].mxu0 %v1442
      %v1629 = vpop.f32.mrb[0].mxu0
      %v1630 = vadd.f32 0.0, %v1629
      %v1631 = vpop.f32.mrb[0].mxu0
      %1632 = vmatprep.mubr.f32.mxu0 0.0
      %1633 = vmatmul.mubr.f32.gmra.mrb[0].mxu0 %v1443
      %v1634 = vpop.f32.mrb[0].mxu0
      %v1635 = vadd.f32 0.0, %v1634
      %v1636 = vpop.f32.mrb[0].mxu0
      %1637 = vmatprep.mubr.f32.mxu0 0.0
      %1638 = vmatmul.mubr.f32.gmra.mrb[0].mxu0 %v1444
      %v1639 = vpop.f32.mrb[0].mxu0
      %v1640 = vadd.f32 0.0, %v1639
      %v1641 = vpop.f32.mrb[0].mxu0
      %1642 = vmatprep.mubr.f32.mxu0 0.0
      %1643 = vmatmul.mubr.f32.gmra.mrb[0].mxu0 %v1445
      %v1644 = vpop.f32.mrb[0].mxu0
      %v1645 = vadd.f32 0.0, %v1644
      %v1646 = vpop.f32.mrb[0].mxu0
      %1647 = vmatprep.mubr.f32.mxu0 0.0
      %1648 = vmatmul.mubr.f32.gmra.mrb[0].mxu0 %v1446
      %v1649 = vpop.f32.mrb[0].mxu0
      %v1650 = vadd.f32 0.0, %v1649
      %v1651 = vpop.f32.mrb[0].mxu0
      %1652 = vmatprep.mubr.f32.mxu0 0.0
      %1653 = vmatmul.mubr.f32.gmra.mrb[0].mxu0 %v1447
      %v1654 = vpop.f32.mrb[0].mxu0
      %v1655 = vadd.f32 0.0, %v1654
      %v1656 = vpop.f32.mrb[0].mxu0
      %1657 = vmatprep.mubr.f32.mxu0 0.0
      %1658 = vmatmul.mubr.f32.gmra.mrb[0].mxu0 %v1448
      %v1659 = vpop.f32.mrb[0].mxu0
      %v1660 = vadd.f32 0.0, %v1659
      %v1661 = vpop.f32.mrb[0].mxu0
      %1662 = vmatprep.mubr.f32.mxu0 0.0
      %1663 = vmatmul.mubr.f32.gmra.mrb[0].mxu0 %v1449
      %v1664 = vpop.f32.mrb[0].mxu0
      %v1665 = vadd.f32 0.0, %v1664
      %v1666 = vpop.f32.mrb[0].mxu0
      %1667 = vmatprep.mubr.f32.mxu0 0.0
      %1668 = vmatmul.mubr.f32.gmra.mrb[0].mxu0 %v1450
      %v1669 = vpop.f32.mrb[0].mxu0
      %v1670 = vadd.f32 0.0, %v1669
      %v1671 = vpop.f32.mrb[0].mxu0
      %1672 = vmatprep.mubr.f32.mxu0 0.0
      %1673 = vmatmul.mubr.f32.gmra.mrb[0].mxu0 %v1451
      %v1674 = vpop.f32.mrb[0].mxu0
      %v1675 = vadd.f32 0.0, %v1674
      %v1676 = vpop.f32.mrb[0].mxu0
      %1677 = vmatprep.mubr.f32.mxu0 0.0
      %1678 = vmatmul.mubr.f32.gmra.mrb[0].mxu0 %v1452
      %v1679 = vpop.f32.mrb[0].mxu0
      %v1680 = vadd.f32 0.0, %v1679
      %v1681 = vpop.f32.mrb[0].mxu0
      %1682 = vmatprep.mubr.f32.mxu0 0.0
      %1683 = vmatmul.mubr.f32.gmra.mrb[0].mxu0 %v1453
      %v1684 = vpop.f32.mrb[0].mxu0
      %v1685 = vadd.f32 0.0, %v1684
      %v1686 = vpop.f32.mrb[0].mxu0
      %1687 = vmatprep.mubr.f32.mxu0 0.0
      %1688 = vmatmul.mubr.f32.gmra.mrb[0].mxu0 %v1454
      %v1689 = vpop.f32.mrb[0].mxu0
      %v1690 = vadd.f32 0.0, %v1689
      %v1691 = vpop.f32.mrb[0].mxu0
      %1692 = vmatprep.mubr.f32.mxu0 0.0
      %1693 = vmatmul.mubr.f32.gmra.mrb[0].mxu0 %v1455
      %v1694 = vpop.f32.mrb[0].mxu0
      %v1695 = vadd.f32 0.0, %v1694
      %v1696 = vpop.f32.mrb[0].mxu0
      %1697 = vmatprep.mubr.f32.mxu0 0.0
      %1698 = vmatmul.mubr.f32.gmra.mrb[0].mxu0 %v1456
      %v1699 = vpop.f32.mrb[0].mxu0
      %v1700 = vadd.f32 0.0, %v1699
      %v1701 = vpop.f32.mrb[0].mxu0
      %1702 = vmatprep.mubr.f32.mxu0 0.0
      %1703 = vmatmul.mubr.f32.gmra.mrb[0].mxu0 %v1457
      %v1704 = vpop.f32.mrb[0].mxu0
      %v1705 = vadd.f32 0.0, %v1704
      %v1706 = vpop.f32.mrb[0].mxu0
      %1707 = vmatprep.mubr.f32.mxu0 0.0
      %1708 = vmatmul.mubr.f32.gmra.mrb[0].mxu0 %v1458
      %v1709 = vpop.f32.mrb[0].mxu0
      %v1710 = vadd.f32 0.0, %v1709
      %v1711 = vpop.f32.mrb[0].mxu0
      %1712 = vmatprep.mubr.f32.mxu0 0.0
      %1713 = vmatmul.mubr.f32.gmra.mrb[0].mxu0 %v1459
      %v1714 = vpop.f32.mrb[0].mxu0
      %v1715 = vadd.f32 0.0, %v1714
      %v1716 = vpop.f32.mrb[0].mxu0
      %1717 = vmatprep.mubr.f32.mxu0 0.0
      %1718 = vmatmul.mubr.f32.gmra.mrb[0].mxu0 %v1460
      %v1719 = vpop.f32.mrb[0].mxu0
      %v1720 = vadd.f32 0.0, %v1719
      %v1721 = vpop.f32.mrb[0].mxu0
      %1722 = vdwg.mxu0
      %v1723 = vadd.f32 %v1247, %v1545
      %v1724 = vadd.f32 %v1252, %v1550
      %v1725 = vadd.f32 %v1257, %v1555
      %v1726 = vadd.f32 %v1262, %v1560
      %v1727 = vadd.f32 %v1267, %v1565
      %v1728 = vadd.f32 %v1272, %v1570
      %v1729 = vadd.f32 %v1277, %v1575
      %v1730 = vadd.f32 %v1282, %v1580
      %v1731 = vadd.f32 %v1287, %v1585
      %v1732 = vadd.f32 %v1292, %v1590
      %v1733 = vadd.f32 %v1297, %v1595
      %v1734 = vadd.f32 %v1302, %v1600
      %v1735 = vadd.f32 %v1307, %v1605
      %v1736 = vadd.f32 %v1312, %v1610
      %v1737 = vadd.f32 %v1317, %v1615
      %v1738 = vadd.f32 %v1322, %v1620
      %v1739 = vadd.f32 %v1327, %v1625
      %v1740 = vadd.f32 %v1332, %v1630
      %v1741 = vadd.f32 %v1337, %v1635
      %v1742 = vadd.f32 %v1342, %v1640
      %v1743 = vadd.f32 %v1347, %v1645
      %v1744 = vadd.f32 %v1352, %v1650
      %v1745 = vadd.f32 %v1357, %v1655
      %v1746 = vadd.f32 %v1362, %v1660
      %v1747 = vadd.f32 %v1367, %v1665
      %v1748 = vadd.f32 %v1372, %v1670
      %v1749 = vadd.f32 %v1377, %v1675
      %v1750 = vadd.f32 %v1382, %v1680
      %v1751 = vadd.f32 %v1387, %v1685
      %v1752 = vadd.f32 %v1392, %v1690
      %v1753 = vadd.f32 %v1397, %v1695
      %v1754 = vadd.f32 %v1402, %v1700
      %v1755 = vadd.f32 %v1407, %v1705
      %v1756 = vadd.f32 %v1412, %v1710
      %v1757 = vadd.f32 %v1417, %v1715
      %v1758 = vadd.f32 %v1422, %v1720
      %v1759 = vld [vmem:[#allocation2 + $0x12] sm:$0xff]
      %v1760 = vld [vmem:[#allocation2 + $0x1a] sm:$0xff]
      %v1761 = vld [vmem:[#allocation2 + $0x22] sm:$0xff]
      %v1762 = vld [vmem:[#allocation2 + $0x2a] sm:$0xff]
      %v1763 = vld [vmem:[#allocation2 + $0x32] sm:$0xff]
      %v1764 = vld [vmem:[#allocation2 + $0x3a] sm:$0xff]
      %v1765 = vld [vmem:[#allocation2 + $0x42] sm:$0xff]
      %v1766 = vld [vmem:[#allocation2 + $0x4a] sm:$0xff]
      %v1767 = vld [vmem:[#allocation2 + $0x52] sm:$0xff]
      %v1768 = vld [vmem:[#allocation2 + $0x5a] sm:$0xff]
      %v1769 = vld [vmem:[#allocation2 + $0x62] sm:$0xff]
      %v1770 = vld [vmem:[#allocation2 + $0x6a] sm:$0xff]
      %v1771 = vld [vmem:[#allocation2 + $0x72] sm:$0xff]
      %v1772 = vld [vmem:[#allocation2 + $0x7a] sm:$0xff]
      %v1773 = vld [vmem:[#allocation2 + $0x82] sm:$0xff]
      %v1774 = vld [vmem:[#allocation2 + $0x8a] sm:$0xff]
      %v1775 = vld [vmem:[#allocation2 + $0x92] sm:$0xff]
      %v1776 = vld [vmem:[#allocation2 + $0x9a] sm:$0xff]
      %v1777 = vld [vmem:[#allocation2 + $0xa2] sm:$0xff]
      %v1778 = vld [vmem:[#allocation2 + $0xaa] sm:$0xff]
      %v1779 = vld [vmem:[#allocation2 + $0xb2] sm:$0xff]
      %v1780 = vld [vmem:[#allocation2 + $0xba] sm:$0xff]
      %v1781 = vld [vmem:[#allocation2 + $0xc2] sm:$0xff]
      %v1782 = vld [vmem:[#allocation2 + $0xca] sm:$0xff]
      %v1783 = vld [vmem:[#allocation2 + $0xd2] sm:$0xff]
      %v1784 = vld [vmem:[#allocation2 + $0xda] sm:$0xff]
      %v1785 = vld [vmem:[#allocation2 + $0xe2] sm:$0xff]
      %v1786 = vld [vmem:[#allocation2 + $0xea] sm:$0xff]
      %v1787 = vld [vmem:[#allocation2 + $0xf2] sm:$0xff]
      %v1788 = vld [vmem:[#allocation2 + $0xfa] sm:$0xff]
      %v1789 = vld [vmem:[#allocation2 + $0x102] sm:$0xff]
      %v1790 = vld [vmem:[#allocation2 + $0x10a] sm:$0xff]
      %v1791 = vld [vmem:[#allocation2 + $0x112] sm:$0xff]
      %v1792 = vld [vmem:[#allocation2 + $0x11a] sm:$0xff]
      %v1793 = vld [vmem:[#allocation2 + $0x122] sm:$0xff]
      %v1794 = vld [vmem:[#allocation2 + $0x12a] sm:$0xff]
      %s1795 = scalar_lea.vmem %s4, 384
      %v1796 = vld [vmem:[%s1795] sm:$0xff]
      %v1797 = vld [vmem:[%s1795 + $0x8] sm:$0xff]
      %v1798 = vld [vmem:[%s1795 + $0x10] sm:$0xff]
      %v1799 = vld [vmem:[%s1795 + $0x18] sm:$0xff]
      %v1800 = vld [vmem:[%s1795 + $0x20] sm:$0xff]
      %v1801 = vld [vmem:[%s1795 + $0x28] sm:$0xff]
      %v1802 = vld [vmem:[%s1795 + $0x30] sm:$0xff]
      %v1803 = vld [vmem:[%s1795 + $0x38] sm:$0xff]
      %v1804 = vld [vmem:[%s1795 + $0x40] sm:$0xff]
      %v1805 = vld [vmem:[%s1795 + $0x48] sm:$0xff]
      %v1806 = vld [vmem:[%s1795 + $0x50] sm:$0xff]
      %v1807 = vld [vmem:[%s1795 + $0x58] sm:$0xff]
      %v1808 = vld [vmem:[%s1795 + $0x60] sm:$0xff]
      %v1809 = vld [vmem:[%s1795 + $0x68] sm:$0xff]
      %v1810 = vld [vmem:[%s1795 + $0x70] sm:$0xff]
      %v1811 = vld [vmem:[%s1795 + $0x78] sm:$0xff]
      %1812 = vmatprep.subr.mxu0 0.0
      %1813 = vmatpush1.msra.mxu0 %v1796
      %1814 = vmatprep.subr.mxu0 0.0
      %1815 = vmatpush1.msra.mxu0 %v1797
      %1816 = vmatprep.subr.mxu0 0.0
      %1817 = vmatpush1.msra.mxu0 %v1798
      %1818 = vmatprep.subr.mxu0 0.0
      %1819 = vmatpush1.msra.mxu0 %v1799
      %1820 = vmatprep.subr.mxu0 0.0
      %1821 = vmatpush1.msra.mxu0 %v1800
      %1822 = vmatprep.subr.mxu0 0.0
      %1823 = vmatpush1.msra.mxu0 %v1801
      %1824 = vmatprep.subr.mxu0 0.0
      %1825 = vmatpush1.msra.mxu0 %v1802
      %1826 = vmatprep.subr.mxu0 0.0
      %1827 = vmatpush1.msra.mxu0 %v1803
      %1828 = vmatprep.subr.mxu0 0.0
      %1829 = vmatpush1.msra.mxu0 %v1804
      %1830 = vmatprep.subr.mxu0 0.0
      %1831 = vmatpush1.msra.mxu0 %v1805
      %1832 = vmatprep.subr.mxu0 0.0
      %1833 = vmatpush1.msra.mxu0 %v1806
      %1834 = vmatprep.subr.mxu0 0.0
      %1835 = vmatpush1.msra.mxu0 %v1807
      %1836 = vmatprep.subr.mxu0 0.0
      %1837 = vmatpush1.msra.mxu0 %v1808
      %1838 = vmatprep.subr.mxu0 0.0
      %1839 = vmatpush1.msra.mxu0 %v1809
      %1840 = vmatprep.subr.mxu0 0.0
      %1841 = vmatpush1.msra.mxu0 %v1810
      %1842 = vmatprep.subr.mxu0 0.0
      %1843 = vmatpush1.msra.mxu0 %v1811
      %1844 = vmatprep.subr.mxu0 0.0
      %1845 = vmatpush1.msra.mxu0 0.0
      %1846 = vmatprep.subr.mxu0 0.0
      %1847 = vmatpush1.msra.mxu0 0.0
      %1848 = vmatprep.subr.mxu0 0.0
      %1849 = vmatpush1.msra.mxu0 0.0
      %1850 = vmatprep.subr.mxu0 0.0
      %1851 = vmatpush1.msra.mxu0 0.0
      %1852 = vmatprep.subr.mxu0 0.0
      %1853 = vmatpush1.msra.mxu0 0.0
      %1854 = vmatprep.subr.mxu0 0.0
      %1855 = vmatpush1.msra.mxu0 0.0
      %1856 = vmatprep.subr.mxu0 0.0
      %1857 = vmatpush1.msra.mxu0 0.0
      %1858 = vmatprep.subr.mxu0 0.0
      %1859 = vmatpush1.msra.mxu0 0.0
      %1860 = vmatprep.subr.mxu0 0.0
      %1861 = vmatpush1.msra.mxu0 0.0
      %1862 = vmatprep.subr.mxu0 0.0
      %1863 = vmatpush1.msra.mxu0 0.0
      %1864 = vmatprep.subr.mxu0 0.0
      %1865 = vmatpush1.msra.mxu0 0.0
      %1866 = vmatprep.subr.mxu0 0.0
      %1867 = vmatpush1.msra.mxu0 0.0
      %1868 = vmatprep.subr.mxu0 0.0
      %1869 = vmatpush1.msra.mxu0 0.0
      %1870 = vmatprep.subr.mxu0 0.0
      %1871 = vmatpush1.msra.mxu0 0.0
      %1872 = vmatprep.subr.mxu0 0.0
      %1873 = vmatpush1.msra.mxu0 0.0
      %1874 = vmatprep.subr.mxu0 0.0
      %1875 = vmatpush1.msra.mxu0 0.0
      %1876 = vmatprep.mubr.f32.mxu0 0.0
      %1877 = vmatmul.mubr.f32.gmra.mrb[0].mxu0 %v1759
      %v1878 = vpop.f32.mrb[0].mxu0
      %v1879 = vadd.f32 0.0, %v1878
      %v1880 = vpop.f32.mrb[0].mxu0
      %1881 = vmatprep.mubr.f32.mxu0 0.0
      %1882 = vmatmul.mubr.f32.gmra.mrb[0].mxu0 %v1760
      %v1883 = vpop.f32.mrb[0].mxu0
      %v1884 = vadd.f32 0.0, %v1883
      %v1885 = vpop.f32.mrb[0].mxu0
      %1886 = vmatprep.mubr.f32.mxu0 0.0
      %1887 = vmatmul.mubr.f32.gmra.mrb[0].mxu0 %v1761
      %v1888 = vpop.f32.mrb[0].mxu0
      %v1889 = vadd.f32 0.0, %v1888
      %v1890 = vpop.f32.mrb[0].mxu0
      %1891 = vmatprep.mubr.f32.mxu0 0.0
      %1892 = vmatmul.mubr.f32.gmra.mrb[0].mxu0 %v1762
      %v1893 = vpop.f32.mrb[0].mxu0
      %v1894 = vadd.f32 0.0, %v1893
      %v1895 = vpop.f32.mrb[0].mxu0
      %1896 = vmatprep.mubr.f32.mxu0 0.0
      %1897 = vmatmul.mubr.f32.gmra.mrb[0].mxu0 %v1763
      %v1898 = vpop.f32.mrb[0].mxu0
      %v1899 = vadd.f32 0.0, %v1898
      %v1900 = vpop.f32.mrb[0].mxu0
      %1901 = vmatprep.mubr.f32.mxu0 0.0
      %1902 = vmatmul.mubr.f32.gmra.mrb[0].mxu0 %v1764
      %v1903 = vpop.f32.mrb[0].mxu0
      %v1904 = vadd.f32 0.0, %v1903
      %v1905 = vpop.f32.mrb[0].mxu0
      %1906 = vmatprep.mubr.f32.mxu0 0.0
      %1907 = vmatmul.mubr.f32.gmra.mrb[0].mxu0 %v1765
      %v1908 = vpop.f32.mrb[0].mxu0
      %v1909 = vadd.f32 0.0, %v1908
      %v1910 = vpop.f32.mrb[0].mxu0
      %1911 = vmatprep.mubr.f32.mxu0 0.0
      %1912 = vmatmul.mubr.f32.gmra.mrb[0].mxu0 %v1766
      %v1913 = vpop.f32.mrb[0].mxu0
      %v1914 = vadd.f32 0.0, %v1913
      %v1915 = vpop.f32.mrb[0].mxu0
      %1916 = vmatprep.mubr.f32.mxu0 0.0
      %1917 = vmatmul.mubr.f32.gmra.mrb[0].mxu0 %v1767
      %v1918 = vpop.f32.mrb[0].mxu0
      %v1919 = vadd.f32 0.0, %v1918
      %v1920 = vpop.f32.mrb[0].mxu0
      %1921 = vmatprep.mubr.f32.mxu0 0.0
      %1922 = vmatmul.mubr.f32.gmra.mrb[0].mxu0 %v1768
      %v1923 = vpop.f32.mrb[0].mxu0
      %v1924 = vadd.f32 0.0, %v1923
      %v1925 = vpop.f32.mrb[0].mxu0
      %1926 = vmatprep.mubr.f32.mxu0 0.0
      %1927 = vmatmul.mubr.f32.gmra.mrb[0].mxu0 %v1769
      %v1928 = vpop.f32.mrb[0].mxu0
      %v1929 = vadd.f32 0.0, %v1928
      %v1930 = vpop.f32.mrb[0].mxu0
      %1931 = vmatprep.mubr.f32.mxu0 0.0
      %1932 = vmatmul.mubr.f32.gmra.mrb[0].mxu0 %v1770
      %v1933 = vpop.f32.mrb[0].mxu0
      %v1934 = vadd.f32 0.0, %v1933
      %v1935 = vpop.f32.mrb[0].mxu0
      %1936 = vmatprep.mubr.f32.mxu0 0.0
      %1937 = vmatmul.mubr.f32.gmra.mrb[0].mxu0 %v1771
      %v1938 = vpop.f32.mrb[0].mxu0
      %v1939 = vadd.f32 0.0, %v1938
      %v1940 = vpop.f32.mrb[0].mxu0
      %1941 = vmatprep.mubr.f32.mxu0 0.0
      %1942 = vmatmul.mubr.f32.gmra.mrb[0].mxu0 %v1772
      %v1943 = vpop.f32.mrb[0].mxu0
      %v1944 = vadd.f32 0.0, %v1943
      %v1945 = vpop.f32.mrb[0].mxu0
      %1946 = vmatprep.mubr.f32.mxu0 0.0
      %1947 = vmatmul.mubr.f32.gmra.mrb[0].mxu0 %v1773
      %v1948 = vpop.f32.mrb[0].mxu0
      %v1949 = vadd.f32 0.0, %v1948
      %v1950 = vpop.f32.mrb[0].mxu0
      %1951 = vmatprep.mubr.f32.mxu0 0.0
      %1952 = vmatmul.mubr.f32.gmra.mrb[0].mxu0 %v1774
      %v1953 = vpop.f32.mrb[0].mxu0
      %v1954 = vadd.f32 0.0, %v1953
      %v1955 = vpop.f32.mrb[0].mxu0
      %1956 = vmatprep.mubr.f32.mxu0 0.0
      %1957 = vmatmul.mubr.f32.gmra.mrb[0].mxu0 %v1775
      %v1958 = vpop.f32.mrb[0].mxu0
      %v1959 = vadd.f32 0.0, %v1958
      %v1960 = vpop.f32.mrb[0].mxu0
      %1961 = vmatprep.mubr.f32.mxu0 0.0
      %1962 = vmatmul.mubr.f32.gmra.mrb[0].mxu0 %v1776
      %v1963 = vpop.f32.mrb[0].mxu0
      %v1964 = vadd.f32 0.0, %v1963
      %v1965 = vpop.f32.mrb[0].mxu0
      %1966 = vmatprep.mubr.f32.mxu0 0.0
      %1967 = vmatmul.mubr.f32.gmra.mrb[0].mxu0 %v1777
      %v1968 = vpop.f32.mrb[0].mxu0
      %v1969 = vadd.f32 0.0, %v1968
      %v1970 = vpop.f32.mrb[0].mxu0
      %1971 = vmatprep.mubr.f32.mxu0 0.0
      %1972 = vmatmul.mubr.f32.gmra.mrb[0].mxu0 %v1778
      %v1973 = vpop.f32.mrb[0].mxu0
      %v1974 = vadd.f32 0.0, %v1973
      %v1975 = vpop.f32.mrb[0].mxu0
      %1976 = vmatprep.mubr.f32.mxu0 0.0
      %1977 = vmatmul.mubr.f32.gmra.mrb[0].mxu0 %v1779
      %v1978 = vpop.f32.mrb[0].mxu0
      %v1979 = vadd.f32 0.0, %v1978
      %v1980 = vpop.f32.mrb[0].mxu0
      %1981 = vmatprep.mubr.f32.mxu0 0.0
      %1982 = vmatmul.mubr.f32.gmra.mrb[0].mxu0 %v1780
      %v1983 = vpop.f32.mrb[0].mxu0
      %v1984 = vadd.f32 0.0, %v1983
      %v1985 = vpop.f32.mrb[0].mxu0
      %1986 = vmatprep.mubr.f32.mxu0 0.0
      %1987 = vmatmul.mubr.f32.gmra.mrb[0].mxu0 %v1781
      %v1988 = vpop.f32.mrb[0].mxu0
      %v1989 = vadd.f32 0.0, %v1988
      %v1990 = vpop.f32.mrb[0].mxu0
      %1991 = vmatprep.mubr.f32.mxu0 0.0
      %1992 = vmatmul.mubr.f32.gmra.mrb[0].mxu0 %v1782
      %v1993 = vpop.f32.mrb[0].mxu0
      %v1994 = vadd.f32 0.0, %v1993
      %v1995 = vpop.f32.mrb[0].mxu0
      %1996 = vmatprep.mubr.f32.mxu0 0.0
      %1997 = vmatmul.mubr.f32.gmra.mrb[0].mxu0 %v1783
      %v1998 = vpop.f32.mrb[0].mxu0
      %v1999 = vadd.f32 0.0, %v1998
      %v2000 = vpop.f32.mrb[0].mxu0
      %2001 = vmatprep.mubr.f32.mxu0 0.0
      %2002 = vmatmul.mubr.f32.gmra.mrb[0].mxu0 %v1784
      %v2003 = vpop.f32.mrb[0].mxu0
      %v2004 = vadd.f32 0.0, %v2003
      %v2005 = vpop.f32.mrb[0].mxu0
      %2006 = vmatprep.mubr.f32.mxu0 0.0
      %2007 = vmatmul.mubr.f32.gmra.mrb[0].mxu0 %v1785
      %v2008 = vpop.f32.mrb[0].mxu0
      %v2009 = vadd.f32 0.0, %v2008
      %v2010 = vpop.f32.mrb[0].mxu0
      %2011 = vmatprep.mubr.f32.mxu0 0.0
      %2012 = vmatmul.mubr.f32.gmra.mrb[0].mxu0 %v1786
      %v2013 = vpop.f32.mrb[0].mxu0
      %v2014 = vadd.f32 0.0, %v2013
      %v2015 = vpop.f32.mrb[0].mxu0
      %2016 = vmatprep.mubr.f32.mxu0 0.0
      %2017 = vmatmul.mubr.f32.gmra.mrb[0].mxu0 %v1787
      %v2018 = vpop.f32.mrb[0].mxu0
      %v2019 = vadd.f32 0.0, %v2018
      %v2020 = vpop.f32.mrb[0].mxu0
      %2021 = vmatprep.mubr.f32.mxu0 0.0
      %2022 = vmatmul.mubr.f32.gmra.mrb[0].mxu0 %v1788
      %v2023 = vpop.f32.mrb[0].mxu0
      %v2024 = vadd.f32 0.0, %v2023
      %v2025 = vpop.f32.mrb[0].mxu0
      %2026 = vmatprep.mubr.f32.mxu0 0.0
      %2027 = vmatmul.mubr.f32.gmra.mrb[0].mxu0 %v1789
      %v2028 = vpop.f32.mrb[0].mxu0
      %v2029 = vadd.f32 0.0, %v2028
      %v2030 = vpop.f32.mrb[0].mxu0
      %2031 = vmatprep.mubr.f32.mxu0 0.0
      %2032 = vmatmul.mubr.f32.gmra.mrb[0].mxu0 %v1790
      %v2033 = vpop.f32.mrb[0].mxu0
      %v2034 = vadd.f32 0.0, %v2033
      %v2035 = vpop.f32.mrb[0].mxu0
      %2036 = vmatprep.mubr.f32.mxu0 0.0
      %2037 = vmatmul.mubr.f32.gmra.mrb[0].mxu0 %v1791
      %v2038 = vpop.f32.mrb[0].mxu0
      %v2039 = vadd.f32 0.0, %v2038
      %v2040 = vpop.f32.mrb[0].mxu0
      %2041 = vmatprep.mubr.f32.mxu0 0.0
      %2042 = vmatmul.mubr.f32.gmra.mrb[0].mxu0 %v1792
      %v2043 = vpop.f32.mrb[0].mxu0
      %v2044 = vadd.f32 0.0, %v2043
      %v2045 = vpop.f32.mrb[0].mxu0
      %2046 = vmatprep.mubr.f32.mxu0 0.0
      %2047 = vmatmul.mubr.f32.gmra.mrb[0].mxu0 %v1793
      %v2048 = vpop.f32.mrb[0].mxu0
      %v2049 = vadd.f32 0.0, %v2048
      %v2050 = vpop.f32.mrb[0].mxu0
      %2051 = vmatprep.mubr.f32.mxu0 0.0
      %2052 = vmatmul.mubr.f32.gmra.mrb[0].mxu0 %v1794
      %v2053 = vpop.f32.mrb[0].mxu0
      %v2054 = vadd.f32 0.0, %v2053
      %v2055 = vpop.f32.mrb[0].mxu0
      %2056 = vdwg.mxu0
      %v2057 = vadd.f32 %v1723, %v1879
      %v2058 = vadd.f32 %v1724, %v1884
      %v2059 = vadd.f32 %v1725, %v1889
      %v2060 = vadd.f32 %v1726, %v1894
      %v2061 = vadd.f32 %v1727, %v1899
      %v2062 = vadd.f32 %v1728, %v1904
      %v2063 = vadd.f32 %v1729, %v1909
      %v2064 = vadd.f32 %v1730, %v1914
      %v2065 = vadd.f32 %v1731, %v1919
      %v2066 = vadd.f32 %v1732, %v1924
      %v2067 = vadd.f32 %v1733, %v1929
      %v2068 = vadd.f32 %v1734, %v1934
      %v2069 = vadd.f32 %v1735, %v1939
      %v2070 = vadd.f32 %v1736, %v1944
      %v2071 = vadd.f32 %v1737, %v1949
      %v2072 = vadd.f32 %v1738, %v1954
      %v2073 = vadd.f32 %v1739, %v1959
      %v2074 = vadd.f32 %v1740, %v1964
      %v2075 = vadd.f32 %v1741, %v1969
      %v2076 = vadd.f32 %v1742, %v1974
      %v2077 = vadd.f32 %v1743, %v1979
      %v2078 = vadd.f32 %v1744, %v1984
      %v2079 = vadd.f32 %v1745, %v1989
      %v2080 = vadd.f32 %v1746, %v1994
      %v2081 = vadd.f32 %v1747, %v1999
      %v2082 = vadd.f32 %v1748, %v2004
      %v2083 = vadd.f32 %v1749, %v2009
      %v2084 = vadd.f32 %v1750, %v2014
      %v2085 = vadd.f32 %v1751, %v2019
      %v2086 = vadd.f32 %v1752, %v2024
      %v2087 = vadd.f32 %v1753, %v2029
      %v2088 = vadd.f32 %v1754, %v2034
      %v2089 = vadd.f32 %v1755, %v2039
      %v2090 = vadd.f32 %v1756, %v2044
      %v2091 = vadd.f32 %v1757, %v2049
      %v2092 = vadd.f32 %v1758, %v2054
      %v2093 = vld [vmem:[#allocation2 + $0x13] sm:$0xff]
      %v2094 = vld [vmem:[#allocation2 + $0x1b] sm:$0xff]
      %v2095 = vld [vmem:[#allocation2 + $0x23] sm:$0xff]
      %v2096 = vld [vmem:[#allocation2 + $0x2b] sm:$0xff]
      %v2097 = vld [vmem:[#allocation2 + $0x33] sm:$0xff]
      %v2098 = vld [vmem:[#allocation2 + $0x3b] sm:$0xff]
      %v2099 = vld [vmem:[#allocation2 + $0x43] sm:$0xff]
      %v2100 = vld [vmem:[#allocation2 + $0x4b] sm:$0xff]
      %v2101 = vld [vmem:[#allocation2 + $0x53] sm:$0xff]
      %v2102 = vld [vmem:[#allocation2 + $0x5b] sm:$0xff]
      %v2103 = vld [vmem:[#allocation2 + $0x63] sm:$0xff]
      %v2104 = vld [vmem:[#allocation2 + $0x6b] sm:$0xff]
      %v2105 = vld [vmem:[#allocation2 + $0x73] sm:$0xff]
      %v2106 = vld [vmem:[#allocation2 + $0x7b] sm:$0xff]
      %v2107 = vld [vmem:[#allocation2 + $0x83] sm:$0xff]
      %v2108 = vld [vmem:[#allocation2 + $0x8b] sm:$0xff]
      %v2109 = vld [vmem:[#allocation2 + $0x93] sm:$0xff]
      %v2110 = vld [vmem:[#allocation2 + $0x9b] sm:$0xff]
      %v2111 = vld [vmem:[#allocation2 + $0xa3] sm:$0xff]
      %v2112 = vld [vmem:[#allocation2 + $0xab] sm:$0xff]
      %v2113 = vld [vmem:[#allocation2 + $0xb3] sm:$0xff]
      %v2114 = vld [vmem:[#allocation2 + $0xbb] sm:$0xff]
      %v2115 = vld [vmem:[#allocation2 + $0xc3] sm:$0xff]
      %v2116 = vld [vmem:[#allocation2 + $0xcb] sm:$0xff]
      %v2117 = vld [vmem:[#allocation2 + $0xd3] sm:$0xff]
      %v2118 = vld [vmem:[#allocation2 + $0xdb] sm:$0xff]
      %v2119 = vld [vmem:[#allocation2 + $0xe3] sm:$0xff]
      %v2120 = vld [vmem:[#allocation2 + $0xeb] sm:$0xff]
      %v2121 = vld [vmem:[#allocation2 + $0xf3] sm:$0xff]
      %v2122 = vld [vmem:[#allocation2 + $0xfb] sm:$0xff]
      %v2123 = vld [vmem:[#allocation2 + $0x103] sm:$0xff]
      %v2124 = vld [vmem:[#allocation2 + $0x10b] sm:$0xff]
      %v2125 = vld [vmem:[#allocation2 + $0x113] sm:$0xff]
      %v2126 = vld [vmem:[#allocation2 + $0x11b] sm:$0xff]
      %v2127 = vld [vmem:[#allocation2 + $0x123] sm:$0xff]
      %v2128 = vld [vmem:[#allocation2 + $0x12b] sm:$0xff]
      %s2129 = scalar_lea.vmem %s4, 512
      %v2130 = vld [vmem:[%s2129] sm:$0xff]
      %v2131 = vld [vmem:[%s2129 + $0x8] sm:$0xff]
      %v2132 = vld [vmem:[%s2129 + $0x10] sm:$0xff]
      %v2133 = vld [vmem:[%s2129 + $0x18] sm:$0xff]
      %v2134 = vld [vmem:[%s2129 + $0x20] sm:$0xff]
      %v2135 = vld [vmem:[%s2129 + $0x28] sm:$0xff]
      %v2136 = vld [vmem:[%s2129 + $0x30] sm:$0xff]
      %v2137 = vld [vmem:[%s2129 + $0x38] sm:$0xff]
      %v2138 = vld [vmem:[%s2129 + $0x40] sm:$0xff]
      %v2139 = vld [vmem:[%s2129 + $0x48] sm:$0xff]
      %v2140 = vld [vmem:[%s2129 + $0x50] sm:$0xff]
      %v2141 = vld [vmem:[%s2129 + $0x58] sm:$0xff]
      %v2142 = vld [vmem:[%s2129 + $0x60] sm:$0xff]
      %v2143 = vld [vmem:[%s2129 + $0x68] sm:$0xff]
      %v2144 = vld [vmem:[%s2129 + $0x70] sm:$0xff]
      %v2145 = vld [vmem:[%s2129 + $0x78] sm:$0xff]
      %2146 = vmatprep.subr.mxu0 0.0
      %2147 = vmatpush1.msra.mxu0 %v2130
      %2148 = vmatprep.subr.mxu0 0.0
      %2149 = vmatpush1.msra.mxu0 %v2131
      %2150 = vmatprep.subr.mxu0 0.0
      %2151 = vmatpush1.msra.mxu0 %v2132
      %2152 = vmatprep.subr.mxu0 0.0
      %2153 = vmatpush1.msra.mxu0 %v2133
      %2154 = vmatprep.subr.mxu0 0.0
      %2155 = vmatpush1.msra.mxu0 %v2134
      %2156 = vmatprep.subr.mxu0 0.0
      %2157 = vmatpush1.msra.mxu0 %v2135
      %2158 = vmatprep.subr.mxu0 0.0
      %2159 = vmatpush1.msra.mxu0 %v2136
      %2160 = vmatprep.subr.mxu0 0.0
      %2161 = vmatpush1.msra.mxu0 %v2137
      %2162 = vmatprep.subr.mxu0 0.0
      %2163 = vmatpush1.msra.mxu0 %v2138
      %2164 = vmatprep.subr.mxu0 0.0
      %2165 = vmatpush1.msra.mxu0 %v2139
      %2166 = vmatprep.subr.mxu0 0.0
      %2167 = vmatpush1.msra.mxu0 %v2140
      %2168 = vmatprep.subr.mxu0 0.0
      %2169 = vmatpush1.msra.mxu0 %v2141
      %2170 = vmatprep.subr.mxu0 0.0
      %2171 = vmatpush1.msra.mxu0 %v2142
      %2172 = vmatprep.subr.mxu0 0.0
      %2173 = vmatpush1.msra.mxu0 %v2143
      %2174 = vmatprep.subr.mxu0 0.0
      %2175 = vmatpush1.msra.mxu0 %v2144
      %2176 = vmatprep.subr.mxu0 0.0
      %2177 = vmatpush1.msra.mxu0 %v2145
      %2178 = vmatprep.subr.mxu0 0.0
      %2179 = vmatpush1.msra.mxu0 0.0
      %2180 = vmatprep.subr.mxu0 0.0
      %2181 = vmatpush1.msra.mxu0 0.0
      %2182 = vmatprep.subr.mxu0 0.0
      %2183 = vmatpush1.msra.mxu0 0.0
      %2184 = vmatprep.subr.mxu0 0.0
      %2185 = vmatpush1.msra.mxu0 0.0
      %2186 = vmatprep.subr.mxu0 0.0
      %2187 = vmatpush1.msra.mxu0 0.0
      %2188 = vmatprep.subr.mxu0 0.0
      %2189 = vmatpush1.msra.mxu0 0.0
      %2190 = vmatprep.subr.mxu0 0.0
      %2191 = vmatpush1.msra.mxu0 0.0
      %2192 = vmatprep.subr.mxu0 0.0
      %2193 = vmatpush1.msra.mxu0 0.0
      %2194 = vmatprep.subr.mxu0 0.0
      %2195 = vmatpush1.msra.mxu0 0.0
      %2196 = vmatprep.subr.mxu0 0.0
      %2197 = vmatpush1.msra.mxu0 0.0
      %2198 = vmatprep.subr.mxu0 0.0
      %2199 = vmatpush1.msra.mxu0 0.0
      %2200 = vmatprep.subr.mxu0 0.0
      %2201 = vmatpush1.msra.mxu0 0.0
      %2202 = vmatprep.subr.mxu0 0.0
      %2203 = vmatpush1.msra.mxu0 0.0
      %2204 = vmatprep.subr.mxu0 0.0
      %2205 = vmatpush1.msra.mxu0 0.0
      %2206 = vmatprep.subr.mxu0 0.0
      %2207 = vmatpush1.msra.mxu0 0.0
      %2208 = vmatprep.subr.mxu0 0.0
      %2209 = vmatpush1.msra.mxu0 0.0
      %2210 = vmatprep.mubr.f32.mxu0 0.0
      %2211 = vmatmul.mubr.f32.gmra.mrb[0].mxu0 %v2093
      %v2212 = vpop.f32.mrb[0].mxu0
      %v2213 = vadd.f32 0.0, %v2212
      %v2214 = vpop.f32.mrb[0].mxu0
      %2215 = vmatprep.mubr.f32.mxu0 0.0
      %2216 = vmatmul.mubr.f32.gmra.mrb[0].mxu0 %v2094
      %v2217 = vpop.f32.mrb[0].mxu0
      %v2218 = vadd.f32 0.0, %v2217
      %v2219 = vpop.f32.mrb[0].mxu0
      %2220 = vmatprep.mubr.f32.mxu0 0.0
      %2221 = vmatmul.mubr.f32.gmra.mrb[0].mxu0 %v2095
      %v2222 = vpop.f32.mrb[0].mxu0
      %v2223 = vadd.f32 0.0, %v2222
      %v2224 = vpop.f32.mrb[0].mxu0
      %2225 = vmatprep.mubr.f32.mxu0 0.0
      %2226 = vmatmul.mubr.f32.gmra.mrb[0].mxu0 %v2096
      %v2227 = vpop.f32.mrb[0].mxu0
      %v2228 = vadd.f32 0.0, %v2227
      %v2229 = vpop.f32.mrb[0].mxu0
      %2230 = vmatprep.mubr.f32.mxu0 0.0
      %2231 = vmatmul.mubr.f32.gmra.mrb[0].mxu0 %v2097
      %v2232 = vpop.f32.mrb[0].mxu0
      %v2233 = vadd.f32 0.0, %v2232
      %v2234 = vpop.f32.mrb[0].mxu0
      %2235 = vmatprep.mubr.f32.mxu0 0.0
      %2236 = vmatmul.mubr.f32.gmra.mrb[0].mxu0 %v2098
      %v2237 = vpop.f32.mrb[0].mxu0
      %v2238 = vadd.f32 0.0, %v2237
      %v2239 = vpop.f32.mrb[0].mxu0
      %2240 = vmatprep.mubr.f32.mxu0 0.0
      %2241 = vmatmul.mubr.f32.gmra.mrb[0].mxu0 %v2099
      %v2242 = vpop.f32.mrb[0].mxu0
      %v2243 = vadd.f32 0.0, %v2242
      %v2244 = vpop.f32.mrb[0].mxu0
      %2245 = vmatprep.mubr.f32.mxu0 0.0
      %2246 = vmatmul.mubr.f32.gmra.mrb[0].mxu0 %v2100
      %v2247 = vpop.f32.mrb[0].mxu0
      %v2248 = vadd.f32 0.0, %v2247
      %v2249 = vpop.f32.mrb[0].mxu0
      %2250 = vmatprep.mubr.f32.mxu0 0.0
      %2251 = vmatmul.mubr.f32.gmra.mrb[0].mxu0 %v2101
      %v2252 = vpop.f32.mrb[0].mxu0
      %v2253 = vadd.f32 0.0, %v2252
      %v2254 = vpop.f32.mrb[0].mxu0
      %2255 = vmatprep.mubr.f32.mxu0 0.0
      %2256 = vmatmul.mubr.f32.gmra.mrb[0].mxu0 %v2102
      %v2257 = vpop.f32.mrb[0].mxu0
      %v2258 = vadd.f32 0.0, %v2257
      %v2259 = vpop.f32.mrb[0].mxu0
      %2260 = vmatprep.mubr.f32.mxu0 0.0
      %2261 = vmatmul.mubr.f32.gmra.mrb[0].mxu0 %v2103
      %v2262 = vpop.f32.mrb[0].mxu0
      %v2263 = vadd.f32 0.0, %v2262
      %v2264 = vpop.f32.mrb[0].mxu0
      %2265 = vmatprep.mubr.f32.mxu0 0.0
      %2266 = vmatmul.mubr.f32.gmra.mrb[0].mxu0 %v2104
      %v2267 = vpop.f32.mrb[0].mxu0
      %v2268 = vadd.f32 0.0, %v2267
      %v2269 = vpop.f32.mrb[0].mxu0
      %2270 = vmatprep.mubr.f32.mxu0 0.0
      %2271 = vmatmul.mubr.f32.gmra.mrb[0].mxu0 %v2105
      %v2272 = vpop.f32.mrb[0].mxu0
      %v2273 = vadd.f32 0.0, %v2272
      %v2274 = vpop.f32.mrb[0].mxu0
      %2275 = vmatprep.mubr.f32.mxu0 0.0
      %2276 = vmatmul.mubr.f32.gmra.mrb[0].mxu0 %v2106
      %v2277 = vpop.f32.mrb[0].mxu0
      %v2278 = vadd.f32 0.0, %v2277
      %v2279 = vpop.f32.mrb[0].mxu0
      %2280 = vmatprep.mubr.f32.mxu0 0.0
      %2281 = vmatmul.mubr.f32.gmra.mrb[0].mxu0 %v2107
      %v2282 = vpop.f32.mrb[0].mxu0
      %v2283 = vadd.f32 0.0, %v2282
      %v2284 = vpop.f32.mrb[0].mxu0
      %2285 = vmatprep.mubr.f32.mxu0 0.0
      %2286 = vmatmul.mubr.f32.gmra.mrb[0].mxu0 %v2108
      %v2287 = vpop.f32.mrb[0].mxu0
      %v2288 = vadd.f32 0.0, %v2287
      %v2289 = vpop.f32.mrb[0].mxu0
      %2290 = vmatprep.mubr.f32.mxu0 0.0
      %2291 = vmatmul.mubr.f32.gmra.mrb[0].mxu0 %v2109
      %v2292 = vpop.f32.mrb[0].mxu0
      %v2293 = vadd.f32 0.0, %v2292
      %v2294 = vpop.f32.mrb[0].mxu0
      %2295 = vmatprep.mubr.f32.mxu0 0.0
      %2296 = vmatmul.mubr.f32.gmra.mrb[0].mxu0 %v2110
      %v2297 = vpop.f32.mrb[0].mxu0
      %v2298 = vadd.f32 0.0, %v2297
      %v2299 = vpop.f32.mrb[0].mxu0
      %2300 = vmatprep.mubr.f32.mxu0 0.0
      %2301 = vmatmul.mubr.f32.gmra.mrb[0].mxu0 %v2111
      %v2302 = vpop.f32.mrb[0].mxu0
      %v2303 = vadd.f32 0.0, %v2302
      %v2304 = vpop.f32.mrb[0].mxu0
      %2305 = vmatprep.mubr.f32.mxu0 0.0
      %2306 = vmatmul.mubr.f32.gmra.mrb[0].mxu0 %v2112
      %v2307 = vpop.f32.mrb[0].mxu0
      %v2308 = vadd.f32 0.0, %v2307
      %v2309 = vpop.f32.mrb[0].mxu0
      %2310 = vmatprep.mubr.f32.mxu0 0.0
      %2311 = vmatmul.mubr.f32.gmra.mrb[0].mxu0 %v2113
      %v2312 = vpop.f32.mrb[0].mxu0
      %v2313 = vadd.f32 0.0, %v2312
      %v2314 = vpop.f32.mrb[0].mxu0
      %2315 = vmatprep.mubr.f32.mxu0 0.0
      %2316 = vmatmul.mubr.f32.gmra.mrb[0].mxu0 %v2114
      %v2317 = vpop.f32.mrb[0].mxu0
      %v2318 = vadd.f32 0.0, %v2317
      %v2319 = vpop.f32.mrb[0].mxu0
      %2320 = vmatprep.mubr.f32.mxu0 0.0
      %2321 = vmatmul.mubr.f32.gmra.mrb[0].mxu0 %v2115
      %v2322 = vpop.f32.mrb[0].mxu0
      %v2323 = vadd.f32 0.0, %v2322
      %v2324 = vpop.f32.mrb[0].mxu0
      %2325 = vmatprep.mubr.f32.mxu0 0.0
      %2326 = vmatmul.mubr.f32.gmra.mrb[0].mxu0 %v2116
      %v2327 = vpop.f32.mrb[0].mxu0
      %v2328 = vadd.f32 0.0, %v2327
      %v2329 = vpop.f32.mrb[0].mxu0
      %2330 = vmatprep.mubr.f32.mxu0 0.0
      %2331 = vmatmul.mubr.f32.gmra.mrb[0].mxu0 %v2117
      %v2332 = vpop.f32.mrb[0].mxu0
      %v2333 = vadd.f32 0.0, %v2332
      %v2334 = vpop.f32.mrb[0].mxu0
      %2335 = vmatprep.mubr.f32.mxu0 0.0
      %2336 = vmatmul.mubr.f32.gmra.mrb[0].mxu0 %v2118
      %v2337 = vpop.f32.mrb[0].mxu0
      %v2338 = vadd.f32 0.0, %v2337
      %v2339 = vpop.f32.mrb[0].mxu0
      %2340 = vmatprep.mubr.f32.mxu0 0.0
      %2341 = vmatmul.mubr.f32.gmra.mrb[0].mxu0 %v2119
      %v2342 = vpop.f32.mrb[0].mxu0
      %v2343 = vadd.f32 0.0, %v2342
      %v2344 = vpop.f32.mrb[0].mxu0
      %2345 = vmatprep.mubr.f32.mxu0 0.0
      %2346 = vmatmul.mubr.f32.gmra.mrb[0].mxu0 %v2120
      %v2347 = vpop.f32.mrb[0].mxu0
      %v2348 = vadd.f32 0.0, %v2347
      %v2349 = vpop.f32.mrb[0].mxu0
      %2350 = vmatprep.mubr.f32.mxu0 0.0
      %2351 = vmatmul.mubr.f32.gmra.mrb[0].mxu0 %v2121
      %v2352 = vpop.f32.mrb[0].mxu0
      %v2353 = vadd.f32 0.0, %v2352
      %v2354 = vpop.f32.mrb[0].mxu0
      %2355 = vmatprep.mubr.f32.mxu0 0.0
      %2356 = vmatmul.mubr.f32.gmra.mrb[0].mxu0 %v2122
      %v2357 = vpop.f32.mrb[0].mxu0
      %v2358 = vadd.f32 0.0, %v2357
      %v2359 = vpop.f32.mrb[0].mxu0
      %2360 = vmatprep.mubr.f32.mxu0 0.0
      %2361 = vmatmul.mubr.f32.gmra.mrb[0].mxu0 %v2123
      %v2362 = vpop.f32.mrb[0].mxu0
      %v2363 = vadd.f32 0.0, %v2362
      %v2364 = vpop.f32.mrb[0].mxu0
      %2365 = vmatprep.mubr.f32.mxu0 0.0
      %2366 = vmatmul.mubr.f32.gmra.mrb[0].mxu0 %v2124
      %v2367 = vpop.f32.mrb[0].mxu0
      %v2368 = vadd.f32 0.0, %v2367
      %v2369 = vpop.f32.mrb[0].mxu0
      %2370 = vmatprep.mubr.f32.mxu0 0.0
      %2371 = vmatmul.mubr.f32.gmra.mrb[0].mxu0 %v2125
      %v2372 = vpop.f32.mrb[0].mxu0
      %v2373 = vadd.f32 0.0, %v2372
      %v2374 = vpop.f32.mrb[0].mxu0
      %2375 = vmatprep.mubr.f32.mxu0 0.0
      %2376 = vmatmul.mubr.f32.gmra.mrb[0].mxu0 %v2126
      %v2377 = vpop.f32.mrb[0].mxu0
      %v2378 = vadd.f32 0.0, %v2377
      %v2379 = vpop.f32.mrb[0].mxu0
      %2380 = vmatprep.mubr.f32.mxu0 0.0
      %2381 = vmatmul.mubr.f32.gmra.mrb[0].mxu0 %v2127
      %v2382 = vpop.f32.mrb[0].mxu0
      %v2383 = vadd.f32 0.0, %v2382
      %v2384 = vpop.f32.mrb[0].mxu0
      %2385 = vmatprep.mubr.f32.mxu0 0.0
      %2386 = vmatmul.mubr.f32.gmra.mrb[0].mxu0 %v2128
      %v2387 = vpop.f32.mrb[0].mxu0
      %v2388 = vadd.f32 0.0, %v2387
      %v2389 = vpop.f32.mrb[0].mxu0
      %2390 = vdwg.mxu0
      %v2391 = vadd.f32 %v2057, %v2213
      %v2392 = vadd.f32 %v2058, %v2218
      %v2393 = vadd.f32 %v2059, %v2223
      %v2394 = vadd.f32 %v2060, %v2228
      %v2395 = vadd.f32 %v2061, %v2233
      %v2396 = vadd.f32 %v2062, %v2238
      %v2397 = vadd.f32 %v2063, %v2243
      %v2398 = vadd.f32 %v2064, %v2248
      %v2399 = vadd.f32 %v2065, %v2253
      %v2400 = vadd.f32 %v2066, %v2258
      %v2401 = vadd.f32 %v2067, %v2263
      %v2402 = vadd.f32 %v2068, %v2268
      %v2403 = vadd.f32 %v2069, %v2273
      %v2404 = vadd.f32 %v2070, %v2278
      %v2405 = vadd.f32 %v2071, %v2283
      %v2406 = vadd.f32 %v2072, %v2288
      %v2407 = vadd.f32 %v2073, %v2293
      %v2408 = vadd.f32 %v2074, %v2298
      %v2409 = vadd.f32 %v2075, %v2303
      %v2410 = vadd.f32 %v2076, %v2308
      %v2411 = vadd.f32 %v2077, %v2313
      %v2412 = vadd.f32 %v2078, %v2318
      %v2413 = vadd.f32 %v2079, %v2323
      %v2414 = vadd.f32 %v2080, %v2328
      %v2415 = vadd.f32 %v2081, %v2333
      %v2416 = vadd.f32 %v2082, %v2338
      %v2417 = vadd.f32 %v2083, %v2343
      %v2418 = vadd.f32 %v2084, %v2348
      %v2419 = vadd.f32 %v2085, %v2353
      %v2420 = vadd.f32 %v2086, %v2358
      %v2421 = vadd.f32 %v2087, %v2363
      %v2422 = vadd.f32 %v2088, %v2368
      %v2423 = vadd.f32 %v2089, %v2373
      %v2424 = vadd.f32 %v2090, %v2378
      %v2425 = vadd.f32 %v2091, %v2383
      %v2426 = vadd.f32 %v2092, %v2388
      %v2427 = vld [vmem:[#allocation2 + $0x14] sm:$0xff]
      %v2428 = vld [vmem:[#allocation2 + $0x1c] sm:$0xff]
      %v2429 = vld [vmem:[#allocation2 + $0x24] sm:$0xff]
      %v2430 = vld [vmem:[#allocation2 + $0x2c] sm:$0xff]
      %v2431 = vld [vmem:[#allocation2 + $0x34] sm:$0xff]
      %v2432 = vld [vmem:[#allocation2 + $0x3c] sm:$0xff]
      %v2433 = vld [vmem:[#allocation2 + $0x44] sm:$0xff]
      %v2434 = vld [vmem:[#allocation2 + $0x4c] sm:$0xff]
      %v2435 = vld [vmem:[#allocation2 + $0x54] sm:$0xff]
      %v2436 = vld [vmem:[#allocation2 + $0x5c] sm:$0xff]
      %v2437 = vld [vmem:[#allocation2 + $0x64] sm:$0xff]
      %v2438 = vld [vmem:[#allocation2 + $0x6c] sm:$0xff]
      %v2439 = vld [vmem:[#allocation2 + $0x74] sm:$0xff]
      %v2440 = vld [vmem:[#allocation2 + $0x7c] sm:$0xff]
      %v2441 = vld [vmem:[#allocation2 + $0x84] sm:$0xff]
      %v2442 = vld [vmem:[#allocation2 + $0x8c] sm:$0xff]
      %v2443 = vld [vmem:[#allocation2 + $0x94] sm:$0xff]
      %v2444 = vld [vmem:[#allocation2 + $0x9c] sm:$0xff]
      %v2445 = vld [vmem:[#allocation2 + $0xa4] sm:$0xff]
      %v2446 = vld [vmem:[#allocation2 + $0xac] sm:$0xff]
      %v2447 = vld [vmem:[#allocation2 + $0xb4] sm:$0xff]
      %v2448 = vld [vmem:[#allocation2 + $0xbc] sm:$0xff]
      %v2449 = vld [vmem:[#allocation2 + $0xc4] sm:$0xff]
      %v2450 = vld [vmem:[#allocation2 + $0xcc] sm:$0xff]
      %v2451 = vld [vmem:[#allocation2 + $0xd4] sm:$0xff]
      %v2452 = vld [vmem:[#allocation2 + $0xdc] sm:$0xff]
      %v2453 = vld [vmem:[#allocation2 + $0xe4] sm:$0xff]
      %v2454 = vld [vmem:[#allocation2 + $0xec] sm:$0xff]
      %v2455 = vld [vmem:[#allocation2 + $0xf4] sm:$0xff]
      %v2456 = vld [vmem:[#allocation2 + $0xfc] sm:$0xff]
      %v2457 = vld [vmem:[#allocation2 + $0x104] sm:$0xff]
      %v2458 = vld [vmem:[#allocation2 + $0x10c] sm:$0xff]
      %v2459 = vld [vmem:[#allocation2 + $0x114] sm:$0xff]
      %v2460 = vld [vmem:[#allocation2 + $0x11c] sm:$0xff]
      %v2461 = vld [vmem:[#allocation2 + $0x124] sm:$0xff]
      %v2462 = vld [vmem:[#allocation2 + $0x12c] sm:$0xff]
      %s2463 = scalar_lea.vmem %s4, 640
      %v2464 = vld [vmem:[%s2463] sm:$0xff]
      %v2465 = vld [vmem:[%s2463 + $0x8] sm:$0xff]
      %v2466 = vld [vmem:[%s2463 + $0x10] sm:$0xff]
      %v2467 = vld [vmem:[%s2463 + $0x18] sm:$0xff]
      %v2468 = vld [vmem:[%s2463 + $0x20] sm:$0xff]
      %v2469 = vld [vmem:[%s2463 + $0x28] sm:$0xff]
      %v2470 = vld [vmem:[%s2463 + $0x30] sm:$0xff]
      %v2471 = vld [vmem:[%s2463 + $0x38] sm:$0xff]
      %v2472 = vld [vmem:[%s2463 + $0x40] sm:$0xff]
      %v2473 = vld [vmem:[%s2463 + $0x48] sm:$0xff]
      %v2474 = vld [vmem:[%s2463 + $0x50] sm:$0xff]
      %v2475 = vld [vmem:[%s2463 + $0x58] sm:$0xff]
      %v2476 = vld [vmem:[%s2463 + $0x60] sm:$0xff]
      %v2477 = vld [vmem:[%s2463 + $0x68] sm:$0xff]
      %v2478 = vld [vmem:[%s2463 + $0x70] sm:$0xff]
      %v2479 = vld [vmem:[%s2463 + $0x78] sm:$0xff]
      %2480 = vmatprep.subr.mxu0 0.0
      %2481 = vmatpush1.msra.mxu0 %v2464
      %2482 = vmatprep.subr.mxu0 0.0
      %2483 = vmatpush1.msra.mxu0 %v2465
      %2484 = vmatprep.subr.mxu0 0.0
      %2485 = vmatpush1.msra.mxu0 %v2466
      %2486 = vmatprep.subr.mxu0 0.0
      %2487 = vmatpush1.msra.mxu0 %v2467
      %2488 = vmatprep.subr.mxu0 0.0
      %2489 = vmatpush1.msra.mxu0 %v2468
      %2490 = vmatprep.subr.mxu0 0.0
      %2491 = vmatpush1.msra.mxu0 %v2469
      %2492 = vmatprep.subr.mxu0 0.0
      %2493 = vmatpush1.msra.mxu0 %v2470
      %2494 = vmatprep.subr.mxu0 0.0
      %2495 = vmatpush1.msra.mxu0 %v2471
      %2496 = vmatprep.subr.mxu0 0.0
      %2497 = vmatpush1.msra.mxu0 %v2472
      %2498 = vmatprep.subr.mxu0 0.0
      %2499 = vmatpush1.msra.mxu0 %v2473
      %2500 = vmatprep.subr.mxu0 0.0
      %2501 = vmatpush1.msra.mxu0 %v2474
      %2502 = vmatprep.subr.mxu0 0.0
      %2503 = vmatpush1.msra.mxu0 %v2475
      %2504 = vmatprep.subr.mxu0 0.0
      %2505 = vmatpush1.msra.mxu0 %v2476
      %2506 = vmatprep.subr.mxu0 0.0
      %2507 = vmatpush1.msra.mxu0 %v2477
      %2508 = vmatprep.subr.mxu0 0.0
      %2509 = vmatpush1.msra.mxu0 %v2478
      %2510 = vmatprep.subr.mxu0 0.0
      %2511 = vmatpush1.msra.mxu0 %v2479
      %2512 = vmatprep.subr.mxu0 0.0
      %2513 = vmatpush1.msra.mxu0 0.0
      %2514 = vmatprep.subr.mxu0 0.0
      %2515 = vmatpush1.msra.mxu0 0.0
      %2516 = vmatprep.subr.mxu0 0.0
      %2517 = vmatpush1.msra.mxu0 0.0
      %2518 = vmatprep.subr.mxu0 0.0
      %2519 = vmatpush1.msra.mxu0 0.0
      %2520 = vmatprep.subr.mxu0 0.0
      %2521 = vmatpush1.msra.mxu0 0.0
      %2522 = vmatprep.subr.mxu0 0.0
      %2523 = vmatpush1.msra.mxu0 0.0
      %2524 = vmatprep.subr.mxu0 0.0
      %2525 = vmatpush1.msra.mxu0 0.0
      %2526 = vmatprep.subr.mxu0 0.0
      %2527 = vmatpush1.msra.mxu0 0.0
      %2528 = vmatprep.subr.mxu0 0.0
      %2529 = vmatpush1.msra.mxu0 0.0
      %2530 = vmatprep.subr.mxu0 0.0
      %2531 = vmatpush1.msra.mxu0 0.0
      %2532 = vmatprep.subr.mxu0 0.0
      %2533 = vmatpush1.msra.mxu0 0.0
      %2534 = vmatprep.subr.mxu0 0.0
      %2535 = vmatpush1.msra.mxu0 0.0
      %2536 = vmatprep.subr.mxu0 0.0
      %2537 = vmatpush1.msra.mxu0 0.0
      %2538 = vmatprep.subr.mxu0 0.0
      %2539 = vmatpush1.msra.mxu0 0.0
      %2540 = vmatprep.subr.mxu0 0.0
      %2541 = vmatpush1.msra.mxu0 0.0
      %2542 = vmatprep.subr.mxu0 0.0
      %2543 = vmatpush1.msra.mxu0 0.0
      %2544 = vmatprep.mubr.f32.mxu0 0.0
      %2545 = vmatmul.mubr.f32.gmra.mrb[0].mxu0 %v2427
      %v2546 = vpop.f32.mrb[0].mxu0
      %v2547 = vadd.f32 0.0, %v2546
      %v2548 = vpop.f32.mrb[0].mxu0
      %2549 = vmatprep.mubr.f32.mxu0 0.0
      %2550 = vmatmul.mubr.f32.gmra.mrb[0].mxu0 %v2428
      %v2551 = vpop.f32.mrb[0].mxu0
      %v2552 = vadd.f32 0.0, %v2551
      %v2553 = vpop.f32.mrb[0].mxu0
      %2554 = vmatprep.mubr.f32.mxu0 0.0
      %2555 = vmatmul.mubr.f32.gmra.mrb[0].mxu0 %v2429
      %v2556 = vpop.f32.mrb[0].mxu0
      %v2557 = vadd.f32 0.0, %v2556
      %v2558 = vpop.f32.mrb[0].mxu0
      %2559 = vmatprep.mubr.f32.mxu0 0.0
      %2560 = vmatmul.mubr.f32.gmra.mrb[0].mxu0 %v2430
      %v2561 = vpop.f32.mrb[0].mxu0
      %v2562 = vadd.f32 0.0, %v2561
      %v2563 = vpop.f32.mrb[0].mxu0
      %2564 = vmatprep.mubr.f32.mxu0 0.0
      %2565 = vmatmul.mubr.f32.gmra.mrb[0].mxu0 %v2431
      %v2566 = vpop.f32.mrb[0].mxu0
      %v2567 = vadd.f32 0.0, %v2566
      %v2568 = vpop.f32.mrb[0].mxu0
      %2569 = vmatprep.mubr.f32.mxu0 0.0
      %2570 = vmatmul.mubr.f32.gmra.mrb[0].mxu0 %v2432
      %v2571 = vpop.f32.mrb[0].mxu0
      %v2572 = vadd.f32 0.0, %v2571
      %v2573 = vpop.f32.mrb[0].mxu0
      %2574 = vmatprep.mubr.f32.mxu0 0.0
      %2575 = vmatmul.mubr.f32.gmra.mrb[0].mxu0 %v2433
      %v2576 = vpop.f32.mrb[0].mxu0
      %v2577 = vadd.f32 0.0, %v2576
      %v2578 = vpop.f32.mrb[0].mxu0
      %2579 = vmatprep.mubr.f32.mxu0 0.0
      %2580 = vmatmul.mubr.f32.gmra.mrb[0].mxu0 %v2434
      %v2581 = vpop.f32.mrb[0].mxu0
      %v2582 = vadd.f32 0.0, %v2581
      %v2583 = vpop.f32.mrb[0].mxu0
      %2584 = vmatprep.mubr.f32.mxu0 0.0
      %2585 = vmatmul.mubr.f32.gmra.mrb[0].mxu0 %v2435
      %v2586 = vpop.f32.mrb[0].mxu0
      %v2587 = vadd.f32 0.0, %v2586
      %v2588 = vpop.f32.mrb[0].mxu0
      %2589 = vmatprep.mubr.f32.mxu0 0.0
      %2590 = vmatmul.mubr.f32.gmra.mrb[0].mxu0 %v2436
      %v2591 = vpop.f32.mrb[0].mxu0
      %v2592 = vadd.f32 0.0, %v2591
      %v2593 = vpop.f32.mrb[0].mxu0
      %2594 = vmatprep.mubr.f32.mxu0 0.0
      %2595 = vmatmul.mubr.f32.gmra.mrb[0].mxu0 %v2437
      %v2596 = vpop.f32.mrb[0].mxu0
      %v2597 = vadd.f32 0.0, %v2596
      %v2598 = vpop.f32.mrb[0].mxu0
      %2599 = vmatprep.mubr.f32.mxu0 0.0
      %2600 = vmatmul.mubr.f32.gmra.mrb[0].mxu0 %v2438
      %v2601 = vpop.f32.mrb[0].mxu0
      %v2602 = vadd.f32 0.0, %v2601
      %v2603 = vpop.f32.mrb[0].mxu0
      %2604 = vmatprep.mubr.f32.mxu0 0.0
      %2605 = vmatmul.mubr.f32.gmra.mrb[0].mxu0 %v2439
      %v2606 = vpop.f32.mrb[0].mxu0
      %v2607 = vadd.f32 0.0, %v2606
      %v2608 = vpop.f32.mrb[0].mxu0
      %2609 = vmatprep.mubr.f32.mxu0 0.0
      %2610 = vmatmul.mubr.f32.gmra.mrb[0].mxu0 %v2440
      %v2611 = vpop.f32.mrb[0].mxu0
      %v2612 = vadd.f32 0.0, %v2611
      %v2613 = vpop.f32.mrb[0].mxu0
      %2614 = vmatprep.mubr.f32.mxu0 0.0
      %2615 = vmatmul.mubr.f32.gmra.mrb[0].mxu0 %v2441
      %v2616 = vpop.f32.mrb[0].mxu0
      %v2617 = vadd.f32 0.0, %v2616
      %v2618 = vpop.f32.mrb[0].mxu0
      %2619 = vmatprep.mubr.f32.mxu0 0.0
      %2620 = vmatmul.mubr.f32.gmra.mrb[0].mxu0 %v2442
      %v2621 = vpop.f32.mrb[0].mxu0
      %v2622 = vadd.f32 0.0, %v2621
      %v2623 = vpop.f32.mrb[0].mxu0
      %2624 = vmatprep.mubr.f32.mxu0 0.0
      %2625 = vmatmul.mubr.f32.gmra.mrb[0].mxu0 %v2443
      %v2626 = vpop.f32.mrb[0].mxu0
      %v2627 = vadd.f32 0.0, %v2626
      %v2628 = vpop.f32.mrb[0].mxu0
      %2629 = vmatprep.mubr.f32.mxu0 0.0
      %2630 = vmatmul.mubr.f32.gmra.mrb[0].mxu0 %v2444
      %v2631 = vpop.f32.mrb[0].mxu0
      %v2632 = vadd.f32 0.0, %v2631
      %v2633 = vpop.f32.mrb[0].mxu0
      %2634 = vmatprep.mubr.f32.mxu0 0.0
      %2635 = vmatmul.mubr.f32.gmra.mrb[0].mxu0 %v2445
      %v2636 = vpop.f32.mrb[0].mxu0
      %v2637 = vadd.f32 0.0, %v2636
      %v2638 = vpop.f32.mrb[0].mxu0
      %2639 = vmatprep.mubr.f32.mxu0 0.0
      %2640 = vmatmul.mubr.f32.gmra.mrb[0].mxu0 %v2446
      %v2641 = vpop.f32.mrb[0].mxu0
      %v2642 = vadd.f32 0.0, %v2641
      %v2643 = vpop.f32.mrb[0].mxu0
      %2644 = vmatprep.mubr.f32.mxu0 0.0
      %2645 = vmatmul.mubr.f32.gmra.mrb[0].mxu0 %v2447
      %v2646 = vpop.f32.mrb[0].mxu0
      %v2647 = vadd.f32 0.0, %v2646
      %v2648 = vpop.f32.mrb[0].mxu0
      %2649 = vmatprep.mubr.f32.mxu0 0.0
      %2650 = vmatmul.mubr.f32.gmra.mrb[0].mxu0 %v2448
      %v2651 = vpop.f32.mrb[0].mxu0
      %v2652 = vadd.f32 0.0, %v2651
      %v2653 = vpop.f32.mrb[0].mxu0
      %2654 = vmatprep.mubr.f32.mxu0 0.0
      %2655 = vmatmul.mubr.f32.gmra.mrb[0].mxu0 %v2449
      %v2656 = vpop.f32.mrb[0].mxu0
      %v2657 = vadd.f32 0.0, %v2656
      %v2658 = vpop.f32.mrb[0].mxu0
      %2659 = vmatprep.mubr.f32.mxu0 0.0
      %2660 = vmatmul.mubr.f32.gmra.mrb[0].mxu0 %v2450
      %v2661 = vpop.f32.mrb[0].mxu0
      %v2662 = vadd.f32 0.0, %v2661
      %v2663 = vpop.f32.mrb[0].mxu0
      %2664 = vmatprep.mubr.f32.mxu0 0.0
      %2665 = vmatmul.mubr.f32.gmra.mrb[0].mxu0 %v2451
      %v2666 = vpop.f32.mrb[0].mxu0
      %v2667 = vadd.f32 0.0, %v2666
      %v2668 = vpop.f32.mrb[0].mxu0
      %2669 = vmatprep.mubr.f32.mxu0 0.0
      %2670 = vmatmul.mubr.f32.gmra.mrb[0].mxu0 %v2452
      %v2671 = vpop.f32.mrb[0].mxu0
      %v2672 = vadd.f32 0.0, %v2671
      %v2673 = vpop.f32.mrb[0].mxu0
      %2674 = vmatprep.mubr.f32.mxu0 0.0
      %2675 = vmatmul.mubr.f32.gmra.mrb[0].mxu0 %v2453
      %v2676 = vpop.f32.mrb[0].mxu0
      %v2677 = vadd.f32 0.0, %v2676
      %v2678 = vpop.f32.mrb[0].mxu0
      %2679 = vmatprep.mubr.f32.mxu0 0.0
      %2680 = vmatmul.mubr.f32.gmra.mrb[0].mxu0 %v2454
      %v2681 = vpop.f32.mrb[0].mxu0
      %v2682 = vadd.f32 0.0, %v2681
      %v2683 = vpop.f32.mrb[0].mxu0
      %2684 = vmatprep.mubr.f32.mxu0 0.0
      %2685 = vmatmul.mubr.f32.gmra.mrb[0].mxu0 %v2455
      %v2686 = vpop.f32.mrb[0].mxu0
      %v2687 = vadd.f32 0.0, %v2686
      %v2688 = vpop.f32.mrb[0].mxu0
      %2689 = vmatprep.mubr.f32.mxu0 0.0
      %2690 = vmatmul.mubr.f32.gmra.mrb[0].mxu0 %v2456
      %v2691 = vpop.f32.mrb[0].mxu0
      %v2692 = vadd.f32 0.0, %v2691
      %v2693 = vpop.f32.mrb[0].mxu0
      %2694 = vmatprep.mubr.f32.mxu0 0.0
      %2695 = vmatmul.mubr.f32.gmra.mrb[0].mxu0 %v2457
      %v2696 = vpop.f32.mrb[0].mxu0
      %v2697 = vadd.f32 0.0, %v2696
      %v2698 = vpop.f32.mrb[0].mxu0
      %2699 = vmatprep.mubr.f32.mxu0 0.0
      %2700 = vmatmul.mubr.f32.gmra.mrb[0].mxu0 %v2458
      %v2701 = vpop.f32.mrb[0].mxu0
      %v2702 = vadd.f32 0.0, %v2701
      %v2703 = vpop.f32.mrb[0].mxu0
      %2704 = vmatprep.mubr.f32.mxu0 0.0
      %2705 = vmatmul.mubr.f32.gmra.mrb[0].mxu0 %v2459
      %v2706 = vpop.f32.mrb[0].mxu0
      %v2707 = vadd.f32 0.0, %v2706
      %v2708 = vpop.f32.mrb[0].mxu0
      %2709 = vmatprep.mubr.f32.mxu0 0.0
      %2710 = vmatmul.mubr.f32.gmra.mrb[0].mxu0 %v2460
      %v2711 = vpop.f32.mrb[0].mxu0
      %v2712 = vadd.f32 0.0, %v2711
      %v2713 = vpop.f32.mrb[0].mxu0
      %2714 = vmatprep.mubr.f32.mxu0 0.0
      %2715 = vmatmul.mubr.f32.gmra.mrb[0].mxu0 %v2461
      %v2716 = vpop.f32.mrb[0].mxu0
      %v2717 = vadd.f32 0.0, %v2716
      %v2718 = vpop.f32.mrb[0].mxu0
      %2719 = vmatprep.mubr.f32.mxu0 0.0
      %2720 = vmatmul.mubr.f32.gmra.mrb[0].mxu0 %v2462
      %v2721 = vpop.f32.mrb[0].mxu0
      %v2722 = vadd.f32 0.0, %v2721
      %v2723 = vpop.f32.mrb[0].mxu0
      %2724 = vdwg.mxu0
      %v2725 = vadd.f32 %v2391, %v2547
      %v2726 = vadd.f32 %v2392, %v2552
      %v2727 = vadd.f32 %v2393, %v2557
      %v2728 = vadd.f32 %v2394, %v2562
      %v2729 = vadd.f32 %v2395, %v2567
      %v2730 = vadd.f32 %v2396, %v2572
      %v2731 = vadd.f32 %v2397, %v2577
      %v2732 = vadd.f32 %v2398, %v2582
      %v2733 = vadd.f32 %v2399, %v2587
      %v2734 = vadd.f32 %v2400, %v2592
      %v2735 = vadd.f32 %v2401, %v2597
      %v2736 = vadd.f32 %v2402, %v2602
      %v2737 = vadd.f32 %v2403, %v2607
      %v2738 = vadd.f32 %v2404, %v2612
      %v2739 = vadd.f32 %v2405, %v2617
      %v2740 = vadd.f32 %v2406, %v2622
      %v2741 = vadd.f32 %v2407, %v2627
      %v2742 = vadd.f32 %v2408, %v2632
      %v2743 = vadd.f32 %v2409, %v2637
      %v2744 = vadd.f32 %v2410, %v2642
      %v2745 = vadd.f32 %v2411, %v2647
      %v2746 = vadd.f32 %v2412, %v2652
      %v2747 = vadd.f32 %v2413, %v2657
      %v2748 = vadd.f32 %v2414, %v2662
      %v2749 = vadd.f32 %v2415, %v2667
      %v2750 = vadd.f32 %v2416, %v2672
      %v2751 = vadd.f32 %v2417, %v2677
      %v2752 = vadd.f32 %v2418, %v2682
      %v2753 = vadd.f32 %v2419, %v2687
      %v2754 = vadd.f32 %v2420, %v2692
      %v2755 = vadd.f32 %v2421, %v2697
      %v2756 = vadd.f32 %v2422, %v2702
      %v2757 = vadd.f32 %v2423, %v2707
      %v2758 = vadd.f32 %v2424, %v2712
      %v2759 = vadd.f32 %v2425, %v2717
      %v2760 = vadd.f32 %v2426, %v2722
      %v2761 = vld [vmem:[#allocation2 + $0x24] sm:$0xff]
      %v2762 = vld [vmem:[#allocation2 + $0x2c] sm:$0xff]
      %v2763 = vld [vmem:[#allocation2 + $0x34] sm:$0xff]
      %v2764 = vld [vmem:[#allocation2 + $0x3c] sm:$0xff]
      %v2765 = vld [vmem:[#allocation2 + $0x44] sm:$0xff]
      %v2766 = vld [vmem:[#allocation2 + $0x4c] sm:$0xff]
      %v2767 = vld [vmem:[#allocation2 + $0x54] sm:$0xff]
      %v2768 = vld [vmem:[#allocation2 + $0x5c] sm:$0xff]
      %v2769 = vld [vmem:[#allocation2 + $0x64] sm:$0xff]
      %v2770 = vld [vmem:[#allocation2 + $0x6c] sm:$0xff]
      %v2771 = vld [vmem:[#allocation2 + $0x74] sm:$0xff]
      %v2772 = vld [vmem:[#allocation2 + $0x7c] sm:$0xff]
      %v2773 = vld [vmem:[#allocation2 + $0x84] sm:$0xff]
      %v2774 = vld [vmem:[#allocation2 + $0x8c] sm:$0xff]
      %v2775 = vld [vmem:[#allocation2 + $0x94] sm:$0xff]
      %v2776 = vld [vmem:[#allocation2 + $0x9c] sm:$0xff]
      %v2777 = vld [vmem:[#allocation2 + $0xa4] sm:$0xff]
      %v2778 = vld [vmem:[#allocation2 + $0xac] sm:$0xff]
      %v2779 = vld [vmem:[#allocation2 + $0xb4] sm:$0xff]
      %v2780 = vld [vmem:[#allocation2 + $0xbc] sm:$0xff]
      %v2781 = vld [vmem:[#allocation2 + $0xc4] sm:$0xff]
      %v2782 = vld [vmem:[#allocation2 + $0xcc] sm:$0xff]
      %v2783 = vld [vmem:[#allocation2 + $0xd4] sm:$0xff]
      %v2784 = vld [vmem:[#allocation2 + $0xdc] sm:$0xff]
      %v2785 = vld [vmem:[#allocation2 + $0xe4] sm:$0xff]
      %v2786 = vld [vmem:[#allocation2 + $0xec] sm:$0xff]
      %v2787 = vld [vmem:[#allocation2 + $0xf4] sm:$0xff]
      %v2788 = vld [vmem:[#allocation2 + $0xfc] sm:$0xff]
      %v2789 = vld [vmem:[#allocation2 + $0x104] sm:$0xff]
      %v2790 = vld [vmem:[#allocation2 + $0x10c] sm:$0xff]
      %v2791 = vld [vmem:[#allocation2 + $0x114] sm:$0xff]
      %v2792 = vld [vmem:[#allocation2 + $0x11c] sm:$0xff]
      %v2793 = vld [vmem:[#allocation2 + $0x124] sm:$0xff]
      %v2794 = vld [vmem:[#allocation2 + $0x12c] sm:$0xff]
      %v2795 = vld [vmem:[#allocation2 + $0x134] sm:$0xff]
      %v2796 = vld [vmem:[#allocation2 + $0x13c] sm:$0xff]
      %s2797 = scalar_lea.vmem %s4, 768
      %v2798 = vld [vmem:[%s2797] sm:$0xff]
      %v2799 = vld [vmem:[%s2797 + $0x8] sm:$0xff]
      %v2800 = vld [vmem:[%s2797 + $0x10] sm:$0xff]
      %v2801 = vld [vmem:[%s2797 + $0x18] sm:$0xff]
      %v2802 = vld [vmem:[%s2797 + $0x20] sm:$0xff]
      %v2803 = vld [vmem:[%s2797 + $0x28] sm:$0xff]
      %v2804 = vld [vmem:[%s2797 + $0x30] sm:$0xff]
      %v2805 = vld [vmem:[%s2797 + $0x38] sm:$0xff]
      %v2806 = vld [vmem:[%s2797 + $0x40] sm:$0xff]
      %v2807 = vld [vmem:[%s2797 + $0x48] sm:$0xff]
      %v2808 = vld [vmem:[%s2797 + $0x50] sm:$0xff]
      %v2809 = vld [vmem:[%s2797 + $0x58] sm:$0xff]
      %v2810 = vld [vmem:[%s2797 + $0x60] sm:$0xff]
      %v2811 = vld [vmem:[%s2797 + $0x68] sm:$0xff]
      %v2812 = vld [vmem:[%s2797 + $0x70] sm:$0xff]
      %v2813 = vld [vmem:[%s2797 + $0x78] sm:$0xff]
      %2814 = vmatprep.subr.mxu0 0.0
      %2815 = vmatpush1.msra.mxu0 %v2798
      %2816 = vmatprep.subr.mxu0 0.0
      %2817 = vmatpush1.msra.mxu0 %v2799
      %2818 = vmatprep.subr.mxu0 0.0
      %2819 = vmatpush1.msra.mxu0 %v2800
      %2820 = vmatprep.subr.mxu0 0.0
      %2821 = vmatpush1.msra.mxu0 %v2801
      %2822 = vmatprep.subr.mxu0 0.0
      %2823 = vmatpush1.msra.mxu0 %v2802
      %2824 = vmatprep.subr.mxu0 0.0
      %2825 = vmatpush1.msra.mxu0 %v2803
      %2826 = vmatprep.subr.mxu0 0.0
      %2827 = vmatpush1.msra.mxu0 %v2804
      %2828 = vmatprep.subr.mxu0 0.0
      %2829 = vmatpush1.msra.mxu0 %v2805
      %2830 = vmatprep.subr.mxu0 0.0
      %2831 = vmatpush1.msra.mxu0 %v2806
      %2832 = vmatprep.subr.mxu0 0.0
      %2833 = vmatpush1.msra.mxu0 %v2807
      %2834 = vmatprep.subr.mxu0 0.0
      %2835 = vmatpush1.msra.mxu0 %v2808
      %2836 = vmatprep.subr.mxu0 0.0
      %2837 = vmatpush1.msra.mxu0 %v2809
      %2838 = vmatprep.subr.mxu0 0.0
      %2839 = vmatpush1.msra.mxu0 %v2810
      %2840 = vmatprep.subr.mxu0 0.0
      %2841 = vmatpush1.msra.mxu0 %v2811
      %2842 = vmatprep.subr.mxu0 0.0
      %2843 = vmatpush1.msra.mxu0 %v2812
      %2844 = vmatprep.subr.mxu0 0.0
      %2845 = vmatpush1.msra.mxu0 %v2813
      %2846 = vmatprep.subr.mxu0 0.0
      %2847 = vmatpush1.msra.mxu0 0.0
      %2848 = vmatprep.subr.mxu0 0.0
      %2849 = vmatpush1.msra.mxu0 0.0
      %2850 = vmatprep.subr.mxu0 0.0
      %2851 = vmatpush1.msra.mxu0 0.0
      %2852 = vmatprep.subr.mxu0 0.0
      %2853 = vmatpush1.msra.mxu0 0.0
      %2854 = vmatprep.subr.mxu0 0.0
      %2855 = vmatpush1.msra.mxu0 0.0
      %2856 = vmatprep.subr.mxu0 0.0
      %2857 = vmatpush1.msra.mxu0 0.0
      %2858 = vmatprep.subr.mxu0 0.0
      %2859 = vmatpush1.msra.mxu0 0.0
      %2860 = vmatprep.subr.mxu0 0.0
      %2861 = vmatpush1.msra.mxu0 0.0
      %2862 = vmatprep.subr.mxu0 0.0
      %2863 = vmatpush1.msra.mxu0 0.0
      %2864 = vmatprep.subr.mxu0 0.0
      %2865 = vmatpush1.msra.mxu0 0.0
      %2866 = vmatprep.subr.mxu0 0.0
      %2867 = vmatpush1.msra.mxu0 0.0
      %2868 = vmatprep.subr.mxu0 0.0
      %2869 = vmatpush1.msra.mxu0 0.0
      %2870 = vmatprep.subr.mxu0 0.0
      %2871 = vmatpush1.msra.mxu0 0.0
      %2872 = vmatprep.subr.mxu0 0.0
      %2873 = vmatpush1.msra.mxu0 0.0
      %2874 = vmatprep.subr.mxu0 0.0
      %2875 = vmatpush1.msra.mxu0 0.0
      %2876 = vmatprep.subr.mxu0 0.0
      %2877 = vmatpush1.msra.mxu0 0.0
      %2878 = vmatprep.mubr.f32.mxu0 0.0
      %2879 = vmatmul.mubr.f32.gmra.mrb[0].mxu0 %v2761
      %v2880 = vpop.f32.mrb[0].mxu0
      %v2881 = vadd.f32 0.0, %v2880
      %v2882 = vpop.f32.mrb[0].mxu0
      %2883 = vmatprep.mubr.f32.mxu0 0.0
      %2884 = vmatmul.mubr.f32.gmra.mrb[0].mxu0 %v2762
      %v2885 = vpop.f32.mrb[0].mxu0
      %v2886 = vadd.f32 0.0, %v2885
      %v2887 = vpop.f32.mrb[0].mxu0
      %2888 = vmatprep.mubr.f32.mxu0 0.0
      %2889 = vmatmul.mubr.f32.gmra.mrb[0].mxu0 %v2763
      %v2890 = vpop.f32.mrb[0].mxu0
      %v2891 = vadd.f32 0.0, %v2890
      %v2892 = vpop.f32.mrb[0].mxu0
      %2893 = vmatprep.mubr.f32.mxu0 0.0
      %2894 = vmatmul.mubr.f32.gmra.mrb[0].mxu0 %v2764
      %v2895 = vpop.f32.mrb[0].mxu0
      %v2896 = vadd.f32 0.0, %v2895
      %v2897 = vpop.f32.mrb[0].mxu0
      %2898 = vmatprep.mubr.f32.mxu0 0.0
      %2899 = vmatmul.mubr.f32.gmra.mrb[0].mxu0 %v2765
      %v2900 = vpop.f32.mrb[0].mxu0
      %v2901 = vadd.f32 0.0, %v2900
      %v2902 = vpop.f32.mrb[0].mxu0
      %2903 = vmatprep.mubr.f32.mxu0 0.0
      %2904 = vmatmul.mubr.f32.gmra.mrb[0].mxu0 %v2766
      %v2905 = vpop.f32.mrb[0].mxu0
      %v2906 = vadd.f32 0.0, %v2905
      %v2907 = vpop.f32.mrb[0].mxu0
      %2908 = vmatprep.mubr.f32.mxu0 0.0
      %2909 = vmatmul.mubr.f32.gmra.mrb[0].mxu0 %v2767
      %v2910 = vpop.f32.mrb[0].mxu0
      %v2911 = vadd.f32 0.0, %v2910
      %v2912 = vpop.f32.mrb[0].mxu0
      %2913 = vmatprep.mubr.f32.mxu0 0.0
      %2914 = vmatmul.mubr.f32.gmra.mrb[0].mxu0 %v2768
      %v2915 = vpop.f32.mrb[0].mxu0
      %v2916 = vadd.f32 0.0, %v2915
      %v2917 = vpop.f32.mrb[0].mxu0
      %2918 = vmatprep.mubr.f32.mxu0 0.0
      %2919 = vmatmul.mubr.f32.gmra.mrb[0].mxu0 %v2769
      %v2920 = vpop.f32.mrb[0].mxu0
      %v2921 = vadd.f32 0.0, %v2920
      %v2922 = vpop.f32.mrb[0].mxu0
      %2923 = vmatprep.mubr.f32.mxu0 0.0
      %2924 = vmatmul.mubr.f32.gmra.mrb[0].mxu0 %v2770
      %v2925 = vpop.f32.mrb[0].mxu0
      %v2926 = vadd.f32 0.0, %v2925
      %v2927 = vpop.f32.mrb[0].mxu0
      %2928 = vmatprep.mubr.f32.mxu0 0.0
      %2929 = vmatmul.mubr.f32.gmra.mrb[0].mxu0 %v2771
      %v2930 = vpop.f32.mrb[0].mxu0
      %v2931 = vadd.f32 0.0, %v2930
      %v2932 = vpop.f32.mrb[0].mxu0
      %2933 = vmatprep.mubr.f32.mxu0 0.0
      %2934 = vmatmul.mubr.f32.gmra.mrb[0].mxu0 %v2772
      %v2935 = vpop.f32.mrb[0].mxu0
      %v2936 = vadd.f32 0.0, %v2935
      %v2937 = vpop.f32.mrb[0].mxu0
      %2938 = vmatprep.mubr.f32.mxu0 0.0
      %2939 = vmatmul.mubr.f32.gmra.mrb[0].mxu0 %v2773
      %v2940 = vpop.f32.mrb[0].mxu0
      %v2941 = vadd.f32 0.0, %v2940
      %v2942 = vpop.f32.mrb[0].mxu0
      %2943 = vmatprep.mubr.f32.mxu0 0.0
      %2944 = vmatmul.mubr.f32.gmra.mrb[0].mxu0 %v2774
      %v2945 = vpop.f32.mrb[0].mxu0
      %v2946 = vadd.f32 0.0, %v2945
      %v2947 = vpop.f32.mrb[0].mxu0
      %2948 = vmatprep.mubr.f32.mxu0 0.0
      %2949 = vmatmul.mubr.f32.gmra.mrb[0].mxu0 %v2775
      %v2950 = vpop.f32.mrb[0].mxu0
      %v2951 = vadd.f32 0.0, %v2950
      %v2952 = vpop.f32.mrb[0].mxu0
      %2953 = vmatprep.mubr.f32.mxu0 0.0
      %2954 = vmatmul.mubr.f32.gmra.mrb[0].mxu0 %v2776
      %v2955 = vpop.f32.mrb[0].mxu0
      %v2956 = vadd.f32 0.0, %v2955
      %v2957 = vpop.f32.mrb[0].mxu0
      %2958 = vmatprep.mubr.f32.mxu0 0.0
      %2959 = vmatmul.mubr.f32.gmra.mrb[0].mxu0 %v2777
      %v2960 = vpop.f32.mrb[0].mxu0
      %v2961 = vadd.f32 0.0, %v2960
      %v2962 = vpop.f32.mrb[0].mxu0
      %2963 = vmatprep.mubr.f32.mxu0 0.0
      %2964 = vmatmul.mubr.f32.gmra.mrb[0].mxu0 %v2778
      %v2965 = vpop.f32.mrb[0].mxu0
      %v2966 = vadd.f32 0.0, %v2965
      %v2967 = vpop.f32.mrb[0].mxu0
      %2968 = vmatprep.mubr.f32.mxu0 0.0
      %2969 = vmatmul.mubr.f32.gmra.mrb[0].mxu0 %v2779
      %v2970 = vpop.f32.mrb[0].mxu0
      %v2971 = vadd.f32 0.0, %v2970
      %v2972 = vpop.f32.mrb[0].mxu0
      %2973 = vmatprep.mubr.f32.mxu0 0.0
      %2974 = vmatmul.mubr.f32.gmra.mrb[0].mxu0 %v2780
      %v2975 = vpop.f32.mrb[0].mxu0
      %v2976 = vadd.f32 0.0, %v2975
      %v2977 = vpop.f32.mrb[0].mxu0
      %2978 = vmatprep.mubr.f32.mxu0 0.0
      %2979 = vmatmul.mubr.f32.gmra.mrb[0].mxu0 %v2781
      %v2980 = vpop.f32.mrb[0].mxu0
      %v2981 = vadd.f32 0.0, %v2980
      %v2982 = vpop.f32.mrb[0].mxu0
      %2983 = vmatprep.mubr.f32.mxu0 0.0
      %2984 = vmatmul.mubr.f32.gmra.mrb[0].mxu0 %v2782
      %v2985 = vpop.f32.mrb[0].mxu0
      %v2986 = vadd.f32 0.0, %v2985
      %v2987 = vpop.f32.mrb[0].mxu0
      %2988 = vmatprep.mubr.f32.mxu0 0.0
      %2989 = vmatmul.mubr.f32.gmra.mrb[0].mxu0 %v2783
      %v2990 = vpop.f32.mrb[0].mxu0
      %v2991 = vadd.f32 0.0, %v2990
      %v2992 = vpop.f32.mrb[0].mxu0
      %2993 = vmatprep.mubr.f32.mxu0 0.0
      %2994 = vmatmul.mubr.f32.gmra.mrb[0].mxu0 %v2784
      %v2995 = vpop.f32.mrb[0].mxu0
      %v2996 = vadd.f32 0.0, %v2995
      %v2997 = vpop.f32.mrb[0].mxu0
      %2998 = vmatprep.mubr.f32.mxu0 0.0
      %2999 = vmatmul.mubr.f32.gmra.mrb[0].mxu0 %v2785
      %v3000 = vpop.f32.mrb[0].mxu0
      %v3001 = vadd.f32 0.0, %v3000
      %v3002 = vpop.f32.mrb[0].mxu0
      %3003 = vmatprep.mubr.f32.mxu0 0.0
      %3004 = vmatmul.mubr.f32.gmra.mrb[0].mxu0 %v2786
      %v3005 = vpop.f32.mrb[0].mxu0
      %v3006 = vadd.f32 0.0, %v3005
      %v3007 = vpop.f32.mrb[0].mxu0
      %3008 = vmatprep.mubr.f32.mxu0 0.0
      %3009 = vmatmul.mubr.f32.gmra.mrb[0].mxu0 %v2787
      %v3010 = vpop.f32.mrb[0].mxu0
      %v3011 = vadd.f32 0.0, %v3010
      %v3012 = vpop.f32.mrb[0].mxu0
      %3013 = vmatprep.mubr.f32.mxu0 0.0
      %3014 = vmatmul.mubr.f32.gmra.mrb[0].mxu0 %v2788
      %v3015 = vpop.f32.mrb[0].mxu0
      %v3016 = vadd.f32 0.0, %v3015
      %v3017 = vpop.f32.mrb[0].mxu0
      %3018 = vmatprep.mubr.f32.mxu0 0.0
      %3019 = vmatmul.mubr.f32.gmra.mrb[0].mxu0 %v2789
      %v3020 = vpop.f32.mrb[0].mxu0
      %v3021 = vadd.f32 0.0, %v3020
      %v3022 = vpop.f32.mrb[0].mxu0
      %3023 = vmatprep.mubr.f32.mxu0 0.0
      %3024 = vmatmul.mubr.f32.gmra.mrb[0].mxu0 %v2790
      %v3025 = vpop.f32.mrb[0].mxu0
      %v3026 = vadd.f32 0.0, %v3025
      %v3027 = vpop.f32.mrb[0].mxu0
      %3028 = vmatprep.mubr.f32.mxu0 0.0
      %3029 = vmatmul.mubr.f32.gmra.mrb[0].mxu0 %v2791
      %v3030 = vpop.f32.mrb[0].mxu0
      %v3031 = vadd.f32 0.0, %v3030
      %v3032 = vpop.f32.mrb[0].mxu0
      %3033 = vmatprep.mubr.f32.mxu0 0.0
      %3034 = vmatmul.mubr.f32.gmra.mrb[0].mxu0 %v2792
      %v3035 = vpop.f32.mrb[0].mxu0
      %v3036 = vadd.f32 0.0, %v3035
      %v3037 = vpop.f32.mrb[0].mxu0
      %3038 = vmatprep.mubr.f32.mxu0 0.0
      %3039 = vmatmul.mubr.f32.gmra.mrb[0].mxu0 %v2793
      %v3040 = vpop.f32.mrb[0].mxu0
      %v3041 = vadd.f32 0.0, %v3040
      %v3042 = vpop.f32.mrb[0].mxu0
      %3043 = vmatprep.mubr.f32.mxu0 0.0
      %3044 = vmatmul.mubr.f32.gmra.mrb[0].mxu0 %v2794
      %v3045 = vpop.f32.mrb[0].mxu0
      %v3046 = vadd.f32 0.0, %v3045
      %v3047 = vpop.f32.mrb[0].mxu0
      %3048 = vmatprep.mubr.f32.mxu0 0.0
      %3049 = vmatmul.mubr.f32.gmra.mrb[0].mxu0 %v2795
      %v3050 = vpop.f32.mrb[0].mxu0
      %v3051 = vadd.f32 0.0, %v3050
      %v3052 = vpop.f32.mrb[0].mxu0
      %3053 = vmatprep.mubr.f32.mxu0 0.0
      %3054 = vmatmul.mubr.f32.gmra.mrb[0].mxu0 %v2796
      %v3055 = vpop.f32.mrb[0].mxu0
      %v3056 = vadd.f32 0.0, %v3055
      %v3057 = vpop.f32.mrb[0].mxu0
      %3058 = vdwg.mxu0
      %v3059 = vadd.f32 %v2725, %v2881
      %v3060 = vadd.f32 %v2726, %v2886
      %v3061 = vadd.f32 %v2727, %v2891
      %v3062 = vadd.f32 %v2728, %v2896
      %v3063 = vadd.f32 %v2729, %v2901
      %v3064 = vadd.f32 %v2730, %v2906
      %v3065 = vadd.f32 %v2731, %v2911
      %v3066 = vadd.f32 %v2732, %v2916
      %v3067 = vadd.f32 %v2733, %v2921
      %v3068 = vadd.f32 %v2734, %v2926
      %v3069 = vadd.f32 %v2735, %v2931
      %v3070 = vadd.f32 %v2736, %v2936
      %v3071 = vadd.f32 %v2737, %v2941
      %v3072 = vadd.f32 %v2738, %v2946
      %v3073 = vadd.f32 %v2739, %v2951
      %v3074 = vadd.f32 %v2740, %v2956
      %v3075 = vadd.f32 %v2741, %v2961
      %v3076 = vadd.f32 %v2742, %v2966
      %v3077 = vadd.f32 %v2743, %v2971
      %v3078 = vadd.f32 %v2744, %v2976
      %v3079 = vadd.f32 %v2745, %v2981
      %v3080 = vadd.f32 %v2746, %v2986
      %v3081 = vadd.f32 %v2747, %v2991
      %v3082 = vadd.f32 %v2748, %v2996
      %v3083 = vadd.f32 %v2749, %v3001
      %v3084 = vadd.f32 %v2750, %v3006
      %v3085 = vadd.f32 %v2751, %v3011
      %v3086 = vadd.f32 %v2752, %v3016
      %v3087 = vadd.f32 %v2753, %v3021
      %v3088 = vadd.f32 %v2754, %v3026
      %v3089 = vadd.f32 %v2755, %v3031
      %v3090 = vadd.f32 %v2756, %v3036
      %v3091 = vadd.f32 %v2757, %v3041
      %v3092 = vadd.f32 %v2758, %v3046
      %v3093 = vadd.f32 %v2759, %v3051
      %v3094 = vadd.f32 %v2760, %v3056
      %v3095 = vld [vmem:[#allocation2 + $0x25] sm:$0xff]
      %v3096 = vld [vmem:[#allocation2 + $0x2d] sm:$0xff]
      %v3097 = vld [vmem:[#allocation2 + $0x35] sm:$0xff]
      %v3098 = vld [vmem:[#allocation2 + $0x3d] sm:$0xff]
      %v3099 = vld [vmem:[#allocation2 + $0x45] sm:$0xff]
      %v3100 = vld [vmem:[#allocation2 + $0x4d] sm:$0xff]
      %v3101 = vld [vmem:[#allocation2 + $0x55] sm:$0xff]
      %v3102 = vld [vmem:[#allocation2 + $0x5d] sm:$0xff]
      %v3103 = vld [vmem:[#allocation2 + $0x65] sm:$0xff]
      %v3104 = vld [vmem:[#allocation2 + $0x6d] sm:$0xff]
      %v3105 = vld [vmem:[#allocation2 + $0x75] sm:$0xff]
      %v3106 = vld [vmem:[#allocation2 + $0x7d] sm:$0xff]
      %v3107 = vld [vmem:[#allocation2 + $0x85] sm:$0xff]
      %v3108 = vld [vmem:[#allocation2 + $0x8d] sm:$0xff]
      %v3109 = vld [vmem:[#allocation2 + $0x95] sm:$0xff]
      %v3110 = vld [vmem:[#allocation2 + $0x9d] sm:$0xff]
      %v3111 = vld [vmem:[#allocation2 + $0xa5] sm:$0xff]
      %v3112 = vld [vmem:[#allocation2 + $0xad] sm:$0xff]
      %v3113 = vld [vmem:[#allocation2 + $0xb5] sm:$0xff]
      %v3114 = vld [vmem:[#allocation2 + $0xbd] sm:$0xff]
      %v3115 = vld [vmem:[#allocation2 + $0xc5] sm:$0xff]
      %v3116 = vld [vmem:[#allocation2 + $0xcd] sm:$0xff]
      %v3117 = vld [vmem:[#allocation2 + $0xd5] sm:$0xff]
      %v3118 = vld [vmem:[#allocation2 + $0xdd] sm:$0xff]
      %v3119 = vld [vmem:[#allocation2 + $0xe5] sm:$0xff]
      %v3120 = vld [vmem:[#allocation2 + $0xed] sm:$0xff]
      %v3121 = vld [vmem:[#allocation2 + $0xf5] sm:$0xff]
      %v3122 = vld [vmem:[#allocation2 + $0xfd] sm:$0xff]
      %v3123 = vld [vmem:[#allocation2 + $0x105] sm:$0xff]
      %v3124 = vld [vmem:[#allocation2 + $0x10d] sm:$0xff]
      %v3125 = vld [vmem:[#allocation2 + $0x115] sm:$0xff]
      %v3126 = vld [vmem:[#allocation2 + $0x11d] sm:$0xff]
      %v3127 = vld [vmem:[#allocation2 + $0x125] sm:$0xff]
      %v3128 = vld [vmem:[#allocation2 + $0x12d] sm:$0xff]
      %v3129 = vld [vmem:[#allocation2 + $0x135] sm:$0xff]
      %v3130 = vld [vmem:[#allocation2 + $0x13d] sm:$0xff]
      %s3131 = scalar_lea.vmem %s4, 896
      %v3132 = vld [vmem:[%s3131] sm:$0xff]
      %v3133 = vld [vmem:[%s3131 + $0x8] sm:$0xff]
      %v3134 = vld [vmem:[%s3131 + $0x10] sm:$0xff]
      %v3135 = vld [vmem:[%s3131 + $0x18] sm:$0xff]
      %v3136 = vld [vmem:[%s3131 + $0x20] sm:$0xff]
      %v3137 = vld [vmem:[%s3131 + $0x28] sm:$0xff]
      %v3138 = vld [vmem:[%s3131 + $0x30] sm:$0xff]
      %v3139 = vld [vmem:[%s3131 + $0x38] sm:$0xff]
      %v3140 = vld [vmem:[%s3131 + $0x40] sm:$0xff]
      %v3141 = vld [vmem:[%s3131 + $0x48] sm:$0xff]
      %v3142 = vld [vmem:[%s3131 + $0x50] sm:$0xff]
      %v3143 = vld [vmem:[%s3131 + $0x58] sm:$0xff]
      %v3144 = vld [vmem:[%s3131 + $0x60] sm:$0xff]
      %v3145 = vld [vmem:[%s3131 + $0x68] sm:$0xff]
      %v3146 = vld [vmem:[%s3131 + $0x70] sm:$0xff]
      %v3147 = vld [vmem:[%s3131 + $0x78] sm:$0xff]
      %3148 = vmatprep.subr.mxu0 0.0
      %3149 = vmatpush1.msra.mxu0 %v3132
      %3150 = vmatprep.subr.mxu0 0.0
      %3151 = vmatpush1.msra.mxu0 %v3133
      %3152 = vmatprep.subr.mxu0 0.0
      %3153 = vmatpush1.msra.mxu0 %v3134
      %3154 = vmatprep.subr.mxu0 0.0
      %3155 = vmatpush1.msra.mxu0 %v3135
      %3156 = vmatprep.subr.mxu0 0.0
      %3157 = vmatpush1.msra.mxu0 %v3136
      %3158 = vmatprep.subr.mxu0 0.0
      %3159 = vmatpush1.msra.mxu0 %v3137
      %3160 = vmatprep.subr.mxu0 0.0
      %3161 = vmatpush1.msra.mxu0 %v3138
      %3162 = vmatprep.subr.mxu0 0.0
      %3163 = vmatpush1.msra.mxu0 %v3139
      %3164 = vmatprep.subr.mxu0 0.0
      %3165 = vmatpush1.msra.mxu0 %v3140
      %3166 = vmatprep.subr.mxu0 0.0
      %3167 = vmatpush1.msra.mxu0 %v3141
      %3168 = vmatprep.subr.mxu0 0.0
      %3169 = vmatpush1.msra.mxu0 %v3142
      %3170 = vmatprep.subr.mxu0 0.0
      %3171 = vmatpush1.msra.mxu0 %v3143
      %3172 = vmatprep.subr.mxu0 0.0
      %3173 = vmatpush1.msra.mxu0 %v3144
      %3174 = vmatprep.subr.mxu0 0.0
      %3175 = vmatpush1.msra.mxu0 %v3145
      %3176 = vmatprep.subr.mxu0 0.0
      %3177 = vmatpush1.msra.mxu0 %v3146
      %3178 = vmatprep.subr.mxu0 0.0
      %3179 = vmatpush1.msra.mxu0 %v3147
      %3180 = vmatprep.subr.mxu0 0.0
      %3181 = vmatpush1.msra.mxu0 0.0
      %3182 = vmatprep.subr.mxu0 0.0
      %3183 = vmatpush1.msra.mxu0 0.0
      %3184 = vmatprep.subr.mxu0 0.0
      %3185 = vmatpush1.msra.mxu0 0.0
      %3186 = vmatprep.subr.mxu0 0.0
      %3187 = vmatpush1.msra.mxu0 0.0
      %3188 = vmatprep.subr.mxu0 0.0
      %3189 = vmatpush1.msra.mxu0 0.0
      %3190 = vmatprep.subr.mxu0 0.0
      %3191 = vmatpush1.msra.mxu0 0.0
      %3192 = vmatprep.subr.mxu0 0.0
      %3193 = vmatpush1.msra.mxu0 0.0
      %3194 = vmatprep.subr.mxu0 0.0
      %3195 = vmatpush1.msra.mxu0 0.0
      %3196 = vmatprep.subr.mxu0 0.0
      %3197 = vmatpush1.msra.mxu0 0.0
      %3198 = vmatprep.subr.mxu0 0.0
      %3199 = vmatpush1.msra.mxu0 0.0
      %3200 = vmatprep.subr.mxu0 0.0
      %3201 = vmatpush1.msra.mxu0 0.0
      %3202 = vmatprep.subr.mxu0 0.0
      %3203 = vmatpush1.msra.mxu0 0.0
      %3204 = vmatprep.subr.mxu0 0.0
      %3205 = vmatpush1.msra.mxu0 0.0
      %3206 = vmatprep.subr.mxu0 0.0
      %3207 = vmatpush1.msra.mxu0 0.0
      %3208 = vmatprep.subr.mxu0 0.0
      %3209 = vmatpush1.msra.mxu0 0.0
      %3210 = vmatprep.subr.mxu0 0.0
      %3211 = vmatpush1.msra.mxu0 0.0
      %3212 = vmatprep.mubr.f32.mxu0 0.0
      %3213 = vmatmul.mubr.f32.gmra.mrb[0].mxu0 %v3095
      %v3214 = vpop.f32.mrb[0].mxu0
      %v3215 = vadd.f32 0.0, %v3214
      %v3216 = vpop.f32.mrb[0].mxu0
      %3217 = vmatprep.mubr.f32.mxu0 0.0
      %3218 = vmatmul.mubr.f32.gmra.mrb[0].mxu0 %v3096
      %v3219 = vpop.f32.mrb[0].mxu0
      %v3220 = vadd.f32 0.0, %v3219
      %v3221 = vpop.f32.mrb[0].mxu0
      %3222 = vmatprep.mubr.f32.mxu0 0.0
      %3223 = vmatmul.mubr.f32.gmra.mrb[0].mxu0 %v3097
      %v3224 = vpop.f32.mrb[0].mxu0
      %v3225 = vadd.f32 0.0, %v3224
      %v3226 = vpop.f32.mrb[0].mxu0
      %3227 = vmatprep.mubr.f32.mxu0 0.0
      %3228 = vmatmul.mubr.f32.gmra.mrb[0].mxu0 %v3098
      %v3229 = vpop.f32.mrb[0].mxu0
      %v3230 = vadd.f32 0.0, %v3229
      %v3231 = vpop.f32.mrb[0].mxu0
      %3232 = vmatprep.mubr.f32.mxu0 0.0
      %3233 = vmatmul.mubr.f32.gmra.mrb[0].mxu0 %v3099
      %v3234 = vpop.f32.mrb[0].mxu0
      %v3235 = vadd.f32 0.0, %v3234
      %v3236 = vpop.f32.mrb[0].mxu0
      %3237 = vmatprep.mubr.f32.mxu0 0.0
      %3238 = vmatmul.mubr.f32.gmra.mrb[0].mxu0 %v3100
      %v3239 = vpop.f32.mrb[0].mxu0
      %v3240 = vadd.f32 0.0, %v3239
      %v3241 = vpop.f32.mrb[0].mxu0
      %3242 = vmatprep.mubr.f32.mxu0 0.0
      %3243 = vmatmul.mubr.f32.gmra.mrb[0].mxu0 %v3101
      %v3244 = vpop.f32.mrb[0].mxu0
      %v3245 = vadd.f32 0.0, %v3244
      %v3246 = vpop.f32.mrb[0].mxu0
      %3247 = vmatprep.mubr.f32.mxu0 0.0
      %3248 = vmatmul.mubr.f32.gmra.mrb[0].mxu0 %v3102
      %v3249 = vpop.f32.mrb[0].mxu0
      %v3250 = vadd.f32 0.0, %v3249
      %v3251 = vpop.f32.mrb[0].mxu0
      %3252 = vmatprep.mubr.f32.mxu0 0.0
      %3253 = vmatmul.mubr.f32.gmra.mrb[0].mxu0 %v3103
      %v3254 = vpop.f32.mrb[0].mxu0
      %v3255 = vadd.f32 0.0, %v3254
      %v3256 = vpop.f32.mrb[0].mxu0
      %3257 = vmatprep.mubr.f32.mxu0 0.0
      %3258 = vmatmul.mubr.f32.gmra.mrb[0].mxu0 %v3104
      %v3259 = vpop.f32.mrb[0].mxu0
      %v3260 = vadd.f32 0.0, %v3259
      %v3261 = vpop.f32.mrb[0].mxu0
      %3262 = vmatprep.mubr.f32.mxu0 0.0
      %3263 = vmatmul.mubr.f32.gmra.mrb[0].mxu0 %v3105
      %v3264 = vpop.f32.mrb[0].mxu0
      %v3265 = vadd.f32 0.0, %v3264
      %v3266 = vpop.f32.mrb[0].mxu0
      %3267 = vmatprep.mubr.f32.mxu0 0.0
      %3268 = vmatmul.mubr.f32.gmra.mrb[0].mxu0 %v3106
      %v3269 = vpop.f32.mrb[0].mxu0
      %v3270 = vadd.f32 0.0, %v3269
      %v3271 = vpop.f32.mrb[0].mxu0
      %3272 = vmatprep.mubr.f32.mxu0 0.0
      %3273 = vmatmul.mubr.f32.gmra.mrb[0].mxu0 %v3107
      %v3274 = vpop.f32.mrb[0].mxu0
      %v3275 = vadd.f32 0.0, %v3274
      %v3276 = vpop.f32.mrb[0].mxu0
      %3277 = vmatprep.mubr.f32.mxu0 0.0
      %3278 = vmatmul.mubr.f32.gmra.mrb[0].mxu0 %v3108
      %v3279 = vpop.f32.mrb[0].mxu0
      %v3280 = vadd.f32 0.0, %v3279
      %v3281 = vpop.f32.mrb[0].mxu0
      %3282 = vmatprep.mubr.f32.mxu0 0.0
      %3283 = vmatmul.mubr.f32.gmra.mrb[0].mxu0 %v3109
      %v3284 = vpop.f32.mrb[0].mxu0
      %v3285 = vadd.f32 0.0, %v3284
      %v3286 = vpop.f32.mrb[0].mxu0
      %3287 = vmatprep.mubr.f32.mxu0 0.0
      %3288 = vmatmul.mubr.f32.gmra.mrb[0].mxu0 %v3110
      %v3289 = vpop.f32.mrb[0].mxu0
      %v3290 = vadd.f32 0.0, %v3289
      %v3291 = vpop.f32.mrb[0].mxu0
      %3292 = vmatprep.mubr.f32.mxu0 0.0
      %3293 = vmatmul.mubr.f32.gmra.mrb[0].mxu0 %v3111
      %v3294 = vpop.f32.mrb[0].mxu0
      %v3295 = vadd.f32 0.0, %v3294
      %v3296 = vpop.f32.mrb[0].mxu0
      %3297 = vmatprep.mubr.f32.mxu0 0.0
      %3298 = vmatmul.mubr.f32.gmra.mrb[0].mxu0 %v3112
      %v3299 = vpop.f32.mrb[0].mxu0
      %v3300 = vadd.f32 0.0, %v3299
      %v3301 = vpop.f32.mrb[0].mxu0
      %3302 = vmatprep.mubr.f32.mxu0 0.0
      %3303 = vmatmul.mubr.f32.gmra.mrb[0].mxu0 %v3113
      %v3304 = vpop.f32.mrb[0].mxu0
      %v3305 = vadd.f32 0.0, %v3304
      %v3306 = vpop.f32.mrb[0].mxu0
      %3307 = vmatprep.mubr.f32.mxu0 0.0
      %3308 = vmatmul.mubr.f32.gmra.mrb[0].mxu0 %v3114
      %v3309 = vpop.f32.mrb[0].mxu0
      %v3310 = vadd.f32 0.0, %v3309
      %v3311 = vpop.f32.mrb[0].mxu0
      %3312 = vmatprep.mubr.f32.mxu0 0.0
      %3313 = vmatmul.mubr.f32.gmra.mrb[0].mxu0 %v3115
      %v3314 = vpop.f32.mrb[0].mxu0
      %v3315 = vadd.f32 0.0, %v3314
      %v3316 = vpop.f32.mrb[0].mxu0
      %3317 = vmatprep.mubr.f32.mxu0 0.0
      %3318 = vmatmul.mubr.f32.gmra.mrb[0].mxu0 %v3116
      %v3319 = vpop.f32.mrb[0].mxu0
      %v3320 = vadd.f32 0.0, %v3319
      %v3321 = vpop.f32.mrb[0].mxu0
      %3322 = vmatprep.mubr.f32.mxu0 0.0
      %3323 = vmatmul.mubr.f32.gmra.mrb[0].mxu0 %v3117
      %v3324 = vpop.f32.mrb[0].mxu0
      %v3325 = vadd.f32 0.0, %v3324
      %v3326 = vpop.f32.mrb[0].mxu0
      %3327 = vmatprep.mubr.f32.mxu0 0.0
      %3328 = vmatmul.mubr.f32.gmra.mrb[0].mxu0 %v3118
      %v3329 = vpop.f32.mrb[0].mxu0
      %v3330 = vadd.f32 0.0, %v3329
      %v3331 = vpop.f32.mrb[0].mxu0
      %3332 = vmatprep.mubr.f32.mxu0 0.0
      %3333 = vmatmul.mubr.f32.gmra.mrb[0].mxu0 %v3119
      %v3334 = vpop.f32.mrb[0].mxu0
      %v3335 = vadd.f32 0.0, %v3334
      %v3336 = vpop.f32.mrb[0].mxu0
      %3337 = vmatprep.mubr.f32.mxu0 0.0
      %3338 = vmatmul.mubr.f32.gmra.mrb[0].mxu0 %v3120
      %v3339 = vpop.f32.mrb[0].mxu0
      %v3340 = vadd.f32 0.0, %v3339
      %v3341 = vpop.f32.mrb[0].mxu0
      %3342 = vmatprep.mubr.f32.mxu0 0.0
      %3343 = vmatmul.mubr.f32.gmra.mrb[0].mxu0 %v3121
      %v3344 = vpop.f32.mrb[0].mxu0
      %v3345 = vadd.f32 0.0, %v3344
      %v3346 = vpop.f32.mrb[0].mxu0
      %3347 = vmatprep.mubr.f32.mxu0 0.0
      %3348 = vmatmul.mubr.f32.gmra.mrb[0].mxu0 %v3122
      %v3349 = vpop.f32.mrb[0].mxu0
      %v3350 = vadd.f32 0.0, %v3349
      %v3351 = vpop.f32.mrb[0].mxu0
      %3352 = vmatprep.mubr.f32.mxu0 0.0
      %3353 = vmatmul.mubr.f32.gmra.mrb[0].mxu0 %v3123
      %v3354 = vpop.f32.mrb[0].mxu0
      %v3355 = vadd.f32 0.0, %v3354
      %v3356 = vpop.f32.mrb[0].mxu0
      %3357 = vmatprep.mubr.f32.mxu0 0.0
      %3358 = vmatmul.mubr.f32.gmra.mrb[0].mxu0 %v3124
      %v3359 = vpop.f32.mrb[0].mxu0
      %v3360 = vadd.f32 0.0, %v3359
      %v3361 = vpop.f32.mrb[0].mxu0
      %3362 = vmatprep.mubr.f32.mxu0 0.0
      %3363 = vmatmul.mubr.f32.gmra.mrb[0].mxu0 %v3125
      %v3364 = vpop.f32.mrb[0].mxu0
      %v3365 = vadd.f32 0.0, %v3364
      %v3366 = vpop.f32.mrb[0].mxu0
      %3367 = vmatprep.mubr.f32.mxu0 0.0
      %3368 = vmatmul.mubr.f32.gmra.mrb[0].mxu0 %v3126
      %v3369 = vpop.f32.mrb[0].mxu0
      %v3370 = vadd.f32 0.0, %v3369
      %v3371 = vpop.f32.mrb[0].mxu0
      %3372 = vmatprep.mubr.f32.mxu0 0.0
      %3373 = vmatmul.mubr.f32.gmra.mrb[0].mxu0 %v3127
      %v3374 = vpop.f32.mrb[0].mxu0
      %v3375 = vadd.f32 0.0, %v3374
      %v3376 = vpop.f32.mrb[0].mxu0
      %3377 = vmatprep.mubr.f32.mxu0 0.0
      %3378 = vmatmul.mubr.f32.gmra.mrb[0].mxu0 %v3128
      %v3379 = vpop.f32.mrb[0].mxu0
      %v3380 = vadd.f32 0.0, %v3379
      %v3381 = vpop.f32.mrb[0].mxu0
      %3382 = vmatprep.mubr.f32.mxu0 0.0
      %3383 = vmatmul.mubr.f32.gmra.mrb[0].mxu0 %v3129
      %v3384 = vpop.f32.mrb[0].mxu0
      %v3385 = vadd.f32 0.0, %v3384
      %v3386 = vpop.f32.mrb[0].mxu0
      %3387 = vmatprep.mubr.f32.mxu0 0.0
      %3388 = vmatmul.mubr.f32.gmra.mrb[0].mxu0 %v3130
      %v3389 = vpop.f32.mrb[0].mxu0
      %v3390 = vadd.f32 0.0, %v3389
      %v3391 = vpop.f32.mrb[0].mxu0
      %3392 = vdwg.mxu0
      %v3393 = vadd.f32 %v3059, %v3215
      %v3394 = vadd.f32 %v3060, %v3220
      %v3395 = vadd.f32 %v3061, %v3225
      %v3396 = vadd.f32 %v3062, %v3230
      %v3397 = vadd.f32 %v3063, %v3235
      %v3398 = vadd.f32 %v3064, %v3240
      %v3399 = vadd.f32 %v3065, %v3245
      %v3400 = vadd.f32 %v3066, %v3250
      %v3401 = vadd.f32 %v3067, %v3255
      %v3402 = vadd.f32 %v3068, %v3260
      %v3403 = vadd.f32 %v3069, %v3265
      %v3404 = vadd.f32 %v3070, %v3270
      %v3405 = vadd.f32 %v3071, %v3275
      %v3406 = vadd.f32 %v3072, %v3280
      %v3407 = vadd.f32 %v3073, %v3285
      %v3408 = vadd.f32 %v3074, %v3290
      %v3409 = vadd.f32 %v3075, %v3295
      %v3410 = vadd.f32 %v3076, %v3300
      %v3411 = vadd.f32 %v3077, %v3305
      %v3412 = vadd.f32 %v3078, %v3310
      %v3413 = vadd.f32 %v3079, %v3315
      %v3414 = vadd.f32 %v3080, %v3320
      %v3415 = vadd.f32 %v3081, %v3325
      %v3416 = vadd.f32 %v3082, %v3330
      %v3417 = vadd.f32 %v3083, %v3335
      %v3418 = vadd.f32 %v3084, %v3340
      %v3419 = vadd.f32 %v3085, %v3345
      %v3420 = vadd.f32 %v3086, %v3350
      %v3421 = vadd.f32 %v3087, %v3355
      %v3422 = vadd.f32 %v3088, %v3360
      %v3423 = vadd.f32 %v3089, %v3365
      %v3424 = vadd.f32 %v3090, %v3370
      %v3425 = vadd.f32 %v3091, %v3375
      %v3426 = vadd.f32 %v3092, %v3380
      %v3427 = vadd.f32 %v3093, %v3385
      %v3428 = vadd.f32 %v3094, %v3390
      %v3429 = vld [vmem:[#allocation2 + $0x26] sm:$0xff]
      %v3430 = vld [vmem:[#allocation2 + $0x2e] sm:$0xff]
      %v3431 = vld [vmem:[#allocation2 + $0x36] sm:$0xff]
      %v3432 = vld [vmem:[#allocation2 + $0x3e] sm:$0xff]
      %v3433 = vld [vmem:[#allocation2 + $0x46] sm:$0xff]
      %v3434 = vld [vmem:[#allocation2 + $0x4e] sm:$0xff]
      %v3435 = vld [vmem:[#allocation2 + $0x56] sm:$0xff]
      %v3436 = vld [vmem:[#allocation2 + $0x5e] sm:$0xff]
      %v3437 = vld [vmem:[#allocation2 + $0x66] sm:$0xff]
      %v3438 = vld [vmem:[#allocation2 + $0x6e] sm:$0xff]
      %v3439 = vld [vmem:[#allocation2 + $0x76] sm:$0xff]
      %v3440 = vld [vmem:[#allocation2 + $0x7e] sm:$0xff]
      %v3441 = vld [vmem:[#allocation2 + $0x86] sm:$0xff]
      %v3442 = vld [vmem:[#allocation2 + $0x8e] sm:$0xff]
      %v3443 = vld [vmem:[#allocation2 + $0x96] sm:$0xff]
      %v3444 = vld [vmem:[#allocation2 + $0x9e] sm:$0xff]
      %v3445 = vld [vmem:[#allocation2 + $0xa6] sm:$0xff]
      %v3446 = vld [vmem:[#allocation2 + $0xae] sm:$0xff]
      %v3447 = vld [vmem:[#allocation2 + $0xb6] sm:$0xff]
      %v3448 = vld [vmem:[#allocation2 + $0xbe] sm:$0xff]
      %v3449 = vld [vmem:[#allocation2 + $0xc6] sm:$0xff]
      %v3450 = vld [vmem:[#allocation2 + $0xce] sm:$0xff]
      %v3451 = vld [vmem:[#allocation2 + $0xd6] sm:$0xff]
      %v3452 = vld [vmem:[#allocation2 + $0xde] sm:$0xff]
      %v3453 = vld [vmem:[#allocation2 + $0xe6] sm:$0xff]
      %v3454 = vld [vmem:[#allocation2 + $0xee] sm:$0xff]
      %v3455 = vld [vmem:[#allocation2 + $0xf6] sm:$0xff]
      %v3456 = vld [vmem:[#allocation2 + $0xfe] sm:$0xff]
      %v3457 = vld [vmem:[#allocation2 + $0x106] sm:$0xff]
      %v3458 = vld [vmem:[#allocation2 + $0x10e] sm:$0xff]
      %v3459 = vld [vmem:[#allocation2 + $0x116] sm:$0xff]
      %v3460 = vld [vmem:[#allocation2 + $0x11e] sm:$0xff]
      %v3461 = vld [vmem:[#allocation2 + $0x126] sm:$0xff]
      %v3462 = vld [vmem:[#allocation2 + $0x12e] sm:$0xff]
      %v3463 = vld [vmem:[#allocation2 + $0x136] sm:$0xff]
      %v3464 = vld [vmem:[#allocation2 + $0x13e] sm:$0xff]
      %s3465 = scalar_lea.vmem %s4, 1024
      %v3466 = vld [vmem:[%s3465] sm:$0xff]
      %v3467 = vld [vmem:[%s3465 + $0x8] sm:$0xff]
      %v3468 = vld [vmem:[%s3465 + $0x10] sm:$0xff]
      %v3469 = vld [vmem:[%s3465 + $0x18] sm:$0xff]
      %v3470 = vld [vmem:[%s3465 + $0x20] sm:$0xff]
      %v3471 = vld [vmem:[%s3465 + $0x28] sm:$0xff]
      %v3472 = vld [vmem:[%s3465 + $0x30] sm:$0xff]
      %v3473 = vld [vmem:[%s3465 + $0x38] sm:$0xff]
      %v3474 = vld [vmem:[%s3465 + $0x40] sm:$0xff]
      %v3475 = vld [vmem:[%s3465 + $0x48] sm:$0xff]
      %v3476 = vld [vmem:[%s3465 + $0x50] sm:$0xff]
      %v3477 = vld [vmem:[%s3465 + $0x58] sm:$0xff]
      %v3478 = vld [vmem:[%s3465 + $0x60] sm:$0xff]
      %v3479 = vld [vmem:[%s3465 + $0x68] sm:$0xff]
      %v3480 = vld [vmem:[%s3465 + $0x70] sm:$0xff]
      %v3481 = vld [vmem:[%s3465 + $0x78] sm:$0xff]
      %3482 = vmatprep.subr.mxu0 0.0
      %3483 = vmatpush1.msra.mxu0 %v3466
      %3484 = vmatprep.subr.mxu0 0.0
      %3485 = vmatpush1.msra.mxu0 %v3467
      %3486 = vmatprep.subr.mxu0 0.0
      %3487 = vmatpush1.msra.mxu0 %v3468
      %3488 = vmatprep.subr.mxu0 0.0
      %3489 = vmatpush1.msra.mxu0 %v3469
      %3490 = vmatprep.subr.mxu0 0.0
      %3491 = vmatpush1.msra.mxu0 %v3470
      %3492 = vmatprep.subr.mxu0 0.0
      %3493 = vmatpush1.msra.mxu0 %v3471
      %3494 = vmatprep.subr.mxu0 0.0
      %3495 = vmatpush1.msra.mxu0 %v3472
      %3496 = vmatprep.subr.mxu0 0.0
      %3497 = vmatpush1.msra.mxu0 %v3473
      %3498 = vmatprep.subr.mxu0 0.0
      %3499 = vmatpush1.msra.mxu0 %v3474
      %3500 = vmatprep.subr.mxu0 0.0
      %3501 = vmatpush1.msra.mxu0 %v3475
      %3502 = vmatprep.subr.mxu0 0.0
      %3503 = vmatpush1.msra.mxu0 %v3476
      %3504 = vmatprep.subr.mxu0 0.0
      %3505 = vmatpush1.msra.mxu0 %v3477
      %3506 = vmatprep.subr.mxu0 0.0
      %3507 = vmatpush1.msra.mxu0 %v3478
      %3508 = vmatprep.subr.mxu0 0.0
      %3509 = vmatpush1.msra.mxu0 %v3479
      %3510 = vmatprep.subr.mxu0 0.0
      %3511 = vmatpush1.msra.mxu0 %v3480
      %3512 = vmatprep.subr.mxu0 0.0
      %3513 = vmatpush1.msra.mxu0 %v3481
      %3514 = vmatprep.subr.mxu0 0.0
      %3515 = vmatpush1.msra.mxu0 0.0
      %3516 = vmatprep.subr.mxu0 0.0
      %3517 = vmatpush1.msra.mxu0 0.0
      %3518 = vmatprep.subr.mxu0 0.0
      %3519 = vmatpush1.msra.mxu0 0.0
      %3520 = vmatprep.subr.mxu0 0.0
      %3521 = vmatpush1.msra.mxu0 0.0
      %3522 = vmatprep.subr.mxu0 0.0
      %3523 = vmatpush1.msra.mxu0 0.0
      %3524 = vmatprep.subr.mxu0 0.0
      %3525 = vmatpush1.msra.mxu0 0.0
      %3526 = vmatprep.subr.mxu0 0.0
      %3527 = vmatpush1.msra.mxu0 0.0
      %3528 = vmatprep.subr.mxu0 0.0
      %3529 = vmatpush1.msra.mxu0 0.0
      %3530 = vmatprep.subr.mxu0 0.0
      %3531 = vmatpush1.msra.mxu0 0.0
      %3532 = vmatprep.subr.mxu0 0.0
      %3533 = vmatpush1.msra.mxu0 0.0
      %3534 = vmatprep.subr.mxu0 0.0
      %3535 = vmatpush1.msra.mxu0 0.0
      %3536 = vmatprep.subr.mxu0 0.0
      %3537 = vmatpush1.msra.mxu0 0.0
      %3538 = vmatprep.subr.mxu0 0.0
      %3539 = vmatpush1.msra.mxu0 0.0
      %3540 = vmatprep.subr.mxu0 0.0
      %3541 = vmatpush1.msra.mxu0 0.0
      %3542 = vmatprep.subr.mxu0 0.0
      %3543 = vmatpush1.msra.mxu0 0.0
      %3544 = vmatprep.subr.mxu0 0.0
      %3545 = vmatpush1.msra.mxu0 0.0
      %3546 = vmatprep.mubr.f32.mxu0 0.0
      %3547 = vmatmul.mubr.f32.gmra.mrb[0].mxu0 %v3429
      %v3548 = vpop.f32.mrb[0].mxu0
      %v3549 = vadd.f32 0.0, %v3548
      %v3550 = vpop.f32.mrb[0].mxu0
      %3551 = vmatprep.mubr.f32.mxu0 0.0
      %3552 = vmatmul.mubr.f32.gmra.mrb[0].mxu0 %v3430
      %v3553 = vpop.f32.mrb[0].mxu0
      %v3554 = vadd.f32 0.0, %v3553
      %v3555 = vpop.f32.mrb[0].mxu0
      %3556 = vmatprep.mubr.f32.mxu0 0.0
      %3557 = vmatmul.mubr.f32.gmra.mrb[0].mxu0 %v3431
      %v3558 = vpop.f32.mrb[0].mxu0
      %v3559 = vadd.f32 0.0, %v3558
      %v3560 = vpop.f32.mrb[0].mxu0
      %3561 = vmatprep.mubr.f32.mxu0 0.0
      %3562 = vmatmul.mubr.f32.gmra.mrb[0].mxu0 %v3432
      %v3563 = vpop.f32.mrb[0].mxu0
      %v3564 = vadd.f32 0.0, %v3563
      %v3565 = vpop.f32.mrb[0].mxu0
      %3566 = vmatprep.mubr.f32.mxu0 0.0
      %3567 = vmatmul.mubr.f32.gmra.mrb[0].mxu0 %v3433
      %v3568 = vpop.f32.mrb[0].mxu0
      %v3569 = vadd.f32 0.0, %v3568
      %v3570 = vpop.f32.mrb[0].mxu0
      %3571 = vmatprep.mubr.f32.mxu0 0.0
      %3572 = vmatmul.mubr.f32.gmra.mrb[0].mxu0 %v3434
      %v3573 = vpop.f32.mrb[0].mxu0
      %v3574 = vadd.f32 0.0, %v3573
      %v3575 = vpop.f32.mrb[0].mxu0
      %3576 = vmatprep.mubr.f32.mxu0 0.0
      %3577 = vmatmul.mubr.f32.gmra.mrb[0].mxu0 %v3435
      %v3578 = vpop.f32.mrb[0].mxu0
      %v3579 = vadd.f32 0.0, %v3578
      %v3580 = vpop.f32.mrb[0].mxu0
      %3581 = vmatprep.mubr.f32.mxu0 0.0
      %3582 = vmatmul.mubr.f32.gmra.mrb[0].mxu0 %v3436
      %v3583 = vpop.f32.mrb[0].mxu0
      %v3584 = vadd.f32 0.0, %v3583
      %v3585 = vpop.f32.mrb[0].mxu0
      %3586 = vmatprep.mubr.f32.mxu0 0.0
      %3587 = vmatmul.mubr.f32.gmra.mrb[0].mxu0 %v3437
      %v3588 = vpop.f32.mrb[0].mxu0
      %v3589 = vadd.f32 0.0, %v3588
      %v3590 = vpop.f32.mrb[0].mxu0
      %3591 = vmatprep.mubr.f32.mxu0 0.0
      %3592 = vmatmul.mubr.f32.gmra.mrb[0].mxu0 %v3438
      %v3593 = vpop.f32.mrb[0].mxu0
      %v3594 = vadd.f32 0.0, %v3593
      %v3595 = vpop.f32.mrb[0].mxu0
      %3596 = vmatprep.mubr.f32.mxu0 0.0
      %3597 = vmatmul.mubr.f32.gmra.mrb[0].mxu0 %v3439
      %v3598 = vpop.f32.mrb[0].mxu0
      %v3599 = vadd.f32 0.0, %v3598
      %v3600 = vpop.f32.mrb[0].mxu0
      %3601 = vmatprep.mubr.f32.mxu0 0.0
      %3602 = vmatmul.mubr.f32.gmra.mrb[0].mxu0 %v3440
      %v3603 = vpop.f32.mrb[0].mxu0
      %v3604 = vadd.f32 0.0, %v3603
      %v3605 = vpop.f32.mrb[0].mxu0
      %3606 = vmatprep.mubr.f32.mxu0 0.0
      %3607 = vmatmul.mubr.f32.gmra.mrb[0].mxu0 %v3441
      %v3608 = vpop.f32.mrb[0].mxu0
      %v3609 = vadd.f32 0.0, %v3608
      %v3610 = vpop.f32.mrb[0].mxu0
      %3611 = vmatprep.mubr.f32.mxu0 0.0
      %3612 = vmatmul.mubr.f32.gmra.mrb[0].mxu0 %v3442
      %v3613 = vpop.f32.mrb[0].mxu0
      %v3614 = vadd.f32 0.0, %v3613
      %v3615 = vpop.f32.mrb[0].mxu0
      %3616 = vmatprep.mubr.f32.mxu0 0.0
      %3617 = vmatmul.mubr.f32.gmra.mrb[0].mxu0 %v3443
      %v3618 = vpop.f32.mrb[0].mxu0
      %v3619 = vadd.f32 0.0, %v3618
      %v3620 = vpop.f32.mrb[0].mxu0
      %3621 = vmatprep.mubr.f32.mxu0 0.0
      %3622 = vmatmul.mubr.f32.gmra.mrb[0].mxu0 %v3444
      %v3623 = vpop.f32.mrb[0].mxu0
      %v3624 = vadd.f32 0.0, %v3623
      %v3625 = vpop.f32.mrb[0].mxu0
      %3626 = vmatprep.mubr.f32.mxu0 0.0
      %3627 = vmatmul.mubr.f32.gmra.mrb[0].mxu0 %v3445
      %v3628 = vpop.f32.mrb[0].mxu0
      %v3629 = vadd.f32 0.0, %v3628
      %v3630 = vpop.f32.mrb[0].mxu0
      %3631 = vmatprep.mubr.f32.mxu0 0.0
      %3632 = vmatmul.mubr.f32.gmra.mrb[0].mxu0 %v3446
      %v3633 = vpop.f32.mrb[0].mxu0
      %v3634 = vadd.f32 0.0, %v3633
      %v3635 = vpop.f32.mrb[0].mxu0
      %3636 = vmatprep.mubr.f32.mxu0 0.0
      %3637 = vmatmul.mubr.f32.gmra.mrb[0].mxu0 %v3447
      %v3638 = vpop.f32.mrb[0].mxu0
      %v3639 = vadd.f32 0.0, %v3638
      %v3640 = vpop.f32.mrb[0].mxu0
      %3641 = vmatprep.mubr.f32.mxu0 0.0
      %3642 = vmatmul.mubr.f32.gmra.mrb[0].mxu0 %v3448
      %v3643 = vpop.f32.mrb[0].mxu0
      %v3644 = vadd.f32 0.0, %v3643
      %v3645 = vpop.f32.mrb[0].mxu0
      %3646 = vmatprep.mubr.f32.mxu0 0.0
      %3647 = vmatmul.mubr.f32.gmra.mrb[0].mxu0 %v3449
      %v3648 = vpop.f32.mrb[0].mxu0
      %v3649 = vadd.f32 0.0, %v3648
      %v3650 = vpop.f32.mrb[0].mxu0
      %3651 = vmatprep.mubr.f32.mxu0 0.0
      %3652 = vmatmul.mubr.f32.gmra.mrb[0].mxu0 %v3450
      %v3653 = vpop.f32.mrb[0].mxu0
      %v3654 = vadd.f32 0.0, %v3653
      %v3655 = vpop.f32.mrb[0].mxu0
      %3656 = vmatprep.mubr.f32.mxu0 0.0
      %3657 = vmatmul.mubr.f32.gmra.mrb[0].mxu0 %v3451
      %v3658 = vpop.f32.mrb[0].mxu0
      %v3659 = vadd.f32 0.0, %v3658
      %v3660 = vpop.f32.mrb[0].mxu0
      %3661 = vmatprep.mubr.f32.mxu0 0.0
      %3662 = vmatmul.mubr.f32.gmra.mrb[0].mxu0 %v3452
      %v3663 = vpop.f32.mrb[0].mxu0
      %v3664 = vadd.f32 0.0, %v3663
      %v3665 = vpop.f32.mrb[0].mxu0
      %3666 = vmatprep.mubr.f32.mxu0 0.0
      %3667 = vmatmul.mubr.f32.gmra.mrb[0].mxu0 %v3453
      %v3668 = vpop.f32.mrb[0].mxu0
      %v3669 = vadd.f32 0.0, %v3668
      %v3670 = vpop.f32.mrb[0].mxu0
      %3671 = vmatprep.mubr.f32.mxu0 0.0
      %3672 = vmatmul.mubr.f32.gmra.mrb[0].mxu0 %v3454
      %v3673 = vpop.f32.mrb[0].mxu0
      %v3674 = vadd.f32 0.0, %v3673
      %v3675 = vpop.f32.mrb[0].mxu0
      %3676 = vmatprep.mubr.f32.mxu0 0.0
      %3677 = vmatmul.mubr.f32.gmra.mrb[0].mxu0 %v3455
      %v3678 = vpop.f32.mrb[0].mxu0
      %v3679 = vadd.f32 0.0, %v3678
      %v3680 = vpop.f32.mrb[0].mxu0
      %3681 = vmatprep.mubr.f32.mxu0 0.0
      %3682 = vmatmul.mubr.f32.gmra.mrb[0].mxu0 %v3456
      %v3683 = vpop.f32.mrb[0].mxu0
      %v3684 = vadd.f32 0.0, %v3683
      %v3685 = vpop.f32.mrb[0].mxu0
      %3686 = vmatprep.mubr.f32.mxu0 0.0
      %3687 = vmatmul.mubr.f32.gmra.mrb[0].mxu0 %v3457
      %v3688 = vpop.f32.mrb[0].mxu0
      %v3689 = vadd.f32 0.0, %v3688
      %v3690 = vpop.f32.mrb[0].mxu0
      %3691 = vmatprep.mubr.f32.mxu0 0.0
      %3692 = vmatmul.mubr.f32.gmra.mrb[0].mxu0 %v3458
      %v3693 = vpop.f32.mrb[0].mxu0
      %v3694 = vadd.f32 0.0, %v3693
      %v3695 = vpop.f32.mrb[0].mxu0
      %3696 = vmatprep.mubr.f32.mxu0 0.0
      %3697 = vmatmul.mubr.f32.gmra.mrb[0].mxu0 %v3459
      %v3698 = vpop.f32.mrb[0].mxu0
      %v3699 = vadd.f32 0.0, %v3698
      %v3700 = vpop.f32.mrb[0].mxu0
      %3701 = vmatprep.mubr.f32.mxu0 0.0
      %3702 = vmatmul.mubr.f32.gmra.mrb[0].mxu0 %v3460
      %v3703 = vpop.f32.mrb[0].mxu0
      %v3704 = vadd.f32 0.0, %v3703
      %v3705 = vpop.f32.mrb[0].mxu0
      %3706 = vmatprep.mubr.f32.mxu0 0.0
      %3707 = vmatmul.mubr.f32.gmra.mrb[0].mxu0 %v3461
      %v3708 = vpop.f32.mrb[0].mxu0
      %v3709 = vadd.f32 0.0, %v3708
      %v3710 = vpop.f32.mrb[0].mxu0
      %3711 = vmatprep.mubr.f32.mxu0 0.0
      %3712 = vmatmul.mubr.f32.gmra.mrb[0].mxu0 %v3462
      %v3713 = vpop.f32.mrb[0].mxu0
      %v3714 = vadd.f32 0.0, %v3713
      %v3715 = vpop.f32.mrb[0].mxu0
      %3716 = vmatprep.mubr.f32.mxu0 0.0
      %3717 = vmatmul.mubr.f32.gmra.mrb[0].mxu0 %v3463
      %v3718 = vpop.f32.mrb[0].mxu0
      %v3719 = vadd.f32 0.0, %v3718
      %v3720 = vpop.f32.mrb[0].mxu0
      %3721 = vmatprep.mubr.f32.mxu0 0.0
      %3722 = vmatmul.mubr.f32.gmra.mrb[0].mxu0 %v3464
      %v3723 = vpop.f32.mrb[0].mxu0
      %v3724 = vadd.f32 0.0, %v3723
      %v3725 = vpop.f32.mrb[0].mxu0
      %3726 = vdwg.mxu0
      %v3727 = vadd.f32 %v3393, %v3549
      %v3728 = vadd.f32 %v3394, %v3554
      %v3729 = vadd.f32 %v3395, %v3559
      %v3730 = vadd.f32 %v3396, %v3564
      %v3731 = vadd.f32 %v3397, %v3569
      %v3732 = vadd.f32 %v3398, %v3574
      %v3733 = vadd.f32 %v3399, %v3579
      %v3734 = vadd.f32 %v3400, %v3584
      %v3735 = vadd.f32 %v3401, %v3589
      %v3736 = vadd.f32 %v3402, %v3594
      %v3737 = vadd.f32 %v3403, %v3599
      %v3738 = vadd.f32 %v3404, %v3604
      %v3739 = vadd.f32 %v3405, %v3609
      %v3740 = vadd.f32 %v3406, %v3614
      %v3741 = vadd.f32 %v3407, %v3619
      %v3742 = vadd.f32 %v3408, %v3624
      %v3743 = vadd.f32 %v3409, %v3629
      %v3744 = vadd.f32 %v3410, %v3634
      %v3745 = vadd.f32 %v3411, %v3639
      %v3746 = vadd.f32 %v3412, %v3644
      %v3747 = vadd.f32 %v3413, %v3649
      %v3748 = vadd.f32 %v3414, %v3654
      %v3749 = vadd.f32 %v3415, %v3659
      %v3750 = vadd.f32 %v3416, %v3664
      %v3751 = vadd.f32 %v3417, %v3669
      %v3752 = vadd.f32 %v3418, %v3674
      %v3753 = vadd.f32 %v3419, %v3679
      %v3754 = vadd.f32 %v3420, %v3684
      %v3755 = vadd.f32 %v3421, %v3689
      %v3756 = vadd.f32 %v3422, %v3694
      %v3757 = vadd.f32 %v3423, %v3699
      %v3758 = vadd.f32 %v3424, %v3704
      %v3759 = vadd.f32 %v3425, %v3709
      %v3760 = vadd.f32 %v3426, %v3714
      %v3761 = vadd.f32 %v3427, %v3719
      %v3762 = vadd.f32 %v3428, %v3724
      %v3763 = vld [vmem:[%s5] sm:$0x1]
      %v3765 = vlaneseq
      %v3766 = vshrl.u32 %v3765, 7
      %v3767 = vsub.s32 0, %v3766
      %v3768 = vrot.slane %v3763, %v3767
      %v3770 = vmul.f32 %v3727, %v3768
      %v3771 = vmul.f32 %v3728, %v3768
      %v3772 = vmul.f32 %v3729, %v3768
      %v3773 = vmul.f32 %v3730, %v3768
      %v3774 = vmul.f32 %v3731, %v3768
      %v3775 = vmul.f32 %v3732, %v3768
      %v3776 = vmul.f32 %v3733, %v3768
      %v3777 = vmul.f32 %v3734, %v3768
      %v3778 = vmul.f32 %v3735, %v3768
      %v3779 = vmul.f32 %v3736, %v3768
      %v3780 = vmul.f32 %v3737, %v3768
      %v3781 = vmul.f32 %v3738, %v3768
      %v3782 = vmul.f32 %v3739, %v3768
      %v3783 = vmul.f32 %v3740, %v3768
      %v3784 = vmul.f32 %v3741, %v3768
      %v3785 = vmul.f32 %v3742, %v3768
      %v3786 = vmul.f32 %v3743, %v3768
      %v3787 = vmul.f32 %v3744, %v3768
      %v3788 = vmul.f32 %v3745, %v3768
      %v3789 = vmul.f32 %v3746, %v3768
      %v3790 = vmul.f32 %v3747, %v3768
      %v3791 = vmul.f32 %v3748, %v3768
      %v3792 = vmul.f32 %v3749, %v3768
      %v3793 = vmul.f32 %v3750, %v3768
      %v3794 = vmul.f32 %v3751, %v3768
      %v3795 = vmul.f32 %v3752, %v3768
      %v3796 = vmul.f32 %v3753, %v3768
      %v3797 = vmul.f32 %v3754, %v3768
      %v3798 = vmul.f32 %v3755, %v3768
      %v3799 = vmul.f32 %v3756, %v3768
      %v3800 = vmul.f32 %v3757, %v3768
      %v3801 = vmul.f32 %v3758, %v3768
      %v3802 = vmul.f32 %v3759, %v3768
      %v3803 = vmul.f32 %v3760, %v3768
      %v3804 = vmul.f32 %v3761, %v3768
      %v3805 = vmul.f32 %v3762, %v3768
      %v3806 = vld [vmem:[%s6] sm:$0x1]
      %v3808 = vlaneseq
      %v3809 = vshrl.u32 %v3808, 7
      %v3810 = vsub.s32 0, %v3809
      %v3811 = vrot.slane %v3806, %v3810
      %v3813 = vadd.f32 %v3770, %v3811
      %v3814 = vadd.f32 %v3771, %v3811
      %v3815 = vadd.f32 %v3772, %v3811
      %v3816 = vadd.f32 %v3773, %v3811
      %v3817 = vadd.f32 %v3774, %v3811
      %v3818 = vadd.f32 %v3775, %v3811
      %v3819 = vadd.f32 %v3776, %v3811
      %v3820 = vadd.f32 %v3777, %v3811
      %v3821 = vadd.f32 %v3778, %v3811
      %v3822 = vadd.f32 %v3779, %v3811
      %v3823 = vadd.f32 %v3780, %v3811
      %v3824 = vadd.f32 %v3781, %v3811
      %v3825 = vadd.f32 %v3782, %v3811
      %v3826 = vadd.f32 %v3783, %v3811
      %v3827 = vadd.f32 %v3784, %v3811
      %v3828 = vadd.f32 %v3785, %v3811
      %v3829 = vadd.f32 %v3786, %v3811
      %v3830 = vadd.f32 %v3787, %v3811
      %v3831 = vadd.f32 %v3788, %v3811
      %v3832 = vadd.f32 %v3789, %v3811
      %v3833 = vadd.f32 %v3790, %v3811
      %v3834 = vadd.f32 %v3791, %v3811
      %v3835 = vadd.f32 %v3792, %v3811
      %v3836 = vadd.f32 %v3793, %v3811
      %v3837 = vadd.f32 %v3794, %v3811
      %v3838 = vadd.f32 %v3795, %v3811
      %v3839 = vadd.f32 %v3796, %v3811
      %v3840 = vadd.f32 %v3797, %v3811
      %v3841 = vadd.f32 %v3798, %v3811
      %v3842 = vadd.f32 %v3799, %v3811
      %v3843 = vadd.f32 %v3800, %v3811
      %v3844 = vadd.f32 %v3801, %v3811
      %v3845 = vadd.f32 %v3802, %v3811
      %v3846 = vadd.f32 %v3803, %v3811
      %v3847 = vadd.f32 %v3804, %v3811
      %v3848 = vadd.f32 %v3805, %v3811
      %vm3849 = vcmp.gt.f32.partialorder %v3813, 0.0
      %vm3850 = vcmp.gt.f32.partialorder %v3814, 0.0
      %vm3851 = vcmp.gt.f32.partialorder %v3815, 0.0
      %vm3852 = vcmp.gt.f32.partialorder %v3816, 0.0
      %vm3853 = vcmp.gt.f32.partialorder %v3817, 0.0
      %vm3854 = vcmp.gt.f32.partialorder %v3818, 0.0
      %vm3855 = vcmp.gt.f32.partialorder %v3819, 0.0
      %vm3856 = vcmp.gt.f32.partialorder %v3820, 0.0
      %vm3857 = vcmp.gt.f32.partialorder %v3821, 0.0
      %vm3858 = vcmp.gt.f32.partialorder %v3822, 0.0
      %vm3859 = vcmp.gt.f32.partialorder %v3823, 0.0
      %vm3860 = vcmp.gt.f32.partialorder %v3824, 0.0
      %vm3861 = vcmp.gt.f32.partialorder %v3825, 0.0
      %vm3862 = vcmp.gt.f32.partialorder %v3826, 0.0
      %vm3863 = vcmp.gt.f32.partialorder %v3827, 0.0
      %vm3864 = vcmp.gt.f32.partialorder %v3828, 0.0
      %vm3865 = vcmp.gt.f32.partialorder %v3829, 0.0
      %vm3866 = vcmp.gt.f32.partialorder %v3830, 0.0
      %vm3867 = vcmp.gt.f32.partialorder %v3831, 0.0
      %vm3868 = vcmp.gt.f32.partialorder %v3832, 0.0
      %vm3869 = vcmp.gt.f32.partialorder %v3833, 0.0
      %vm3870 = vcmp.gt.f32.partialorder %v3834, 0.0
      %vm3871 = vcmp.gt.f32.partialorder %v3835, 0.0
      %vm3872 = vcmp.gt.f32.partialorder %v3836, 0.0
      %vm3873 = vcmp.gt.f32.partialorder %v3837, 0.0
      %vm3874 = vcmp.gt.f32.partialorder %v3838, 0.0
      %vm3875 = vcmp.gt.f32.partialorder %v3839, 0.0
      %vm3876 = vcmp.gt.f32.partialorder %v3840, 0.0
      %vm3877 = vcmp.gt.f32.partialorder %v3841, 0.0
      %vm3878 = vcmp.gt.f32.partialorder %v3842, 0.0
      %vm3879 = vcmp.gt.f32.partialorder %v3843, 0.0
      %vm3880 = vcmp.gt.f32.partialorder %v3844, 0.0
      %vm3881 = vcmp.gt.f32.partialorder %v3845, 0.0
      %vm3882 = vcmp.gt.f32.partialorder %v3846, 0.0
      %vm3883 = vcmp.gt.f32.partialorder %v3847, 0.0
      %vm3884 = vcmp.gt.f32.partialorder %v3848, 0.0
      %v3885 = vmul.f32 %v3813, 0.01
      %v3886 = vmul.f32 %v3814, 0.01
      %v3887 = vmul.f32 %v3815, 0.01
      %v3888 = vmul.f32 %v3816, 0.01
      %v3889 = vmul.f32 %v3817, 0.01
      %v3890 = vmul.f32 %v3818, 0.01
      %v3891 = vmul.f32 %v3819, 0.01
      %v3892 = vmul.f32 %v3820, 0.01
      %v3893 = vmul.f32 %v3821, 0.01
      %v3894 = vmul.f32 %v3822, 0.01
      %v3895 = vmul.f32 %v3823, 0.01
      %v3896 = vmul.f32 %v3824, 0.01
      %v3897 = vmul.f32 %v3825, 0.01
      %v3898 = vmul.f32 %v3826, 0.01
      %v3899 = vmul.f32 %v3827, 0.01
      %v3900 = vmul.f32 %v3828, 0.01
      %v3901 = vmul.f32 %v3829, 0.01
      %v3902 = vmul.f32 %v3830, 0.01
      %v3903 = vmul.f32 %v3831, 0.01
      %v3904 = vmul.f32 %v3832, 0.01
      %v3905 = vmul.f32 %v3833, 0.01
      %v3906 = vmul.f32 %v3834, 0.01
      %v3907 = vmul.f32 %v3835, 0.01
      %v3908 = vmul.f32 %v3836, 0.01
      %v3909 = vmul.f32 %v3837, 0.01
      %v3910 = vmul.f32 %v3838, 0.01
      %v3911 = vmul.f32 %v3839, 0.01
      %v3912 = vmul.f32 %v3840, 0.01
      %v3913 = vmul.f32 %v3841, 0.01
      %v3914 = vmul.f32 %v3842, 0.01
      %v3915 = vmul.f32 %v3843, 0.01
      %v3916 = vmul.f32 %v3844, 0.01
      %v3917 = vmul.f32 %v3845, 0.01
      %v3918 = vmul.f32 %v3846, 0.01
      %v3919 = vmul.f32 %v3847, 0.01
      %v3920 = vmul.f32 %v3848, 0.01
      %v3921 = vsel %vm3849, %v3813, %v3885
      %v3922 = vsel %vm3850, %v3814, %v3886
      %v3923 = vsel %vm3851, %v3815, %v3887
      %v3924 = vsel %vm3852, %v3816, %v3888
      %v3925 = vsel %vm3853, %v3817, %v3889
      %v3926 = vsel %vm3854, %v3818, %v3890
      %v3927 = vsel %vm3855, %v3819, %v3891
      %v3928 = vsel %vm3856, %v3820, %v3892
      %v3929 = vsel %vm3857, %v3821, %v3893
      %v3930 = vsel %vm3858, %v3822, %v3894
      %v3931 = vsel %vm3859, %v3823, %v3895
      %v3932 = vsel %vm3860, %v3824, %v3896
      %v3933 = vsel %vm3861, %v3825, %v3897
      %v3934 = vsel %vm3862, %v3826, %v3898
      %v3935 = vsel %vm3863, %v3827, %v3899
      %v3936 = vsel %vm3864, %v3828, %v3900
      %v3937 = vsel %vm3865, %v3829, %v3901
      %v3938 = vsel %vm3866, %v3830, %v3902
      %v3939 = vsel %vm3867, %v3831, %v3903
      %v3940 = vsel %vm3868, %v3832, %v3904
      %v3941 = vsel %vm3869, %v3833, %v3905
      %v3942 = vsel %vm3870, %v3834, %v3906
      %v3943 = vsel %vm3871, %v3835, %v3907
      %v3944 = vsel %vm3872, %v3836, %v3908
      %v3945 = vsel %vm3873, %v3837, %v3909
      %v3946 = vsel %vm3874, %v3838, %v3910
      %v3947 = vsel %vm3875, %v3839, %v3911
      %v3948 = vsel %vm3876, %v3840, %v3912
      %v3949 = vsel %vm3877, %v3841, %v3913
      %v3950 = vsel %vm3878, %v3842, %v3914
      %v3951 = vsel %vm3879, %v3843, %v3915
      %v3952 = vsel %vm3880, %v3844, %v3916
      %v3953 = vsel %vm3881, %v3845, %v3917
      %v3954 = vsel %vm3882, %v3846, %v3918
      %v3955 = vsel %vm3883, %v3847, %v3919
      %v3956 = vsel %vm3884, %v3848, %v3920
      %v3957 = vld [vmem:[%s3] sm:$0xff]
      %v3958 = vld [vmem:[%s3 + $0x8] sm:$0xff]
      %v3959 = vld [vmem:[%s3 + $0x10] sm:$0xff]
      %v3960 = vld [vmem:[%s3 + $0x18] sm:$0xff]
      %v3961 = vld [vmem:[%s3 + $0x20] sm:$0xff]
      %v3962 = vld [vmem:[%s3 + $0x28] sm:$0xff]
      %v3963 = vld [vmem:[%s3 + $0x30] sm:$0xff]
      %v3964 = vld [vmem:[%s3 + $0x38] sm:$0xff]
      %v3965 = vld [vmem:[%s3 + $0x40] sm:$0xff]
      %v3966 = vld [vmem:[%s3 + $0x48] sm:$0xff]
      %v3967 = vld [vmem:[%s3 + $0x50] sm:$0xff]
      %v3968 = vld [vmem:[%s3 + $0x58] sm:$0xff]
      %v3969 = vld [vmem:[%s3 + $0x60] sm:$0xff]
      %v3970 = vld [vmem:[%s3 + $0x68] sm:$0xff]
      %v3971 = vld [vmem:[%s3 + $0x70] sm:$0xff]
      %v3972 = vld [vmem:[%s3 + $0x78] sm:$0xff]
      %v3973 = vld [vmem:[%s3 + $0x80] sm:$0xff]
      %v3974 = vld [vmem:[%s3 + $0x88] sm:$0xff]
      %v3975 = vld [vmem:[%s3 + $0x90] sm:$0xff]
      %v3976 = vld [vmem:[%s3 + $0x98] sm:$0xff]
      %v3977 = vld [vmem:[%s3 + $0xa0] sm:$0xff]
      %v3978 = vld [vmem:[%s3 + $0xa8] sm:$0xff]
      %v3979 = vld [vmem:[%s3 + $0xb0] sm:$0xff]
      %v3980 = vld [vmem:[%s3 + $0xb8] sm:$0xff]
      %v3981 = vld [vmem:[%s3 + $0xc0] sm:$0xff]
      %v3982 = vld [vmem:[%s3 + $0xc8] sm:$0xff]
      %v3983 = vld [vmem:[%s3 + $0xd0] sm:$0xff]
      %v3984 = vld [vmem:[%s3 + $0xd8] sm:$0xff]
      %v3985 = vld [vmem:[%s3 + $0xe0] sm:$0xff]
      %v3986 = vld [vmem:[%s3 + $0xe8] sm:$0xff]
      %v3987 = vld [vmem:[%s3 + $0xf0] sm:$0xff]
      %v3988 = vld [vmem:[%s3 + $0xf8] sm:$0xff]
      %v3989 = vld [vmem:[%s3 + $0x100] sm:$0xff]
      %v3990 = vld [vmem:[%s3 + $0x108] sm:$0xff]
      %v3991 = vld [vmem:[%s3 + $0x110] sm:$0xff]
      %v3992 = vld [vmem:[%s3 + $0x118] sm:$0xff]
      %3994 = vset.pattern.permute.xlu0 0
      %3995 = vperm.xlu0 %3994, %v3957
      %v3996 = vpop.permute.xlu0 %3995
      %3999 = vset.pattern.permute.xlu0 0
      %4000 = vperm.xlu0 %3999, %v3958
      %v4001 = vpop.permute.xlu0 %4000
      %4004 = vset.pattern.permute.xlu0 0
      %4005 = vperm.xlu0 %4004, %v3959
      %v4006 = vpop.permute.xlu0 %4005
      %4009 = vset.pattern.permute.xlu0 0
      %4010 = vperm.xlu0 %4009, %v3960
      %v4011 = vpop.permute.xlu0 %4010
      %4014 = vset.pattern.permute.xlu0 0
      %4015 = vperm.xlu0 %4014, %v3961
      %v4016 = vpop.permute.xlu0 %4015
      %4019 = vset.pattern.permute.xlu0 0
      %4020 = vperm.xlu0 %4019, %v3962
      %v4021 = vpop.permute.xlu0 %4020
      %4024 = vset.pattern.permute.xlu0 0
      %4025 = vperm.xlu0 %4024, %v3963
      %v4026 = vpop.permute.xlu0 %4025
      %4029 = vset.pattern.permute.xlu0 0
      %4030 = vperm.xlu0 %4029, %v3964
      %v4031 = vpop.permute.xlu0 %4030
      %4034 = vset.pattern.permute.xlu0 0
      %4035 = vperm.xlu0 %4034, %v3965
      %v4036 = vpop.permute.xlu0 %4035
      %4039 = vset.pattern.permute.xlu0 0
      %4040 = vperm.xlu0 %4039, %v3966
      %v4041 = vpop.permute.xlu0 %4040
      %4044 = vset.pattern.permute.xlu0 0
      %4045 = vperm.xlu0 %4044, %v3967
      %v4046 = vpop.permute.xlu0 %4045
      %4049 = vset.pattern.permute.xlu0 0
      %4050 = vperm.xlu0 %4049, %v3968
      %v4051 = vpop.permute.xlu0 %4050
      %4054 = vset.pattern.permute.xlu0 0
      %4055 = vperm.xlu0 %4054, %v3969
      %v4056 = vpop.permute.xlu0 %4055
      %4059 = vset.pattern.permute.xlu0 0
      %4060 = vperm.xlu0 %4059, %v3970
      %v4061 = vpop.permute.xlu0 %4060
      %4064 = vset.pattern.permute.xlu0 0
      %4065 = vperm.xlu0 %4064, %v3971
      %v4066 = vpop.permute.xlu0 %4065
      %4069 = vset.pattern.permute.xlu0 0
      %4070 = vperm.xlu0 %4069, %v3972
      %v4071 = vpop.permute.xlu0 %4070
      %4074 = vset.pattern.permute.xlu0 0
      %4075 = vperm.xlu0 %4074, %v3973
      %v4076 = vpop.permute.xlu0 %4075
      %4079 = vset.pattern.permute.xlu0 0
      %4080 = vperm.xlu0 %4079, %v3974
      %v4081 = vpop.permute.xlu0 %4080
      %4084 = vset.pattern.permute.xlu0 0
      %4085 = vperm.xlu0 %4084, %v3975
      %v4086 = vpop.permute.xlu0 %4085
      %4089 = vset.pattern.permute.xlu0 0
      %4090 = vperm.xlu0 %4089, %v3976
      %v4091 = vpop.permute.xlu0 %4090
      %4094 = vset.pattern.permute.xlu0 0
      %4095 = vperm.xlu0 %4094, %v3977
      %v4096 = vpop.permute.xlu0 %4095
      %4099 = vset.pattern.permute.xlu0 0
      %4100 = vperm.xlu0 %4099, %v3978
      %v4101 = vpop.permute.xlu0 %4100
      %4104 = vset.pattern.permute.xlu0 0
      %4105 = vperm.xlu0 %4104, %v3979
      %v4106 = vpop.permute.xlu0 %4105
      %4109 = vset.pattern.permute.xlu0 0
      %4110 = vperm.xlu0 %4109, %v3980
      %v4111 = vpop.permute.xlu0 %4110
      %4114 = vset.pattern.permute.xlu0 0
      %4115 = vperm.xlu0 %4114, %v3981
      %v4116 = vpop.permute.xlu0 %4115
      %4119 = vset.pattern.permute.xlu0 0
      %4120 = vperm.xlu0 %4119, %v3982
      %v4121 = vpop.permute.xlu0 %4120
      %4124 = vset.pattern.permute.xlu0 0
      %4125 = vperm.xlu0 %4124, %v3983
      %v4126 = vpop.permute.xlu0 %4125
      %4129 = vset.pattern.permute.xlu0 0
      %4130 = vperm.xlu0 %4129, %v3984
      %v4131 = vpop.permute.xlu0 %4130
      %4134 = vset.pattern.permute.xlu0 0
      %4135 = vperm.xlu0 %4134, %v3985
      %v4136 = vpop.permute.xlu0 %4135
      %4139 = vset.pattern.permute.xlu0 0
      %4140 = vperm.xlu0 %4139, %v3986
      %v4141 = vpop.permute.xlu0 %4140
      %4144 = vset.pattern.permute.xlu0 0
      %4145 = vperm.xlu0 %4144, %v3987
      %v4146 = vpop.permute.xlu0 %4145
      %4149 = vset.pattern.permute.xlu0 0
      %4150 = vperm.xlu0 %4149, %v3988
      %v4151 = vpop.permute.xlu0 %4150
      %4154 = vset.pattern.permute.xlu0 0
      %4155 = vperm.xlu0 %4154, %v3989
      %v4156 = vpop.permute.xlu0 %4155
      %4159 = vset.pattern.permute.xlu0 0
      %4160 = vperm.xlu0 %4159, %v3990
      %v4161 = vpop.permute.xlu0 %4160
      %4164 = vset.pattern.permute.xlu0 0
      %4165 = vperm.xlu0 %4164, %v3991
      %v4166 = vpop.permute.xlu0 %4165
      %4169 = vset.pattern.permute.xlu0 0
      %4170 = vperm.xlu0 %4169, %v3992
      %v4171 = vpop.permute.xlu0 %4170
      %v4173 = vmul.f32 %v3921, %v3996
      %v4174 = vmul.f32 %v3922, %v4001
      %v4175 = vmul.f32 %v3923, %v4006
      %v4176 = vmul.f32 %v3924, %v4011
      %v4177 = vmul.f32 %v3925, %v4016
      %v4178 = vmul.f32 %v3926, %v4021
      %v4179 = vmul.f32 %v3927, %v4026
      %v4180 = vmul.f32 %v3928, %v4031
      %v4181 = vmul.f32 %v3929, %v4036
      %v4182 = vmul.f32 %v3930, %v4041
      %v4183 = vmul.f32 %v3931, %v4046
      %v4184 = vmul.f32 %v3932, %v4051
      %v4185 = vmul.f32 %v3933, %v4056
      %v4186 = vmul.f32 %v3934, %v4061
      %v4187 = vmul.f32 %v3935, %v4066
      %v4188 = vmul.f32 %v3936, %v4071
      %v4189 = vmul.f32 %v3937, %v4076
      %v4190 = vmul.f32 %v3938, %v4081
      %v4191 = vmul.f32 %v3939, %v4086
      %v4192 = vmul.f32 %v3940, %v4091
      %v4193 = vmul.f32 %v3941, %v4096
      %v4194 = vmul.f32 %v3942, %v4101
      %v4195 = vmul.f32 %v3943, %v4106
      %v4196 = vmul.f32 %v3944, %v4111
      %v4197 = vmul.f32 %v3945, %v4116
      %v4198 = vmul.f32 %v3946, %v4121
      %v4199 = vmul.f32 %v3947, %v4126
      %v4200 = vmul.f32 %v3948, %v4131
      %v4201 = vmul.f32 %v3949, %v4136
      %v4202 = vmul.f32 %v3950, %v4141
      %v4203 = vmul.f32 %v3951, %v4146
      %v4204 = vmul.f32 %v3952, %v4151
      %v4205 = vmul.f32 %v3953, %v4156
      %v4206 = vmul.f32 %v3954, %v4161
      %v4207 = vmul.f32 %v3955, %v4166
      %v4208 = vmul.f32 %v3956, %v4171
      %4209 = vst [vmem:[#allocation3] sm:$0xff] 0.0
      %4210 = vst [vmem:[#allocation3 + $0x8] sm:$0xff] 0.0
      %4211 = vst [vmem:[#allocation3 + $0x10] sm:$0x7] 0.0
      %4212 = vst [vmem:[#allocation3 + $0x132] sm:$0xff] 0.0
      %4213 = vst [vmem:[#allocation3 + $0x13a] sm:$0xff] 0.0
      %4214 = vst [vmem:[#allocation3 + $0x142] sm:$0x3f] 0.0
      %4215 = vst [vmem:[#allocation3 + $0x13] sm:$0xff] %v4173
      %4216 = vst [vmem:[#allocation3 + $0x1b] sm:$0xff] %v4174
      %4217 = vst [vmem:[#allocation3 + $0x23] sm:$0xff] %v4175
      %4218 = vst [vmem:[#allocation3 + $0x2b] sm:$0xff] %v4176
      %4219 = vst [vmem:[#allocation3 + $0x33] sm:$0xff] %v4177
      %4220 = vst [vmem:[#allocation3 + $0x3b] sm:$0xff] %v4178
      %4221 = vst [vmem:[#allocation3 + $0x43] sm:$0xff] %v4179
      %4222 = vst [vmem:[#allocation3 + $0x4b] sm:$0xff] %v4180
      %4223 = vst [vmem:[#allocation3 + $0x53] sm:$0xff] %v4181
      %4224 = vst [vmem:[#allocation3 + $0x5b] sm:$0xff] %v4182
      %4225 = vst [vmem:[#allocation3 + $0x63] sm:$0xff] %v4183
      %4226 = vst [vmem:[#allocation3 + $0x6b] sm:$0xff] %v4184
      %4227 = vst [vmem:[#allocation3 + $0x73] sm:$0xff] %v4185
      %4228 = vst [vmem:[#allocation3 + $0x7b] sm:$0xff] %v4186
      %4229 = vst [vmem:[#allocation3 + $0x83] sm:$0xff] %v4187
      %4230 = vst [vmem:[#allocation3 + $0x8b] sm:$0xff] %v4188
      %4231 = vst [vmem:[#allocation3 + $0x93] sm:$0xff] %v4189
      %4232 = vst [vmem:[#allocation3 + $0x9b] sm:$0xff] %v4190
      %4233 = vst [vmem:[#allocation3 + $0xa3] sm:$0xff] %v4191
      %4234 = vst [vmem:[#allocation3 + $0xab] sm:$0xff] %v4192
      %4235 = vst [vmem:[#allocation3 + $0xb3] sm:$0xff] %v4193
      %4236 = vst [vmem:[#allocation3 + $0xbb] sm:$0xff] %v4194
      %4237 = vst [vmem:[#allocation3 + $0xc3] sm:$0xff] %v4195
      %4238 = vst [vmem:[#allocation3 + $0xcb] sm:$0xff] %v4196
      %4239 = vst [vmem:[#allocation3 + $0xd3] sm:$0xff] %v4197
      %4240 = vst [vmem:[#allocation3 + $0xdb] sm:$0xff] %v4198
      %4241 = vst [vmem:[#allocation3 + $0xe3] sm:$0xff] %v4199
      %4242 = vst [vmem:[#allocation3 + $0xeb] sm:$0xff] %v4200
      %4243 = vst [vmem:[#allocation3 + $0xf3] sm:$0xff] %v4201
      %4244 = vst [vmem:[#allocation3 + $0xfb] sm:$0xff] %v4202
      %4245 = vst [vmem:[#allocation3 + $0x103] sm:$0xff] %v4203
      %4246 = vst [vmem:[#allocation3 + $0x10b] sm:$0xff] %v4204
      %4247 = vst [vmem:[#allocation3 + $0x113] sm:$0xff] %v4205
      %4248 = vst [vmem:[#allocation3 + $0x11b] sm:$0xff] %v4206
      %4249 = vst [vmem:[#allocation3 + $0x123] sm:$0xff] %v4207
      %4250 = vst [vmem:[#allocation3 + $0x12b] sm:$0xff] %v4208
      %v4251 = vld [vmem:[#allocation3] sm:$0xff]
      %v4252 = vld [vmem:[#allocation3 + $0x8] sm:$0xff]
      %v4253 = vld [vmem:[#allocation3 + $0x10] sm:$0xff]
      %v4254 = vld [vmem:[#allocation3 + $0x18] sm:$0xff]
      %v4255 = vld [vmem:[#allocation3 + $0x20] sm:$0xff]
      %v4256 = vld [vmem:[#allocation3 + $0x28] sm:$0xff]
      %v4257 = vld [vmem:[#allocation3 + $0x30] sm:$0xff]
      %v4258 = vld [vmem:[#allocation3 + $0x38] sm:$0xff]
      %v4259 = vld [vmem:[#allocation3 + $0x40] sm:$0xff]
      %v4260 = vld [vmem:[#allocation3 + $0x48] sm:$0xff]
      %v4261 = vld [vmem:[#allocation3 + $0x50] sm:$0xff]
      %v4262 = vld [vmem:[#allocation3 + $0x58] sm:$0xff]
      %v4263 = vld [vmem:[#allocation3 + $0x60] sm:$0xff]
      %v4264 = vld [vmem:[#allocation3 + $0x68] sm:$0xff]
      %v4265 = vld [vmem:[#allocation3 + $0x70] sm:$0xff]
      %v4266 = vld [vmem:[#allocation3 + $0x78] sm:$0xff]
      %v4267 = vld [vmem:[#allocation3 + $0x80] sm:$0xff]
      %v4268 = vld [vmem:[#allocation3 + $0x88] sm:$0xff]
      %v4269 = vld [vmem:[#allocation3 + $0x90] sm:$0xff]
      %v4270 = vld [vmem:[#allocation3 + $0x98] sm:$0xff]
      %v4271 = vld [vmem:[#allocation3 + $0xa0] sm:$0xff]
      %v4272 = vld [vmem:[#allocation3 + $0xa8] sm:$0xff]
      %v4273 = vld [vmem:[#allocation3 + $0xb0] sm:$0xff]
      %v4274 = vld [vmem:[#allocation3 + $0xb8] sm:$0xff]
      %v4275 = vld [vmem:[#allocation3 + $0xc0] sm:$0xff]
      %v4276 = vld [vmem:[#allocation3 + $0xc8] sm:$0xff]
      %v4277 = vld [vmem:[#allocation3 + $0xd0] sm:$0xff]
      %v4278 = vld [vmem:[#allocation3 + $0xd8] sm:$0xff]
      %v4279 = vld [vmem:[#allocation3 + $0xe0] sm:$0xff]
      %v4280 = vld [vmem:[#allocation3 + $0xe8] sm:$0xff]
      %v4281 = vld [vmem:[#allocation3 + $0xf0] sm:$0xff]
      %v4282 = vld [vmem:[#allocation3 + $0xf8] sm:$0xff]
      %v4283 = vld [vmem:[#allocation3 + $0x100] sm:$0xff]
      %v4284 = vld [vmem:[#allocation3 + $0x108] sm:$0xff]
      %v4285 = vld [vmem:[#allocation3 + $0x110] sm:$0xff]
      %v4286 = vld [vmem:[#allocation3 + $0x118] sm:$0xff]
      %v4287 = vld [vmem:[%s7] sm:$0xff]
      %v4288 = vld [vmem:[%s7 + $0x8] sm:$0xff]
      %v4289 = vld [vmem:[%s7 + $0x10] sm:$0xff]
      %v4290 = vld [vmem:[%s7 + $0x18] sm:$0xff]
      %v4291 = vld [vmem:[%s7 + $0x20] sm:$0xff]
      %v4292 = vld [vmem:[%s7 + $0x28] sm:$0xff]
      %v4293 = vld [vmem:[%s7 + $0x30] sm:$0xff]
      %v4294 = vld [vmem:[%s7 + $0x38] sm:$0xff]
      %v4295 = vld [vmem:[%s7 + $0x40] sm:$0xff]
      %v4296 = vld [vmem:[%s7 + $0x48] sm:$0xff]
      %v4297 = vld [vmem:[%s7 + $0x50] sm:$0xff]
      %v4298 = vld [vmem:[%s7 + $0x58] sm:$0xff]
      %v4299 = vld [vmem:[%s7 + $0x60] sm:$0xff]
      %v4300 = vld [vmem:[%s7 + $0x68] sm:$0xff]
      %v4301 = vld [vmem:[%s7 + $0x70] sm:$0xff]
      %v4302 = vld [vmem:[%s7 + $0x78] sm:$0xff]
      %v4303 = vld [vmem:[#allocation3 + $0x1] sm:$0xff]
      %v4304 = vld [vmem:[#allocation3 + $0x9] sm:$0xff]
      %v4305 = vld [vmem:[#allocation3 + $0x11] sm:$0xff]
      %v4306 = vld [vmem:[#allocation3 + $0x19] sm:$0xff]
      %v4307 = vld [vmem:[#allocation3 + $0x21] sm:$0xff]
      %v4308 = vld [vmem:[#allocation3 + $0x29] sm:$0xff]
      %v4309 = vld [vmem:[#allocation3 + $0x31] sm:$0xff]
      %v4310 = vld [vmem:[#allocation3 + $0x39] sm:$0xff]
      %v4311 = vld [vmem:[#allocation3 + $0x41] sm:$0xff]
      %v4312 = vld [vmem:[#allocation3 + $0x49] sm:$0xff]
      %v4313 = vld [vmem:[#allocation3 + $0x51] sm:$0xff]
      %v4314 = vld [vmem:[#allocation3 + $0x59] sm:$0xff]
      %v4315 = vld [vmem:[#allocation3 + $0x61] sm:$0xff]
      %v4316 = vld [vmem:[#allocation3 + $0x69] sm:$0xff]
      %v4317 = vld [vmem:[#allocation3 + $0x71] sm:$0xff]
      %v4318 = vld [vmem:[#allocation3 + $0x79] sm:$0xff]
      %v4319 = vld [vmem:[#allocation3 + $0x81] sm:$0xff]
      %v4320 = vld [vmem:[#allocation3 + $0x89] sm:$0xff]
      %v4321 = vld [vmem:[#allocation3 + $0x91] sm:$0xff]
      %v4322 = vld [vmem:[#allocation3 + $0x99] sm:$0xff]
      %v4323 = vld [vmem:[#allocation3 + $0xa1] sm:$0xff]
      %v4324 = vld [vmem:[#allocation3 + $0xa9] sm:$0xff]
      %v4325 = vld [vmem:[#allocation3 + $0xb1] sm:$0xff]
      %v4326 = vld [vmem:[#allocation3 + $0xb9] sm:$0xff]
      %v4327 = vld [vmem:[#allocation3 + $0xc1] sm:$0xff]
      %v4328 = vld [vmem:[#allocation3 + $0xc9] sm:$0xff]
      %v4329 = vld [vmem:[#allocation3 + $0xd1] sm:$0xff]
      %v4330 = vld [vmem:[#allocation3 + $0xd9] sm:$0xff]
      %v4331 = vld [vmem:[#allocation3 + $0xe1] sm:$0xff]
      %v4332 = vld [vmem:[#allocation3 + $0xe9] sm:$0xff]
      %v4333 = vld [vmem:[#allocation3 + $0xf1] sm:$0xff]
      %v4334 = vld [vmem:[#allocation3 + $0xf9] sm:$0xff]
      %v4335 = vld [vmem:[#allocation3 + $0x101] sm:$0xff]
      %v4336 = vld [vmem:[#allocation3 + $0x109] sm:$0xff]
      %v4337 = vld [vmem:[#allocation3 + $0x111] sm:$0xff]
      %v4338 = vld [vmem:[#allocation3 + $0x119] sm:$0xff]
      %s4339 = scalar_lea.vmem %s7, 128
      %v4340 = vld [vmem:[%s4339] sm:$0xff]
      %v4341 = vld [vmem:[%s4339 + $0x8] sm:$0xff]
      %v4342 = vld [vmem:[%s4339 + $0x10] sm:$0xff]
      %v4343 = vld [vmem:[%s4339 + $0x18] sm:$0xff]
      %v4344 = vld [vmem:[%s4339 + $0x20] sm:$0xff]
      %v4345 = vld [vmem:[%s4339 + $0x28] sm:$0xff]
      %v4346 = vld [vmem:[%s4339 + $0x30] sm:$0xff]
      %v4347 = vld [vmem:[%s4339 + $0x38] sm:$0xff]
      %v4348 = vld [vmem:[%s4339 + $0x40] sm:$0xff]
      %v4349 = vld [vmem:[%s4339 + $0x48] sm:$0xff]
      %v4350 = vld [vmem:[%s4339 + $0x50] sm:$0xff]
      %v4351 = vld [vmem:[%s4339 + $0x58] sm:$0xff]
      %v4352 = vld [vmem:[%s4339 + $0x60] sm:$0xff]
      %v4353 = vld [vmem:[%s4339 + $0x68] sm:$0xff]
      %v4354 = vld [vmem:[%s4339 + $0x70] sm:$0xff]
      %v4355 = vld [vmem:[%s4339 + $0x78] sm:$0xff]
      %4356 = vmatprep.subr.mxu0 0.0
      %4357 = vmatpush1.msra.mxu0 %v4340
      %4358 = vmatprep.subr.mxu0 0.0
      %4359 = vmatpush1.msra.mxu0 %v4341
      %4360 = vmatprep.subr.mxu0 0.0
      %4361 = vmatpush1.msra.mxu0 %v4342
      %4362 = vmatprep.subr.mxu0 0.0
      %4363 = vmatpush1.msra.mxu0 %v4343
      %4364 = vmatprep.subr.mxu0 0.0
      %4365 = vmatpush1.msra.mxu0 %v4344
      %4366 = vmatprep.subr.mxu0 0.0
      %4367 = vmatpush1.msra.mxu0 %v4345
      %4368 = vmatprep.subr.mxu0 0.0
      %4369 = vmatpush1.msra.mxu0 %v4346
      %4370 = vmatprep.subr.mxu0 0.0
      %4371 = vmatpush1.msra.mxu0 %v4347
      %4372 = vmatprep.subr.mxu0 0.0
      %4373 = vmatpush1.msra.mxu0 %v4348
      %4374 = vmatprep.subr.mxu0 0.0
      %4375 = vmatpush1.msra.mxu0 %v4349
      %4376 = vmatprep.subr.mxu0 0.0
      %4377 = vmatpush1.msra.mxu0 %v4350
      %4378 = vmatprep.subr.mxu0 0.0
      %4379 = vmatpush1.msra.mxu0 %v4351
      %4380 = vmatprep.subr.mxu0 0.0
      %4381 = vmatpush1.msra.mxu0 %v4352
      %4382 = vmatprep.subr.mxu0 0.0
      %4383 = vmatpush1.msra.mxu0 %v4353
      %4384 = vmatprep.subr.mxu0 0.0
      %4385 = vmatpush1.msra.mxu0 %v4354
      %4386 = vmatprep.subr.mxu0 0.0
      %4387 = vmatpush1.msra.mxu0 %v4355
      %4388 = vmatprep.subr.mxu0 0.0
      %4389 = vmatpush1.msra.mxu0 0.0
      %4390 = vmatprep.subr.mxu0 0.0
      %4391 = vmatpush1.msra.mxu0 0.0
      %4392 = vmatprep.subr.mxu0 0.0
      %4393 = vmatpush1.msra.mxu0 0.0
      %4394 = vmatprep.subr.mxu0 0.0
      %4395 = vmatpush1.msra.mxu0 0.0
      %4396 = vmatprep.subr.mxu0 0.0
      %4397 = vmatpush1.msra.mxu0 0.0
      %4398 = vmatprep.subr.mxu0 0.0
      %4399 = vmatpush1.msra.mxu0 0.0
      %4400 = vmatprep.subr.mxu0 0.0
      %4401 = vmatpush1.msra.mxu0 0.0
      %4402 = vmatprep.subr.mxu0 0.0
      %4403 = vmatpush1.msra.mxu0 0.0
      %4404 = vmatprep.subr.mxu0 0.0
      %4405 = vmatpush1.msra.mxu0 0.0
      %4406 = vmatprep.subr.mxu0 0.0
      %4407 = vmatpush1.msra.mxu0 0.0
      %4408 = vmatprep.subr.mxu0 0.0
      %4409 = vmatpush1.msra.mxu0 0.0
      %4410 = vmatprep.subr.mxu0 0.0
      %4411 = vmatpush1.msra.mxu0 0.0
      %4412 = vmatprep.subr.mxu0 0.0
      %4413 = vmatpush1.msra.mxu0 0.0
      %4414 = vmatprep.subr.mxu0 0.0
      %4415 = vmatpush1.msra.mxu0 0.0
      %4416 = vmatprep.subr.mxu0 0.0
      %4417 = vmatpush1.msra.mxu0 0.0
      %4418 = vmatprep.subr.mxu0 0.0
      %4419 = vmatpush1.msra.mxu0 0.0
      %4420 = vmatprep.mubr.f32.mxu0 0.0
      %4421 = vmatmul.mubr.f32.gmra.mrb[0].mxu0 %v4303
      %v4422 = vpop.f32.mrb[0].mxu0
      %v4423 = vadd.f32 0.0, %v4422
      %v4424 = vpop.f32.mrb[0].mxu0
      %4425 = vmatprep.mubr.f32.mxu0 0.0
      %4426 = vmatmul.mubr.f32.gmra.mrb[0].mxu0 %v4304
      %v4427 = vpop.f32.mrb[0].mxu0
      %v4428 = vadd.f32 0.0, %v4427
      %v4429 = vpop.f32.mrb[0].mxu0
      %4430 = vmatprep.mubr.f32.mxu0 0.0
      %4431 = vmatmul.mubr.f32.gmra.mrb[0].mxu0 %v4305
      %v4432 = vpop.f32.mrb[0].mxu0
      %v4433 = vadd.f32 0.0, %v4432
      %v4434 = vpop.f32.mrb[0].mxu0
      %4435 = vmatprep.mubr.f32.mxu0 0.0
      %4436 = vmatmul.mubr.f32.gmra.mrb[0].mxu0 %v4306
      %v4437 = vpop.f32.mrb[0].mxu0
      %v4438 = vadd.f32 0.0, %v4437
      %v4439 = vpop.f32.mrb[0].mxu0
      %4440 = vmatprep.mubr.f32.mxu0 0.0
      %4441 = vmatmul.mubr.f32.gmra.mrb[0].mxu0 %v4307
      %v4442 = vpop.f32.mrb[0].mxu0
      %v4443 = vadd.f32 0.0, %v4442
      %v4444 = vpop.f32.mrb[0].mxu0
      %4445 = vmatprep.mubr.f32.mxu0 0.0
      %4446 = vmatmul.mubr.f32.gmra.mrb[0].mxu0 %v4308
      %v4447 = vpop.f32.mrb[0].mxu0
      %v4448 = vadd.f32 0.0, %v4447
      %v4449 = vpop.f32.mrb[0].mxu0
      %4450 = vmatprep.mubr.f32.mxu0 0.0
      %4451 = vmatmul.mubr.f32.gmra.mrb[0].mxu0 %v4309
      %v4452 = vpop.f32.mrb[0].mxu0
      %v4453 = vadd.f32 0.0, %v4452
      %v4454 = vpop.f32.mrb[0].mxu0
      %4455 = vmatprep.mubr.f32.mxu0 0.0
      %4456 = vmatmul.mubr.f32.gmra.mrb[0].mxu0 %v4310
      %v4457 = vpop.f32.mrb[0].mxu0
      %v4458 = vadd.f32 0.0, %v4457
      %v4459 = vpop.f32.mrb[0].mxu0
      %4460 = vmatprep.mubr.f32.mxu0 0.0
      %4461 = vmatmul.mubr.f32.gmra.mrb[0].mxu0 %v4311
      %v4462 = vpop.f32.mrb[0].mxu0
      %v4463 = vadd.f32 0.0, %v4462
      %v4464 = vpop.f32.mrb[0].mxu0
      %4465 = vmatprep.mubr.f32.mxu0 0.0
      %4466 = vmatmul.mubr.f32.gmra.mrb[0].mxu0 %v4312
      %v4467 = vpop.f32.mrb[0].mxu0
      %v4468 = vadd.f32 0.0, %v4467
      %v4469 = vpop.f32.mrb[0].mxu0
      %4470 = vmatprep.mubr.f32.mxu0 0.0
      %4471 = vmatmul.mubr.f32.gmra.mrb[0].mxu0 %v4313
      %v4472 = vpop.f32.mrb[0].mxu0
      %v4473 = vadd.f32 0.0, %v4472
      %v4474 = vpop.f32.mrb[0].mxu0
      %4475 = vmatprep.mubr.f32.mxu0 0.0
      %4476 = vmatmul.mubr.f32.gmra.mrb[0].mxu0 %v4314
      %v4477 = vpop.f32.mrb[0].mxu0
      %v4478 = vadd.f32 0.0, %v4477
      %v4479 = vpop.f32.mrb[0].mxu0
      %4480 = vmatprep.mubr.f32.mxu0 0.0
      %4481 = vmatmul.mubr.f32.gmra.mrb[0].mxu0 %v4315
      %v4482 = vpop.f32.mrb[0].mxu0
      %v4483 = vadd.f32 0.0, %v4482
      %v4484 = vpop.f32.mrb[0].mxu0
      %4485 = vmatprep.mubr.f32.mxu0 0.0
      %4486 = vmatmul.mubr.f32.gmra.mrb[0].mxu0 %v4316
      %v4487 = vpop.f32.mrb[0].mxu0
      %v4488 = vadd.f32 0.0, %v4487
      %v4489 = vpop.f32.mrb[0].mxu0
      %4490 = vmatprep.mubr.f32.mxu0 0.0
      %4491 = vmatmul.mubr.f32.gmra.mrb[0].mxu0 %v4317
      %v4492 = vpop.f32.mrb[0].mxu0
      %v4493 = vadd.f32 0.0, %v4492
      %v4494 = vpop.f32.mrb[0].mxu0
      %4495 = vmatprep.mubr.f32.mxu0 0.0
      %4496 = vmatmul.mubr.f32.gmra.mrb[0].mxu0 %v4318
      %v4497 = vpop.f32.mrb[0].mxu0
      %v4498 = vadd.f32 0.0, %v4497
      %v4499 = vpop.f32.mrb[0].mxu0
      %4500 = vmatprep.mubr.f32.mxu0 0.0
      %4501 = vmatmul.mubr.f32.gmra.mrb[0].mxu0 %v4319
      %v4502 = vpop.f32.mrb[0].mxu0
      %v4503 = vadd.f32 0.0, %v4502
      %v4504 = vpop.f32.mrb[0].mxu0
      %4505 = vmatprep.mubr.f32.mxu0 0.0
      %4506 = vmatmul.mubr.f32.gmra.mrb[0].mxu0 %v4320
      %v4507 = vpop.f32.mrb[0].mxu0
      %v4508 = vadd.f32 0.0, %v4507
      %v4509 = vpop.f32.mrb[0].mxu0
      %4510 = vmatprep.mubr.f32.mxu0 0.0
      %4511 = vmatmul.mubr.f32.gmra.mrb[0].mxu0 %v4321
      %v4512 = vpop.f32.mrb[0].mxu0
      %v4513 = vadd.f32 0.0, %v4512
      %v4514 = vpop.f32.mrb[0].mxu0
      %4515 = vmatprep.mubr.f32.mxu0 0.0
      %4516 = vmatmul.mubr.f32.gmra.mrb[0].mxu0 %v4322
      %v4517 = vpop.f32.mrb[0].mxu0
      %v4518 = vadd.f32 0.0, %v4517
      %v4519 = vpop.f32.mrb[0].mxu0
      %4520 = vmatprep.mubr.f32.mxu0 0.0
      %4521 = vmatmul.mubr.f32.gmra.mrb[0].mxu0 %v4323
      %v4522 = vpop.f32.mrb[0].mxu0
      %v4523 = vadd.f32 0.0, %v4522
      %v4524 = vpop.f32.mrb[0].mxu0
      %4525 = vmatprep.mubr.f32.mxu0 0.0
      %4526 = vmatmul.mubr.f32.gmra.mrb[0].mxu0 %v4324
      %v4527 = vpop.f32.mrb[0].mxu0
      %v4528 = vadd.f32 0.0, %v4527
      %v4529 = vpop.f32.mrb[0].mxu0
      %4530 = vmatprep.mubr.f32.mxu0 0.0
      %4531 = vmatmul.mubr.f32.gmra.mrb[0].mxu0 %v4325
      %v4532 = vpop.f32.mrb[0].mxu0
      %v4533 = vadd.f32 0.0, %v4532
      %v4534 = vpop.f32.mrb[0].mxu0
      %4535 = vmatprep.mubr.f32.mxu0 0.0
      %4536 = vmatmul.mubr.f32.gmra.mrb[0].mxu0 %v4326
      %v4537 = vpop.f32.mrb[0].mxu0
      %v4538 = vadd.f32 0.0, %v4537
      %v4539 = vpop.f32.mrb[0].mxu0
      %4540 = vmatprep.mubr.f32.mxu0 0.0
      %4541 = vmatmul.mubr.f32.gmra.mrb[0].mxu0 %v4327
      %v4542 = vpop.f32.mrb[0].mxu0
      %v4543 = vadd.f32 0.0, %v4542
      %v4544 = vpop.f32.mrb[0].mxu0
      %4545 = vmatprep.mubr.f32.mxu0 0.0
      %4546 = vmatmul.mubr.f32.gmra.mrb[0].mxu0 %v4328
      %v4547 = vpop.f32.mrb[0].mxu0
      %v4548 = vadd.f32 0.0, %v4547
      %v4549 = vpop.f32.mrb[0].mxu0
      %4550 = vmatprep.mubr.f32.mxu0 0.0
      %4551 = vmatmul.mubr.f32.gmra.mrb[0].mxu0 %v4329
      %v4552 = vpop.f32.mrb[0].mxu0
      %v4553 = vadd.f32 0.0, %v4552
      %v4554 = vpop.f32.mrb[0].mxu0
      %4555 = vmatprep.mubr.f32.mxu0 0.0
      %4556 = vmatmul.mubr.f32.gmra.mrb[0].mxu0 %v4330
      %v4557 = vpop.f32.mrb[0].mxu0
      %v4558 = vadd.f32 0.0, %v4557
      %v4559 = vpop.f32.mrb[0].mxu0
      %4560 = vmatprep.mubr.f32.mxu0 0.0
      %4561 = vmatmul.mubr.f32.gmra.mrb[0].mxu0 %v4331
      %v4562 = vpop.f32.mrb[0].mxu0
      %v4563 = vadd.f32 0.0, %v4562
      %v4564 = vpop.f32.mrb[0].mxu0
      %4565 = vmatprep.mubr.f32.mxu0 0.0
      %4566 = vmatmul.mubr.f32.gmra.mrb[0].mxu0 %v4332
      %v4567 = vpop.f32.mrb[0].mxu0
      %v4568 = vadd.f32 0.0, %v4567
      %v4569 = vpop.f32.mrb[0].mxu0
      %4570 = vmatprep.mubr.f32.mxu0 0.0
      %4571 = vmatmul.mubr.f32.gmra.mrb[0].mxu0 %v4333
      %v4572 = vpop.f32.mrb[0].mxu0
      %v4573 = vadd.f32 0.0, %v4572
      %v4574 = vpop.f32.mrb[0].mxu0
      %4575 = vmatprep.mubr.f32.mxu0 0.0
      %4576 = vmatmul.mubr.f32.gmra.mrb[0].mxu0 %v4334
      %v4577 = vpop.f32.mrb[0].mxu0
      %v4578 = vadd.f32 0.0, %v4577
      %v4579 = vpop.f32.mrb[0].mxu0
      %4580 = vmatprep.mubr.f32.mxu0 0.0
      %4581 = vmatmul.mubr.f32.gmra.mrb[0].mxu0 %v4335
      %v4582 = vpop.f32.mrb[0].mxu0
      %v4583 = vadd.f32 0.0, %v4582
      %v4584 = vpop.f32.mrb[0].mxu0
      %4585 = vmatprep.mubr.f32.mxu0 0.0
      %4586 = vmatmul.mubr.f32.gmra.mrb[0].mxu0 %v4336
      %v4587 = vpop.f32.mrb[0].mxu0
      %v4588 = vadd.f32 0.0, %v4587
      %v4589 = vpop.f32.mrb[0].mxu0
      %4590 = vmatprep.mubr.f32.mxu0 0.0
      %4591 = vmatmul.mubr.f32.gmra.mrb[0].mxu0 %v4337
      %v4592 = vpop.f32.mrb[0].mxu0
      %v4593 = vadd.f32 0.0, %v4592
      %v4594 = vpop.f32.mrb[0].mxu0
      %4595 = vmatprep.mubr.f32.mxu0 0.0
      %4596 = vmatmul.mubr.f32.gmra.mrb[0].mxu0 %v4338
      %v4597 = vpop.f32.mrb[0].mxu0
      %v4598 = vadd.f32 0.0, %v4597
      %v4599 = vpop.f32.mrb[0].mxu0
      %4600 = vdwg.mxu0
      %4601 = vmatprep.subr.mxu0 0.0
      %4602 = vmatpush1.msra.mxu0 %v4287
      %4603 = vmatprep.subr.mxu0 0.0
      %4604 = vmatpush1.msra.mxu0 %v4288
      %4605 = vmatprep.subr.mxu0 0.0
      %4606 = vmatpush1.msra.mxu0 %v4289
      %4607 = vmatprep.subr.mxu0 0.0
      %4608 = vmatpush1.msra.mxu0 %v4290
      %4609 = vmatprep.subr.mxu0 0.0
      %4610 = vmatpush1.msra.mxu0 %v4291
      %4611 = vmatprep.subr.mxu0 0.0
      %4612 = vmatpush1.msra.mxu0 %v4292
      %4613 = vmatprep.subr.mxu0 0.0
      %4614 = vmatpush1.msra.mxu0 %v4293
      %4615 = vmatprep.subr.mxu0 0.0
      %4616 = vmatpush1.msra.mxu0 %v4294
      %4617 = vmatprep.subr.mxu0 0.0
      %4618 = vmatpush1.msra.mxu0 %v4295
      %4619 = vmatprep.subr.mxu0 0.0
      %4620 = vmatpush1.msra.mxu0 %v4296
      %4621 = vmatprep.subr.mxu0 0.0
      %4622 = vmatpush1.msra.mxu0 %v4297
      %4623 = vmatprep.subr.mxu0 0.0
      %4624 = vmatpush1.msra.mxu0 %v4298
      %4625 = vmatprep.subr.mxu0 0.0
      %4626 = vmatpush1.msra.mxu0 %v4299
      %4627 = vmatprep.subr.mxu0 0.0
      %4628 = vmatpush1.msra.mxu0 %v4300
      %4629 = vmatprep.subr.mxu0 0.0
      %4630 = vmatpush1.msra.mxu0 %v4301
      %4631 = vmatprep.subr.mxu0 0.0
      %4632 = vmatpush1.msra.mxu0 %v4302
      %4633 = vmatprep.subr.mxu0 0.0
      %4634 = vmatpush1.msra.mxu0 0.0
      %4635 = vmatprep.subr.mxu0 0.0
      %4636 = vmatpush1.msra.mxu0 0.0
      %4637 = vmatprep.subr.mxu0 0.0
      %4638 = vmatpush1.msra.mxu0 0.0
      %4639 = vmatprep.subr.mxu0 0.0
      %4640 = vmatpush1.msra.mxu0 0.0
      %4641 = vmatprep.subr.mxu0 0.0
      %4642 = vmatpush1.msra.mxu0 0.0
      %4643 = vmatprep.subr.mxu0 0.0
      %4644 = vmatpush1.msra.mxu0 0.0
      %4645 = vmatprep.subr.mxu0 0.0
      %4646 = vmatpush1.msra.mxu0 0.0
      %4647 = vmatprep.subr.mxu0 0.0
      %4648 = vmatpush1.msra.mxu0 0.0
      %4649 = vmatprep.subr.mxu0 0.0
      %4650 = vmatpush1.msra.mxu0 0.0
      %4651 = vmatprep.subr.mxu0 0.0
      %4652 = vmatpush1.msra.mxu0 0.0
      %4653 = vmatprep.subr.mxu0 0.0
      %4654 = vmatpush1.msra.mxu0 0.0
      %4655 = vmatprep.subr.mxu0 0.0
      %4656 = vmatpush1.msra.mxu0 0.0
      %4657 = vmatprep.subr.mxu0 0.0
      %4658 = vmatpush1.msra.mxu0 0.0
      %4659 = vmatprep.subr.mxu0 0.0
      %4660 = vmatpush1.msra.mxu0 0.0
      %4661 = vmatprep.subr.mxu0 0.0
      %4662 = vmatpush1.msra.mxu0 0.0
      %4663 = vmatprep.subr.mxu0 0.0
      %4664 = vmatpush1.msra.mxu0 0.0
      %4665 = vmatprep.mubr.f32.mxu0 0.0
      %4666 = vmatmul.mubr.f32.gmra.mrb[0].mxu0 %v4251
      %v4667 = vpop.f32.mrb[0].mxu0
      %v4668 = vadd.f32 %v4423, %v4667
      %v4669 = vpop.f32.mrb[0].mxu0
      %4670 = vmatprep.mubr.f32.mxu0 0.0
      %4671 = vmatmul.mubr.f32.gmra.mrb[0].mxu0 %v4252
      %v4672 = vpop.f32.mrb[0].mxu0
      %v4673 = vadd.f32 %v4428, %v4672
      %v4674 = vpop.f32.mrb[0].mxu0
      %4675 = vmatprep.mubr.f32.mxu0 0.0
      %4676 = vmatmul.mubr.f32.gmra.mrb[0].mxu0 %v4253
      %v4677 = vpop.f32.mrb[0].mxu0
      %v4678 = vadd.f32 %v4433, %v4677
      %v4679 = vpop.f32.mrb[0].mxu0
      %4680 = vmatprep.mubr.f32.mxu0 0.0
      %4681 = vmatmul.mubr.f32.gmra.mrb[0].mxu0 %v4254
      %v4682 = vpop.f32.mrb[0].mxu0
      %v4683 = vadd.f32 %v4438, %v4682
      %v4684 = vpop.f32.mrb[0].mxu0
      %4685 = vmatprep.mubr.f32.mxu0 0.0
      %4686 = vmatmul.mubr.f32.gmra.mrb[0].mxu0 %v4255
      %v4687 = vpop.f32.mrb[0].mxu0
      %v4688 = vadd.f32 %v4443, %v4687
      %v4689 = vpop.f32.mrb[0].mxu0
      %4690 = vmatprep.mubr.f32.mxu0 0.0
      %4691 = vmatmul.mubr.f32.gmra.mrb[0].mxu0 %v4256
      %v4692 = vpop.f32.mrb[0].mxu0
      %v4693 = vadd.f32 %v4448, %v4692
      %v4694 = vpop.f32.mrb[0].mxu0
      %4695 = vmatprep.mubr.f32.mxu0 0.0
      %4696 = vmatmul.mubr.f32.gmra.mrb[0].mxu0 %v4257
      %v4697 = vpop.f32.mrb[0].mxu0
      %v4698 = vadd.f32 %v4453, %v4697
      %v4699 = vpop.f32.mrb[0].mxu0
      %4700 = vmatprep.mubr.f32.mxu0 0.0
      %4701 = vmatmul.mubr.f32.gmra.mrb[0].mxu0 %v4258
      %v4702 = vpop.f32.mrb[0].mxu0
      %v4703 = vadd.f32 %v4458, %v4702
      %v4704 = vpop.f32.mrb[0].mxu0
      %4705 = vmatprep.mubr.f32.mxu0 0.0
      %4706 = vmatmul.mubr.f32.gmra.mrb[0].mxu0 %v4259
      %v4707 = vpop.f32.mrb[0].mxu0
      %v4708 = vadd.f32 %v4463, %v4707
      %v4709 = vpop.f32.mrb[0].mxu0
      %4710 = vmatprep.mubr.f32.mxu0 0.0
      %4711 = vmatmul.mubr.f32.gmra.mrb[0].mxu0 %v4260
      %v4712 = vpop.f32.mrb[0].mxu0
      %v4713 = vadd.f32 %v4468, %v4712
      %v4714 = vpop.f32.mrb[0].mxu0
      %4715 = vmatprep.mubr.f32.mxu0 0.0
      %4716 = vmatmul.mubr.f32.gmra.mrb[0].mxu0 %v4261
      %v4717 = vpop.f32.mrb[0].mxu0
      %v4718 = vadd.f32 %v4473, %v4717
      %v4719 = vpop.f32.mrb[0].mxu0
      %4720 = vmatprep.mubr.f32.mxu0 0.0
      %4721 = vmatmul.mubr.f32.gmra.mrb[0].mxu0 %v4262
      %v4722 = vpop.f32.mrb[0].mxu0
      %v4723 = vadd.f32 %v4478, %v4722
      %v4724 = vpop.f32.mrb[0].mxu0
      %4725 = vmatprep.mubr.f32.mxu0 0.0
      %4726 = vmatmul.mubr.f32.gmra.mrb[0].mxu0 %v4263
      %v4727 = vpop.f32.mrb[0].mxu0
      %v4728 = vadd.f32 %v4483, %v4727
      %v4729 = vpop.f32.mrb[0].mxu0
      %4730 = vmatprep.mubr.f32.mxu0 0.0
      %4731 = vmatmul.mubr.f32.gmra.mrb[0].mxu0 %v4264
      %v4732 = vpop.f32.mrb[0].mxu0
      %v4733 = vadd.f32 %v4488, %v4732
      %v4734 = vpop.f32.mrb[0].mxu0
      %4735 = vmatprep.mubr.f32.mxu0 0.0
      %4736 = vmatmul.mubr.f32.gmra.mrb[0].mxu0 %v4265
      %v4737 = vpop.f32.mrb[0].mxu0
      %v4738 = vadd.f32 %v4493, %v4737
      %v4739 = vpop.f32.mrb[0].mxu0
      %4740 = vmatprep.mubr.f32.mxu0 0.0
      %4741 = vmatmul.mubr.f32.gmra.mrb[0].mxu0 %v4266
      %v4742 = vpop.f32.mrb[0].mxu0
      %v4743 = vadd.f32 %v4498, %v4742
      %v4744 = vpop.f32.mrb[0].mxu0
      %4745 = vmatprep.mubr.f32.mxu0 0.0
      %4746 = vmatmul.mubr.f32.gmra.mrb[0].mxu0 %v4267
      %v4747 = vpop.f32.mrb[0].mxu0
      %v4748 = vadd.f32 %v4503, %v4747
      %v4749 = vpop.f32.mrb[0].mxu0
      %4750 = vmatprep.mubr.f32.mxu0 0.0
      %4751 = vmatmul.mubr.f32.gmra.mrb[0].mxu0 %v4268
      %v4752 = vpop.f32.mrb[0].mxu0
      %v4753 = vadd.f32 %v4508, %v4752
      %v4754 = vpop.f32.mrb[0].mxu0
      %4755 = vmatprep.mubr.f32.mxu0 0.0
      %4756 = vmatmul.mubr.f32.gmra.mrb[0].mxu0 %v4269
      %v4757 = vpop.f32.mrb[0].mxu0
      %v4758 = vadd.f32 %v4513, %v4757
      %v4759 = vpop.f32.mrb[0].mxu0
      %4760 = vmatprep.mubr.f32.mxu0 0.0
      %4761 = vmatmul.mubr.f32.gmra.mrb[0].mxu0 %v4270
      %v4762 = vpop.f32.mrb[0].mxu0
      %v4763 = vadd.f32 %v4518, %v4762
      %v4764 = vpop.f32.mrb[0].mxu0
      %4765 = vmatprep.mubr.f32.mxu0 0.0
      %4766 = vmatmul.mubr.f32.gmra.mrb[0].mxu0 %v4271
      %v4767 = vpop.f32.mrb[0].mxu0
      %v4768 = vadd.f32 %v4523, %v4767
      %v4769 = vpop.f32.mrb[0].mxu0
      %4770 = vmatprep.mubr.f32.mxu0 0.0
      %4771 = vmatmul.mubr.f32.gmra.mrb[0].mxu0 %v4272
      %v4772 = vpop.f32.mrb[0].mxu0
      %v4773 = vadd.f32 %v4528, %v4772
      %v4774 = vpop.f32.mrb[0].mxu0
      %4775 = vmatprep.mubr.f32.mxu0 0.0
      %4776 = vmatmul.mubr.f32.gmra.mrb[0].mxu0 %v4273
      %v4777 = vpop.f32.mrb[0].mxu0
      %v4778 = vadd.f32 %v4533, %v4777
      %v4779 = vpop.f32.mrb[0].mxu0
      %4780 = vmatprep.mubr.f32.mxu0 0.0
      %4781 = vmatmul.mubr.f32.gmra.mrb[0].mxu0 %v4274
      %v4782 = vpop.f32.mrb[0].mxu0
      %v4783 = vadd.f32 %v4538, %v4782
      %v4784 = vpop.f32.mrb[0].mxu0
      %4785 = vmatprep.mubr.f32.mxu0 0.0
      %4786 = vmatmul.mubr.f32.gmra.mrb[0].mxu0 %v4275
      %v4787 = vpop.f32.mrb[0].mxu0
      %v4788 = vadd.f32 %v4543, %v4787
      %v4789 = vpop.f32.mrb[0].mxu0
      %4790 = vmatprep.mubr.f32.mxu0 0.0
      %4791 = vmatmul.mubr.f32.gmra.mrb[0].mxu0 %v4276
      %v4792 = vpop.f32.mrb[0].mxu0
      %v4793 = vadd.f32 %v4548, %v4792
      %v4794 = vpop.f32.mrb[0].mxu0
      %4795 = vmatprep.mubr.f32.mxu0 0.0
      %4796 = vmatmul.mubr.f32.gmra.mrb[0].mxu0 %v4277
      %v4797 = vpop.f32.mrb[0].mxu0
      %v4798 = vadd.f32 %v4553, %v4797
      %v4799 = vpop.f32.mrb[0].mxu0
      %4800 = vmatprep.mubr.f32.mxu0 0.0
      %4801 = vmatmul.mubr.f32.gmra.mrb[0].mxu0 %v4278
      %v4802 = vpop.f32.mrb[0].mxu0
      %v4803 = vadd.f32 %v4558, %v4802
      %v4804 = vpop.f32.mrb[0].mxu0
      %4805 = vmatprep.mubr.f32.mxu0 0.0
      %4806 = vmatmul.mubr.f32.gmra.mrb[0].mxu0 %v4279
      %v4807 = vpop.f32.mrb[0].mxu0
      %v4808 = vadd.f32 %v4563, %v4807
      %v4809 = vpop.f32.mrb[0].mxu0
      %4810 = vmatprep.mubr.f32.mxu0 0.0
      %4811 = vmatmul.mubr.f32.gmra.mrb[0].mxu0 %v4280
      %v4812 = vpop.f32.mrb[0].mxu0
      %v4813 = vadd.f32 %v4568, %v4812
      %v4814 = vpop.f32.mrb[0].mxu0
      %4815 = vmatprep.mubr.f32.mxu0 0.0
      %4816 = vmatmul.mubr.f32.gmra.mrb[0].mxu0 %v4281
      %v4817 = vpop.f32.mrb[0].mxu0
      %v4818 = vadd.f32 %v4573, %v4817
      %v4819 = vpop.f32.mrb[0].mxu0
      %4820 = vmatprep.mubr.f32.mxu0 0.0
      %4821 = vmatmul.mubr.f32.gmra.mrb[0].mxu0 %v4282
      %v4822 = vpop.f32.mrb[0].mxu0
      %v4823 = vadd.f32 %v4578, %v4822
      %v4824 = vpop.f32.mrb[0].mxu0
      %4825 = vmatprep.mubr.f32.mxu0 0.0
      %4826 = vmatmul.mubr.f32.gmra.mrb[0].mxu0 %v4283
      %v4827 = vpop.f32.mrb[0].mxu0
      %v4828 = vadd.f32 %v4583, %v4827
      %v4829 = vpop.f32.mrb[0].mxu0
      %4830 = vmatprep.mubr.f32.mxu0 0.0
      %4831 = vmatmul.mubr.f32.gmra.mrb[0].mxu0 %v4284
      %v4832 = vpop.f32.mrb[0].mxu0
      %v4833 = vadd.f32 %v4588, %v4832
      %v4834 = vpop.f32.mrb[0].mxu0
      %4835 = vmatprep.mubr.f32.mxu0 0.0
      %4836 = vmatmul.mubr.f32.gmra.mrb[0].mxu0 %v4285
      %v4837 = vpop.f32.mrb[0].mxu0
      %v4838 = vadd.f32 %v4593, %v4837
      %v4839 = vpop.f32.mrb[0].mxu0
      %4840 = vmatprep.mubr.f32.mxu0 0.0
      %4841 = vmatmul.mubr.f32.gmra.mrb[0].mxu0 %v4286
      %v4842 = vpop.f32.mrb[0].mxu0
      %v4843 = vadd.f32 %v4598, %v4842
      %v4844 = vpop.f32.mrb[0].mxu0
      %4845 = vdwg.mxu0
      %v4846 = vld [vmem:[#allocation3 + $0x2] sm:$0xff]
      %v4847 = vld [vmem:[#allocation3 + $0xa] sm:$0xff]
      %v4848 = vld [vmem:[#allocation3 + $0x12] sm:$0xff]
      %v4849 = vld [vmem:[#allocation3 + $0x1a] sm:$0xff]
      %v4850 = vld [vmem:[#allocation3 + $0x22] sm:$0xff]
      %v4851 = vld [vmem:[#allocation3 + $0x2a] sm:$0xff]
      %v4852 = vld [vmem:[#allocation3 + $0x32] sm:$0xff]
      %v4853 = vld [vmem:[#allocation3 + $0x3a] sm:$0xff]
      %v4854 = vld [vmem:[#allocation3 + $0x42] sm:$0xff]
      %v4855 = vld [vmem:[#allocation3 + $0x4a] sm:$0xff]
      %v4856 = vld [vmem:[#allocation3 + $0x52] sm:$0xff]
      %v4857 = vld [vmem:[#allocation3 + $0x5a] sm:$0xff]
      %v4858 = vld [vmem:[#allocation3 + $0x62] sm:$0xff]
      %v4859 = vld [vmem:[#allocation3 + $0x6a] sm:$0xff]
      %v4860 = vld [vmem:[#allocation3 + $0x72] sm:$0xff]
      %v4861 = vld [vmem:[#allocation3 + $0x7a] sm:$0xff]
      %v4862 = vld [vmem:[#allocation3 + $0x82] sm:$0xff]
      %v4863 = vld [vmem:[#allocation3 + $0x8a] sm:$0xff]
      %v4864 = vld [vmem:[#allocation3 + $0x92] sm:$0xff]
      %v4865 = vld [vmem:[#allocation3 + $0x9a] sm:$0xff]
      %v4866 = vld [vmem:[#allocation3 + $0xa2] sm:$0xff]
      %v4867 = vld [vmem:[#allocation3 + $0xaa] sm:$0xff]
      %v4868 = vld [vmem:[#allocation3 + $0xb2] sm:$0xff]
      %v4869 = vld [vmem:[#allocation3 + $0xba] sm:$0xff]
      %v4870 = vld [vmem:[#allocation3 + $0xc2] sm:$0xff]
      %v4871 = vld [vmem:[#allocation3 + $0xca] sm:$0xff]
      %v4872 = vld [vmem:[#allocation3 + $0xd2] sm:$0xff]
      %v4873 = vld [vmem:[#allocation3 + $0xda] sm:$0xff]
      %v4874 = vld [vmem:[#allocation3 + $0xe2] sm:$0xff]
      %v4875 = vld [vmem:[#allocation3 + $0xea] sm:$0xff]
      %v4876 = vld [vmem:[#allocation3 + $0xf2] sm:$0xff]
      %v4877 = vld [vmem:[#allocation3 + $0xfa] sm:$0xff]
      %v4878 = vld [vmem:[#allocation3 + $0x102] sm:$0xff]
      %v4879 = vld [vmem:[#allocation3 + $0x10a] sm:$0xff]
      %v4880 = vld [vmem:[#allocation3 + $0x112] sm:$0xff]
      %v4881 = vld [vmem:[#allocation3 + $0x11a] sm:$0xff]
      %s4882 = scalar_lea.vmem %s7, 256
      %v4883 = vld [vmem:[%s4882] sm:$0xff]
      %v4884 = vld [vmem:[%s4882 + $0x8] sm:$0xff]
      %v4885 = vld [vmem:[%s4882 + $0x10] sm:$0xff]
      %v4886 = vld [vmem:[%s4882 + $0x18] sm:$0xff]
      %v4887 = vld [vmem:[%s4882 + $0x20] sm:$0xff]
      %v4888 = vld [vmem:[%s4882 + $0x28] sm:$0xff]
      %v4889 = vld [vmem:[%s4882 + $0x30] sm:$0xff]
      %v4890 = vld [vmem:[%s4882 + $0x38] sm:$0xff]
      %v4891 = vld [vmem:[%s4882 + $0x40] sm:$0xff]
      %v4892 = vld [vmem:[%s4882 + $0x48] sm:$0xff]
      %v4893 = vld [vmem:[%s4882 + $0x50] sm:$0xff]
      %v4894 = vld [vmem:[%s4882 + $0x58] sm:$0xff]
      %v4895 = vld [vmem:[%s4882 + $0x60] sm:$0xff]
      %v4896 = vld [vmem:[%s4882 + $0x68] sm:$0xff]
      %v4897 = vld [vmem:[%s4882 + $0x70] sm:$0xff]
      %v4898 = vld [vmem:[%s4882 + $0x78] sm:$0xff]
      %4899 = vmatprep.subr.mxu0 0.0
      %4900 = vmatpush1.msra.mxu0 %v4883
      %4901 = vmatprep.subr.mxu0 0.0
      %4902 = vmatpush1.msra.mxu0 %v4884
      %4903 = vmatprep.subr.mxu0 0.0
      %4904 = vmatpush1.msra.mxu0 %v4885
      %4905 = vmatprep.subr.mxu0 0.0
      %4906 = vmatpush1.msra.mxu0 %v4886
      %4907 = vmatprep.subr.mxu0 0.0
      %4908 = vmatpush1.msra.mxu0 %v4887
      %4909 = vmatprep.subr.mxu0 0.0
      %4910 = vmatpush1.msra.mxu0 %v4888
      %4911 = vmatprep.subr.mxu0 0.0
      %4912 = vmatpush1.msra.mxu0 %v4889
      %4913 = vmatprep.subr.mxu0 0.0
      %4914 = vmatpush1.msra.mxu0 %v4890
      %4915 = vmatprep.subr.mxu0 0.0
      %4916 = vmatpush1.msra.mxu0 %v4891
      %4917 = vmatprep.subr.mxu0 0.0
      %4918 = vmatpush1.msra.mxu0 %v4892
      %4919 = vmatprep.subr.mxu0 0.0
      %4920 = vmatpush1.msra.mxu0 %v4893
      %4921 = vmatprep.subr.mxu0 0.0
      %4922 = vmatpush1.msra.mxu0 %v4894
      %4923 = vmatprep.subr.mxu0 0.0
      %4924 = vmatpush1.msra.mxu0 %v4895
      %4925 = vmatprep.subr.mxu0 0.0
      %4926 = vmatpush1.msra.mxu0 %v4896
      %4927 = vmatprep.subr.mxu0 0.0
      %4928 = vmatpush1.msra.mxu0 %v4897
      %4929 = vmatprep.subr.mxu0 0.0
      %4930 = vmatpush1.msra.mxu0 %v4898
      %4931 = vmatprep.subr.mxu0 0.0
      %4932 = vmatpush1.msra.mxu0 0.0
      %4933 = vmatprep.subr.mxu0 0.0
      %4934 = vmatpush1.msra.mxu0 0.0
      %4935 = vmatprep.subr.mxu0 0.0
      %4936 = vmatpush1.msra.mxu0 0.0
      %4937 = vmatprep.subr.mxu0 0.0
      %4938 = vmatpush1.msra.mxu0 0.0
      %4939 = vmatprep.subr.mxu0 0.0
      %4940 = vmatpush1.msra.mxu0 0.0
      %4941 = vmatprep.subr.mxu0 0.0
      %4942 = vmatpush1.msra.mxu0 0.0
      %4943 = vmatprep.subr.mxu0 0.0
      %4944 = vmatpush1.msra.mxu0 0.0
      %4945 = vmatprep.subr.mxu0 0.0
      %4946 = vmatpush1.msra.mxu0 0.0
      %4947 = vmatprep.subr.mxu0 0.0
      %4948 = vmatpush1.msra.mxu0 0.0
      %4949 = vmatprep.subr.mxu0 0.0
      %4950 = vmatpush1.msra.mxu0 0.0
      %4951 = vmatprep.subr.mxu0 0.0
      %4952 = vmatpush1.msra.mxu0 0.0
      %4953 = vmatprep.subr.mxu0 0.0
      %4954 = vmatpush1.msra.mxu0 0.0
      %4955 = vmatprep.subr.mxu0 0.0
      %4956 = vmatpush1.msra.mxu0 0.0
      %4957 = vmatprep.subr.mxu0 0.0
      %4958 = vmatpush1.msra.mxu0 0.0
      %4959 = vmatprep.subr.mxu0 0.0
      %4960 = vmatpush1.msra.mxu0 0.0
      %4961 = vmatprep.subr.mxu0 0.0
      %4962 = vmatpush1.msra.mxu0 0.0
      %4963 = vmatprep.mubr.f32.mxu0 0.0
      %4964 = vmatmul.mubr.f32.gmra.mrb[0].mxu0 %v4846
      %v4965 = vpop.f32.mrb[0].mxu0
      %v4966 = vadd.f32 0.0, %v4965
      %v4967 = vpop.f32.mrb[0].mxu0
      %4968 = vmatprep.mubr.f32.mxu0 0.0
      %4969 = vmatmul.mubr.f32.gmra.mrb[0].mxu0 %v4847
      %v4970 = vpop.f32.mrb[0].mxu0
      %v4971 = vadd.f32 0.0, %v4970
      %v4972 = vpop.f32.mrb[0].mxu0
      %4973 = vmatprep.mubr.f32.mxu0 0.0
      %4974 = vmatmul.mubr.f32.gmra.mrb[0].mxu0 %v4848
      %v4975 = vpop.f32.mrb[0].mxu0
      %v4976 = vadd.f32 0.0, %v4975
      %v4977 = vpop.f32.mrb[0].mxu0
      %4978 = vmatprep.mubr.f32.mxu0 0.0
      %4979 = vmatmul.mubr.f32.gmra.mrb[0].mxu0 %v4849
      %v4980 = vpop.f32.mrb[0].mxu0
      %v4981 = vadd.f32 0.0, %v4980
      %v4982 = vpop.f32.mrb[0].mxu0
      %4983 = vmatprep.mubr.f32.mxu0 0.0
      %4984 = vmatmul.mubr.f32.gmra.mrb[0].mxu0 %v4850
      %v4985 = vpop.f32.mrb[0].mxu0
      %v4986 = vadd.f32 0.0, %v4985
      %v4987 = vpop.f32.mrb[0].mxu0
      %4988 = vmatprep.mubr.f32.mxu0 0.0
      %4989 = vmatmul.mubr.f32.gmra.mrb[0].mxu0 %v4851
      %v4990 = vpop.f32.mrb[0].mxu0
      %v4991 = vadd.f32 0.0, %v4990
      %v4992 = vpop.f32.mrb[0].mxu0
      %4993 = vmatprep.mubr.f32.mxu0 0.0
      %4994 = vmatmul.mubr.f32.gmra.mrb[0].mxu0 %v4852
      %v4995 = vpop.f32.mrb[0].mxu0
      %v4996 = vadd.f32 0.0, %v4995
      %v4997 = vpop.f32.mrb[0].mxu0
      %4998 = vmatprep.mubr.f32.mxu0 0.0
      %4999 = vmatmul.mubr.f32.gmra.mrb[0].mxu0 %v4853
      %v5000 = vpop.f32.mrb[0].mxu0
      %v5001 = vadd.f32 0.0, %v5000
      %v5002 = vpop.f32.mrb[0].mxu0
      %5003 = vmatprep.mubr.f32.mxu0 0.0
      %5004 = vmatmul.mubr.f32.gmra.mrb[0].mxu0 %v4854
      %v5005 = vpop.f32.mrb[0].mxu0
      %v5006 = vadd.f32 0.0, %v5005
      %v5007 = vpop.f32.mrb[0].mxu0
      %5008 = vmatprep.mubr.f32.mxu0 0.0
      %5009 = vmatmul.mubr.f32.gmra.mrb[0].mxu0 %v4855
      %v5010 = vpop.f32.mrb[0].mxu0
      %v5011 = vadd.f32 0.0, %v5010
      %v5012 = vpop.f32.mrb[0].mxu0
      %5013 = vmatprep.mubr.f32.mxu0 0.0
      %5014 = vmatmul.mubr.f32.gmra.mrb[0].mxu0 %v4856
      %v5015 = vpop.f32.mrb[0].mxu0
      %v5016 = vadd.f32 0.0, %v5015
      %v5017 = vpop.f32.mrb[0].mxu0
      %5018 = vmatprep.mubr.f32.mxu0 0.0
      %5019 = vmatmul.mubr.f32.gmra.mrb[0].mxu0 %v4857
      %v5020 = vpop.f32.mrb[0].mxu0
      %v5021 = vadd.f32 0.0, %v5020
      %v5022 = vpop.f32.mrb[0].mxu0
      %5023 = vmatprep.mubr.f32.mxu0 0.0
      %5024 = vmatmul.mubr.f32.gmra.mrb[0].mxu0 %v4858
      %v5025 = vpop.f32.mrb[0].mxu0
      %v5026 = vadd.f32 0.0, %v5025
      %v5027 = vpop.f32.mrb[0].mxu0
      %5028 = vmatprep.mubr.f32.mxu0 0.0
      %5029 = vmatmul.mubr.f32.gmra.mrb[0].mxu0 %v4859
      %v5030 = vpop.f32.mrb[0].mxu0
      %v5031 = vadd.f32 0.0, %v5030
      %v5032 = vpop.f32.mrb[0].mxu0
      %5033 = vmatprep.mubr.f32.mxu0 0.0
      %5034 = vmatmul.mubr.f32.gmra.mrb[0].mxu0 %v4860
      %v5035 = vpop.f32.mrb[0].mxu0
      %v5036 = vadd.f32 0.0, %v5035
      %v5037 = vpop.f32.mrb[0].mxu0
      %5038 = vmatprep.mubr.f32.mxu0 0.0
      %5039 = vmatmul.mubr.f32.gmra.mrb[0].mxu0 %v4861
      %v5040 = vpop.f32.mrb[0].mxu0
      %v5041 = vadd.f32 0.0, %v5040
      %v5042 = vpop.f32.mrb[0].mxu0
      %5043 = vmatprep.mubr.f32.mxu0 0.0
      %5044 = vmatmul.mubr.f32.gmra.mrb[0].mxu0 %v4862
      %v5045 = vpop.f32.mrb[0].mxu0
      %v5046 = vadd.f32 0.0, %v5045
      %v5047 = vpop.f32.mrb[0].mxu0
      %5048 = vmatprep.mubr.f32.mxu0 0.0
      %5049 = vmatmul.mubr.f32.gmra.mrb[0].mxu0 %v4863
      %v5050 = vpop.f32.mrb[0].mxu0
      %v5051 = vadd.f32 0.0, %v5050
      %v5052 = vpop.f32.mrb[0].mxu0
      %5053 = vmatprep.mubr.f32.mxu0 0.0
      %5054 = vmatmul.mubr.f32.gmra.mrb[0].mxu0 %v4864
      %v5055 = vpop.f32.mrb[0].mxu0
      %v5056 = vadd.f32 0.0, %v5055
      %v5057 = vpop.f32.mrb[0].mxu0
      %5058 = vmatprep.mubr.f32.mxu0 0.0
      %5059 = vmatmul.mubr.f32.gmra.mrb[0].mxu0 %v4865
      %v5060 = vpop.f32.mrb[0].mxu0
      %v5061 = vadd.f32 0.0, %v5060
      %v5062 = vpop.f32.mrb[0].mxu0
      %5063 = vmatprep.mubr.f32.mxu0 0.0
      %5064 = vmatmul.mubr.f32.gmra.mrb[0].mxu0 %v4866
      %v5065 = vpop.f32.mrb[0].mxu0
      %v5066 = vadd.f32 0.0, %v5065
      %v5067 = vpop.f32.mrb[0].mxu0
      %5068 = vmatprep.mubr.f32.mxu0 0.0
      %5069 = vmatmul.mubr.f32.gmra.mrb[0].mxu0 %v4867
      %v5070 = vpop.f32.mrb[0].mxu0
      %v5071 = vadd.f32 0.0, %v5070
      %v5072 = vpop.f32.mrb[0].mxu0
      %5073 = vmatprep.mubr.f32.mxu0 0.0
      %5074 = vmatmul.mubr.f32.gmra.mrb[0].mxu0 %v4868
      %v5075 = vpop.f32.mrb[0].mxu0
      %v5076 = vadd.f32 0.0, %v5075
      %v5077 = vpop.f32.mrb[0].mxu0
      %5078 = vmatprep.mubr.f32.mxu0 0.0
      %5079 = vmatmul.mubr.f32.gmra.mrb[0].mxu0 %v4869
      %v5080 = vpop.f32.mrb[0].mxu0
      %v5081 = vadd.f32 0.0, %v5080
      %v5082 = vpop.f32.mrb[0].mxu0
      %5083 = vmatprep.mubr.f32.mxu0 0.0
      %5084 = vmatmul.mubr.f32.gmra.mrb[0].mxu0 %v4870
      %v5085 = vpop.f32.mrb[0].mxu0
      %v5086 = vadd.f32 0.0, %v5085
      %v5087 = vpop.f32.mrb[0].mxu0
      %5088 = vmatprep.mubr.f32.mxu0 0.0
      %5089 = vmatmul.mubr.f32.gmra.mrb[0].mxu0 %v4871
      %v5090 = vpop.f32.mrb[0].mxu0
      %v5091 = vadd.f32 0.0, %v5090
      %v5092 = vpop.f32.mrb[0].mxu0
      %5093 = vmatprep.mubr.f32.mxu0 0.0
      %5094 = vmatmul.mubr.f32.gmra.mrb[0].mxu0 %v4872
      %v5095 = vpop.f32.mrb[0].mxu0
      %v5096 = vadd.f32 0.0, %v5095
      %v5097 = vpop.f32.mrb[0].mxu0
      %5098 = vmatprep.mubr.f32.mxu0 0.0
      %5099 = vmatmul.mubr.f32.gmra.mrb[0].mxu0 %v4873
      %v5100 = vpop.f32.mrb[0].mxu0
      %v5101 = vadd.f32 0.0, %v5100
      %v5102 = vpop.f32.mrb[0].mxu0
      %5103 = vmatprep.mubr.f32.mxu0 0.0
      %5104 = vmatmul.mubr.f32.gmra.mrb[0].mxu0 %v4874
      %v5105 = vpop.f32.mrb[0].mxu0
      %v5106 = vadd.f32 0.0, %v5105
      %v5107 = vpop.f32.mrb[0].mxu0
      %5108 = vmatprep.mubr.f32.mxu0 0.0
      %5109 = vmatmul.mubr.f32.gmra.mrb[0].mxu0 %v4875
      %v5110 = vpop.f32.mrb[0].mxu0
      %v5111 = vadd.f32 0.0, %v5110
      %v5112 = vpop.f32.mrb[0].mxu0
      %5113 = vmatprep.mubr.f32.mxu0 0.0
      %5114 = vmatmul.mubr.f32.gmra.mrb[0].mxu0 %v4876
      %v5115 = vpop.f32.mrb[0].mxu0
      %v5116 = vadd.f32 0.0, %v5115
      %v5117 = vpop.f32.mrb[0].mxu0
      %5118 = vmatprep.mubr.f32.mxu0 0.0
      %5119 = vmatmul.mubr.f32.gmra.mrb[0].mxu0 %v4877
      %v5120 = vpop.f32.mrb[0].mxu0
      %v5121 = vadd.f32 0.0, %v5120
      %v5122 = vpop.f32.mrb[0].mxu0
      %5123 = vmatprep.mubr.f32.mxu0 0.0
      %5124 = vmatmul.mubr.f32.gmra.mrb[0].mxu0 %v4878
      %v5125 = vpop.f32.mrb[0].mxu0
      %v5126 = vadd.f32 0.0, %v5125
      %v5127 = vpop.f32.mrb[0].mxu0
      %5128 = vmatprep.mubr.f32.mxu0 0.0
      %5129 = vmatmul.mubr.f32.gmra.mrb[0].mxu0 %v4879
      %v5130 = vpop.f32.mrb[0].mxu0
      %v5131 = vadd.f32 0.0, %v5130
      %v5132 = vpop.f32.mrb[0].mxu0
      %5133 = vmatprep.mubr.f32.mxu0 0.0
      %5134 = vmatmul.mubr.f32.gmra.mrb[0].mxu0 %v4880
      %v5135 = vpop.f32.mrb[0].mxu0
      %v5136 = vadd.f32 0.0, %v5135
      %v5137 = vpop.f32.mrb[0].mxu0
      %5138 = vmatprep.mubr.f32.mxu0 0.0
      %5139 = vmatmul.mubr.f32.gmra.mrb[0].mxu0 %v4881
      %v5140 = vpop.f32.mrb[0].mxu0
      %v5141 = vadd.f32 0.0, %v5140
      %v5142 = vpop.f32.mrb[0].mxu0
      %5143 = vdwg.mxu0
      %v5144 = vadd.f32 %v4668, %v4966
      %v5145 = vadd.f32 %v4673, %v4971
      %v5146 = vadd.f32 %v4678, %v4976
      %v5147 = vadd.f32 %v4683, %v4981
      %v5148 = vadd.f32 %v4688, %v4986
      %v5149 = vadd.f32 %v4693, %v4991
      %v5150 = vadd.f32 %v4698, %v4996
      %v5151 = vadd.f32 %v4703, %v5001
      %v5152 = vadd.f32 %v4708, %v5006
      %v5153 = vadd.f32 %v4713, %v5011
      %v5154 = vadd.f32 %v4718, %v5016
      %v5155 = vadd.f32 %v4723, %v5021
      %v5156 = vadd.f32 %v4728, %v5026
      %v5157 = vadd.f32 %v4733, %v5031
      %v5158 = vadd.f32 %v4738, %v5036
      %v5159 = vadd.f32 %v4743, %v5041
      %v5160 = vadd.f32 %v4748, %v5046
      %v5161 = vadd.f32 %v4753, %v5051
      %v5162 = vadd.f32 %v4758, %v5056
      %v5163 = vadd.f32 %v4763, %v5061
      %v5164 = vadd.f32 %v4768, %v5066
      %v5165 = vadd.f32 %v4773, %v5071
      %v5166 = vadd.f32 %v4778, %v5076
      %v5167 = vadd.f32 %v4783, %v5081
      %v5168 = vadd.f32 %v4788, %v5086
      %v5169 = vadd.f32 %v4793, %v5091
      %v5170 = vadd.f32 %v4798, %v5096
      %v5171 = vadd.f32 %v4803, %v5101
      %v5172 = vadd.f32 %v4808, %v5106
      %v5173 = vadd.f32 %v4813, %v5111
      %v5174 = vadd.f32 %v4818, %v5116
      %v5175 = vadd.f32 %v4823, %v5121
      %v5176 = vadd.f32 %v4828, %v5126
      %v5177 = vadd.f32 %v4833, %v5131
      %v5178 = vadd.f32 %v4838, %v5136
      %v5179 = vadd.f32 %v4843, %v5141
      %v5180 = vld [vmem:[#allocation3 + $0x12] sm:$0xff]
      %v5181 = vld [vmem:[#allocation3 + $0x1a] sm:$0xff]
      %v5182 = vld [vmem:[#allocation3 + $0x22] sm:$0xff]
      %v5183 = vld [vmem:[#allocation3 + $0x2a] sm:$0xff]
      %v5184 = vld [vmem:[#allocation3 + $0x32] sm:$0xff]
      %v5185 = vld [vmem:[#allocation3 + $0x3a] sm:$0xff]
      %v5186 = vld [vmem:[#allocation3 + $0x42] sm:$0xff]
      %v5187 = vld [vmem:[#allocation3 + $0x4a] sm:$0xff]
      %v5188 = vld [vmem:[#allocation3 + $0x52] sm:$0xff]
      %v5189 = vld [vmem:[#allocation3 + $0x5a] sm:$0xff]
      %v5190 = vld [vmem:[#allocation3 + $0x62] sm:$0xff]
      %v5191 = vld [vmem:[#allocation3 + $0x6a] sm:$0xff]
      %v5192 = vld [vmem:[#allocation3 + $0x72] sm:$0xff]
      %v5193 = vld [vmem:[#allocation3 + $0x7a] sm:$0xff]
      %v5194 = vld [vmem:[#allocation3 + $0x82] sm:$0xff]
      %v5195 = vld [vmem:[#allocation3 + $0x8a] sm:$0xff]
      %v5196 = vld [vmem:[#allocation3 + $0x92] sm:$0xff]
      %v5197 = vld [vmem:[#allocation3 + $0x9a] sm:$0xff]
      %v5198 = vld [vmem:[#allocation3 + $0xa2] sm:$0xff]
      %v5199 = vld [vmem:[#allocation3 + $0xaa] sm:$0xff]
      %v5200 = vld [vmem:[#allocation3 + $0xb2] sm:$0xff]
      %v5201 = vld [vmem:[#allocation3 + $0xba] sm:$0xff]
      %v5202 = vld [vmem:[#allocation3 + $0xc2] sm:$0xff]
      %v5203 = vld [vmem:[#allocation3 + $0xca] sm:$0xff]
      %v5204 = vld [vmem:[#allocation3 + $0xd2] sm:$0xff]
      %v5205 = vld [vmem:[#allocation3 + $0xda] sm:$0xff]
      %v5206 = vld [vmem:[#allocation3 + $0xe2] sm:$0xff]
      %v5207 = vld [vmem:[#allocation3 + $0xea] sm:$0xff]
      %v5208 = vld [vmem:[#allocation3 + $0xf2] sm:$0xff]
      %v5209 = vld [vmem:[#allocation3 + $0xfa] sm:$0xff]
      %v5210 = vld [vmem:[#allocation3 + $0x102] sm:$0xff]
      %v5211 = vld [vmem:[#allocation3 + $0x10a] sm:$0xff]
      %v5212 = vld [vmem:[#allocation3 + $0x112] sm:$0xff]
      %v5213 = vld [vmem:[#allocation3 + $0x11a] sm:$0xff]
      %v5214 = vld [vmem:[#allocation3 + $0x122] sm:$0xff]
      %v5215 = vld [vmem:[#allocation3 + $0x12a] sm:$0xff]
      %s5216 = scalar_lea.vmem %s7, 384
      %v5217 = vld [vmem:[%s5216] sm:$0xff]
      %v5218 = vld [vmem:[%s5216 + $0x8] sm:$0xff]
      %v5219 = vld [vmem:[%s5216 + $0x10] sm:$0xff]
      %v5220 = vld [vmem:[%s5216 + $0x18] sm:$0xff]
      %v5221 = vld [vmem:[%s5216 + $0x20] sm:$0xff]
      %v5222 = vld [vmem:[%s5216 + $0x28] sm:$0xff]
      %v5223 = vld [vmem:[%s5216 + $0x30] sm:$0xff]
      %v5224 = vld [vmem:[%s5216 + $0x38] sm:$0xff]
      %v5225 = vld [vmem:[%s5216 + $0x40] sm:$0xff]
      %v5226 = vld [vmem:[%s5216 + $0x48] sm:$0xff]
      %v5227 = vld [vmem:[%s5216 + $0x50] sm:$0xff]
      %v5228 = vld [vmem:[%s5216 + $0x58] sm:$0xff]
      %v5229 = vld [vmem:[%s5216 + $0x60] sm:$0xff]
      %v5230 = vld [vmem:[%s5216 + $0x68] sm:$0xff]
      %v5231 = vld [vmem:[%s5216 + $0x70] sm:$0xff]
      %v5232 = vld [vmem:[%s5216 + $0x78] sm:$0xff]
      %5233 = vmatprep.subr.mxu0 0.0
      %5234 = vmatpush1.msra.mxu0 %v5217
      %5235 = vmatprep.subr.mxu0 0.0
      %5236 = vmatpush1.msra.mxu0 %v5218
      %5237 = vmatprep.subr.mxu0 0.0
      %5238 = vmatpush1.msra.mxu0 %v5219
      %5239 = vmatprep.subr.mxu0 0.0
      %5240 = vmatpush1.msra.mxu0 %v5220
      %5241 = vmatprep.subr.mxu0 0.0
      %5242 = vmatpush1.msra.mxu0 %v5221
      %5243 = vmatprep.subr.mxu0 0.0
      %5244 = vmatpush1.msra.mxu0 %v5222
      %5245 = vmatprep.subr.mxu0 0.0
      %5246 = vmatpush1.msra.mxu0 %v5223
      %5247 = vmatprep.subr.mxu0 0.0
      %5248 = vmatpush1.msra.mxu0 %v5224
      %5249 = vmatprep.subr.mxu0 0.0
      %5250 = vmatpush1.msra.mxu0 %v5225
      %5251 = vmatprep.subr.mxu0 0.0
      %5252 = vmatpush1.msra.mxu0 %v5226
      %5253 = vmatprep.subr.mxu0 0.0
      %5254 = vmatpush1.msra.mxu0 %v5227
      %5255 = vmatprep.subr.mxu0 0.0
      %5256 = vmatpush1.msra.mxu0 %v5228
      %5257 = vmatprep.subr.mxu0 0.0
      %5258 = vmatpush1.msra.mxu0 %v5229
      %5259 = vmatprep.subr.mxu0 0.0
      %5260 = vmatpush1.msra.mxu0 %v5230
      %5261 = vmatprep.subr.mxu0 0.0
      %5262 = vmatpush1.msra.mxu0 %v5231
      %5263 = vmatprep.subr.mxu0 0.0
      %5264 = vmatpush1.msra.mxu0 %v5232
      %5265 = vmatprep.subr.mxu0 0.0
      %5266 = vmatpush1.msra.mxu0 0.0
      %5267 = vmatprep.subr.mxu0 0.0
      %5268 = vmatpush1.msra.mxu0 0.0
      %5269 = vmatprep.subr.mxu0 0.0
      %5270 = vmatpush1.msra.mxu0 0.0
      %5271 = vmatprep.subr.mxu0 0.0
      %5272 = vmatpush1.msra.mxu0 0.0
      %5273 = vmatprep.subr.mxu0 0.0
      %5274 = vmatpush1.msra.mxu0 0.0
      %5275 = vmatprep.subr.mxu0 0.0
      %5276 = vmatpush1.msra.mxu0 0.0
      %5277 = vmatprep.subr.mxu0 0.0
      %5278 = vmatpush1.msra.mxu0 0.0
      %5279 = vmatprep.subr.mxu0 0.0
      %5280 = vmatpush1.msra.mxu0 0.0
      %5281 = vmatprep.subr.mxu0 0.0
      %5282 = vmatpush1.msra.mxu0 0.0
      %5283 = vmatprep.subr.mxu0 0.0
      %5284 = vmatpush1.msra.mxu0 0.0
      %5285 = vmatprep.subr.mxu0 0.0
      %5286 = vmatpush1.msra.mxu0 0.0
      %5287 = vmatprep.subr.mxu0 0.0
      %5288 = vmatpush1.msra.mxu0 0.0
      %5289 = vmatprep.subr.mxu0 0.0
      %5290 = vmatpush1.msra.mxu0 0.0
      %5291 = vmatprep.subr.mxu0 0.0
      %5292 = vmatpush1.msra.mxu0 0.0
      %5293 = vmatprep.subr.mxu0 0.0
      %5294 = vmatpush1.msra.mxu0 0.0
      %5295 = vmatprep.subr.mxu0 0.0
      %5296 = vmatpush1.msra.mxu0 0.0
      %5297 = vmatprep.mubr.f32.mxu0 0.0
      %5298 = vmatmul.mubr.f32.gmra.mrb[0].mxu0 %v5180
      %v5299 = vpop.f32.mrb[0].mxu0
      %v5300 = vadd.f32 0.0, %v5299
      %v5301 = vpop.f32.mrb[0].mxu0
      %5302 = vmatprep.mubr.f32.mxu0 0.0
      %5303 = vmatmul.mubr.f32.gmra.mrb[0].mxu0 %v5181
      %v5304 = vpop.f32.mrb[0].mxu0
      %v5305 = vadd.f32 0.0, %v5304
      %v5306 = vpop.f32.mrb[0].mxu0
      %5307 = vmatprep.mubr.f32.mxu0 0.0
      %5308 = vmatmul.mubr.f32.gmra.mrb[0].mxu0 %v5182
      %v5309 = vpop.f32.mrb[0].mxu0
      %v5310 = vadd.f32 0.0, %v5309
      %v5311 = vpop.f32.mrb[0].mxu0
      %5312 = vmatprep.mubr.f32.mxu0 0.0
      %5313 = vmatmul.mubr.f32.gmra.mrb[0].mxu0 %v5183
      %v5314 = vpop.f32.mrb[0].mxu0
      %v5315 = vadd.f32 0.0, %v5314
      %v5316 = vpop.f32.mrb[0].mxu0
      %5317 = vmatprep.mubr.f32.mxu0 0.0
      %5318 = vmatmul.mubr.f32.gmra.mrb[0].mxu0 %v5184
      %v5319 = vpop.f32.mrb[0].mxu0
      %v5320 = vadd.f32 0.0, %v5319
      %v5321 = vpop.f32.mrb[0].mxu0
      %5322 = vmatprep.mubr.f32.mxu0 0.0
      %5323 = vmatmul.mubr.f32.gmra.mrb[0].mxu0 %v5185
      %v5324 = vpop.f32.mrb[0].mxu0
      %v5325 = vadd.f32 0.0, %v5324
      %v5326 = vpop.f32.mrb[0].mxu0
      %5327 = vmatprep.mubr.f32.mxu0 0.0
      %5328 = vmatmul.mubr.f32.gmra.mrb[0].mxu0 %v5186
      %v5329 = vpop.f32.mrb[0].mxu0
      %v5330 = vadd.f32 0.0, %v5329
      %v5331 = vpop.f32.mrb[0].mxu0
      %5332 = vmatprep.mubr.f32.mxu0 0.0
      %5333 = vmatmul.mubr.f32.gmra.mrb[0].mxu0 %v5187
      %v5334 = vpop.f32.mrb[0].mxu0
      %v5335 = vadd.f32 0.0, %v5334
      %v5336 = vpop.f32.mrb[0].mxu0
      %5337 = vmatprep.mubr.f32.mxu0 0.0
      %5338 = vmatmul.mubr.f32.gmra.mrb[0].mxu0 %v5188
      %v5339 = vpop.f32.mrb[0].mxu0
      %v5340 = vadd.f32 0.0, %v5339
      %v5341 = vpop.f32.mrb[0].mxu0
      %5342 = vmatprep.mubr.f32.mxu0 0.0
      %5343 = vmatmul.mubr.f32.gmra.mrb[0].mxu0 %v5189
      %v5344 = vpop.f32.mrb[0].mxu0
      %v5345 = vadd.f32 0.0, %v5344
      %v5346 = vpop.f32.mrb[0].mxu0
      %5347 = vmatprep.mubr.f32.mxu0 0.0
      %5348 = vmatmul.mubr.f32.gmra.mrb[0].mxu0 %v5190
      %v5349 = vpop.f32.mrb[0].mxu0
      %v5350 = vadd.f32 0.0, %v5349
      %v5351 = vpop.f32.mrb[0].mxu0
      %5352 = vmatprep.mubr.f32.mxu0 0.0
      %5353 = vmatmul.mubr.f32.gmra.mrb[0].mxu0 %v5191
      %v5354 = vpop.f32.mrb[0].mxu0
      %v5355 = vadd.f32 0.0, %v5354
      %v5356 = vpop.f32.mrb[0].mxu0
      %5357 = vmatprep.mubr.f32.mxu0 0.0
      %5358 = vmatmul.mubr.f32.gmra.mrb[0].mxu0 %v5192
      %v5359 = vpop.f32.mrb[0].mxu0
      %v5360 = vadd.f32 0.0, %v5359
      %v5361 = vpop.f32.mrb[0].mxu0
      %5362 = vmatprep.mubr.f32.mxu0 0.0
      %5363 = vmatmul.mubr.f32.gmra.mrb[0].mxu0 %v5193
      %v5364 = vpop.f32.mrb[0].mxu0
      %v5365 = vadd.f32 0.0, %v5364
      %v5366 = vpop.f32.mrb[0].mxu0
      %5367 = vmatprep.mubr.f32.mxu0 0.0
      %5368 = vmatmul.mubr.f32.gmra.mrb[0].mxu0 %v5194
      %v5369 = vpop.f32.mrb[0].mxu0
      %v5370 = vadd.f32 0.0, %v5369
      %v5371 = vpop.f32.mrb[0].mxu0
      %5372 = vmatprep.mubr.f32.mxu0 0.0
      %5373 = vmatmul.mubr.f32.gmra.mrb[0].mxu0 %v5195
      %v5374 = vpop.f32.mrb[0].mxu0
      %v5375 = vadd.f32 0.0, %v5374
      %v5376 = vpop.f32.mrb[0].mxu0
      %5377 = vmatprep.mubr.f32.mxu0 0.0
      %5378 = vmatmul.mubr.f32.gmra.mrb[0].mxu0 %v5196
      %v5379 = vpop.f32.mrb[0].mxu0
      %v5380 = vadd.f32 0.0, %v5379
      %v5381 = vpop.f32.mrb[0].mxu0
      %5382 = vmatprep.mubr.f32.mxu0 0.0
      %5383 = vmatmul.mubr.f32.gmra.mrb[0].mxu0 %v5197
      %v5384 = vpop.f32.mrb[0].mxu0
      %v5385 = vadd.f32 0.0, %v5384
      %v5386 = vpop.f32.mrb[0].mxu0
      %5387 = vmatprep.mubr.f32.mxu0 0.0
      %5388 = vmatmul.mubr.f32.gmra.mrb[0].mxu0 %v5198
      %v5389 = vpop.f32.mrb[0].mxu0
      %v5390 = vadd.f32 0.0, %v5389
      %v5391 = vpop.f32.mrb[0].mxu0
      %5392 = vmatprep.mubr.f32.mxu0 0.0
      %5393 = vmatmul.mubr.f32.gmra.mrb[0].mxu0 %v5199
      %v5394 = vpop.f32.mrb[0].mxu0
      %v5395 = vadd.f32 0.0, %v5394
      %v5396 = vpop.f32.mrb[0].mxu0
      %5397 = vmatprep.mubr.f32.mxu0 0.0
      %5398 = vmatmul.mubr.f32.gmra.mrb[0].mxu0 %v5200
      %v5399 = vpop.f32.mrb[0].mxu0
      %v5400 = vadd.f32 0.0, %v5399
      %v5401 = vpop.f32.mrb[0].mxu0
      %5402 = vmatprep.mubr.f32.mxu0 0.0
      %5403 = vmatmul.mubr.f32.gmra.mrb[0].mxu0 %v5201
      %v5404 = vpop.f32.mrb[0].mxu0
      %v5405 = vadd.f32 0.0, %v5404
      %v5406 = vpop.f32.mrb[0].mxu0
      %5407 = vmatprep.mubr.f32.mxu0 0.0
      %5408 = vmatmul.mubr.f32.gmra.mrb[0].mxu0 %v5202
      %v5409 = vpop.f32.mrb[0].mxu0
      %v5410 = vadd.f32 0.0, %v5409
      %v5411 = vpop.f32.mrb[0].mxu0
      %5412 = vmatprep.mubr.f32.mxu0 0.0
      %5413 = vmatmul.mubr.f32.gmra.mrb[0].mxu0 %v5203
      %v5414 = vpop.f32.mrb[0].mxu0
      %v5415 = vadd.f32 0.0, %v5414
      %v5416 = vpop.f32.mrb[0].mxu0
      %5417 = vmatprep.mubr.f32.mxu0 0.0
      %5418 = vmatmul.mubr.f32.gmra.mrb[0].mxu0 %v5204
      %v5419 = vpop.f32.mrb[0].mxu0
      %v5420 = vadd.f32 0.0, %v5419
      %v5421 = vpop.f32.mrb[0].mxu0
      %5422 = vmatprep.mubr.f32.mxu0 0.0
      %5423 = vmatmul.mubr.f32.gmra.mrb[0].mxu0 %v5205
      %v5424 = vpop.f32.mrb[0].mxu0
      %v5425 = vadd.f32 0.0, %v5424
      %v5426 = vpop.f32.mrb[0].mxu0
      %5427 = vmatprep.mubr.f32.mxu0 0.0
      %5428 = vmatmul.mubr.f32.gmra.mrb[0].mxu0 %v5206
      %v5429 = vpop.f32.mrb[0].mxu0
      %v5430 = vadd.f32 0.0, %v5429
      %v5431 = vpop.f32.mrb[0].mxu0
      %5432 = vmatprep.mubr.f32.mxu0 0.0
      %5433 = vmatmul.mubr.f32.gmra.mrb[0].mxu0 %v5207
      %v5434 = vpop.f32.mrb[0].mxu0
      %v5435 = vadd.f32 0.0, %v5434
      %v5436 = vpop.f32.mrb[0].mxu0
      %5437 = vmatprep.mubr.f32.mxu0 0.0
      %5438 = vmatmul.mubr.f32.gmra.mrb[0].mxu0 %v5208
      %v5439 = vpop.f32.mrb[0].mxu0
      %v5440 = vadd.f32 0.0, %v5439
      %v5441 = vpop.f32.mrb[0].mxu0
      %5442 = vmatprep.mubr.f32.mxu0 0.0
      %5443 = vmatmul.mubr.f32.gmra.mrb[0].mxu0 %v5209
      %v5444 = vpop.f32.mrb[0].mxu0
      %v5445 = vadd.f32 0.0, %v5444
      %v5446 = vpop.f32.mrb[0].mxu0
      %5447 = vmatprep.mubr.f32.mxu0 0.0
      %5448 = vmatmul.mubr.f32.gmra.mrb[0].mxu0 %v5210
      %v5449 = vpop.f32.mrb[0].mxu0
      %v5450 = vadd.f32 0.0, %v5449
      %v5451 = vpop.f32.mrb[0].mxu0
      %5452 = vmatprep.mubr.f32.mxu0 0.0
      %5453 = vmatmul.mubr.f32.gmra.mrb[0].mxu0 %v5211
      %v5454 = vpop.f32.mrb[0].mxu0
      %v5455 = vadd.f32 0.0, %v5454
      %v5456 = vpop.f32.mrb[0].mxu0
      %5457 = vmatprep.mubr.f32.mxu0 0.0
      %5458 = vmatmul.mubr.f32.gmra.mrb[0].mxu0 %v5212
      %v5459 = vpop.f32.mrb[0].mxu0
      %v5460 = vadd.f32 0.0, %v5459
      %v5461 = vpop.f32.mrb[0].mxu0
      %5462 = vmatprep.mubr.f32.mxu0 0.0
      %5463 = vmatmul.mubr.f32.gmra.mrb[0].mxu0 %v5213
      %v5464 = vpop.f32.mrb[0].mxu0
      %v5465 = vadd.f32 0.0, %v5464
      %v5466 = vpop.f32.mrb[0].mxu0
      %5467 = vmatprep.mubr.f32.mxu0 0.0
      %5468 = vmatmul.mubr.f32.gmra.mrb[0].mxu0 %v5214
      %v5469 = vpop.f32.mrb[0].mxu0
      %v5470 = vadd.f32 0.0, %v5469
      %v5471 = vpop.f32.mrb[0].mxu0
      %5472 = vmatprep.mubr.f32.mxu0 0.0
      %5473 = vmatmul.mubr.f32.gmra.mrb[0].mxu0 %v5215
      %v5474 = vpop.f32.mrb[0].mxu0
      %v5475 = vadd.f32 0.0, %v5474
      %v5476 = vpop.f32.mrb[0].mxu0
      %5477 = vdwg.mxu0
      %v5478 = vadd.f32 %v5144, %v5300
      %v5479 = vadd.f32 %v5145, %v5305
      %v5480 = vadd.f32 %v5146, %v5310
      %v5481 = vadd.f32 %v5147, %v5315
      %v5482 = vadd.f32 %v5148, %v5320
      %v5483 = vadd.f32 %v5149, %v5325
      %v5484 = vadd.f32 %v5150, %v5330
      %v5485 = vadd.f32 %v5151, %v5335
      %v5486 = vadd.f32 %v5152, %v5340
      %v5487 = vadd.f32 %v5153, %v5345
      %v5488 = vadd.f32 %v5154, %v5350
      %v5489 = vadd.f32 %v5155, %v5355
      %v5490 = vadd.f32 %v5156, %v5360
      %v5491 = vadd.f32 %v5157, %v5365
      %v5492 = vadd.f32 %v5158, %v5370
      %v5493 = vadd.f32 %v5159, %v5375
      %v5494 = vadd.f32 %v5160, %v5380
      %v5495 = vadd.f32 %v5161, %v5385
      %v5496 = vadd.f32 %v5162, %v5390
      %v5497 = vadd.f32 %v5163, %v5395
      %v5498 = vadd.f32 %v5164, %v5400
      %v5499 = vadd.f32 %v5165, %v5405
      %v5500 = vadd.f32 %v5166, %v5410
      %v5501 = vadd.f32 %v5167, %v5415
      %v5502 = vadd.f32 %v5168, %v5420
      %v5503 = vadd.f32 %v5169, %v5425
      %v5504 = vadd.f32 %v5170, %v5430
      %v5505 = vadd.f32 %v5171, %v5435
      %v5506 = vadd.f32 %v5172, %v5440
      %v5507 = vadd.f32 %v5173, %v5445
      %v5508 = vadd.f32 %v5174, %v5450
      %v5509 = vadd.f32 %v5175, %v5455
      %v5510 = vadd.f32 %v5176, %v5460
      %v5511 = vadd.f32 %v5177, %v5465
      %v5512 = vadd.f32 %v5178, %v5470
      %v5513 = vadd.f32 %v5179, %v5475
      %v5514 = vld [vmem:[#allocation3 + $0x13] sm:$0xff]
      %v5515 = vld [vmem:[#allocation3 + $0x1b] sm:$0xff]
      %v5516 = vld [vmem:[#allocation3 + $0x23] sm:$0xff]
      %v5517 = vld [vmem:[#allocation3 + $0x2b] sm:$0xff]
      %v5518 = vld [vmem:[#allocation3 + $0x33] sm:$0xff]
      %v5519 = vld [vmem:[#allocation3 + $0x3b] sm:$0xff]
      %v5520 = vld [vmem:[#allocation3 + $0x43] sm:$0xff]
      %v5521 = vld [vmem:[#allocation3 + $0x4b] sm:$0xff]
      %v5522 = vld [vmem:[#allocation3 + $0x53] sm:$0xff]
      %v5523 = vld [vmem:[#allocation3 + $0x5b] sm:$0xff]
      %v5524 = vld [vmem:[#allocation3 + $0x63] sm:$0xff]
      %v5525 = vld [vmem:[#allocation3 + $0x6b] sm:$0xff]
      %v5526 = vld [vmem:[#allocation3 + $0x73] sm:$0xff]
      %v5527 = vld [vmem:[#allocation3 + $0x7b] sm:$0xff]
      %v5528 = vld [vmem:[#allocation3 + $0x83] sm:$0xff]
      %v5529 = vld [vmem:[#allocation3 + $0x8b] sm:$0xff]
      %v5530 = vld [vmem:[#allocation3 + $0x93] sm:$0xff]
      %v5531 = vld [vmem:[#allocation3 + $0x9b] sm:$0xff]
      %v5532 = vld [vmem:[#allocation3 + $0xa3] sm:$0xff]
      %v5533 = vld [vmem:[#allocation3 + $0xab] sm:$0xff]
      %v5534 = vld [vmem:[#allocation3 + $0xb3] sm:$0xff]
      %v5535 = vld [vmem:[#allocation3 + $0xbb] sm:$0xff]
      %v5536 = vld [vmem:[#allocation3 + $0xc3] sm:$0xff]
      %v5537 = vld [vmem:[#allocation3 + $0xcb] sm:$0xff]
      %v5538 = vld [vmem:[#allocation3 + $0xd3] sm:$0xff]
      %v5539 = vld [vmem:[#allocation3 + $0xdb] sm:$0xff]
      %v5540 = vld [vmem:[#allocation3 + $0xe3] sm:$0xff]
      %v5541 = vld [vmem:[#allocation3 + $0xeb] sm:$0xff]
      %v5542 = vld [vmem:[#allocation3 + $0xf3] sm:$0xff]
      %v5543 = vld [vmem:[#allocation3 + $0xfb] sm:$0xff]
      %v5544 = vld [vmem:[#allocation3 + $0x103] sm:$0xff]
      %v5545 = vld [vmem:[#allocation3 + $0x10b] sm:$0xff]
      %v5546 = vld [vmem:[#allocation3 + $0x113] sm:$0xff]
      %v5547 = vld [vmem:[#allocation3 + $0x11b] sm:$0xff]
      %v5548 = vld [vmem:[#allocation3 + $0x123] sm:$0xff]
      %v5549 = vld [vmem:[#allocation3 + $0x12b] sm:$0xff]
      %s5550 = scalar_lea.vmem %s7, 512
      %v5551 = vld [vmem:[%s5550] sm:$0xff]
      %v5552 = vld [vmem:[%s5550 + $0x8] sm:$0xff]
      %v5553 = vld [vmem:[%s5550 + $0x10] sm:$0xff]
      %v5554 = vld [vmem:[%s5550 + $0x18] sm:$0xff]
      %v5555 = vld [vmem:[%s5550 + $0x20] sm:$0xff]
      %v5556 = vld [vmem:[%s5550 + $0x28] sm:$0xff]
      %v5557 = vld [vmem:[%s5550 + $0x30] sm:$0xff]
      %v5558 = vld [vmem:[%s5550 + $0x38] sm:$0xff]
      %v5559 = vld [vmem:[%s5550 + $0x40] sm:$0xff]
      %v5560 = vld [vmem:[%s5550 + $0x48] sm:$0xff]
      %v5561 = vld [vmem:[%s5550 + $0x50] sm:$0xff]
      %v5562 = vld [vmem:[%s5550 + $0x58] sm:$0xff]
      %v5563 = vld [vmem:[%s5550 + $0x60] sm:$0xff]
      %v5564 = vld [vmem:[%s5550 + $0x68] sm:$0xff]
      %v5565 = vld [vmem:[%s5550 + $0x70] sm:$0xff]
      %v5566 = vld [vmem:[%s5550 + $0x78] sm:$0xff]
      %5567 = vmatprep.subr.mxu0 0.0
      %5568 = vmatpush1.msra.mxu0 %v5551
      %5569 = vmatprep.subr.mxu0 0.0
      %5570 = vmatpush1.msra.mxu0 %v5552
      %5571 = vmatprep.subr.mxu0 0.0
      %5572 = vmatpush1.msra.mxu0 %v5553
      %5573 = vmatprep.subr.mxu0 0.0
      %5574 = vmatpush1.msra.mxu0 %v5554
      %5575 = vmatprep.subr.mxu0 0.0
      %5576 = vmatpush1.msra.mxu0 %v5555
      %5577 = vmatprep.subr.mxu0 0.0
      %5578 = vmatpush1.msra.mxu0 %v5556
      %5579 = vmatprep.subr.mxu0 0.0
      %5580 = vmatpush1.msra.mxu0 %v5557
      %5581 = vmatprep.subr.mxu0 0.0
      %5582 = vmatpush1.msra.mxu0 %v5558
      %5583 = vmatprep.subr.mxu0 0.0
      %5584 = vmatpush1.msra.mxu0 %v5559
      %5585 = vmatprep.subr.mxu0 0.0
      %5586 = vmatpush1.msra.mxu0 %v5560
      %5587 = vmatprep.subr.mxu0 0.0
      %5588 = vmatpush1.msra.mxu0 %v5561
      %5589 = vmatprep.subr.mxu0 0.0
      %5590 = vmatpush1.msra.mxu0 %v5562
      %5591 = vmatprep.subr.mxu0 0.0
      %5592 = vmatpush1.msra.mxu0 %v5563
      %5593 = vmatprep.subr.mxu0 0.0
      %5594 = vmatpush1.msra.mxu0 %v5564
      %5595 = vmatprep.subr.mxu0 0.0
      %5596 = vmatpush1.msra.mxu0 %v5565
      %5597 = vmatprep.subr.mxu0 0.0
      %5598 = vmatpush1.msra.mxu0 %v5566
      %5599 = vmatprep.subr.mxu0 0.0
      %5600 = vmatpush1.msra.mxu0 0.0
      %5601 = vmatprep.subr.mxu0 0.0
      %5602 = vmatpush1.msra.mxu0 0.0
      %5603 = vmatprep.subr.mxu0 0.0
      %5604 = vmatpush1.msra.mxu0 0.0
      %5605 = vmatprep.subr.mxu0 0.0
      %5606 = vmatpush1.msra.mxu0 0.0
      %5607 = vmatprep.subr.mxu0 0.0
      %5608 = vmatpush1.msra.mxu0 0.0
      %5609 = vmatprep.subr.mxu0 0.0
      %5610 = vmatpush1.msra.mxu0 0.0
      %5611 = vmatprep.subr.mxu0 0.0
      %5612 = vmatpush1.msra.mxu0 0.0
      %5613 = vmatprep.subr.mxu0 0.0
      %5614 = vmatpush1.msra.mxu0 0.0
      %5615 = vmatprep.subr.mxu0 0.0
      %5616 = vmatpush1.msra.mxu0 0.0
      %5617 = vmatprep.subr.mxu0 0.0
      %5618 = vmatpush1.msra.mxu0 0.0
      %5619 = vmatprep.subr.mxu0 0.0
      %5620 = vmatpush1.msra.mxu0 0.0
      %5621 = vmatprep.subr.mxu0 0.0
      %5622 = vmatpush1.msra.mxu0 0.0
      %5623 = vmatprep.subr.mxu0 0.0
      %5624 = vmatpush1.msra.mxu0 0.0
      %5625 = vmatprep.subr.mxu0 0.0
      %5626 = vmatpush1.msra.mxu0 0.0
      %5627 = vmatprep.subr.mxu0 0.0
      %5628 = vmatpush1.msra.mxu0 0.0
      %5629 = vmatprep.subr.mxu0 0.0
      %5630 = vmatpush1.msra.mxu0 0.0
      %5631 = vmatprep.mubr.f32.mxu0 0.0
      %5632 = vmatmul.mubr.f32.gmra.mrb[0].mxu0 %v5514
      %v5633 = vpop.f32.mrb[0].mxu0
      %v5634 = vadd.f32 0.0, %v5633
      %v5635 = vpop.f32.mrb[0].mxu0
      %5636 = vmatprep.mubr.f32.mxu0 0.0
      %5637 = vmatmul.mubr.f32.gmra.mrb[0].mxu0 %v5515
      %v5638 = vpop.f32.mrb[0].mxu0
      %v5639 = vadd.f32 0.0, %v5638
      %v5640 = vpop.f32.mrb[0].mxu0
      %5641 = vmatprep.mubr.f32.mxu0 0.0
      %5642 = vmatmul.mubr.f32.gmra.mrb[0].mxu0 %v5516
      %v5643 = vpop.f32.mrb[0].mxu0
      %v5644 = vadd.f32 0.0, %v5643
      %v5645 = vpop.f32.mrb[0].mxu0
      %5646 = vmatprep.mubr.f32.mxu0 0.0
      %5647 = vmatmul.mubr.f32.gmra.mrb[0].mxu0 %v5517
      %v5648 = vpop.f32.mrb[0].mxu0
      %v5649 = vadd.f32 0.0, %v5648
      %v5650 = vpop.f32.mrb[0].mxu0
      %5651 = vmatprep.mubr.f32.mxu0 0.0
      %5652 = vmatmul.mubr.f32.gmra.mrb[0].mxu0 %v5518
      %v5653 = vpop.f32.mrb[0].mxu0
      %v5654 = vadd.f32 0.0, %v5653
      %v5655 = vpop.f32.mrb[0].mxu0
      %5656 = vmatprep.mubr.f32.mxu0 0.0
      %5657 = vmatmul.mubr.f32.gmra.mrb[0].mxu0 %v5519
      %v5658 = vpop.f32.mrb[0].mxu0
      %v5659 = vadd.f32 0.0, %v5658
      %v5660 = vpop.f32.mrb[0].mxu0
      %5661 = vmatprep.mubr.f32.mxu0 0.0
      %5662 = vmatmul.mubr.f32.gmra.mrb[0].mxu0 %v5520
      %v5663 = vpop.f32.mrb[0].mxu0
      %v5664 = vadd.f32 0.0, %v5663
      %v5665 = vpop.f32.mrb[0].mxu0
      %5666 = vmatprep.mubr.f32.mxu0 0.0
      %5667 = vmatmul.mubr.f32.gmra.mrb[0].mxu0 %v5521
      %v5668 = vpop.f32.mrb[0].mxu0
      %v5669 = vadd.f32 0.0, %v5668
      %v5670 = vpop.f32.mrb[0].mxu0
      %5671 = vmatprep.mubr.f32.mxu0 0.0
      %5672 = vmatmul.mubr.f32.gmra.mrb[0].mxu0 %v5522
      %v5673 = vpop.f32.mrb[0].mxu0
      %v5674 = vadd.f32 0.0, %v5673
      %v5675 = vpop.f32.mrb[0].mxu0
      %5676 = vmatprep.mubr.f32.mxu0 0.0
      %5677 = vmatmul.mubr.f32.gmra.mrb[0].mxu0 %v5523
      %v5678 = vpop.f32.mrb[0].mxu0
      %v5679 = vadd.f32 0.0, %v5678
      %v5680 = vpop.f32.mrb[0].mxu0
      %5681 = vmatprep.mubr.f32.mxu0 0.0
      %5682 = vmatmul.mubr.f32.gmra.mrb[0].mxu0 %v5524
      %v5683 = vpop.f32.mrb[0].mxu0
      %v5684 = vadd.f32 0.0, %v5683
      %v5685 = vpop.f32.mrb[0].mxu0
      %5686 = vmatprep.mubr.f32.mxu0 0.0
      %5687 = vmatmul.mubr.f32.gmra.mrb[0].mxu0 %v5525
      %v5688 = vpop.f32.mrb[0].mxu0
      %v5689 = vadd.f32 0.0, %v5688
      %v5690 = vpop.f32.mrb[0].mxu0
      %5691 = vmatprep.mubr.f32.mxu0 0.0
      %5692 = vmatmul.mubr.f32.gmra.mrb[0].mxu0 %v5526
      %v5693 = vpop.f32.mrb[0].mxu0
      %v5694 = vadd.f32 0.0, %v5693
      %v5695 = vpop.f32.mrb[0].mxu0
      %5696 = vmatprep.mubr.f32.mxu0 0.0
      %5697 = vmatmul.mubr.f32.gmra.mrb[0].mxu0 %v5527
      %v5698 = vpop.f32.mrb[0].mxu0
      %v5699 = vadd.f32 0.0, %v5698
      %v5700 = vpop.f32.mrb[0].mxu0
      %5701 = vmatprep.mubr.f32.mxu0 0.0
      %5702 = vmatmul.mubr.f32.gmra.mrb[0].mxu0 %v5528
      %v5703 = vpop.f32.mrb[0].mxu0
      %v5704 = vadd.f32 0.0, %v5703
      %v5705 = vpop.f32.mrb[0].mxu0
      %5706 = vmatprep.mubr.f32.mxu0 0.0
      %5707 = vmatmul.mubr.f32.gmra.mrb[0].mxu0 %v5529
      %v5708 = vpop.f32.mrb[0].mxu0
      %v5709 = vadd.f32 0.0, %v5708
      %v5710 = vpop.f32.mrb[0].mxu0
      %5711 = vmatprep.mubr.f32.mxu0 0.0
      %5712 = vmatmul.mubr.f32.gmra.mrb[0].mxu0 %v5530
      %v5713 = vpop.f32.mrb[0].mxu0
      %v5714 = vadd.f32 0.0, %v5713
      %v5715 = vpop.f32.mrb[0].mxu0
      %5716 = vmatprep.mubr.f32.mxu0 0.0
      %5717 = vmatmul.mubr.f32.gmra.mrb[0].mxu0 %v5531
      %v5718 = vpop.f32.mrb[0].mxu0
      %v5719 = vadd.f32 0.0, %v5718
      %v5720 = vpop.f32.mrb[0].mxu0
      %5721 = vmatprep.mubr.f32.mxu0 0.0
      %5722 = vmatmul.mubr.f32.gmra.mrb[0].mxu0 %v5532
      %v5723 = vpop.f32.mrb[0].mxu0
      %v5724 = vadd.f32 0.0, %v5723
      %v5725 = vpop.f32.mrb[0].mxu0
      %5726 = vmatprep.mubr.f32.mxu0 0.0
      %5727 = vmatmul.mubr.f32.gmra.mrb[0].mxu0 %v5533
      %v5728 = vpop.f32.mrb[0].mxu0
      %v5729 = vadd.f32 0.0, %v5728
      %v5730 = vpop.f32.mrb[0].mxu0
      %5731 = vmatprep.mubr.f32.mxu0 0.0
      %5732 = vmatmul.mubr.f32.gmra.mrb[0].mxu0 %v5534
      %v5733 = vpop.f32.mrb[0].mxu0
      %v5734 = vadd.f32 0.0, %v5733
      %v5735 = vpop.f32.mrb[0].mxu0
      %5736 = vmatprep.mubr.f32.mxu0 0.0
      %5737 = vmatmul.mubr.f32.gmra.mrb[0].mxu0 %v5535
      %v5738 = vpop.f32.mrb[0].mxu0
      %v5739 = vadd.f32 0.0, %v5738
      %v5740 = vpop.f32.mrb[0].mxu0
      %5741 = vmatprep.mubr.f32.mxu0 0.0
      %5742 = vmatmul.mubr.f32.gmra.mrb[0].mxu0 %v5536
      %v5743 = vpop.f32.mrb[0].mxu0
      %v5744 = vadd.f32 0.0, %v5743
      %v5745 = vpop.f32.mrb[0].mxu0
      %5746 = vmatprep.mubr.f32.mxu0 0.0
      %5747 = vmatmul.mubr.f32.gmra.mrb[0].mxu0 %v5537
      %v5748 = vpop.f32.mrb[0].mxu0
      %v5749 = vadd.f32 0.0, %v5748
      %v5750 = vpop.f32.mrb[0].mxu0
      %5751 = vmatprep.mubr.f32.mxu0 0.0
      %5752 = vmatmul.mubr.f32.gmra.mrb[0].mxu0 %v5538
      %v5753 = vpop.f32.mrb[0].mxu0
      %v5754 = vadd.f32 0.0, %v5753
      %v5755 = vpop.f32.mrb[0].mxu0
      %5756 = vmatprep.mubr.f32.mxu0 0.0
      %5757 = vmatmul.mubr.f32.gmra.mrb[0].mxu0 %v5539
      %v5758 = vpop.f32.mrb[0].mxu0
      %v5759 = vadd.f32 0.0, %v5758
      %v5760 = vpop.f32.mrb[0].mxu0
      %5761 = vmatprep.mubr.f32.mxu0 0.0
      %5762 = vmatmul.mubr.f32.gmra.mrb[0].mxu0 %v5540
      %v5763 = vpop.f32.mrb[0].mxu0
      %v5764 = vadd.f32 0.0, %v5763
      %v5765 = vpop.f32.mrb[0].mxu0
      %5766 = vmatprep.mubr.f32.mxu0 0.0
      %5767 = vmatmul.mubr.f32.gmra.mrb[0].mxu0 %v5541
      %v5768 = vpop.f32.mrb[0].mxu0
      %v5769 = vadd.f32 0.0, %v5768
      %v5770 = vpop.f32.mrb[0].mxu0
      %5771 = vmatprep.mubr.f32.mxu0 0.0
      %5772 = vmatmul.mubr.f32.gmra.mrb[0].mxu0 %v5542
      %v5773 = vpop.f32.mrb[0].mxu0
      %v5774 = vadd.f32 0.0, %v5773
      %v5775 = vpop.f32.mrb[0].mxu0
      %5776 = vmatprep.mubr.f32.mxu0 0.0
      %5777 = vmatmul.mubr.f32.gmra.mrb[0].mxu0 %v5543
      %v5778 = vpop.f32.mrb[0].mxu0
      %v5779 = vadd.f32 0.0, %v5778
      %v5780 = vpop.f32.mrb[0].mxu0
      %5781 = vmatprep.mubr.f32.mxu0 0.0
      %5782 = vmatmul.mubr.f32.gmra.mrb[0].mxu0 %v5544
      %v5783 = vpop.f32.mrb[0].mxu0
      %v5784 = vadd.f32 0.0, %v5783
      %v5785 = vpop.f32.mrb[0].mxu0
      %5786 = vmatprep.mubr.f32.mxu0 0.0
      %5787 = vmatmul.mubr.f32.gmra.mrb[0].mxu0 %v5545
      %v5788 = vpop.f32.mrb[0].mxu0
      %v5789 = vadd.f32 0.0, %v5788
      %v5790 = vpop.f32.mrb[0].mxu0
      %5791 = vmatprep.mubr.f32.mxu0 0.0
      %5792 = vmatmul.mubr.f32.gmra.mrb[0].mxu0 %v5546
      %v5793 = vpop.f32.mrb[0].mxu0
      %v5794 = vadd.f32 0.0, %v5793
      %v5795 = vpop.f32.mrb[0].mxu0
      %5796 = vmatprep.mubr.f32.mxu0 0.0
      %5797 = vmatmul.mubr.f32.gmra.mrb[0].mxu0 %v5547
      %v5798 = vpop.f32.mrb[0].mxu0
      %v5799 = vadd.f32 0.0, %v5798
      %v5800 = vpop.f32.mrb[0].mxu0
      %5801 = vmatprep.mubr.f32.mxu0 0.0
      %5802 = vmatmul.mubr.f32.gmra.mrb[0].mxu0 %v5548
      %v5803 = vpop.f32.mrb[0].mxu0
      %v5804 = vadd.f32 0.0, %v5803
      %v5805 = vpop.f32.mrb[0].mxu0
      %5806 = vmatprep.mubr.f32.mxu0 0.0
      %5807 = vmatmul.mubr.f32.gmra.mrb[0].mxu0 %v5549
      %v5808 = vpop.f32.mrb[0].mxu0
      %v5809 = vadd.f32 0.0, %v5808
      %v5810 = vpop.f32.mrb[0].mxu0
      %5811 = vdwg.mxu0
      %v5812 = vadd.f32 %v5478, %v5634
      %v5813 = vadd.f32 %v5479, %v5639
      %v5814 = vadd.f32 %v5480, %v5644
      %v5815 = vadd.f32 %v5481, %v5649
      %v5816 = vadd.f32 %v5482, %v5654
      %v5817 = vadd.f32 %v5483, %v5659
      %v5818 = vadd.f32 %v5484, %v5664
      %v5819 = vadd.f32 %v5485, %v5669
      %v5820 = vadd.f32 %v5486, %v5674
      %v5821 = vadd.f32 %v5487, %v5679
      %v5822 = vadd.f32 %v5488, %v5684
      %v5823 = vadd.f32 %v5489, %v5689
      %v5824 = vadd.f32 %v5490, %v5694
      %v5825 = vadd.f32 %v5491, %v5699
      %v5826 = vadd.f32 %v5492, %v5704
      %v5827 = vadd.f32 %v5493, %v5709
      %v5828 = vadd.f32 %v5494, %v5714
      %v5829 = vadd.f32 %v5495, %v5719
      %v5830 = vadd.f32 %v5496, %v5724
      %v5831 = vadd.f32 %v5497, %v5729
      %v5832 = vadd.f32 %v5498, %v5734
      %v5833 = vadd.f32 %v5499, %v5739
      %v5834 = vadd.f32 %v5500, %v5744
      %v5835 = vadd.f32 %v5501, %v5749
      %v5836 = vadd.f32 %v5502, %v5754
      %v5837 = vadd.f32 %v5503, %v5759
      %v5838 = vadd.f32 %v5504, %v5764
      %v5839 = vadd.f32 %v5505, %v5769
      %v5840 = vadd.f32 %v5506, %v5774
      %v5841 = vadd.f32 %v5507, %v5779
      %v5842 = vadd.f32 %v5508, %v5784
      %v5843 = vadd.f32 %v5509, %v5789
      %v5844 = vadd.f32 %v5510, %v5794
      %v5845 = vadd.f32 %v5511, %v5799
      %v5846 = vadd.f32 %v5512, %v5804
      %v5847 = vadd.f32 %v5513, %v5809
      %v5848 = vld [vmem:[#allocation3 + $0x14] sm:$0xff]
      %v5849 = vld [vmem:[#allocation3 + $0x1c] sm:$0xff]
      %v5850 = vld [vmem:[#allocation3 + $0x24] sm:$0xff]
      %v5851 = vld [vmem:[#allocation3 + $0x2c] sm:$0xff]
      %v5852 = vld [vmem:[#allocation3 + $0x34] sm:$0xff]
      %v5853 = vld [vmem:[#allocation3 + $0x3c] sm:$0xff]
      %v5854 = vld [vmem:[#allocation3 + $0x44] sm:$0xff]
      %v5855 = vld [vmem:[#allocation3 + $0x4c] sm:$0xff]
      %v5856 = vld [vmem:[#allocation3 + $0x54] sm:$0xff]
      %v5857 = vld [vmem:[#allocation3 + $0x5c] sm:$0xff]
      %v5858 = vld [vmem:[#allocation3 + $0x64] sm:$0xff]
      %v5859 = vld [vmem:[#allocation3 + $0x6c] sm:$0xff]
      %v5860 = vld [vmem:[#allocation3 + $0x74] sm:$0xff]
      %v5861 = vld [vmem:[#allocation3 + $0x7c] sm:$0xff]
      %v5862 = vld [vmem:[#allocation3 + $0x84] sm:$0xff]
      %v5863 = vld [vmem:[#allocation3 + $0x8c] sm:$0xff]
      %v5864 = vld [vmem:[#allocation3 + $0x94] sm:$0xff]
      %v5865 = vld [vmem:[#allocation3 + $0x9c] sm:$0xff]
      %v5866 = vld [vmem:[#allocation3 + $0xa4] sm:$0xff]
      %v5867 = vld [vmem:[#allocation3 + $0xac] sm:$0xff]
      %v5868 = vld [vmem:[#allocation3 + $0xb4] sm:$0xff]
      %v5869 = vld [vmem:[#allocation3 + $0xbc] sm:$0xff]
      %v5870 = vld [vmem:[#allocation3 + $0xc4] sm:$0xff]
      %v5871 = vld [vmem:[#allocation3 + $0xcc] sm:$0xff]
      %v5872 = vld [vmem:[#allocation3 + $0xd4] sm:$0xff]
      %v5873 = vld [vmem:[#allocation3 + $0xdc] sm:$0xff]
      %v5874 = vld [vmem:[#allocation3 + $0xe4] sm:$0xff]
      %v5875 = vld [vmem:[#allocation3 + $0xec] sm:$0xff]
      %v5876 = vld [vmem:[#allocation3 + $0xf4] sm:$0xff]
      %v5877 = vld [vmem:[#allocation3 + $0xfc] sm:$0xff]
      %v5878 = vld [vmem:[#allocation3 + $0x104] sm:$0xff]
      %v5879 = vld [vmem:[#allocation3 + $0x10c] sm:$0xff]
      %v5880 = vld [vmem:[#allocation3 + $0x114] sm:$0xff]
      %v5881 = vld [vmem:[#allocation3 + $0x11c] sm:$0xff]
      %v5882 = vld [vmem:[#allocation3 + $0x124] sm:$0xff]
      %v5883 = vld [vmem:[#allocation3 + $0x12c] sm:$0xff]
      %s5884 = scalar_lea.vmem %s7, 640
      %v5885 = vld [vmem:[%s5884] sm:$0xff]
      %v5886 = vld [vmem:[%s5884 + $0x8] sm:$0xff]
      %v5887 = vld [vmem:[%s5884 + $0x10] sm:$0xff]
      %v5888 = vld [vmem:[%s5884 + $0x18] sm:$0xff]
      %v5889 = vld [vmem:[%s5884 + $0x20] sm:$0xff]
      %v5890 = vld [vmem:[%s5884 + $0x28] sm:$0xff]
      %v5891 = vld [vmem:[%s5884 + $0x30] sm:$0xff]
      %v5892 = vld [vmem:[%s5884 + $0x38] sm:$0xff]
      %v5893 = vld [vmem:[%s5884 + $0x40] sm:$0xff]
      %v5894 = vld [vmem:[%s5884 + $0x48] sm:$0xff]
      %v5895 = vld [vmem:[%s5884 + $0x50] sm:$0xff]
      %v5896 = vld [vmem:[%s5884 + $0x58] sm:$0xff]
      %v5897 = vld [vmem:[%s5884 + $0x60] sm:$0xff]
      %v5898 = vld [vmem:[%s5884 + $0x68] sm:$0xff]
      %v5899 = vld [vmem:[%s5884 + $0x70] sm:$0xff]
      %v5900 = vld [vmem:[%s5884 + $0x78] sm:$0xff]
      %5901 = vmatprep.subr.mxu0 0.0
      %5902 = vmatpush1.msra.mxu0 %v5885
      %5903 = vmatprep.subr.mxu0 0.0
      %5904 = vmatpush1.msra.mxu0 %v5886
      %5905 = vmatprep.subr.mxu0 0.0
      %5906 = vmatpush1.msra.mxu0 %v5887
      %5907 = vmatprep.subr.mxu0 0.0
      %5908 = vmatpush1.msra.mxu0 %v5888
      %5909 = vmatprep.subr.mxu0 0.0
      %5910 = vmatpush1.msra.mxu0 %v5889
      %5911 = vmatprep.subr.mxu0 0.0
      %5912 = vmatpush1.msra.mxu0 %v5890
      %5913 = vmatprep.subr.mxu0 0.0
      %5914 = vmatpush1.msra.mxu0 %v5891
      %5915 = vmatprep.subr.mxu0 0.0
      %5916 = vmatpush1.msra.mxu0 %v5892
      %5917 = vmatprep.subr.mxu0 0.0
      %5918 = vmatpush1.msra.mxu0 %v5893
      %5919 = vmatprep.subr.mxu0 0.0
      %5920 = vmatpush1.msra.mxu0 %v5894
      %5921 = vmatprep.subr.mxu0 0.0
      %5922 = vmatpush1.msra.mxu0 %v5895
      %5923 = vmatprep.subr.mxu0 0.0
      %5924 = vmatpush1.msra.mxu0 %v5896
      %5925 = vmatprep.subr.mxu0 0.0
      %5926 = vmatpush1.msra.mxu0 %v5897
      %5927 = vmatprep.subr.mxu0 0.0
      %5928 = vmatpush1.msra.mxu0 %v5898
      %5929 = vmatprep.subr.mxu0 0.0
      %5930 = vmatpush1.msra.mxu0 %v5899
      %5931 = vmatprep.subr.mxu0 0.0
      %5932 = vmatpush1.msra.mxu0 %v5900
      %5933 = vmatprep.subr.mxu0 0.0
      %5934 = vmatpush1.msra.mxu0 0.0
      %5935 = vmatprep.subr.mxu0 0.0
      %5936 = vmatpush1.msra.mxu0 0.0
      %5937 = vmatprep.subr.mxu0 0.0
      %5938 = vmatpush1.msra.mxu0 0.0
      %5939 = vmatprep.subr.mxu0 0.0
      %5940 = vmatpush1.msra.mxu0 0.0
      %5941 = vmatprep.subr.mxu0 0.0
      %5942 = vmatpush1.msra.mxu0 0.0
      %5943 = vmatprep.subr.mxu0 0.0
      %5944 = vmatpush1.msra.mxu0 0.0
      %5945 = vmatprep.subr.mxu0 0.0
      %5946 = vmatpush1.msra.mxu0 0.0
      %5947 = vmatprep.subr.mxu0 0.0
      %5948 = vmatpush1.msra.mxu0 0.0
      %5949 = vmatprep.subr.mxu0 0.0
      %5950 = vmatpush1.msra.mxu0 0.0
      %5951 = vmatprep.subr.mxu0 0.0
      %5952 = vmatpush1.msra.mxu0 0.0
      %5953 = vmatprep.subr.mxu0 0.0
      %5954 = vmatpush1.msra.mxu0 0.0
      %5955 = vmatprep.subr.mxu0 0.0
      %5956 = vmatpush1.msra.mxu0 0.0
      %5957 = vmatprep.subr.mxu0 0.0
      %5958 = vmatpush1.msra.mxu0 0.0
      %5959 = vmatprep.subr.mxu0 0.0
      %5960 = vmatpush1.msra.mxu0 0.0
      %5961 = vmatprep.subr.mxu0 0.0
      %5962 = vmatpush1.msra.mxu0 0.0
      %5963 = vmatprep.subr.mxu0 0.0
      %5964 = vmatpush1.msra.mxu0 0.0
      %5965 = vmatprep.mubr.f32.mxu0 0.0
      %5966 = vmatmul.mubr.f32.gmra.mrb[0].mxu0 %v5848
      %v5967 = vpop.f32.mrb[0].mxu0
      %v5968 = vadd.f32 0.0, %v5967
      %v5969 = vpop.f32.mrb[0].mxu0
      %5970 = vmatprep.mubr.f32.mxu0 0.0
      %5971 = vmatmul.mubr.f32.gmra.mrb[0].mxu0 %v5849
      %v5972 = vpop.f32.mrb[0].mxu0
      %v5973 = vadd.f32 0.0, %v5972
      %v5974 = vpop.f32.mrb[0].mxu0
      %5975 = vmatprep.mubr.f32.mxu0 0.0
      %5976 = vmatmul.mubr.f32.gmra.mrb[0].mxu0 %v5850
      %v5977 = vpop.f32.mrb[0].mxu0
      %v5978 = vadd.f32 0.0, %v5977
      %v5979 = vpop.f32.mrb[0].mxu0
      %5980 = vmatprep.mubr.f32.mxu0 0.0
      %5981 = vmatmul.mubr.f32.gmra.mrb[0].mxu0 %v5851
      %v5982 = vpop.f32.mrb[0].mxu0
      %v5983 = vadd.f32 0.0, %v5982
      %v5984 = vpop.f32.mrb[0].mxu0
      %5985 = vmatprep.mubr.f32.mxu0 0.0
      %5986 = vmatmul.mubr.f32.gmra.mrb[0].mxu0 %v5852
      %v5987 = vpop.f32.mrb[0].mxu0
      %v5988 = vadd.f32 0.0, %v5987
      %v5989 = vpop.f32.mrb[0].mxu0
      %5990 = vmatprep.mubr.f32.mxu0 0.0
      %5991 = vmatmul.mubr.f32.gmra.mrb[0].mxu0 %v5853
      %v5992 = vpop.f32.mrb[0].mxu0
      %v5993 = vadd.f32 0.0, %v5992
      %v5994 = vpop.f32.mrb[0].mxu0
      %5995 = vmatprep.mubr.f32.mxu0 0.0
      %5996 = vmatmul.mubr.f32.gmra.mrb[0].mxu0 %v5854
      %v5997 = vpop.f32.mrb[0].mxu0
      %v5998 = vadd.f32 0.0, %v5997
      %v5999 = vpop.f32.mrb[0].mxu0
      %6000 = vmatprep.mubr.f32.mxu0 0.0
      %6001 = vmatmul.mubr.f32.gmra.mrb[0].mxu0 %v5855
      %v6002 = vpop.f32.mrb[0].mxu0
      %v6003 = vadd.f32 0.0, %v6002
      %v6004 = vpop.f32.mrb[0].mxu0
      %6005 = vmatprep.mubr.f32.mxu0 0.0
      %6006 = vmatmul.mubr.f32.gmra.mrb[0].mxu0 %v5856
      %v6007 = vpop.f32.mrb[0].mxu0
      %v6008 = vadd.f32 0.0, %v6007
      %v6009 = vpop.f32.mrb[0].mxu0
      %6010 = vmatprep.mubr.f32.mxu0 0.0
      %6011 = vmatmul.mubr.f32.gmra.mrb[0].mxu0 %v5857
      %v6012 = vpop.f32.mrb[0].mxu0
      %v6013 = vadd.f32 0.0, %v6012
      %v6014 = vpop.f32.mrb[0].mxu0
      %6015 = vmatprep.mubr.f32.mxu0 0.0
      %6016 = vmatmul.mubr.f32.gmra.mrb[0].mxu0 %v5858
      %v6017 = vpop.f32.mrb[0].mxu0
      %v6018 = vadd.f32 0.0, %v6017
      %v6019 = vpop.f32.mrb[0].mxu0
      %6020 = vmatprep.mubr.f32.mxu0 0.0
      %6021 = vmatmul.mubr.f32.gmra.mrb[0].mxu0 %v5859
      %v6022 = vpop.f32.mrb[0].mxu0
      %v6023 = vadd.f32 0.0, %v6022
      %v6024 = vpop.f32.mrb[0].mxu0
      %6025 = vmatprep.mubr.f32.mxu0 0.0
      %6026 = vmatmul.mubr.f32.gmra.mrb[0].mxu0 %v5860
      %v6027 = vpop.f32.mrb[0].mxu0
      %v6028 = vadd.f32 0.0, %v6027
      %v6029 = vpop.f32.mrb[0].mxu0
      %6030 = vmatprep.mubr.f32.mxu0 0.0
      %6031 = vmatmul.mubr.f32.gmra.mrb[0].mxu0 %v5861
      %v6032 = vpop.f32.mrb[0].mxu0
      %v6033 = vadd.f32 0.0, %v6032
      %v6034 = vpop.f32.mrb[0].mxu0
      %6035 = vmatprep.mubr.f32.mxu0 0.0
      %6036 = vmatmul.mubr.f32.gmra.mrb[0].mxu0 %v5862
      %v6037 = vpop.f32.mrb[0].mxu0
      %v6038 = vadd.f32 0.0, %v6037
      %v6039 = vpop.f32.mrb[0].mxu0
      %6040 = vmatprep.mubr.f32.mxu0 0.0
      %6041 = vmatmul.mubr.f32.gmra.mrb[0].mxu0 %v5863
      %v6042 = vpop.f32.mrb[0].mxu0
      %v6043 = vadd.f32 0.0, %v6042
      %v6044 = vpop.f32.mrb[0].mxu0
      %6045 = vmatprep.mubr.f32.mxu0 0.0
      %6046 = vmatmul.mubr.f32.gmra.mrb[0].mxu0 %v5864
      %v6047 = vpop.f32.mrb[0].mxu0
      %v6048 = vadd.f32 0.0, %v6047
      %v6049 = vpop.f32.mrb[0].mxu0
      %6050 = vmatprep.mubr.f32.mxu0 0.0
      %6051 = vmatmul.mubr.f32.gmra.mrb[0].mxu0 %v5865
      %v6052 = vpop.f32.mrb[0].mxu0
      %v6053 = vadd.f32 0.0, %v6052
      %v6054 = vpop.f32.mrb[0].mxu0
      %6055 = vmatprep.mubr.f32.mxu0 0.0
      %6056 = vmatmul.mubr.f32.gmra.mrb[0].mxu0 %v5866
      %v6057 = vpop.f32.mrb[0].mxu0
      %v6058 = vadd.f32 0.0, %v6057
      %v6059 = vpop.f32.mrb[0].mxu0
      %6060 = vmatprep.mubr.f32.mxu0 0.0
      %6061 = vmatmul.mubr.f32.gmra.mrb[0].mxu0 %v5867
      %v6062 = vpop.f32.mrb[0].mxu0
      %v6063 = vadd.f32 0.0, %v6062
      %v6064 = vpop.f32.mrb[0].mxu0
      %6065 = vmatprep.mubr.f32.mxu0 0.0
      %6066 = vmatmul.mubr.f32.gmra.mrb[0].mxu0 %v5868
      %v6067 = vpop.f32.mrb[0].mxu0
      %v6068 = vadd.f32 0.0, %v6067
      %v6069 = vpop.f32.mrb[0].mxu0
      %6070 = vmatprep.mubr.f32.mxu0 0.0
      %6071 = vmatmul.mubr.f32.gmra.mrb[0].mxu0 %v5869
      %v6072 = vpop.f32.mrb[0].mxu0
      %v6073 = vadd.f32 0.0, %v6072
      %v6074 = vpop.f32.mrb[0].mxu0
      %6075 = vmatprep.mubr.f32.mxu0 0.0
      %6076 = vmatmul.mubr.f32.gmra.mrb[0].mxu0 %v5870
      %v6077 = vpop.f32.mrb[0].mxu0
      %v6078 = vadd.f32 0.0, %v6077
      %v6079 = vpop.f32.mrb[0].mxu0
      %6080 = vmatprep.mubr.f32.mxu0 0.0
      %6081 = vmatmul.mubr.f32.gmra.mrb[0].mxu0 %v5871
      %v6082 = vpop.f32.mrb[0].mxu0
      %v6083 = vadd.f32 0.0, %v6082
      %v6084 = vpop.f32.mrb[0].mxu0
      %6085 = vmatprep.mubr.f32.mxu0 0.0
      %6086 = vmatmul.mubr.f32.gmra.mrb[0].mxu0 %v5872
      %v6087 = vpop.f32.mrb[0].mxu0
      %v6088 = vadd.f32 0.0, %v6087
      %v6089 = vpop.f32.mrb[0].mxu0
      %6090 = vmatprep.mubr.f32.mxu0 0.0
      %6091 = vmatmul.mubr.f32.gmra.mrb[0].mxu0 %v5873
      %v6092 = vpop.f32.mrb[0].mxu0
      %v6093 = vadd.f32 0.0, %v6092
      %v6094 = vpop.f32.mrb[0].mxu0
      %6095 = vmatprep.mubr.f32.mxu0 0.0
      %6096 = vmatmul.mubr.f32.gmra.mrb[0].mxu0 %v5874
      %v6097 = vpop.f32.mrb[0].mxu0
      %v6098 = vadd.f32 0.0, %v6097
      %v6099 = vpop.f32.mrb[0].mxu0
      %6100 = vmatprep.mubr.f32.mxu0 0.0
      %6101 = vmatmul.mubr.f32.gmra.mrb[0].mxu0 %v5875
      %v6102 = vpop.f32.mrb[0].mxu0
      %v6103 = vadd.f32 0.0, %v6102
      %v6104 = vpop.f32.mrb[0].mxu0
      %6105 = vmatprep.mubr.f32.mxu0 0.0
      %6106 = vmatmul.mubr.f32.gmra.mrb[0].mxu0 %v5876
      %v6107 = vpop.f32.mrb[0].mxu0
      %v6108 = vadd.f32 0.0, %v6107
      %v6109 = vpop.f32.mrb[0].mxu0
      %6110 = vmatprep.mubr.f32.mxu0 0.0
      %6111 = vmatmul.mubr.f32.gmra.mrb[0].mxu0 %v5877
      %v6112 = vpop.f32.mrb[0].mxu0
      %v6113 = vadd.f32 0.0, %v6112
      %v6114 = vpop.f32.mrb[0].mxu0
      %6115 = vmatprep.mubr.f32.mxu0 0.0
      %6116 = vmatmul.mubr.f32.gmra.mrb[0].mxu0 %v5878
      %v6117 = vpop.f32.mrb[0].mxu0
      %v6118 = vadd.f32 0.0, %v6117
      %v6119 = vpop.f32.mrb[0].mxu0
      %6120 = vmatprep.mubr.f32.mxu0 0.0
      %6121 = vmatmul.mubr.f32.gmra.mrb[0].mxu0 %v5879
      %v6122 = vpop.f32.mrb[0].mxu0
      %v6123 = vadd.f32 0.0, %v6122
      %v6124 = vpop.f32.mrb[0].mxu0
      %6125 = vmatprep.mubr.f32.mxu0 0.0
      %6126 = vmatmul.mubr.f32.gmra.mrb[0].mxu0 %v5880
      %v6127 = vpop.f32.mrb[0].mxu0
      %v6128 = vadd.f32 0.0, %v6127
      %v6129 = vpop.f32.mrb[0].mxu0
      %6130 = vmatprep.mubr.f32.mxu0 0.0
      %6131 = vmatmul.mubr.f32.gmra.mrb[0].mxu0 %v5881
      %v6132 = vpop.f32.mrb[0].mxu0
      %v6133 = vadd.f32 0.0, %v6132
      %v6134 = vpop.f32.mrb[0].mxu0
      %6135 = vmatprep.mubr.f32.mxu0 0.0
      %6136 = vmatmul.mubr.f32.gmra.mrb[0].mxu0 %v5882
      %v6137 = vpop.f32.mrb[0].mxu0
      %v6138 = vadd.f32 0.0, %v6137
      %v6139 = vpop.f32.mrb[0].mxu0
      %6140 = vmatprep.mubr.f32.mxu0 0.0
      %6141 = vmatmul.mubr.f32.gmra.mrb[0].mxu0 %v5883
      %v6142 = vpop.f32.mrb[0].mxu0
      %v6143 = vadd.f32 0.0, %v6142
      %v6144 = vpop.f32.mrb[0].mxu0
      %6145 = vdwg.mxu0
      %v6146 = vadd.f32 %v5812, %v5968
      %v6147 = vadd.f32 %v5813, %v5973
      %v6148 = vadd.f32 %v5814, %v5978
      %v6149 = vadd.f32 %v5815, %v5983
      %v6150 = vadd.f32 %v5816, %v5988
      %v6151 = vadd.f32 %v5817, %v5993
      %v6152 = vadd.f32 %v5818, %v5998
      %v6153 = vadd.f32 %v5819, %v6003
      %v6154 = vadd.f32 %v5820, %v6008
      %v6155 = vadd.f32 %v5821, %v6013
      %v6156 = vadd.f32 %v5822, %v6018
      %v6157 = vadd.f32 %v5823, %v6023
      %v6158 = vadd.f32 %v5824, %v6028
      %v6159 = vadd.f32 %v5825, %v6033
      %v6160 = vadd.f32 %v5826, %v6038
      %v6161 = vadd.f32 %v5827, %v6043
      %v6162 = vadd.f32 %v5828, %v6048
      %v6163 = vadd.f32 %v5829, %v6053
      %v6164 = vadd.f32 %v5830, %v6058
      %v6165 = vadd.f32 %v5831, %v6063
      %v6166 = vadd.f32 %v5832, %v6068
      %v6167 = vadd.f32 %v5833, %v6073
      %v6168 = vadd.f32 %v5834, %v6078
      %v6169 = vadd.f32 %v5835, %v6083
      %v6170 = vadd.f32 %v5836, %v6088
      %v6171 = vadd.f32 %v5837, %v6093
      %v6172 = vadd.f32 %v5838, %v6098
      %v6173 = vadd.f32 %v5839, %v6103
      %v6174 = vadd.f32 %v5840, %v6108
      %v6175 = vadd.f32 %v5841, %v6113
      %v6176 = vadd.f32 %v5842, %v6118
      %v6177 = vadd.f32 %v5843, %v6123
      %v6178 = vadd.f32 %v5844, %v6128
      %v6179 = vadd.f32 %v5845, %v6133
      %v6180 = vadd.f32 %v5846, %v6138
      %v6181 = vadd.f32 %v5847, %v6143
      %v6182 = vld [vmem:[#allocation3 + $0x24] sm:$0xff]
      %v6183 = vld [vmem:[#allocation3 + $0x2c] sm:$0xff]
      %v6184 = vld [vmem:[#allocation3 + $0x34] sm:$0xff]
      %v6185 = vld [vmem:[#allocation3 + $0x3c] sm:$0xff]
      %v6186 = vld [vmem:[#allocation3 + $0x44] sm:$0xff]
      %v6187 = vld [vmem:[#allocation3 + $0x4c] sm:$0xff]
      %v6188 = vld [vmem:[#allocation3 + $0x54] sm:$0xff]
      %v6189 = vld [vmem:[#allocation3 + $0x5c] sm:$0xff]
      %v6190 = vld [vmem:[#allocation3 + $0x64] sm:$0xff]
      %v6191 = vld [vmem:[#allocation3 + $0x6c] sm:$0xff]
      %v6192 = vld [vmem:[#allocation3 + $0x74] sm:$0xff]
      %v6193 = vld [vmem:[#allocation3 + $0x7c] sm:$0xff]
      %v6194 = vld [vmem:[#allocation3 + $0x84] sm:$0xff]
      %v6195 = vld [vmem:[#allocation3 + $0x8c] sm:$0xff]
      %v6196 = vld [vmem:[#allocation3 + $0x94] sm:$0xff]
      %v6197 = vld [vmem:[#allocation3 + $0x9c] sm:$0xff]
      %v6198 = vld [vmem:[#allocation3 + $0xa4] sm:$0xff]
      %v6199 = vld [vmem:[#allocation3 + $0xac] sm:$0xff]
      %v6200 = vld [vmem:[#allocation3 + $0xb4] sm:$0xff]
      %v6201 = vld [vmem:[#allocation3 + $0xbc] sm:$0xff]
      %v6202 = vld [vmem:[#allocation3 + $0xc4] sm:$0xff]
      %v6203 = vld [vmem:[#allocation3 + $0xcc] sm:$0xff]
      %v6204 = vld [vmem:[#allocation3 + $0xd4] sm:$0xff]
      %v6205 = vld [vmem:[#allocation3 + $0xdc] sm:$0xff]
      %v6206 = vld [vmem:[#allocation3 + $0xe4] sm:$0xff]
      %v6207 = vld [vmem:[#allocation3 + $0xec] sm:$0xff]
      %v6208 = vld [vmem:[#allocation3 + $0xf4] sm:$0xff]
      %v6209 = vld [vmem:[#allocation3 + $0xfc] sm:$0xff]
      %v6210 = vld [vmem:[#allocation3 + $0x104] sm:$0xff]
      %v6211 = vld [vmem:[#allocation3 + $0x10c] sm:$0xff]
      %v6212 = vld [vmem:[#allocation3 + $0x114] sm:$0xff]
      %v6213 = vld [vmem:[#allocation3 + $0x11c] sm:$0xff]
      %v6214 = vld [vmem:[#allocation3 + $0x124] sm:$0xff]
      %v6215 = vld [vmem:[#allocation3 + $0x12c] sm:$0xff]
      %v6216 = vld [vmem:[#allocation3 + $0x134] sm:$0xff]
      %v6217 = vld [vmem:[#allocation3 + $0x13c] sm:$0xff]
      %s6218 = scalar_lea.vmem %s7, 768
      %v6219 = vld [vmem:[%s6218] sm:$0xff]
      %v6220 = vld [vmem:[%s6218 + $0x8] sm:$0xff]
      %v6221 = vld [vmem:[%s6218 + $0x10] sm:$0xff]
      %v6222 = vld [vmem:[%s6218 + $0x18] sm:$0xff]
      %v6223 = vld [vmem:[%s6218 + $0x20] sm:$0xff]
      %v6224 = vld [vmem:[%s6218 + $0x28] sm:$0xff]
      %v6225 = vld [vmem:[%s6218 + $0x30] sm:$0xff]
      %v6226 = vld [vmem:[%s6218 + $0x38] sm:$0xff]
      %v6227 = vld [vmem:[%s6218 + $0x40] sm:$0xff]
      %v6228 = vld [vmem:[%s6218 + $0x48] sm:$0xff]
      %v6229 = vld [vmem:[%s6218 + $0x50] sm:$0xff]
      %v6230 = vld [vmem:[%s6218 + $0x58] sm:$0xff]
      %v6231 = vld [vmem:[%s6218 + $0x60] sm:$0xff]
      %v6232 = vld [vmem:[%s6218 + $0x68] sm:$0xff]
      %v6233 = vld [vmem:[%s6218 + $0x70] sm:$0xff]
      %v6234 = vld [vmem:[%s6218 + $0x78] sm:$0xff]
      %6235 = vmatprep.subr.mxu0 0.0
      %6236 = vmatpush1.msra.mxu0 %v6219
      %6237 = vmatprep.subr.mxu0 0.0
      %6238 = vmatpush1.msra.mxu0 %v6220
      %6239 = vmatprep.subr.mxu0 0.0
      %6240 = vmatpush1.msra.mxu0 %v6221
      %6241 = vmatprep.subr.mxu0 0.0
      %6242 = vmatpush1.msra.mxu0 %v6222
      %6243 = vmatprep.subr.mxu0 0.0
      %6244 = vmatpush1.msra.mxu0 %v6223
      %6245 = vmatprep.subr.mxu0 0.0
      %6246 = vmatpush1.msra.mxu0 %v6224
      %6247 = vmatprep.subr.mxu0 0.0
      %6248 = vmatpush1.msra.mxu0 %v6225
      %6249 = vmatprep.subr.mxu0 0.0
      %6250 = vmatpush1.msra.mxu0 %v6226
      %6251 = vmatprep.subr.mxu0 0.0
      %6252 = vmatpush1.msra.mxu0 %v6227
      %6253 = vmatprep.subr.mxu0 0.0
      %6254 = vmatpush1.msra.mxu0 %v6228
      %6255 = vmatprep.subr.mxu0 0.0
      %6256 = vmatpush1.msra.mxu0 %v6229
      %6257 = vmatprep.subr.mxu0 0.0
      %6258 = vmatpush1.msra.mxu0 %v6230
      %6259 = vmatprep.subr.mxu0 0.0
      %6260 = vmatpush1.msra.mxu0 %v6231
      %6261 = vmatprep.subr.mxu0 0.0
      %6262 = vmatpush1.msra.mxu0 %v6232
      %6263 = vmatprep.subr.mxu0 0.0
      %6264 = vmatpush1.msra.mxu0 %v6233
      %6265 = vmatprep.subr.mxu0 0.0
      %6266 = vmatpush1.msra.mxu0 %v6234
      %6267 = vmatprep.subr.mxu0 0.0
      %6268 = vmatpush1.msra.mxu0 0.0
      %6269 = vmatprep.subr.mxu0 0.0
      %6270 = vmatpush1.msra.mxu0 0.0
      %6271 = vmatprep.subr.mxu0 0.0
      %6272 = vmatpush1.msra.mxu0 0.0
      %6273 = vmatprep.subr.mxu0 0.0
      %6274 = vmatpush1.msra.mxu0 0.0
      %6275 = vmatprep.subr.mxu0 0.0
      %6276 = vmatpush1.msra.mxu0 0.0
      %6277 = vmatprep.subr.mxu0 0.0
      %6278 = vmatpush1.msra.mxu0 0.0
      %6279 = vmatprep.subr.mxu0 0.0
      %6280 = vmatpush1.msra.mxu0 0.0
      %6281 = vmatprep.subr.mxu0 0.0
      %6282 = vmatpush1.msra.mxu0 0.0
      %6283 = vmatprep.subr.mxu0 0.0
      %6284 = vmatpush1.msra.mxu0 0.0
      %6285 = vmatprep.subr.mxu0 0.0
      %6286 = vmatpush1.msra.mxu0 0.0
      %6287 = vmatprep.subr.mxu0 0.0
      %6288 = vmatpush1.msra.mxu0 0.0
      %6289 = vmatprep.subr.mxu0 0.0
      %6290 = vmatpush1.msra.mxu0 0.0
      %6291 = vmatprep.subr.mxu0 0.0
      %6292 = vmatpush1.msra.mxu0 0.0
      %6293 = vmatprep.subr.mxu0 0.0
      %6294 = vmatpush1.msra.mxu0 0.0
      %6295 = vmatprep.subr.mxu0 0.0
      %6296 = vmatpush1.msra.mxu0 0.0
      %6297 = vmatprep.subr.mxu0 0.0
      %6298 = vmatpush1.msra.mxu0 0.0
      %6299 = vmatprep.mubr.f32.mxu0 0.0
      %6300 = vmatmul.mubr.f32.gmra.mrb[0].mxu0 %v6182
      %v6301 = vpop.f32.mrb[0].mxu0
      %v6302 = vadd.f32 0.0, %v6301
      %v6303 = vpop.f32.mrb[0].mxu0
      %6304 = vmatprep.mubr.f32.mxu0 0.0
      %6305 = vmatmul.mubr.f32.gmra.mrb[0].mxu0 %v6183
      %v6306 = vpop.f32.mrb[0].mxu0
      %v6307 = vadd.f32 0.0, %v6306
      %v6308 = vpop.f32.mrb[0].mxu0
      %6309 = vmatprep.mubr.f32.mxu0 0.0
      %6310 = vmatmul.mubr.f32.gmra.mrb[0].mxu0 %v6184
      %v6311 = vpop.f32.mrb[0].mxu0
      %v6312 = vadd.f32 0.0, %v6311
      %v6313 = vpop.f32.mrb[0].mxu0
      %6314 = vmatprep.mubr.f32.mxu0 0.0
      %6315 = vmatmul.mubr.f32.gmra.mrb[0].mxu0 %v6185
      %v6316 = vpop.f32.mrb[0].mxu0
      %v6317 = vadd.f32 0.0, %v6316
      %v6318 = vpop.f32.mrb[0].mxu0
      %6319 = vmatprep.mubr.f32.mxu0 0.0
      %6320 = vmatmul.mubr.f32.gmra.mrb[0].mxu0 %v6186
      %v6321 = vpop.f32.mrb[0].mxu0
      %v6322 = vadd.f32 0.0, %v6321
      %v6323 = vpop.f32.mrb[0].mxu0
      %6324 = vmatprep.mubr.f32.mxu0 0.0
      %6325 = vmatmul.mubr.f32.gmra.mrb[0].mxu0 %v6187
      %v6326 = vpop.f32.mrb[0].mxu0
      %v6327 = vadd.f32 0.0, %v6326
      %v6328 = vpop.f32.mrb[0].mxu0
      %6329 = vmatprep.mubr.f32.mxu0 0.0
      %6330 = vmatmul.mubr.f32.gmra.mrb[0].mxu0 %v6188
      %v6331 = vpop.f32.mrb[0].mxu0
      %v6332 = vadd.f32 0.0, %v6331
      %v6333 = vpop.f32.mrb[0].mxu0
      %6334 = vmatprep.mubr.f32.mxu0 0.0
      %6335 = vmatmul.mubr.f32.gmra.mrb[0].mxu0 %v6189
      %v6336 = vpop.f32.mrb[0].mxu0
      %v6337 = vadd.f32 0.0, %v6336
      %v6338 = vpop.f32.mrb[0].mxu0
      %6339 = vmatprep.mubr.f32.mxu0 0.0
      %6340 = vmatmul.mubr.f32.gmra.mrb[0].mxu0 %v6190
      %v6341 = vpop.f32.mrb[0].mxu0
      %v6342 = vadd.f32 0.0, %v6341
      %v6343 = vpop.f32.mrb[0].mxu0
      %6344 = vmatprep.mubr.f32.mxu0 0.0
      %6345 = vmatmul.mubr.f32.gmra.mrb[0].mxu0 %v6191
      %v6346 = vpop.f32.mrb[0].mxu0
      %v6347 = vadd.f32 0.0, %v6346
      %v6348 = vpop.f32.mrb[0].mxu0
      %6349 = vmatprep.mubr.f32.mxu0 0.0
      %6350 = vmatmul.mubr.f32.gmra.mrb[0].mxu0 %v6192
      %v6351 = vpop.f32.mrb[0].mxu0
      %v6352 = vadd.f32 0.0, %v6351
      %v6353 = vpop.f32.mrb[0].mxu0
      %6354 = vmatprep.mubr.f32.mxu0 0.0
      %6355 = vmatmul.mubr.f32.gmra.mrb[0].mxu0 %v6193
      %v6356 = vpop.f32.mrb[0].mxu0
      %v6357 = vadd.f32 0.0, %v6356
      %v6358 = vpop.f32.mrb[0].mxu0
      %6359 = vmatprep.mubr.f32.mxu0 0.0
      %6360 = vmatmul.mubr.f32.gmra.mrb[0].mxu0 %v6194
      %v6361 = vpop.f32.mrb[0].mxu0
      %v6362 = vadd.f32 0.0, %v6361
      %v6363 = vpop.f32.mrb[0].mxu0
      %6364 = vmatprep.mubr.f32.mxu0 0.0
      %6365 = vmatmul.mubr.f32.gmra.mrb[0].mxu0 %v6195
      %v6366 = vpop.f32.mrb[0].mxu0
      %v6367 = vadd.f32 0.0, %v6366
      %v6368 = vpop.f32.mrb[0].mxu0
      %6369 = vmatprep.mubr.f32.mxu0 0.0
      %6370 = vmatmul.mubr.f32.gmra.mrb[0].mxu0 %v6196
      %v6371 = vpop.f32.mrb[0].mxu0
      %v6372 = vadd.f32 0.0, %v6371
      %v6373 = vpop.f32.mrb[0].mxu0
      %6374 = vmatprep.mubr.f32.mxu0 0.0
      %6375 = vmatmul.mubr.f32.gmra.mrb[0].mxu0 %v6197
      %v6376 = vpop.f32.mrb[0].mxu0
      %v6377 = vadd.f32 0.0, %v6376
      %v6378 = vpop.f32.mrb[0].mxu0
      %6379 = vmatprep.mubr.f32.mxu0 0.0
      %6380 = vmatmul.mubr.f32.gmra.mrb[0].mxu0 %v6198
      %v6381 = vpop.f32.mrb[0].mxu0
      %v6382 = vadd.f32 0.0, %v6381
      %v6383 = vpop.f32.mrb[0].mxu0
      %6384 = vmatprep.mubr.f32.mxu0 0.0
      %6385 = vmatmul.mubr.f32.gmra.mrb[0].mxu0 %v6199
      %v6386 = vpop.f32.mrb[0].mxu0
      %v6387 = vadd.f32 0.0, %v6386
      %v6388 = vpop.f32.mrb[0].mxu0
      %6389 = vmatprep.mubr.f32.mxu0 0.0
      %6390 = vmatmul.mubr.f32.gmra.mrb[0].mxu0 %v6200
      %v6391 = vpop.f32.mrb[0].mxu0
      %v6392 = vadd.f32 0.0, %v6391
      %v6393 = vpop.f32.mrb[0].mxu0
      %6394 = vmatprep.mubr.f32.mxu0 0.0
      %6395 = vmatmul.mubr.f32.gmra.mrb[0].mxu0 %v6201
      %v6396 = vpop.f32.mrb[0].mxu0
      %v6397 = vadd.f32 0.0, %v6396
      %v6398 = vpop.f32.mrb[0].mxu0
      %6399 = vmatprep.mubr.f32.mxu0 0.0
      %6400 = vmatmul.mubr.f32.gmra.mrb[0].mxu0 %v6202
      %v6401 = vpop.f32.mrb[0].mxu0
      %v6402 = vadd.f32 0.0, %v6401
      %v6403 = vpop.f32.mrb[0].mxu0
      %6404 = vmatprep.mubr.f32.mxu0 0.0
      %6405 = vmatmul.mubr.f32.gmra.mrb[0].mxu0 %v6203
      %v6406 = vpop.f32.mrb[0].mxu0
      %v6407 = vadd.f32 0.0, %v6406
      %v6408 = vpop.f32.mrb[0].mxu0
      %6409 = vmatprep.mubr.f32.mxu0 0.0
      %6410 = vmatmul.mubr.f32.gmra.mrb[0].mxu0 %v6204
      %v6411 = vpop.f32.mrb[0].mxu0
      %v6412 = vadd.f32 0.0, %v6411
      %v6413 = vpop.f32.mrb[0].mxu0
      %6414 = vmatprep.mubr.f32.mxu0 0.0
      %6415 = vmatmul.mubr.f32.gmra.mrb[0].mxu0 %v6205
      %v6416 = vpop.f32.mrb[0].mxu0
      %v6417 = vadd.f32 0.0, %v6416
      %v6418 = vpop.f32.mrb[0].mxu0
      %6419 = vmatprep.mubr.f32.mxu0 0.0
      %6420 = vmatmul.mubr.f32.gmra.mrb[0].mxu0 %v6206
      %v6421 = vpop.f32.mrb[0].mxu0
      %v6422 = vadd.f32 0.0, %v6421
      %v6423 = vpop.f32.mrb[0].mxu0
      %6424 = vmatprep.mubr.f32.mxu0 0.0
      %6425 = vmatmul.mubr.f32.gmra.mrb[0].mxu0 %v6207
      %v6426 = vpop.f32.mrb[0].mxu0
      %v6427 = vadd.f32 0.0, %v6426
      %v6428 = vpop.f32.mrb[0].mxu0
      %6429 = vmatprep.mubr.f32.mxu0 0.0
      %6430 = vmatmul.mubr.f32.gmra.mrb[0].mxu0 %v6208
      %v6431 = vpop.f32.mrb[0].mxu0
      %v6432 = vadd.f32 0.0, %v6431
      %v6433 = vpop.f32.mrb[0].mxu0
      %6434 = vmatprep.mubr.f32.mxu0 0.0
      %6435 = vmatmul.mubr.f32.gmra.mrb[0].mxu0 %v6209
      %v6436 = vpop.f32.mrb[0].mxu0
      %v6437 = vadd.f32 0.0, %v6436
      %v6438 = vpop.f32.mrb[0].mxu0
      %6439 = vmatprep.mubr.f32.mxu0 0.0
      %6440 = vmatmul.mubr.f32.gmra.mrb[0].mxu0 %v6210
      %v6441 = vpop.f32.mrb[0].mxu0
      %v6442 = vadd.f32 0.0, %v6441
      %v6443 = vpop.f32.mrb[0].mxu0
      %6444 = vmatprep.mubr.f32.mxu0 0.0
      %6445 = vmatmul.mubr.f32.gmra.mrb[0].mxu0 %v6211
      %v6446 = vpop.f32.mrb[0].mxu0
      %v6447 = vadd.f32 0.0, %v6446
      %v6448 = vpop.f32.mrb[0].mxu0
      %6449 = vmatprep.mubr.f32.mxu0 0.0
      %6450 = vmatmul.mubr.f32.gmra.mrb[0].mxu0 %v6212
      %v6451 = vpop.f32.mrb[0].mxu0
      %v6452 = vadd.f32 0.0, %v6451
      %v6453 = vpop.f32.mrb[0].mxu0
      %6454 = vmatprep.mubr.f32.mxu0 0.0
      %6455 = vmatmul.mubr.f32.gmra.mrb[0].mxu0 %v6213
      %v6456 = vpop.f32.mrb[0].mxu0
      %v6457 = vadd.f32 0.0, %v6456
      %v6458 = vpop.f32.mrb[0].mxu0
      %6459 = vmatprep.mubr.f32.mxu0 0.0
      %6460 = vmatmul.mubr.f32.gmra.mrb[0].mxu0 %v6214
      %v6461 = vpop.f32.mrb[0].mxu0
      %v6462 = vadd.f32 0.0, %v6461
      %v6463 = vpop.f32.mrb[0].mxu0
      %6464 = vmatprep.mubr.f32.mxu0 0.0
      %6465 = vmatmul.mubr.f32.gmra.mrb[0].mxu0 %v6215
      %v6466 = vpop.f32.mrb[0].mxu0
      %v6467 = vadd.f32 0.0, %v6466
      %v6468 = vpop.f32.mrb[0].mxu0
      %6469 = vmatprep.mubr.f32.mxu0 0.0
      %6470 = vmatmul.mubr.f32.gmra.mrb[0].mxu0 %v6216
      %v6471 = vpop.f32.mrb[0].mxu0
      %v6472 = vadd.f32 0.0, %v6471
      %v6473 = vpop.f32.mrb[0].mxu0
      %6474 = vmatprep.mubr.f32.mxu0 0.0
      %6475 = vmatmul.mubr.f32.gmra.mrb[0].mxu0 %v6217
      %v6476 = vpop.f32.mrb[0].mxu0
      %v6477 = vadd.f32 0.0, %v6476
      %v6478 = vpop.f32.mrb[0].mxu0
      %6479 = vdwg.mxu0
      %v6480 = vadd.f32 %v6146, %v6302
      %v6481 = vadd.f32 %v6147, %v6307
      %v6482 = vadd.f32 %v6148, %v6312
      %v6483 = vadd.f32 %v6149, %v6317
      %v6484 = vadd.f32 %v6150, %v6322
      %v6485 = vadd.f32 %v6151, %v6327
      %v6486 = vadd.f32 %v6152, %v6332
      %v6487 = vadd.f32 %v6153, %v6337
      %v6488 = vadd.f32 %v6154, %v6342
      %v6489 = vadd.f32 %v6155, %v6347
      %v6490 = vadd.f32 %v6156, %v6352
      %v6491 = vadd.f32 %v6157, %v6357
      %v6492 = vadd.f32 %v6158, %v6362
      %v6493 = vadd.f32 %v6159, %v6367
      %v6494 = vadd.f32 %v6160, %v6372
      %v6495 = vadd.f32 %v6161, %v6377
      %v6496 = vadd.f32 %v6162, %v6382
      %v6497 = vadd.f32 %v6163, %v6387
      %v6498 = vadd.f32 %v6164, %v6392
      %v6499 = vadd.f32 %v6165, %v6397
      %v6500 = vadd.f32 %v6166, %v6402
      %v6501 = vadd.f32 %v6167, %v6407
      %v6502 = vadd.f32 %v6168, %v6412
      %v6503 = vadd.f32 %v6169, %v6417
      %v6504 = vadd.f32 %v6170, %v6422
      %v6505 = vadd.f32 %v6171, %v6427
      %v6506 = vadd.f32 %v6172, %v6432
      %v6507 = vadd.f32 %v6173, %v6437
      %v6508 = vadd.f32 %v6174, %v6442
      %v6509 = vadd.f32 %v6175, %v6447
      %v6510 = vadd.f32 %v6176, %v6452
      %v6511 = vadd.f32 %v6177, %v6457
      %v6512 = vadd.f32 %v6178, %v6462
      %v6513 = vadd.f32 %v6179, %v6467
      %v6514 = vadd.f32 %v6180, %v6472
      %v6515 = vadd.f32 %v6181, %v6477
      %v6516 = vld [vmem:[#allocation3 + $0x25] sm:$0xff]
      %v6517 = vld [vmem:[#allocation3 + $0x2d] sm:$0xff]
      %v6518 = vld [vmem:[#allocation3 + $0x35] sm:$0xff]
      %v6519 = vld [vmem:[#allocation3 + $0x3d] sm:$0xff]
      %v6520 = vld [vmem:[#allocation3 + $0x45] sm:$0xff]
      %v6521 = vld [vmem:[#allocation3 + $0x4d] sm:$0xff]
      %v6522 = vld [vmem:[#allocation3 + $0x55] sm:$0xff]
      %v6523 = vld [vmem:[#allocation3 + $0x5d] sm:$0xff]
      %v6524 = vld [vmem:[#allocation3 + $0x65] sm:$0xff]
      %v6525 = vld [vmem:[#allocation3 + $0x6d] sm:$0xff]
      %v6526 = vld [vmem:[#allocation3 + $0x75] sm:$0xff]
      %v6527 = vld [vmem:[#allocation3 + $0x7d] sm:$0xff]
      %v6528 = vld [vmem:[#allocation3 + $0x85] sm:$0xff]
      %v6529 = vld [vmem:[#allocation3 + $0x8d] sm:$0xff]
      %v6530 = vld [vmem:[#allocation3 + $0x95] sm:$0xff]
      %v6531 = vld [vmem:[#allocation3 + $0x9d] sm:$0xff]
      %v6532 = vld [vmem:[#allocation3 + $0xa5] sm:$0xff]
      %v6533 = vld [vmem:[#allocation3 + $0xad] sm:$0xff]
      %v6534 = vld [vmem:[#allocation3 + $0xb5] sm:$0xff]
      %v6535 = vld [vmem:[#allocation3 + $0xbd] sm:$0xff]
      %v6536 = vld [vmem:[#allocation3 + $0xc5] sm:$0xff]
      %v6537 = vld [vmem:[#allocation3 + $0xcd] sm:$0xff]
      %v6538 = vld [vmem:[#allocation3 + $0xd5] sm:$0xff]
      %v6539 = vld [vmem:[#allocation3 + $0xdd] sm:$0xff]
      %v6540 = vld [vmem:[#allocation3 + $0xe5] sm:$0xff]
      %v6541 = vld [vmem:[#allocation3 + $0xed] sm:$0xff]
      %v6542 = vld [vmem:[#allocation3 + $0xf5] sm:$0xff]
      %v6543 = vld [vmem:[#allocation3 + $0xfd] sm:$0xff]
      %v6544 = vld [vmem:[#allocation3 + $0x105] sm:$0xff]
      %v6545 = vld [vmem:[#allocation3 + $0x10d] sm:$0xff]
      %v6546 = vld [vmem:[#allocation3 + $0x115] sm:$0xff]
      %v6547 = vld [vmem:[#allocation3 + $0x11d] sm:$0xff]
      %v6548 = vld [vmem:[#allocation3 + $0x125] sm:$0xff]
      %v6549 = vld [vmem:[#allocation3 + $0x12d] sm:$0xff]
      %v6550 = vld [vmem:[#allocation3 + $0x135] sm:$0xff]
      %v6551 = vld [vmem:[#allocation3 + $0x13d] sm:$0xff]
      %s6552 = scalar_lea.vmem %s7, 896
      %v6553 = vld [vmem:[%s6552] sm:$0xff]
      %v6554 = vld [vmem:[%s6552 + $0x8] sm:$0xff]
      %v6555 = vld [vmem:[%s6552 + $0x10] sm:$0xff]
      %v6556 = vld [vmem:[%s6552 + $0x18] sm:$0xff]
      %v6557 = vld [vmem:[%s6552 + $0x20] sm:$0xff]
      %v6558 = vld [vmem:[%s6552 + $0x28] sm:$0xff]
      %v6559 = vld [vmem:[%s6552 + $0x30] sm:$0xff]
      %v6560 = vld [vmem:[%s6552 + $0x38] sm:$0xff]
      %v6561 = vld [vmem:[%s6552 + $0x40] sm:$0xff]
      %v6562 = vld [vmem:[%s6552 + $0x48] sm:$0xff]
      %v6563 = vld [vmem:[%s6552 + $0x50] sm:$0xff]
      %v6564 = vld [vmem:[%s6552 + $0x58] sm:$0xff]
      %v6565 = vld [vmem:[%s6552 + $0x60] sm:$0xff]
      %v6566 = vld [vmem:[%s6552 + $0x68] sm:$0xff]
      %v6567 = vld [vmem:[%s6552 + $0x70] sm:$0xff]
      %v6568 = vld [vmem:[%s6552 + $0x78] sm:$0xff]
      %6569 = vmatprep.subr.mxu0 0.0
      %6570 = vmatpush1.msra.mxu0 %v6553
      %6571 = vmatprep.subr.mxu0 0.0
      %6572 = vmatpush1.msra.mxu0 %v6554
      %6573 = vmatprep.subr.mxu0 0.0
      %6574 = vmatpush1.msra.mxu0 %v6555
      %6575 = vmatprep.subr.mxu0 0.0
      %6576 = vmatpush1.msra.mxu0 %v6556
      %6577 = vmatprep.subr.mxu0 0.0
      %6578 = vmatpush1.msra.mxu0 %v6557
      %6579 = vmatprep.subr.mxu0 0.0
      %6580 = vmatpush1.msra.mxu0 %v6558
      %6581 = vmatprep.subr.mxu0 0.0
      %6582 = vmatpush1.msra.mxu0 %v6559
      %6583 = vmatprep.subr.mxu0 0.0
      %6584 = vmatpush1.msra.mxu0 %v6560
      %6585 = vmatprep.subr.mxu0 0.0
      %6586 = vmatpush1.msra.mxu0 %v6561
      %6587 = vmatprep.subr.mxu0 0.0
      %6588 = vmatpush1.msra.mxu0 %v6562
      %6589 = vmatprep.subr.mxu0 0.0
      %6590 = vmatpush1.msra.mxu0 %v6563
      %6591 = vmatprep.subr.mxu0 0.0
      %6592 = vmatpush1.msra.mxu0 %v6564
      %6593 = vmatprep.subr.mxu0 0.0
      %6594 = vmatpush1.msra.mxu0 %v6565
      %6595 = vmatprep.subr.mxu0 0.0
      %6596 = vmatpush1.msra.mxu0 %v6566
      %6597 = vmatprep.subr.mxu0 0.0
      %6598 = vmatpush1.msra.mxu0 %v6567
      %6599 = vmatprep.subr.mxu0 0.0
      %6600 = vmatpush1.msra.mxu0 %v6568
      %6601 = vmatprep.subr.mxu0 0.0
      %6602 = vmatpush1.msra.mxu0 0.0
      %6603 = vmatprep.subr.mxu0 0.0
      %6604 = vmatpush1.msra.mxu0 0.0
      %6605 = vmatprep.subr.mxu0 0.0
      %6606 = vmatpush1.msra.mxu0 0.0
      %6607 = vmatprep.subr.mxu0 0.0
      %6608 = vmatpush1.msra.mxu0 0.0
      %6609 = vmatprep.subr.mxu0 0.0
      %6610 = vmatpush1.msra.mxu0 0.0
      %6611 = vmatprep.subr.mxu0 0.0
      %6612 = vmatpush1.msra.mxu0 0.0
      %6613 = vmatprep.subr.mxu0 0.0
      %6614 = vmatpush1.msra.mxu0 0.0
      %6615 = vmatprep.subr.mxu0 0.0
      %6616 = vmatpush1.msra.mxu0 0.0
      %6617 = vmatprep.subr.mxu0 0.0
      %6618 = vmatpush1.msra.mxu0 0.0
      %6619 = vmatprep.subr.mxu0 0.0
      %6620 = vmatpush1.msra.mxu0 0.0
      %6621 = vmatprep.subr.mxu0 0.0
      %6622 = vmatpush1.msra.mxu0 0.0
      %6623 = vmatprep.subr.mxu0 0.0
      %6624 = vmatpush1.msra.mxu0 0.0
      %6625 = vmatprep.subr.mxu0 0.0
      %6626 = vmatpush1.msra.mxu0 0.0
      %6627 = vmatprep.subr.mxu0 0.0
      %6628 = vmatpush1.msra.mxu0 0.0
      %6629 = vmatprep.subr.mxu0 0.0
      %6630 = vmatpush1.msra.mxu0 0.0
      %6631 = vmatprep.subr.mxu0 0.0
      %6632 = vmatpush1.msra.mxu0 0.0
      %6633 = vmatprep.mubr.f32.mxu0 0.0
      %6634 = vmatmul.mubr.f32.gmra.mrb[0].mxu0 %v6516
      %v6635 = vpop.f32.mrb[0].mxu0
      %v6636 = vadd.f32 0.0, %v6635
      %v6637 = vpop.f32.mrb[0].mxu0
      %6638 = vmatprep.mubr.f32.mxu0 0.0
      %6639 = vmatmul.mubr.f32.gmra.mrb[0].mxu0 %v6517
      %v6640 = vpop.f32.mrb[0].mxu0
      %v6641 = vadd.f32 0.0, %v6640
      %v6642 = vpop.f32.mrb[0].mxu0
      %6643 = vmatprep.mubr.f32.mxu0 0.0
      %6644 = vmatmul.mubr.f32.gmra.mrb[0].mxu0 %v6518
      %v6645 = vpop.f32.mrb[0].mxu0
      %v6646 = vadd.f32 0.0, %v6645
      %v6647 = vpop.f32.mrb[0].mxu0
      %6648 = vmatprep.mubr.f32.mxu0 0.0
      %6649 = vmatmul.mubr.f32.gmra.mrb[0].mxu0 %v6519
      %v6650 = vpop.f32.mrb[0].mxu0
      %v6651 = vadd.f32 0.0, %v6650
      %v6652 = vpop.f32.mrb[0].mxu0
      %6653 = vmatprep.mubr.f32.mxu0 0.0
      %6654 = vmatmul.mubr.f32.gmra.mrb[0].mxu0 %v6520
      %v6655 = vpop.f32.mrb[0].mxu0
      %v6656 = vadd.f32 0.0, %v6655
      %v6657 = vpop.f32.mrb[0].mxu0
      %6658 = vmatprep.mubr.f32.mxu0 0.0
      %6659 = vmatmul.mubr.f32.gmra.mrb[0].mxu0 %v6521
      %v6660 = vpop.f32.mrb[0].mxu0
      %v6661 = vadd.f32 0.0, %v6660
      %v6662 = vpop.f32.mrb[0].mxu0
      %6663 = vmatprep.mubr.f32.mxu0 0.0
      %6664 = vmatmul.mubr.f32.gmra.mrb[0].mxu0 %v6522
      %v6665 = vpop.f32.mrb[0].mxu0
      %v6666 = vadd.f32 0.0, %v6665
      %v6667 = vpop.f32.mrb[0].mxu0
      %6668 = vmatprep.mubr.f32.mxu0 0.0
      %6669 = vmatmul.mubr.f32.gmra.mrb[0].mxu0 %v6523
      %v6670 = vpop.f32.mrb[0].mxu0
      %v6671 = vadd.f32 0.0, %v6670
      %v6672 = vpop.f32.mrb[0].mxu0
      %6673 = vmatprep.mubr.f32.mxu0 0.0
      %6674 = vmatmul.mubr.f32.gmra.mrb[0].mxu0 %v6524
      %v6675 = vpop.f32.mrb[0].mxu0
      %v6676 = vadd.f32 0.0, %v6675
      %v6677 = vpop.f32.mrb[0].mxu0
      %6678 = vmatprep.mubr.f32.mxu0 0.0
      %6679 = vmatmul.mubr.f32.gmra.mrb[0].mxu0 %v6525
      %v6680 = vpop.f32.mrb[0].mxu0
      %v6681 = vadd.f32 0.0, %v6680
      %v6682 = vpop.f32.mrb[0].mxu0
      %6683 = vmatprep.mubr.f32.mxu0 0.0
      %6684 = vmatmul.mubr.f32.gmra.mrb[0].mxu0 %v6526
      %v6685 = vpop.f32.mrb[0].mxu0
      %v6686 = vadd.f32 0.0, %v6685
      %v6687 = vpop.f32.mrb[0].mxu0
      %6688 = vmatprep.mubr.f32.mxu0 0.0
      %6689 = vmatmul.mubr.f32.gmra.mrb[0].mxu0 %v6527
      %v6690 = vpop.f32.mrb[0].mxu0
      %v6691 = vadd.f32 0.0, %v6690
      %v6692 = vpop.f32.mrb[0].mxu0
      %6693 = vmatprep.mubr.f32.mxu0 0.0
      %6694 = vmatmul.mubr.f32.gmra.mrb[0].mxu0 %v6528
      %v6695 = vpop.f32.mrb[0].mxu0
      %v6696 = vadd.f32 0.0, %v6695
      %v6697 = vpop.f32.mrb[0].mxu0
      %6698 = vmatprep.mubr.f32.mxu0 0.0
      %6699 = vmatmul.mubr.f32.gmra.mrb[0].mxu0 %v6529
      %v6700 = vpop.f32.mrb[0].mxu0
      %v6701 = vadd.f32 0.0, %v6700
      %v6702 = vpop.f32.mrb[0].mxu0
      %6703 = vmatprep.mubr.f32.mxu0 0.0
      %6704 = vmatmul.mubr.f32.gmra.mrb[0].mxu0 %v6530
      %v6705 = vpop.f32.mrb[0].mxu0
      %v6706 = vadd.f32 0.0, %v6705
      %v6707 = vpop.f32.mrb[0].mxu0
      %6708 = vmatprep.mubr.f32.mxu0 0.0
      %6709 = vmatmul.mubr.f32.gmra.mrb[0].mxu0 %v6531
      %v6710 = vpop.f32.mrb[0].mxu0
      %v6711 = vadd.f32 0.0, %v6710
      %v6712 = vpop.f32.mrb[0].mxu0
      %6713 = vmatprep.mubr.f32.mxu0 0.0
      %6714 = vmatmul.mubr.f32.gmra.mrb[0].mxu0 %v6532
      %v6715 = vpop.f32.mrb[0].mxu0
      %v6716 = vadd.f32 0.0, %v6715
      %v6717 = vpop.f32.mrb[0].mxu0
      %6718 = vmatprep.mubr.f32.mxu0 0.0
      %6719 = vmatmul.mubr.f32.gmra.mrb[0].mxu0 %v6533
      %v6720 = vpop.f32.mrb[0].mxu0
      %v6721 = vadd.f32 0.0, %v6720
      %v6722 = vpop.f32.mrb[0].mxu0
      %6723 = vmatprep.mubr.f32.mxu0 0.0
      %6724 = vmatmul.mubr.f32.gmra.mrb[0].mxu0 %v6534
      %v6725 = vpop.f32.mrb[0].mxu0
      %v6726 = vadd.f32 0.0, %v6725
      %v6727 = vpop.f32.mrb[0].mxu0
      %6728 = vmatprep.mubr.f32.mxu0 0.0
      %6729 = vmatmul.mubr.f32.gmra.mrb[0].mxu0 %v6535
      %v6730 = vpop.f32.mrb[0].mxu0
      %v6731 = vadd.f32 0.0, %v6730
      %v6732 = vpop.f32.mrb[0].mxu0
      %6733 = vmatprep.mubr.f32.mxu0 0.0
      %6734 = vmatmul.mubr.f32.gmra.mrb[0].mxu0 %v6536
      %v6735 = vpop.f32.mrb[0].mxu0
      %v6736 = vadd.f32 0.0, %v6735
      %v6737 = vpop.f32.mrb[0].mxu0
      %6738 = vmatprep.mubr.f32.mxu0 0.0
      %6739 = vmatmul.mubr.f32.gmra.mrb[0].mxu0 %v6537
      %v6740 = vpop.f32.mrb[0].mxu0
      %v6741 = vadd.f32 0.0, %v6740
      %v6742 = vpop.f32.mrb[0].mxu0
      %6743 = vmatprep.mubr.f32.mxu0 0.0
      %6744 = vmatmul.mubr.f32.gmra.mrb[0].mxu0 %v6538
      %v6745 = vpop.f32.mrb[0].mxu0
      %v6746 = vadd.f32 0.0, %v6745
      %v6747 = vpop.f32.mrb[0].mxu0
      %6748 = vmatprep.mubr.f32.mxu0 0.0
      %6749 = vmatmul.mubr.f32.gmra.mrb[0].mxu0 %v6539
      %v6750 = vpop.f32.mrb[0].mxu0
      %v6751 = vadd.f32 0.0, %v6750
      %v6752 = vpop.f32.mrb[0].mxu0
      %6753 = vmatprep.mubr.f32.mxu0 0.0
      %6754 = vmatmul.mubr.f32.gmra.mrb[0].mxu0 %v6540
      %v6755 = vpop.f32.mrb[0].mxu0
      %v6756 = vadd.f32 0.0, %v6755
      %v6757 = vpop.f32.mrb[0].mxu0
      %6758 = vmatprep.mubr.f32.mxu0 0.0
      %6759 = vmatmul.mubr.f32.gmra.mrb[0].mxu0 %v6541
      %v6760 = vpop.f32.mrb[0].mxu0
      %v6761 = vadd.f32 0.0, %v6760
      %v6762 = vpop.f32.mrb[0].mxu0
      %6763 = vmatprep.mubr.f32.mxu0 0.0
      %6764 = vmatmul.mubr.f32.gmra.mrb[0].mxu0 %v6542
      %v6765 = vpop.f32.mrb[0].mxu0
      %v6766 = vadd.f32 0.0, %v6765
      %v6767 = vpop.f32.mrb[0].mxu0
      %6768 = vmatprep.mubr.f32.mxu0 0.0
      %6769 = vmatmul.mubr.f32.gmra.mrb[0].mxu0 %v6543
      %v6770 = vpop.f32.mrb[0].mxu0
      %v6771 = vadd.f32 0.0, %v6770
      %v6772 = vpop.f32.mrb[0].mxu0
      %6773 = vmatprep.mubr.f32.mxu0 0.0
      %6774 = vmatmul.mubr.f32.gmra.mrb[0].mxu0 %v6544
      %v6775 = vpop.f32.mrb[0].mxu0
      %v6776 = vadd.f32 0.0, %v6775
      %v6777 = vpop.f32.mrb[0].mxu0
      %6778 = vmatprep.mubr.f32.mxu0 0.0
      %6779 = vmatmul.mubr.f32.gmra.mrb[0].mxu0 %v6545
      %v6780 = vpop.f32.mrb[0].mxu0
      %v6781 = vadd.f32 0.0, %v6780
      %v6782 = vpop.f32.mrb[0].mxu0
      %6783 = vmatprep.mubr.f32.mxu0 0.0
      %6784 = vmatmul.mubr.f32.gmra.mrb[0].mxu0 %v6546
      %v6785 = vpop.f32.mrb[0].mxu0
      %v6786 = vadd.f32 0.0, %v6785
      %v6787 = vpop.f32.mrb[0].mxu0
      %6788 = vmatprep.mubr.f32.mxu0 0.0
      %6789 = vmatmul.mubr.f32.gmra.mrb[0].mxu0 %v6547
      %v6790 = vpop.f32.mrb[0].mxu0
      %v6791 = vadd.f32 0.0, %v6790
      %v6792 = vpop.f32.mrb[0].mxu0
      %6793 = vmatprep.mubr.f32.mxu0 0.0
      %6794 = vmatmul.mubr.f32.gmra.mrb[0].mxu0 %v6548
      %v6795 = vpop.f32.mrb[0].mxu0
      %v6796 = vadd.f32 0.0, %v6795
      %v6797 = vpop.f32.mrb[0].mxu0
      %6798 = vmatprep.mubr.f32.mxu0 0.0
      %6799 = vmatmul.mubr.f32.gmra.mrb[0].mxu0 %v6549
      %v6800 = vpop.f32.mrb[0].mxu0
      %v6801 = vadd.f32 0.0, %v6800
      %v6802 = vpop.f32.mrb[0].mxu0
      %6803 = vmatprep.mubr.f32.mxu0 0.0
      %6804 = vmatmul.mubr.f32.gmra.mrb[0].mxu0 %v6550
      %v6805 = vpop.f32.mrb[0].mxu0
      %v6806 = vadd.f32 0.0, %v6805
      %v6807 = vpop.f32.mrb[0].mxu0
      %6808 = vmatprep.mubr.f32.mxu0 0.0
      %6809 = vmatmul.mubr.f32.gmra.mrb[0].mxu0 %v6551
      %v6810 = vpop.f32.mrb[0].mxu0
      %v6811 = vadd.f32 0.0, %v6810
      %v6812 = vpop.f32.mrb[0].mxu0
      %6813 = vdwg.mxu0
      %v6814 = vadd.f32 %v6480, %v6636
      %v6815 = vadd.f32 %v6481, %v6641
      %v6816 = vadd.f32 %v6482, %v6646
      %v6817 = vadd.f32 %v6483, %v6651
      %v6818 = vadd.f32 %v6484, %v6656
      %v6819 = vadd.f32 %v6485, %v6661
      %v6820 = vadd.f32 %v6486, %v6666
      %v6821 = vadd.f32 %v6487, %v6671
      %v6822 = vadd.f32 %v6488, %v6676
      %v6823 = vadd.f32 %v6489, %v6681
      %v6824 = vadd.f32 %v6490, %v6686
      %v6825 = vadd.f32 %v6491, %v6691
      %v6826 = vadd.f32 %v6492, %v6696
      %v6827 = vadd.f32 %v6493, %v6701
      %v6828 = vadd.f32 %v6494, %v6706
      %v6829 = vadd.f32 %v6495, %v6711
      %v6830 = vadd.f32 %v6496, %v6716
      %v6831 = vadd.f32 %v6497, %v6721
      %v6832 = vadd.f32 %v6498, %v6726
      %v6833 = vadd.f32 %v6499, %v6731
      %v6834 = vadd.f32 %v6500, %v6736
      %v6835 = vadd.f32 %v6501, %v6741
      %v6836 = vadd.f32 %v6502, %v6746
      %v6837 = vadd.f32 %v6503, %v6751
      %v6838 = vadd.f32 %v6504, %v6756
      %v6839 = vadd.f32 %v6505, %v6761
      %v6840 = vadd.f32 %v6506, %v6766
      %v6841 = vadd.f32 %v6507, %v6771
      %v6842 = vadd.f32 %v6508, %v6776
      %v6843 = vadd.f32 %v6509, %v6781
      %v6844 = vadd.f32 %v6510, %v6786
      %v6845 = vadd.f32 %v6511, %v6791
      %v6846 = vadd.f32 %v6512, %v6796
      %v6847 = vadd.f32 %v6513, %v6801
      %v6848 = vadd.f32 %v6514, %v6806
      %v6849 = vadd.f32 %v6515, %v6811
      %v6850 = vld [vmem:[#allocation3 + $0x26] sm:$0xff]
      %v6851 = vld [vmem:[#allocation3 + $0x2e] sm:$0xff]
      %v6852 = vld [vmem:[#allocation3 + $0x36] sm:$0xff]
      %v6853 = vld [vmem:[#allocation3 + $0x3e] sm:$0xff]
      %v6854 = vld [vmem:[#allocation3 + $0x46] sm:$0xff]
      %v6855 = vld [vmem:[#allocation3 + $0x4e] sm:$0xff]
      %v6856 = vld [vmem:[#allocation3 + $0x56] sm:$0xff]
      %v6857 = vld [vmem:[#allocation3 + $0x5e] sm:$0xff]
      %v6858 = vld [vmem:[#allocation3 + $0x66] sm:$0xff]
      %v6859 = vld [vmem:[#allocation3 + $0x6e] sm:$0xff]
      %v6860 = vld [vmem:[#allocation3 + $0x76] sm:$0xff]
      %v6861 = vld [vmem:[#allocation3 + $0x7e] sm:$0xff]
      %v6862 = vld [vmem:[#allocation3 + $0x86] sm:$0xff]
      %v6863 = vld [vmem:[#allocation3 + $0x8e] sm:$0xff]
      %v6864 = vld [vmem:[#allocation3 + $0x96] sm:$0xff]
      %v6865 = vld [vmem:[#allocation3 + $0x9e] sm:$0xff]
      %v6866 = vld [vmem:[#allocation3 + $0xa6] sm:$0xff]
      %v6867 = vld [vmem:[#allocation3 + $0xae] sm:$0xff]
      %v6868 = vld [vmem:[#allocation3 + $0xb6] sm:$0xff]
      %v6869 = vld [vmem:[#allocation3 + $0xbe] sm:$0xff]
      %v6870 = vld [vmem:[#allocation3 + $0xc6] sm:$0xff]
      %v6871 = vld [vmem:[#allocation3 + $0xce] sm:$0xff]
      %v6872 = vld [vmem:[#allocation3 + $0xd6] sm:$0xff]
      %v6873 = vld [vmem:[#allocation3 + $0xde] sm:$0xff]
      %v6874 = vld [vmem:[#allocation3 + $0xe6] sm:$0xff]
      %v6875 = vld [vmem:[#allocation3 + $0xee] sm:$0xff]
      %v6876 = vld [vmem:[#allocation3 + $0xf6] sm:$0xff]
      %v6877 = vld [vmem:[#allocation3 + $0xfe] sm:$0xff]
      %v6878 = vld [vmem:[#allocation3 + $0x106] sm:$0xff]
      %v6879 = vld [vmem:[#allocation3 + $0x10e] sm:$0xff]
      %v6880 = vld [vmem:[#allocation3 + $0x116] sm:$0xff]
      %v6881 = vld [vmem:[#allocation3 + $0x11e] sm:$0xff]
      %v6882 = vld [vmem:[#allocation3 + $0x126] sm:$0xff]
      %v6883 = vld [vmem:[#allocation3 + $0x12e] sm:$0xff]
      %v6884 = vld [vmem:[#allocation3 + $0x136] sm:$0xff]
      %v6885 = vld [vmem:[#allocation3 + $0x13e] sm:$0xff]
      %s6886 = scalar_lea.vmem %s7, 1024
      %v6887 = vld [vmem:[%s6886] sm:$0xff]
      %v6888 = vld [vmem:[%s6886 + $0x8] sm:$0xff]
      %v6889 = vld [vmem:[%s6886 + $0x10] sm:$0xff]
      %v6890 = vld [vmem:[%s6886 + $0x18] sm:$0xff]
      %v6891 = vld [vmem:[%s6886 + $0x20] sm:$0xff]
      %v6892 = vld [vmem:[%s6886 + $0x28] sm:$0xff]
      %v6893 = vld [vmem:[%s6886 + $0x30] sm:$0xff]
      %v6894 = vld [vmem:[%s6886 + $0x38] sm:$0xff]
      %v6895 = vld [vmem:[%s6886 + $0x40] sm:$0xff]
      %v6896 = vld [vmem:[%s6886 + $0x48] sm:$0xff]
      %v6897 = vld [vmem:[%s6886 + $0x50] sm:$0xff]
      %v6898 = vld [vmem:[%s6886 + $0x58] sm:$0xff]
      %v6899 = vld [vmem:[%s6886 + $0x60] sm:$0xff]
      %v6900 = vld [vmem:[%s6886 + $0x68] sm:$0xff]
      %v6901 = vld [vmem:[%s6886 + $0x70] sm:$0xff]
      %v6902 = vld [vmem:[%s6886 + $0x78] sm:$0xff]
      %6903 = vmatprep.subr.mxu0 0.0
      %6904 = vmatpush1.msra.mxu0 %v6887
      %6905 = vmatprep.subr.mxu0 0.0
      %6906 = vmatpush1.msra.mxu0 %v6888
      %6907 = vmatprep.subr.mxu0 0.0
      %6908 = vmatpush1.msra.mxu0 %v6889
      %6909 = vmatprep.subr.mxu0 0.0
      %6910 = vmatpush1.msra.mxu0 %v6890
      %6911 = vmatprep.subr.mxu0 0.0
      %6912 = vmatpush1.msra.mxu0 %v6891
      %6913 = vmatprep.subr.mxu0 0.0
      %6914 = vmatpush1.msra.mxu0 %v6892
      %6915 = vmatprep.subr.mxu0 0.0
      %6916 = vmatpush1.msra.mxu0 %v6893
      %6917 = vmatprep.subr.mxu0 0.0
      %6918 = vmatpush1.msra.mxu0 %v6894
      %6919 = vmatprep.subr.mxu0 0.0
      %6920 = vmatpush1.msra.mxu0 %v6895
      %6921 = vmatprep.subr.mxu0 0.0
      %6922 = vmatpush1.msra.mxu0 %v6896
      %6923 = vmatprep.subr.mxu0 0.0
      %6924 = vmatpush1.msra.mxu0 %v6897
      %6925 = vmatprep.subr.mxu0 0.0
      %6926 = vmatpush1.msra.mxu0 %v6898
      %6927 = vmatprep.subr.mxu0 0.0
      %6928 = vmatpush1.msra.mxu0 %v6899
      %6929 = vmatprep.subr.mxu0 0.0
      %6930 = vmatpush1.msra.mxu0 %v6900
      %6931 = vmatprep.subr.mxu0 0.0
      %6932 = vmatpush1.msra.mxu0 %v6901
      %6933 = vmatprep.subr.mxu0 0.0
      %6934 = vmatpush1.msra.mxu0 %v6902
      %6935 = vmatprep.subr.mxu0 0.0
      %6936 = vmatpush1.msra.mxu0 0.0
      %6937 = vmatprep.subr.mxu0 0.0
      %6938 = vmatpush1.msra.mxu0 0.0
      %6939 = vmatprep.subr.mxu0 0.0
      %6940 = vmatpush1.msra.mxu0 0.0
      %6941 = vmatprep.subr.mxu0 0.0
      %6942 = vmatpush1.msra.mxu0 0.0
      %6943 = vmatprep.subr.mxu0 0.0
      %6944 = vmatpush1.msra.mxu0 0.0
      %6945 = vmatprep.subr.mxu0 0.0
      %6946 = vmatpush1.msra.mxu0 0.0
      %6947 = vmatprep.subr.mxu0 0.0
      %6948 = vmatpush1.msra.mxu0 0.0
      %6949 = vmatprep.subr.mxu0 0.0
      %6950 = vmatpush1.msra.mxu0 0.0
      %6951 = vmatprep.subr.mxu0 0.0
      %6952 = vmatpush1.msra.mxu0 0.0
      %6953 = vmatprep.subr.mxu0 0.0
      %6954 = vmatpush1.msra.mxu0 0.0
      %6955 = vmatprep.subr.mxu0 0.0
      %6956 = vmatpush1.msra.mxu0 0.0
      %6957 = vmatprep.subr.mxu0 0.0
      %6958 = vmatpush1.msra.mxu0 0.0
      %6959 = vmatprep.subr.mxu0 0.0
      %6960 = vmatpush1.msra.mxu0 0.0
      %6961 = vmatprep.subr.mxu0 0.0
      %6962 = vmatpush1.msra.mxu0 0.0
      %6963 = vmatprep.subr.mxu0 0.0
      %6964 = vmatpush1.msra.mxu0 0.0
      %6965 = vmatprep.subr.mxu0 0.0
      %6966 = vmatpush1.msra.mxu0 0.0
      %6967 = vmatprep.mubr.f32.mxu0 0.0
      %6968 = vmatmul.mubr.f32.gmra.mrb[0].mxu0 %v6850
      %v6969 = vpop.f32.mrb[0].mxu0
      %v6970 = vadd.f32 0.0, %v6969
      %v6971 = vpop.f32.mrb[0].mxu0
      %6972 = vmatprep.mubr.f32.mxu0 0.0
      %6973 = vmatmul.mubr.f32.gmra.mrb[0].mxu0 %v6851
      %v6974 = vpop.f32.mrb[0].mxu0
      %v6975 = vadd.f32 0.0, %v6974
      %v6976 = vpop.f32.mrb[0].mxu0
      %6977 = vmatprep.mubr.f32.mxu0 0.0
      %6978 = vmatmul.mubr.f32.gmra.mrb[0].mxu0 %v6852
      %v6979 = vpop.f32.mrb[0].mxu0
      %v6980 = vadd.f32 0.0, %v6979
      %v6981 = vpop.f32.mrb[0].mxu0
      %6982 = vmatprep.mubr.f32.mxu0 0.0
      %6983 = vmatmul.mubr.f32.gmra.mrb[0].mxu0 %v6853
      %v6984 = vpop.f32.mrb[0].mxu0
      %v6985 = vadd.f32 0.0, %v6984
      %v6986 = vpop.f32.mrb[0].mxu0
      %6987 = vmatprep.mubr.f32.mxu0 0.0
      %6988 = vmatmul.mubr.f32.gmra.mrb[0].mxu0 %v6854
      %v6989 = vpop.f32.mrb[0].mxu0
      %v6990 = vadd.f32 0.0, %v6989
      %v6991 = vpop.f32.mrb[0].mxu0
      %6992 = vmatprep.mubr.f32.mxu0 0.0
      %6993 = vmatmul.mubr.f32.gmra.mrb[0].mxu0 %v6855
      %v6994 = vpop.f32.mrb[0].mxu0
      %v6995 = vadd.f32 0.0, %v6994
      %v6996 = vpop.f32.mrb[0].mxu0
      %6997 = vmatprep.mubr.f32.mxu0 0.0
      %6998 = vmatmul.mubr.f32.gmra.mrb[0].mxu0 %v6856
      %v6999 = vpop.f32.mrb[0].mxu0
      %v7000 = vadd.f32 0.0, %v6999
      %v7001 = vpop.f32.mrb[0].mxu0
      %7002 = vmatprep.mubr.f32.mxu0 0.0
      %7003 = vmatmul.mubr.f32.gmra.mrb[0].mxu0 %v6857
      %v7004 = vpop.f32.mrb[0].mxu0
      %v7005 = vadd.f32 0.0, %v7004
      %v7006 = vpop.f32.mrb[0].mxu0
      %7007 = vmatprep.mubr.f32.mxu0 0.0
      %7008 = vmatmul.mubr.f32.gmra.mrb[0].mxu0 %v6858
      %v7009 = vpop.f32.mrb[0].mxu0
      %v7010 = vadd.f32 0.0, %v7009
      %v7011 = vpop.f32.mrb[0].mxu0
      %7012 = vmatprep.mubr.f32.mxu0 0.0
      %7013 = vmatmul.mubr.f32.gmra.mrb[0].mxu0 %v6859
      %v7014 = vpop.f32.mrb[0].mxu0
      %v7015 = vadd.f32 0.0, %v7014
      %v7016 = vpop.f32.mrb[0].mxu0
      %7017 = vmatprep.mubr.f32.mxu0 0.0
      %7018 = vmatmul.mubr.f32.gmra.mrb[0].mxu0 %v6860
      %v7019 = vpop.f32.mrb[0].mxu0
      %v7020 = vadd.f32 0.0, %v7019
      %v7021 = vpop.f32.mrb[0].mxu0
      %7022 = vmatprep.mubr.f32.mxu0 0.0
      %7023 = vmatmul.mubr.f32.gmra.mrb[0].mxu0 %v6861
      %v7024 = vpop.f32.mrb[0].mxu0
      %v7025 = vadd.f32 0.0, %v7024
      %v7026 = vpop.f32.mrb[0].mxu0
      %7027 = vmatprep.mubr.f32.mxu0 0.0
      %7028 = vmatmul.mubr.f32.gmra.mrb[0].mxu0 %v6862
      %v7029 = vpop.f32.mrb[0].mxu0
      %v7030 = vadd.f32 0.0, %v7029
      %v7031 = vpop.f32.mrb[0].mxu0
      %7032 = vmatprep.mubr.f32.mxu0 0.0
      %7033 = vmatmul.mubr.f32.gmra.mrb[0].mxu0 %v6863
      %v7034 = vpop.f32.mrb[0].mxu0
      %v7035 = vadd.f32 0.0, %v7034
      %v7036 = vpop.f32.mrb[0].mxu0
      %7037 = vmatprep.mubr.f32.mxu0 0.0
      %7038 = vmatmul.mubr.f32.gmra.mrb[0].mxu0 %v6864
      %v7039 = vpop.f32.mrb[0].mxu0
      %v7040 = vadd.f32 0.0, %v7039
      %v7041 = vpop.f32.mrb[0].mxu0
      %7042 = vmatprep.mubr.f32.mxu0 0.0
      %7043 = vmatmul.mubr.f32.gmra.mrb[0].mxu0 %v6865
      %v7044 = vpop.f32.mrb[0].mxu0
      %v7045 = vadd.f32 0.0, %v7044
      %v7046 = vpop.f32.mrb[0].mxu0
      %7047 = vmatprep.mubr.f32.mxu0 0.0
      %7048 = vmatmul.mubr.f32.gmra.mrb[0].mxu0 %v6866
      %v7049 = vpop.f32.mrb[0].mxu0
      %v7050 = vadd.f32 0.0, %v7049
      %v7051 = vpop.f32.mrb[0].mxu0
      %7052 = vmatprep.mubr.f32.mxu0 0.0
      %7053 = vmatmul.mubr.f32.gmra.mrb[0].mxu0 %v6867
      %v7054 = vpop.f32.mrb[0].mxu0
      %v7055 = vadd.f32 0.0, %v7054
      %v7056 = vpop.f32.mrb[0].mxu0
      %7057 = vmatprep.mubr.f32.mxu0 0.0
      %7058 = vmatmul.mubr.f32.gmra.mrb[0].mxu0 %v6868
      %v7059 = vpop.f32.mrb[0].mxu0
      %v7060 = vadd.f32 0.0, %v7059
      %v7061 = vpop.f32.mrb[0].mxu0
      %7062 = vmatprep.mubr.f32.mxu0 0.0
      %7063 = vmatmul.mubr.f32.gmra.mrb[0].mxu0 %v6869
      %v7064 = vpop.f32.mrb[0].mxu0
      %v7065 = vadd.f32 0.0, %v7064
      %v7066 = vpop.f32.mrb[0].mxu0
      %7067 = vmatprep.mubr.f32.mxu0 0.0
      %7068 = vmatmul.mubr.f32.gmra.mrb[0].mxu0 %v6870
      %v7069 = vpop.f32.mrb[0].mxu0
      %v7070 = vadd.f32 0.0, %v7069
      %v7071 = vpop.f32.mrb[0].mxu0
      %7072 = vmatprep.mubr.f32.mxu0 0.0
      %7073 = vmatmul.mubr.f32.gmra.mrb[0].mxu0 %v6871
      %v7074 = vpop.f32.mrb[0].mxu0
      %v7075 = vadd.f32 0.0, %v7074
      %v7076 = vpop.f32.mrb[0].mxu0
      %7077 = vmatprep.mubr.f32.mxu0 0.0
      %7078 = vmatmul.mubr.f32.gmra.mrb[0].mxu0 %v6872
      %v7079 = vpop.f32.mrb[0].mxu0
      %v7080 = vadd.f32 0.0, %v7079
      %v7081 = vpop.f32.mrb[0].mxu0
      %7082 = vmatprep.mubr.f32.mxu0 0.0
      %7083 = vmatmul.mubr.f32.gmra.mrb[0].mxu0 %v6873
      %v7084 = vpop.f32.mrb[0].mxu0
      %v7085 = vadd.f32 0.0, %v7084
      %v7086 = vpop.f32.mrb[0].mxu0
      %7087 = vmatprep.mubr.f32.mxu0 0.0
      %7088 = vmatmul.mubr.f32.gmra.mrb[0].mxu0 %v6874
      %v7089 = vpop.f32.mrb[0].mxu0
      %v7090 = vadd.f32 0.0, %v7089
      %v7091 = vpop.f32.mrb[0].mxu0
      %7092 = vmatprep.mubr.f32.mxu0 0.0
      %7093 = vmatmul.mubr.f32.gmra.mrb[0].mxu0 %v6875
      %v7094 = vpop.f32.mrb[0].mxu0
      %v7095 = vadd.f32 0.0, %v7094
      %v7096 = vpop.f32.mrb[0].mxu0
      %7097 = vmatprep.mubr.f32.mxu0 0.0
      %7098 = vmatmul.mubr.f32.gmra.mrb[0].mxu0 %v6876
      %v7099 = vpop.f32.mrb[0].mxu0
      %v7100 = vadd.f32 0.0, %v7099
      %v7101 = vpop.f32.mrb[0].mxu0
      %7102 = vmatprep.mubr.f32.mxu0 0.0
      %7103 = vmatmul.mubr.f32.gmra.mrb[0].mxu0 %v6877
      %v7104 = vpop.f32.mrb[0].mxu0
      %v7105 = vadd.f32 0.0, %v7104
      %v7106 = vpop.f32.mrb[0].mxu0
      %7107 = vmatprep.mubr.f32.mxu0 0.0
      %7108 = vmatmul.mubr.f32.gmra.mrb[0].mxu0 %v6878
      %v7109 = vpop.f32.mrb[0].mxu0
      %v7110 = vadd.f32 0.0, %v7109
      %v7111 = vpop.f32.mrb[0].mxu0
      %7112 = vmatprep.mubr.f32.mxu0 0.0
      %7113 = vmatmul.mubr.f32.gmra.mrb[0].mxu0 %v6879
      %v7114 = vpop.f32.mrb[0].mxu0
      %v7115 = vadd.f32 0.0, %v7114
      %v7116 = vpop.f32.mrb[0].mxu0
      %7117 = vmatprep.mubr.f32.mxu0 0.0
      %7118 = vmatmul.mubr.f32.gmra.mrb[0].mxu0 %v6880
      %v7119 = vpop.f32.mrb[0].mxu0
      %v7120 = vadd.f32 0.0, %v7119
      %v7121 = vpop.f32.mrb[0].mxu0
      %7122 = vmatprep.mubr.f32.mxu0 0.0
      %7123 = vmatmul.mubr.f32.gmra.mrb[0].mxu0 %v6881
      %v7124 = vpop.f32.mrb[0].mxu0
      %v7125 = vadd.f32 0.0, %v7124
      %v7126 = vpop.f32.mrb[0].mxu0
      %7127 = vmatprep.mubr.f32.mxu0 0.0
      %7128 = vmatmul.mubr.f32.gmra.mrb[0].mxu0 %v6882
      %v7129 = vpop.f32.mrb[0].mxu0
      %v7130 = vadd.f32 0.0, %v7129
      %v7131 = vpop.f32.mrb[0].mxu0
      %7132 = vmatprep.mubr.f32.mxu0 0.0
      %7133 = vmatmul.mubr.f32.gmra.mrb[0].mxu0 %v6883
      %v7134 = vpop.f32.mrb[0].mxu0
      %v7135 = vadd.f32 0.0, %v7134
      %v7136 = vpop.f32.mrb[0].mxu0
      %7137 = vmatprep.mubr.f32.mxu0 0.0
      %7138 = vmatmul.mubr.f32.gmra.mrb[0].mxu0 %v6884
      %v7139 = vpop.f32.mrb[0].mxu0
      %v7140 = vadd.f32 0.0, %v7139
      %v7141 = vpop.f32.mrb[0].mxu0
      %7142 = vmatprep.mubr.f32.mxu0 0.0
      %7143 = vmatmul.mubr.f32.gmra.mrb[0].mxu0 %v6885
      %v7144 = vpop.f32.mrb[0].mxu0
      %v7145 = vadd.f32 0.0, %v7144
      %v7146 = vpop.f32.mrb[0].mxu0
      %7147 = vdwg.mxu0
      %v7148 = vadd.f32 %v6814, %v6970
      %v7149 = vadd.f32 %v6815, %v6975
      %v7150 = vadd.f32 %v6816, %v6980
      %v7151 = vadd.f32 %v6817, %v6985
      %v7152 = vadd.f32 %v6818, %v6990
      %v7153 = vadd.f32 %v6819, %v6995
      %v7154 = vadd.f32 %v6820, %v7000
      %v7155 = vadd.f32 %v6821, %v7005
      %v7156 = vadd.f32 %v6822, %v7010
      %v7157 = vadd.f32 %v6823, %v7015
      %v7158 = vadd.f32 %v6824, %v7020
      %v7159 = vadd.f32 %v6825, %v7025
      %v7160 = vadd.f32 %v6826, %v7030
      %v7161 = vadd.f32 %v6827, %v7035
      %v7162 = vadd.f32 %v6828, %v7040
      %v7163 = vadd.f32 %v6829, %v7045
      %v7164 = vadd.f32 %v6830, %v7050
      %v7165 = vadd.f32 %v6831, %v7055
      %v7166 = vadd.f32 %v6832, %v7060
      %v7167 = vadd.f32 %v6833, %v7065
      %v7168 = vadd.f32 %v6834, %v7070
      %v7169 = vadd.f32 %v6835, %v7075
      %v7170 = vadd.f32 %v6836, %v7080
      %v7171 = vadd.f32 %v6837, %v7085
      %v7172 = vadd.f32 %v6838, %v7090
      %v7173 = vadd.f32 %v6839, %v7095
      %v7174 = vadd.f32 %v6840, %v7100
      %v7175 = vadd.f32 %v6841, %v7105
      %v7176 = vadd.f32 %v6842, %v7110
      %v7177 = vadd.f32 %v6843, %v7115
      %v7178 = vadd.f32 %v6844, %v7120
      %v7179 = vadd.f32 %v6845, %v7125
      %v7180 = vadd.f32 %v6846, %v7130
      %v7181 = vadd.f32 %v6847, %v7135
      %v7182 = vadd.f32 %v6848, %v7140
      %v7183 = vadd.f32 %v6849, %v7145
      %v7184 = vld [vmem:[%s8] sm:$0x1]
      %v7186 = vlaneseq
      %v7187 = vshrl.u32 %v7186, 7
      %v7188 = vsub.s32 0, %v7187
      %v7189 = vrot.slane %v7184, %v7188
      %v7191 = vmul.f32 %v7148, %v7189
      %v7192 = vmul.f32 %v7149, %v7189
      %v7193 = vmul.f32 %v7150, %v7189
      %v7194 = vmul.f32 %v7151, %v7189
      %v7195 = vmul.f32 %v7152, %v7189
      %v7196 = vmul.f32 %v7153, %v7189
      %v7197 = vmul.f32 %v7154, %v7189
      %v7198 = vmul.f32 %v7155, %v7189
      %v7199 = vmul.f32 %v7156, %v7189
      %v7200 = vmul.f32 %v7157, %v7189
      %v7201 = vmul.f32 %v7158, %v7189
      %v7202 = vmul.f32 %v7159, %v7189
      %v7203 = vmul.f32 %v7160, %v7189
      %v7204 = vmul.f32 %v7161, %v7189
      %v7205 = vmul.f32 %v7162, %v7189
      %v7206 = vmul.f32 %v7163, %v7189
      %v7207 = vmul.f32 %v7164, %v7189
      %v7208 = vmul.f32 %v7165, %v7189
      %v7209 = vmul.f32 %v7166, %v7189
      %v7210 = vmul.f32 %v7167, %v7189
      %v7211 = vmul.f32 %v7168, %v7189
      %v7212 = vmul.f32 %v7169, %v7189
      %v7213 = vmul.f32 %v7170, %v7189
      %v7214 = vmul.f32 %v7171, %v7189
      %v7215 = vmul.f32 %v7172, %v7189
      %v7216 = vmul.f32 %v7173, %v7189
      %v7217 = vmul.f32 %v7174, %v7189
      %v7218 = vmul.f32 %v7175, %v7189
      %v7219 = vmul.f32 %v7176, %v7189
      %v7220 = vmul.f32 %v7177, %v7189
      %v7221 = vmul.f32 %v7178, %v7189
      %v7222 = vmul.f32 %v7179, %v7189
      %v7223 = vmul.f32 %v7180, %v7189
      %v7224 = vmul.f32 %v7181, %v7189
      %v7225 = vmul.f32 %v7182, %v7189
      %v7226 = vmul.f32 %v7183, %v7189
      %v7227 = vld [vmem:[%s9] sm:$0x1]
      %v7229 = vlaneseq
      %v7230 = vshrl.u32 %v7229, 7
      %v7231 = vsub.s32 0, %v7230
      %v7232 = vrot.slane %v7227, %v7231
      %v7234 = vadd.f32 %v7191, %v7232
      %v7235 = vadd.f32 %v7192, %v7232
      %v7236 = vadd.f32 %v7193, %v7232
      %v7237 = vadd.f32 %v7194, %v7232
      %v7238 = vadd.f32 %v7195, %v7232
      %v7239 = vadd.f32 %v7196, %v7232
      %v7240 = vadd.f32 %v7197, %v7232
      %v7241 = vadd.f32 %v7198, %v7232
      %v7242 = vadd.f32 %v7199, %v7232
      %v7243 = vadd.f32 %v7200, %v7232
      %v7244 = vadd.f32 %v7201, %v7232
      %v7245 = vadd.f32 %v7202, %v7232
      %v7246 = vadd.f32 %v7203, %v7232
      %v7247 = vadd.f32 %v7204, %v7232
      %v7248 = vadd.f32 %v7205, %v7232
      %v7249 = vadd.f32 %v7206, %v7232
      %v7250 = vadd.f32 %v7207, %v7232
      %v7251 = vadd.f32 %v7208, %v7232
      %v7252 = vadd.f32 %v7209, %v7232
      %v7253 = vadd.f32 %v7210, %v7232
      %v7254 = vadd.f32 %v7211, %v7232
      %v7255 = vadd.f32 %v7212, %v7232
      %v7256 = vadd.f32 %v7213, %v7232
      %v7257 = vadd.f32 %v7214, %v7232
      %v7258 = vadd.f32 %v7215, %v7232
      %v7259 = vadd.f32 %v7216, %v7232
      %v7260 = vadd.f32 %v7217, %v7232
      %v7261 = vadd.f32 %v7218, %v7232
      %v7262 = vadd.f32 %v7219, %v7232
      %v7263 = vadd.f32 %v7220, %v7232
      %v7264 = vadd.f32 %v7221, %v7232
      %v7265 = vadd.f32 %v7222, %v7232
      %v7266 = vadd.f32 %v7223, %v7232
      %v7267 = vadd.f32 %v7224, %v7232
      %v7268 = vadd.f32 %v7225, %v7232
      %v7269 = vadd.f32 %v7226, %v7232
      %vm7270 = vcmp.gt.f32.partialorder %v7234, 0.0
      %vm7271 = vcmp.gt.f32.partialorder %v7235, 0.0
      %vm7272 = vcmp.gt.f32.partialorder %v7236, 0.0
      %vm7273 = vcmp.gt.f32.partialorder %v7237, 0.0
      %vm7274 = vcmp.gt.f32.partialorder %v7238, 0.0
      %vm7275 = vcmp.gt.f32.partialorder %v7239, 0.0
      %vm7276 = vcmp.gt.f32.partialorder %v7240, 0.0
      %vm7277 = vcmp.gt.f32.partialorder %v7241, 0.0
      %vm7278 = vcmp.gt.f32.partialorder %v7242, 0.0
      %vm7279 = vcmp.gt.f32.partialorder %v7243, 0.0
      %vm7280 = vcmp.gt.f32.partialorder %v7244, 0.0
      %vm7281 = vcmp.gt.f32.partialorder %v7245, 0.0
      %vm7282 = vcmp.gt.f32.partialorder %v7246, 0.0
      %vm7283 = vcmp.gt.f32.partialorder %v7247, 0.0
      %vm7284 = vcmp.gt.f32.partialorder %v7248, 0.0
      %vm7285 = vcmp.gt.f32.partialorder %v7249, 0.0
      %vm7286 = vcmp.gt.f32.partialorder %v7250, 0.0
      %vm7287 = vcmp.gt.f32.partialorder %v7251, 0.0
      %vm7288 = vcmp.gt.f32.partialorder %v7252, 0.0
      %vm7289 = vcmp.gt.f32.partialorder %v7253, 0.0
      %vm7290 = vcmp.gt.f32.partialorder %v7254, 0.0
      %vm7291 = vcmp.gt.f32.partialorder %v7255, 0.0
      %vm7292 = vcmp.gt.f32.partialorder %v7256, 0.0
      %vm7293 = vcmp.gt.f32.partialorder %v7257, 0.0
      %vm7294 = vcmp.gt.f32.partialorder %v7258, 0.0
      %vm7295 = vcmp.gt.f32.partialorder %v7259, 0.0
      %vm7296 = vcmp.gt.f32.partialorder %v7260, 0.0
      %vm7297 = vcmp.gt.f32.partialorder %v7261, 0.0
      %vm7298 = vcmp.gt.f32.partialorder %v7262, 0.0
      %vm7299 = vcmp.gt.f32.partialorder %v7263, 0.0
      %vm7300 = vcmp.gt.f32.partialorder %v7264, 0.0
      %vm7301 = vcmp.gt.f32.partialorder %v7265, 0.0
      %vm7302 = vcmp.gt.f32.partialorder %v7266, 0.0
      %vm7303 = vcmp.gt.f32.partialorder %v7267, 0.0
      %vm7304 = vcmp.gt.f32.partialorder %v7268, 0.0
      %vm7305 = vcmp.gt.f32.partialorder %v7269, 0.0
      %v7306 = vmul.f32 %v7234, 0.01
      %v7307 = vmul.f32 %v7235, 0.01
      %v7308 = vmul.f32 %v7236, 0.01
      %v7309 = vmul.f32 %v7237, 0.01
      %v7310 = vmul.f32 %v7238, 0.01
      %v7311 = vmul.f32 %v7239, 0.01
      %v7312 = vmul.f32 %v7240, 0.01
      %v7313 = vmul.f32 %v7241, 0.01
      %v7314 = vmul.f32 %v7242, 0.01
      %v7315 = vmul.f32 %v7243, 0.01
      %v7316 = vmul.f32 %v7244, 0.01
      %v7317 = vmul.f32 %v7245, 0.01
      %v7318 = vmul.f32 %v7246, 0.01
      %v7319 = vmul.f32 %v7247, 0.01
      %v7320 = vmul.f32 %v7248, 0.01
      %v7321 = vmul.f32 %v7249, 0.01
      %v7322 = vmul.f32 %v7250, 0.01
      %v7323 = vmul.f32 %v7251, 0.01
      %v7324 = vmul.f32 %v7252, 0.01
      %v7325 = vmul.f32 %v7253, 0.01
      %v7326 = vmul.f32 %v7254, 0.01
      %v7327 = vmul.f32 %v7255, 0.01
      %v7328 = vmul.f32 %v7256, 0.01
      %v7329 = vmul.f32 %v7257, 0.01
      %v7330 = vmul.f32 %v7258, 0.01
      %v7331 = vmul.f32 %v7259, 0.01
      %v7332 = vmul.f32 %v7260, 0.01
      %v7333 = vmul.f32 %v7261, 0.01
      %v7334 = vmul.f32 %v7262, 0.01
      %v7335 = vmul.f32 %v7263, 0.01
      %v7336 = vmul.f32 %v7264, 0.01
      %v7337 = vmul.f32 %v7265, 0.01
      %v7338 = vmul.f32 %v7266, 0.01
      %v7339 = vmul.f32 %v7267, 0.01
      %v7340 = vmul.f32 %v7268, 0.01
      %v7341 = vmul.f32 %v7269, 0.01
      %v7342 = vsel %vm7270, %v7234, %v7306
      %v7343 = vsel %vm7271, %v7235, %v7307
      %v7344 = vsel %vm7272, %v7236, %v7308
      %v7345 = vsel %vm7273, %v7237, %v7309
      %v7346 = vsel %vm7274, %v7238, %v7310
      %v7347 = vsel %vm7275, %v7239, %v7311
      %v7348 = vsel %vm7276, %v7240, %v7312
      %v7349 = vsel %vm7277, %v7241, %v7313
      %v7350 = vsel %vm7278, %v7242, %v7314
      %v7351 = vsel %vm7279, %v7243, %v7315
      %v7352 = vsel %vm7280, %v7244, %v7316
      %v7353 = vsel %vm7281, %v7245, %v7317
      %v7354 = vsel %vm7282, %v7246, %v7318
      %v7355 = vsel %vm7283, %v7247, %v7319
      %v7356 = vsel %vm7284, %v7248, %v7320
      %v7357 = vsel %vm7285, %v7249, %v7321
      %v7358 = vsel %vm7286, %v7250, %v7322
      %v7359 = vsel %vm7287, %v7251, %v7323
      %v7360 = vsel %vm7288, %v7252, %v7324
      %v7361 = vsel %vm7289, %v7253, %v7325
      %v7362 = vsel %vm7290, %v7254, %v7326
      %v7363 = vsel %vm7291, %v7255, %v7327
      %v7364 = vsel %vm7292, %v7256, %v7328
      %v7365 = vsel %vm7293, %v7257, %v7329
      %v7366 = vsel %vm7294, %v7258, %v7330
      %v7367 = vsel %vm7295, %v7259, %v7331
      %v7368 = vsel %vm7296, %v7260, %v7332
      %v7369 = vsel %vm7297, %v7261, %v7333
      %v7370 = vsel %vm7298, %v7262, %v7334
      %v7371 = vsel %vm7299, %v7263, %v7335
      %v7372 = vsel %vm7300, %v7264, %v7336
      %v7373 = vsel %vm7301, %v7265, %v7337
      %v7374 = vsel %vm7302, %v7266, %v7338
      %v7375 = vsel %vm7303, %v7267, %v7339
      %v7376 = vsel %vm7304, %v7268, %v7340
      %v7377 = vsel %vm7305, %v7269, %v7341
      %7378 = vst [vmem:[%s379] sm:$0xff] %v7342
      %7379 = vst [vmem:[%s379 + $0x8] sm:$0xff] %v7343
      %7380 = vst [vmem:[%s379 + $0x10] sm:$0xff] %v7344
      %7381 = vst [vmem:[%s379 + $0x18] sm:$0xff] %v7345
      %7382 = vst [vmem:[%s379 + $0x20] sm:$0xff] %v7346
      %7383 = vst [vmem:[%s379 + $0x28] sm:$0xff] %v7347
      %7384 = vst [vmem:[%s379 + $0x30] sm:$0xff] %v7348
      %7385 = vst [vmem:[%s379 + $0x38] sm:$0xff] %v7349
      %7386 = vst [vmem:[%s379 + $0x40] sm:$0xff] %v7350
      %7387 = vst [vmem:[%s379 + $0x48] sm:$0xff] %v7351
      %7388 = vst [vmem:[%s379 + $0x50] sm:$0xff] %v7352
      %7389 = vst [vmem:[%s379 + $0x58] sm:$0xff] %v7353
      %7390 = vst [vmem:[%s379 + $0x60] sm:$0xff] %v7354
      %7391 = vst [vmem:[%s379 + $0x68] sm:$0xff] %v7355
      %7392 = vst [vmem:[%s379 + $0x70] sm:$0xff] %v7356
      %7393 = vst [vmem:[%s379 + $0x78] sm:$0xff] %v7357
      %7394 = vst [vmem:[%s379 + $0x80] sm:$0xff] %v7358
      %7395 = vst [vmem:[%s379 + $0x88] sm:$0xff] %v7359
      %7396 = vst [vmem:[%s379 + $0x90] sm:$0xff] %v7360
      %7397 = vst [vmem:[%s379 + $0x98] sm:$0xff] %v7361
      %7398 = vst [vmem:[%s379 + $0xa0] sm:$0xff] %v7362
      %7399 = vst [vmem:[%s379 + $0xa8] sm:$0xff] %v7363
      %7400 = vst [vmem:[%s379 + $0xb0] sm:$0xff] %v7364
      %7401 = vst [vmem:[%s379 + $0xb8] sm:$0xff] %v7365
      %7402 = vst [vmem:[%s379 + $0xc0] sm:$0xff] %v7366
      %7403 = vst [vmem:[%s379 + $0xc8] sm:$0xff] %v7367
      %7404 = vst [vmem:[%s379 + $0xd0] sm:$0xff] %v7368
      %7405 = vst [vmem:[%s379 + $0xd8] sm:$0xff] %v7369
      %7406 = vst [vmem:[%s379 + $0xe0] sm:$0xff] %v7370
      %7407 = vst [vmem:[%s379 + $0xe8] sm:$0xff] %v7371
      %7408 = vst [vmem:[%s379 + $0xf0] sm:$0xff] %v7372
      %7409 = vst [vmem:[%s379 + $0xf8] sm:$0xff] %v7373
      %7410 = vst [vmem:[%s379 + $0x100] sm:$0xff] %v7374
      %7411 = vst [vmem:[%s379 + $0x108] sm:$0xff] %v7375
      %7412 = vst [vmem:[%s379 + $0x110] sm:$0xff] %v7376
      %7413 = vst [vmem:[%s379 + $0x118] sm:$0xff] %v7377
      %p7414 = scmp.lt.s32.totalorder %s21, 1
      %s7415 = scalar_select %p7414, %s21, 1
      %s7416 = smul.addr %s7415, 36
      %s7417 = smul.addr %s7416, 8
      %s7418 = scalar_lea.vmem %s10, %s7417
      // Predicated region
      $region61: #{up_forward.1} parent=59 // pred_check
        %p7419 = pneg %p259
      $region62: #{up_forward.1} parent=59 // pred_check_branch
        %7421 = sbr.rel (%p7419) target = $region64
      $region63: #{up_forward.1} parent=59 // pred_region
        _
      $region64: #{up_forward.1} parent=59 // pred_fallthru
        _
    $region60: #{up_forward.1} parent=5 // pred_fallthru
      _
    %p7422 = scmp.le.s32.totalorder 2, %s16
    // Predicated region
    $region65: #{up_forward.1} parent=5 // pred_check
      %p7423 = pneg %p7422
    $region66: #{up_forward.1} parent=5 // pred_check_branch
      %7425 = sbr.rel (%p7423) target = $region68
    $region67: #{up_forward.1} parent=5 // pred_region
      %s7426 = ssub.s32 %s16, 2
      // Predicated region
      $region69: #{up_forward.1} parent=67 // pred_check
        %p7427 = pneg %p265
      $region70: #{up_forward.1} parent=67 // pred_check_branch
        %7429 = sbr.rel (%p7427) target = $region72
      $region71: #{up_forward.1} parent=67 // pred_region
        %p7430 = scmp.lt.s32.totalorder %s22, 1
        %s7431 = scalar_select %p7430, %s22, 1
        %s7432 = smul.addr %s7431, 36
        %s7433 = smul.addr %s7432, 8
        %s7434 = scalar_lea.vmem %s10, %s7433
      $region72: #{up_forward.1} parent=67 // pred_fallthru
        _
    $region68: #{up_forward.1} parent=5 // pred_fallthru
      _
  $region6: #{up_forward.1} parent=0 // loop_footer
    %s20 = sadd.s32 1, %s16
  $region7: #{up_forward.1} parent=0 // loop_footer_branch
    %15 = sbr.rel target = $region3
  $region8: #{up_forward.1} parent=0 // loop_exit
    _

</llo_original>
